<compile_context>
chip_gen: v7x
topology: tpu7x:2x2x1
jax: 0.10.0
libtpu: 0.0.40
codegen_flags: <defaults>
</compile_context>

<pallas_src>
import functools

import jax
import jax.numpy as jnp
import numpy as np
from jax import lax
from jax.experimental import pallas as pl
from jax.experimental.pallas import tpu as pltpu

# ---- model hyperparameters (from the PyTorch module) ----
IN_CHANNELS = 3
OUT_CHANNELS = 16
KERNEL_SIZE = 3
STRIDE = 2
PADDING = 1
OUTPUT_PADDING = 1
SCALING_FACTOR = 2.0


def _fused_conv_kernel(xp_ref, w_ref, b_ref, o_ref, *,
                       cin, kh, kw, cout, ho, wo, upper):
    """One batch element: direct conv over the pre-dilated/padded input + epilogue.

    xp_ref: (1, cin, Hp, Wp)  VMEM      w_ref: (cout, cin*kh*kw)  SMEM (scalars)
    b_ref:  (cout,)           SMEM      o_ref: (1, cout, ho, wo)  VMEM
    """
    kdim = cin * kh * kw
    # in-kernel im2col: the 27 shifted slabs, sliced once from VMEM (no HBM round trip).
    slabs = []
    for ci in range(cin):
        for ky in range(kh):
            for kx in range(kw):
                slabs.append(xp_ref[0, ci, ky:ky + ho, kx:kx + wo])      # (ho, wo) f32
    for co in range(cout):
        acc = w_ref[co, 0] * slabs[0]
        for k in range(1, kdim):
            acc = acc + w_ref[co, k] * slabs[k]
        # + bias, then clamp(0,1) -> *s -> clamp(0,1) -> /s  ==  clip(., 0, min(1, 1/s))
        o_ref[0, co] = jnp.clip(acc + b_ref[co], 0.0, upper).astype(o_ref.dtype)


def prepare_params(weight_t, conv_bias, extra_bias):
    """One-time (parameter-load time) prep — hoisted out of the per-call forward path."""
    cin, cout, kh, kw = weight_t.shape
    # transposed conv == plain conv with spatially flipped, in/out-swapped weight
    w_conv = jnp.transpose(weight_t[:, :, ::-1, ::-1], (1, 0, 2, 3))     # (cout,cin,kh,kw)
    w_flat = w_conv.reshape(cout, cin * kh * kw).astype(jnp.float32)     # k = (ci, ky, kx)
    b_vec = (conv_bias.reshape(-1) + extra_bias.reshape(-1)).astype(jnp.float32)
    return w_flat, b_vec


@functools.partial(jax.jit, static_argnames=("scaling_factor",))
def model_forward(x_nchw, w_flat, b_vec, scaling_factor=SCALING_FACTOR):
    """Equivalent of ModelNew.forward (weights already prepped by prepare_params)."""
    n, cin, h, w = x_nchw.shape
    kh = kw = KERNEL_SIZE
    cout = w_flat.shape[0]

    # conv-transpose == conv over the interior-dilated + edge-padded input.
    # TODO(synk): this stride-2 interior-dilation pad stays as one tiny (~28 KB) lax.pad;
    # there is no clean in-kernel strided-scatter equivalent on TPU.
    p_lo = kh - 1 - PADDING
    p_hi = kh - 1 - PADDING + OUTPUT_PADDING
    xp = lax.pad(x_nchw.astype(jnp.float32), jnp.float32(0.0),
                 ((0, 0, 0), (0, 0, 0),
                  (p_lo, p_hi, STRIDE - 1), (p_lo, p_hi, STRIDE - 1)))   # (N, Cin, 34, 34)
    hp, wp = xp.shape[2], xp.shape[3]
    ho, wo = hp - kh + 1, wp - kw + 1

    upper = min(1.0, 1.0 / float(scaling_factor))   # exact collapse for s >= 1 (s = 2.0)
    kernel = functools.partial(_fused_conv_kernel, cin=cin, kh=kh, kw=kw,
                               cout=cout, ho=ho, wo=wo, upper=upper)
    kdim = cin * kh * kw
    flops = 2 * n * cout * ho * wo * kdim
    bytes_accessed = 4 * (xp.size + n * cout * ho * wo + w_flat.size + b_vec.size)

    return pl.pallas_call(
        kernel,
        out_shape=jax.ShapeDtypeStruct((n, cout, ho, wo), jnp.float32),   # NCHW directly
        grid_spec=pltpu.PrefetchScalarGridSpec(
            num_scalar_prefetch=0,
            grid=(n,),                                    # one batch element per program
            in_specs=[
                pl.BlockSpec((1, cin, hp, wp), lambda i: (i, 0, 0, 0)),   # padded input
                pl.BlockSpec(memory_space=pltpu.MemorySpace.SMEM),        # w_flat scalars
                pl.BlockSpec(memory_space=pltpu.MemorySpace.SMEM),        # b_vec scalars
            ],
            out_specs=pl.BlockSpec((1, cout, ho, wo), lambda i: (i, 0, 0, 0)),
        ),
        compiler_params=pltpu.CompilerParams(dimension_semantics=("parallel",)),
        cost_estimate=pl.CostEstimate(flops=flops, transcendentals=0,
                                      bytes_accessed=bytes_accessed),
    )(xp, w_flat, b_vec)


def _reference(x_nchw, weight_t, conv_bias, extra_bias, scaling_factor):
    """Pure-JAX reference (lhs-dilated conv == conv transpose) with the faithful op chain."""
    kh = KERNEL_SIZE
    w_conv = jnp.transpose(weight_t[:, :, ::-1, ::-1], (1, 0, 2, 3))      # (Cout,Cin,kh,kw)
    p_lo = kh - 1 - PADDING
    p_hi = kh - 1 - PADDING + OUTPUT_PADDING
    y = lax.conv_general_dilated(
        x_nchw, w_conv, window_strides=(1, 1),
        padding=[(p_lo, p_hi), (p_lo, p_hi)],
        lhs_dilation=(STRIDE, STRIDE),
        dimension_numbers=("NCHW", "OIHW", "NCHW"))
    y = y + conv_bias.reshape(1, -1, 1, 1) + extra_bias.reshape(1, -1, 1, 1)
    y = jnp.clip(y, 0.0, 1.0)
    y = y * scaling_factor
    y = jnp.clip(y, 0.0, 1.0)
    return y / scaling_factor


if __name__ == "__main__":
    key = jax.random.PRNGKey(0)
    k_x, k_w, k_cb, k_b = jax.random.split(key, 4)

    N, H, W = 2, 16, 16
    x = jax.random.normal(k_x, (N, IN_CHANNELS, H, W), jnp.float32)

    # deterministic parameter init (shapes per nn.ConvTranspose2d / nn.Parameter)
    fan_in = IN_CHANNELS * KERNEL_SIZE * KERNEL_SIZE
    bound = 1.0 / np.sqrt(fan_in)
    weight_t = jax.random.uniform(
        k_w, (IN_CHANNELS, OUT_CHANNELS, KERNEL_SIZE, KERNEL_SIZE),
        jnp.float32, -bound, bound)
    conv_bias = jax.random.uniform(k_cb, (OUT_CHANNELS,), jnp.float32, -bound, bound)
    extra_bias = jax.random.normal(k_b, (OUT_CHANNELS, 1, 1), jnp.float32)

    # hoisted weight/bias prep — done once, not per forward call
    w_flat, b_vec = prepare_params(weight_t, conv_bias, extra_bias)
    w_flat, b_vec = jax.block_until_ready((w_flat, b_vec))

    out = model_forward(x, w_flat, b_vec, scaling_factor=SCALING_FACTOR)
    out = jax.block_until_ready(out)

    ref = _reference(x, weight_t, conv_bias, extra_bias, SCALING_FACTOR)
    np.testing.assert_allclose(np.asarray(out), np.asarray(ref), atol=1e-4, rtol=1e-4)
    assert out.shape == (N, OUT_CHANNELS, 2 * H, 2 * W)

    print("KERNEL_OK")
</pallas_src>

<mosaic_0001>
module attributes {stable_mosaic.version = 11 : i64} {
  func.func @_fused_conv_kernel(%arg0: i32, %arg1: memref<1x3x34x34xf32, #tpu.memory_space<vmem>>, %arg2: memref<16x27xf32, #tpu.memory_space<smem>>, %arg3: memref<16xf32, #tpu.memory_space<smem>>, %arg4: memref<1x16x32x32xf32, #tpu.memory_space<vmem>>) attributes {dimension_semantics = [#tpu.dimension_semantics<parallel>], iteration_bounds = array<i64: 2>, scalar_prefetch = 0 : i64, scratch_operands = 0 : i64, tpu.core_type = #tpu.core_type<tc>, window_params = [{transform_indices = @transform_0, window_bounds = array<i64: 1, 3, 34, 34>}, {transform_indices = @transform_1, window_bounds = array<i64: 16, 27>}, {transform_indices = @transform_2, window_bounds = array<i64: 16>}, {transform_indices = @transform_3, window_bounds = array<i64: 1, 16, 32, 32>}]} {
    %c0 = arith.constant 0 : index
    %c0_0 = arith.constant 0 : index
    %c0_1 = arith.constant 0 : index
    %c0_2 = arith.constant 0 : index
    %0 = vector.load %arg1[%c0, %c0_0, %c0_1, %c0_2] : memref<1x3x34x34xf32, #tpu.memory_space<vmem>>, vector<1x1x32x32xf32>
    %1 = vector.shape_cast %0 : vector<1x1x32x32xf32> to vector<32x32xf32>
    %c0_3 = arith.constant 0 : index
    %c0_4 = arith.constant 0 : index
    %c0_5 = arith.constant 0 : index
    %c1 = arith.constant 1 : index
    %2 = vector.load %arg1[%c0_3, %c0_4, %c0_5, %c1] : memref<1x3x34x34xf32, #tpu.memory_space<vmem>>, vector<1x1x32x32xf32>
    %3 = vector.shape_cast %2 : vector<1x1x32x32xf32> to vector<32x32xf32>
    %c0_6 = arith.constant 0 : index
    %c0_7 = arith.constant 0 : index
    %c0_8 = arith.constant 0 : index
    %c2 = arith.constant 2 : index
    %4 = vector.load %arg1[%c0_6, %c0_7, %c0_8, %c2] : memref<1x3x34x34xf32, #tpu.memory_space<vmem>>, vector<1x1x32x32xf32>
    %5 = vector.shape_cast %4 : vector<1x1x32x32xf32> to vector<32x32xf32>
    %c0_9 = arith.constant 0 : index
    %c0_10 = arith.constant 0 : index
    %c1_11 = arith.constant 1 : index
    %c0_12 = arith.constant 0 : index
    %6 = vector.load %arg1[%c0_9, %c0_10, %c1_11, %c0_12] : memref<1x3x34x34xf32, #tpu.memory_space<vmem>>, vector<1x1x32x32xf32>
    %7 = vector.shape_cast %6 : vector<1x1x32x32xf32> to vector<32x32xf32>
    %c0_13 = arith.constant 0 : index
    %c0_14 = arith.constant 0 : index
    %c1_15 = arith.constant 1 : index
    %c1_16 = arith.constant 1 : index
    %8 = vector.load %arg1[%c0_13, %c0_14, %c1_15, %c1_16] : memref<1x3x34x34xf32, #tpu.memory_space<vmem>>, vector<1x1x32x32xf32>
    %9 = vector.shape_cast %8 : vector<1x1x32x32xf32> to vector<32x32xf32>
    %c0_17 = arith.constant 0 : index
    %c0_18 = arith.constant 0 : index
    %c1_19 = arith.constant 1 : index
    %c2_20 = arith.constant 2 : index
    %10 = vector.load %arg1[%c0_17, %c0_18, %c1_19, %c2_20] : memref<1x3x34x34xf32, #tpu.memory_space<vmem>>, vector<1x1x32x32xf32>
    %11 = vector.shape_cast %10 : vector<1x1x32x32xf32> to vector<32x32xf32>
    %c0_21 = arith.constant 0 : index
    %c0_22 = arith.constant 0 : index
    %c2_23 = arith.constant 2 : index
    %c0_24 = arith.constant 0 : index
    %12 = vector.load %arg1[%c0_21, %c0_22, %c2_23, %c0_24] : memref<1x3x34x34xf32, #tpu.memory_space<vmem>>, vector<1x1x32x32xf32>
    %13 = vector.shape_cast %12 : vector<1x1x32x32xf32> to vector<32x32xf32>
    %c0_25 = arith.constant 0 : index
    %c0_26 = arith.constant 0 : index
    %c2_27 = arith.constant 2 : index
    %c1_28 = arith.constant 1 : index
    %14 = vector.load %arg1[%c0_25, %c0_26, %c2_27, %c1_28] : memref<1x3x34x34xf32, #tpu.memory_space<vmem>>, vector<1x1x32x32xf32>
    %15 = vector.shape_cast %14 : vector<1x1x32x32xf32> to vector<32x32xf32>
    %c0_29 = arith.constant 0 : index
    %c0_30 = arith.constant 0 : index
    %c2_31 = arith.constant 2 : index
    %c2_32 = arith.constant 2 : index
    %16 = vector.load %arg1[%c0_29, %c0_30, %c2_31, %c2_32] : memref<1x3x34x34xf32, #tpu.memory_space<vmem>>, vector<1x1x32x32xf32>
    %17 = vector.shape_cast %16 : vector<1x1x32x32xf32> to vector<32x32xf32>
    %c0_33 = arith.constant 0 : index
    %c1_34 = arith.constant 1 : index
    %c0_35 = arith.constant 0 : index
    %c0_36 = arith.constant 0 : index
    %18 = vector.load %arg1[%c0_33, %c1_34, %c0_35, %c0_36] : memref<1x3x34x34xf32, #tpu.memory_space<vmem>>, vector<1x1x32x32xf32>
    %19 = vector.shape_cast %18 : vector<1x1x32x32xf32> to vector<32x32xf32>
    %c0_37 = arith.constant 0 : index
    %c1_38 = arith.constant 1 : index
    %c0_39 = arith.constant 0 : index
    %c1_40 = arith.constant 1 : index
    %20 = vector.load %arg1[%c0_37, %c1_38, %c0_39, %c1_40] : memref<1x3x34x34xf32, #tpu.memory_space<vmem>>, vector<1x1x32x32xf32>
    %21 = vector.shape_cast %20 : vector<1x1x32x32xf32> to vector<32x32xf32>
    %c0_41 = arith.constant 0 : index
    %c1_42 = arith.constant 1 : index
    %c0_43 = arith.constant 0 : index
    %c2_44 = arith.constant 2 : index
    %22 = vector.load %arg1[%c0_41, %c1_42, %c0_43, %c2_44] : memref<1x3x34x34xf32, #tpu.memory_space<vmem>>, vector<1x1x32x32xf32>
    %23 = vector.shape_cast %22 : vector<1x1x32x32xf32> to vector<32x32xf32>
    %c0_45 = arith.constant 0 : index
    %c1_46 = arith.constant 1 : index
    %c1_47 = arith.constant 1 : index
    %c0_48 = arith.constant 0 : index
    %24 = vector.load %arg1[%c0_45, %c1_46, %c1_47, %c0_48] : memref<1x3x34x34xf32, #tpu.memory_space<vmem>>, vector<1x1x32x32xf32>
    %25 = vector.shape_cast %24 : vector<1x1x32x32xf32> to vector<32x32xf32>
    %c0_49 = arith.constant 0 : index
    %c1_50 = arith.constant 1 : index
    %c1_51 = arith.constant 1 : index
    %c1_52 = arith.constant 1 : index
    %26 = vector.load %arg1[%c0_49, %c1_50, %c1_51, %c1_52] : memref<1x3x34x34xf32, #tpu.memory_space<vmem>>, vector<1x1x32x32xf32>
    %27 = vector.shape_cast %26 : vector<1x1x32x32xf32> to vector<32x32xf32>
    %c0_53 = arith.constant 0 : index
    %c1_54 = arith.constant 1 : index
    %c1_55 = arith.constant 1 : index
    %c2_56 = arith.constant 2 : index
    %28 = vector.load %arg1[%c0_53, %c1_54, %c1_55, %c2_56] : memref<1x3x34x34xf32, #tpu.memory_space<vmem>>, vector<1x1x32x32xf32>
    %29 = vector.shape_cast %28 : vector<1x1x32x32xf32> to vector<32x32xf32>
    %c0_57 = arith.constant 0 : index
    %c1_58 = arith.constant 1 : index
    %c2_59 = arith.constant 2 : index
    %c0_60 = arith.constant 0 : index
    %30 = vector.load %arg1[%c0_57, %c1_58, %c2_59, %c0_60] : memref<1x3x34x34xf32, #tpu.memory_space<vmem>>, vector<1x1x32x32xf32>
    %31 = vector.shape_cast %30 : vector<1x1x32x32xf32> to vector<32x32xf32>
    %c0_61 = arith.constant 0 : index
    %c1_62 = arith.constant 1 : index
    %c2_63 = arith.constant 2 : index
    %c1_64 = arith.constant 1 : index
    %32 = vector.load %arg1[%c0_61, %c1_62, %c2_63, %c1_64] : memref<1x3x34x34xf32, #tpu.memory_space<vmem>>, vector<1x1x32x32xf32>
    %33 = vector.shape_cast %32 : vector<1x1x32x32xf32> to vector<32x32xf32>
    %c0_65 = arith.constant 0 : index
    %c1_66 = arith.constant 1 : index
    %c2_67 = arith.constant 2 : index
    %c2_68 = arith.constant 2 : index
    %34 = vector.load %arg1[%c0_65, %c1_66, %c2_67, %c2_68] : memref<1x3x34x34xf32, #tpu.memory_space<vmem>>, vector<1x1x32x32xf32>
    %35 = vector.shape_cast %34 : vector<1x1x32x32xf32> to vector<32x32xf32>
    %c0_69 = arith.constant 0 : index
    %c2_70 = arith.constant 2 : index
    %c0_71 = arith.constant 0 : index
    %c0_72 = arith.constant 0 : index
    %36 = vector.load %arg1[%c0_69, %c2_70, %c0_71, %c0_72] : memref<1x3x34x34xf32, #tpu.memory_space<vmem>>, vector<1x1x32x32xf32>
    %37 = vector.shape_cast %36 : vector<1x1x32x32xf32> to vector<32x32xf32>
    %c0_73 = arith.constant 0 : index
    %c2_74 = arith.constant 2 : index
    %c0_75 = arith.constant 0 : index
    %c1_76 = arith.constant 1 : index
    %38 = vector.load %arg1[%c0_73, %c2_74, %c0_75, %c1_76] : memref<1x3x34x34xf32, #tpu.memory_space<vmem>>, vector<1x1x32x32xf32>
    %39 = vector.shape_cast %38 : vector<1x1x32x32xf32> to vector<32x32xf32>
    %c0_77 = arith.constant 0 : index
    %c2_78 = arith.constant 2 : index
    %c0_79 = arith.constant 0 : index
    %c2_80 = arith.constant 2 : index
    %40 = vector.load %arg1[%c0_77, %c2_78, %c0_79, %c2_80] : memref<1x3x34x34xf32, #tpu.memory_space<vmem>>, vector<1x1x32x32xf32>
    %41 = vector.shape_cast %40 : vector<1x1x32x32xf32> to vector<32x32xf32>
    %c0_81 = arith.constant 0 : index
    %c2_82 = arith.constant 2 : index
    %c1_83 = arith.constant 1 : index
    %c0_84 = arith.constant 0 : index
    %42 = vector.load %arg1[%c0_81, %c2_82, %c1_83, %c0_84] : memref<1x3x34x34xf32, #tpu.memory_space<vmem>>, vector<1x1x32x32xf32>
    %43 = vector.shape_cast %42 : vector<1x1x32x32xf32> to vector<32x32xf32>
    %c0_85 = arith.constant 0 : index
    %c2_86 = arith.constant 2 : index
    %c1_87 = arith.constant 1 : index
    %c1_88 = arith.constant 1 : index
    %44 = vector.load %arg1[%c0_85, %c2_86, %c1_87, %c1_88] : memref<1x3x34x34xf32, #tpu.memory_space<vmem>>, vector<1x1x32x32xf32>
    %45 = vector.shape_cast %44 : vector<1x1x32x32xf32> to vector<32x32xf32>
    %c0_89 = arith.constant 0 : index
    %c2_90 = arith.constant 2 : index
    %c1_91 = arith.constant 1 : index
    %c2_92 = arith.constant 2 : index
    %46 = vector.load %arg1[%c0_89, %c2_90, %c1_91, %c2_92] : memref<1x3x34x34xf32, #tpu.memory_space<vmem>>, vector<1x1x32x32xf32>
    %47 = vector.shape_cast %46 : vector<1x1x32x32xf32> to vector<32x32xf32>
    %c0_93 = arith.constant 0 : index
    %c2_94 = arith.constant 2 : index
    %c2_95 = arith.constant 2 : index
    %c0_96 = arith.constant 0 : index
    %48 = vector.load %arg1[%c0_93, %c2_94, %c2_95, %c0_96] : memref<1x3x34x34xf32, #tpu.memory_space<vmem>>, vector<1x1x32x32xf32>
    %49 = vector.shape_cast %48 : vector<1x1x32x32xf32> to vector<32x32xf32>
    %c0_97 = arith.constant 0 : index
    %c2_98 = arith.constant 2 : index
    %c2_99 = arith.constant 2 : index
    %c1_100 = arith.constant 1 : index
    %50 = vector.load %arg1[%c0_97, %c2_98, %c2_99, %c1_100] : memref<1x3x34x34xf32, #tpu.memory_space<vmem>>, vector<1x1x32x32xf32>
    %51 = vector.shape_cast %50 : vector<1x1x32x32xf32> to vector<32x32xf32>
    %c0_101 = arith.constant 0 : index
    %c2_102 = arith.constant 2 : index
    %c2_103 = arith.constant 2 : index
    %c2_104 = arith.constant 2 : index
    %52 = vector.load %arg1[%c0_101, %c2_102, %c2_103, %c2_104] : memref<1x3x34x34xf32, #tpu.memory_space<vmem>>, vector<1x1x32x32xf32>
    %53 = vector.shape_cast %52 : vector<1x1x32x32xf32> to vector<32x32xf32>
    %c0_105 = arith.constant 0 : index
    %c0_106 = arith.constant 0 : index
    %54 = memref.load %arg2[%c0_105, %c0_106] : memref<16x27xf32, #tpu.memory_space<smem>>
    %55 = vector.broadcast %54 : f32 to vector<32x32xf32>
    %56 = arith.mulf %55, %1 : vector<32x32xf32>
    %c0_107 = arith.constant 0 : index
    %c1_108 = arith.constant 1 : index
    %57 = memref.load %arg2[%c0_107, %c1_108] : memref<16x27xf32, #tpu.memory_space<smem>>
    %58 = vector.broadcast %57 : f32 to vector<32x32xf32>
    %59 = arith.mulf %58, %3 : vector<32x32xf32>
    %60 = arith.addf %56, %59 : vector<32x32xf32>
    %c0_109 = arith.constant 0 : index
    %c2_110 = arith.constant 2 : index
    %61 = memref.load %arg2[%c0_109, %c2_110] : memref<16x27xf32, #tpu.memory_space<smem>>
    %62 = vector.broadcast %61 : f32 to vector<32x32xf32>
    %63 = arith.mulf %62, %5 : vector<32x32xf32>
    %64 = arith.addf %60, %63 : vector<32x32xf32>
    %c0_111 = arith.constant 0 : index
    %c3 = arith.constant 3 : index
    %65 = memref.load %arg2[%c0_111, %c3] : memref<16x27xf32, #tpu.memory_space<smem>>
    %66 = vector.broadcast %65 : f32 to vector<32x32xf32>
    %67 = arith.mulf %66, %7 : vector<32x32xf32>
    %68 = arith.addf %64, %67 : vector<32x32xf32>
    %c0_112 = arith.constant 0 : index
    %c4 = arith.constant 4 : index
    %69 = memref.load %arg2[%c0_112, %c4] : memref<16x27xf32, #tpu.memory_space<smem>>
    %70 = vector.broadcast %69 : f32 to vector<32x32xf32>
    %71 = arith.mulf %70, %9 : vector<32x32xf32>
    %72 = arith.addf %68, %71 : vector<32x32xf32>
    %c0_113 = arith.constant 0 : index
    %c5 = arith.constant 5 : index
    %73 = memref.load %arg2[%c0_113, %c5] : memref<16x27xf32, #tpu.memory_space<smem>>
    %74 = vector.broadcast %73 : f32 to vector<32x32xf32>
    %75 = arith.mulf %74, %11 : vector<32x32xf32>
    %76 = arith.addf %72, %75 : vector<32x32xf32>
    %c0_114 = arith.constant 0 : index
    %c6 = arith.constant 6 : index
    %77 = memref.load %arg2[%c0_114, %c6] : memref<16x27xf32, #tpu.memory_space<smem>>
    %78 = vector.broadcast %77 : f32 to vector<32x32xf32>
    %79 = arith.mulf %78, %13 : vector<32x32xf32>
    %80 = arith.addf %76, %79 : vector<32x32xf32>
    %c0_115 = arith.constant 0 : index
    %c7 = arith.constant 7 : index
    %81 = memref.load %arg2[%c0_115, %c7] : memref<16x27xf32, #tpu.memory_space<smem>>
    %82 = vector.broadcast %81 : f32 to vector<32x32xf32>
    %83 = arith.mulf %82, %15 : vector<32x32xf32>
    %84 = arith.addf %80, %83 : vector<32x32xf32>
    %c0_116 = arith.constant 0 : index
    %c8 = arith.constant 8 : index
    %85 = memref.load %arg2[%c0_116, %c8] : memref<16x27xf32, #tpu.memory_space<smem>>
    %86 = vector.broadcast %85 : f32 to vector<32x32xf32>
    %87 = arith.mulf %86, %17 : vector<32x32xf32>
    %88 = arith.addf %84, %87 : vector<32x32xf32>
    %c0_117 = arith.constant 0 : index
    %c9 = arith.constant 9 : index
    %89 = memref.load %arg2[%c0_117, %c9] : memref<16x27xf32, #tpu.memory_space<smem>>
    %90 = vector.broadcast %89 : f32 to vector<32x32xf32>
    %91 = arith.mulf %90, %19 : vector<32x32xf32>
    %92 = arith.addf %88, %91 : vector<32x32xf32>
    %c0_118 = arith.constant 0 : index
    %c10 = arith.constant 10 : index
    %93 = memref.load %arg2[%c0_118, %c10] : memref<16x27xf32, #tpu.memory_space<smem>>
    %94 = vector.broadcast %93 : f32 to vector<32x32xf32>
    %95 = arith.mulf %94, %21 : vector<32x32xf32>
    %96 = arith.addf %92, %95 : vector<32x32xf32>
    %c0_119 = arith.constant 0 : index
    %c11 = arith.constant 11 : index
    %97 = memref.load %arg2[%c0_119, %c11] : memref<16x27xf32, #tpu.memory_space<smem>>
    %98 = vector.broadcast %97 : f32 to vector<32x32xf32>
    %99 = arith.mulf %98, %23 : vector<32x32xf32>
    %100 = arith.addf %96, %99 : vector<32x32xf32>
    %c0_120 = arith.constant 0 : index
    %c12 = arith.constant 12 : index
    %101 = memref.load %arg2[%c0_120, %c12] : memref<16x27xf32, #tpu.memory_space<smem>>
    %102 = vector.broadcast %101 : f32 to vector<32x32xf32>
    %103 = arith.mulf %102, %25 : vector<32x32xf32>
    %104 = arith.addf %100, %103 : vector<32x32xf32>
    %c0_121 = arith.constant 0 : index
    %c13 = arith.constant 13 : index
    %105 = memref.load %arg2[%c0_121, %c13] : memref<16x27xf32, #tpu.memory_space<smem>>
    %106 = vector.broadcast %105 : f32 to vector<32x32xf32>
    %107 = arith.mulf %106, %27 : vector<32x32xf32>
    %108 = arith.addf %104, %107 : vector<32x32xf32>
    %c0_122 = arith.constant 0 : index
    %c14 = arith.constant 14 : index
    %109 = memref.load %arg2[%c0_122, %c14] : memref<16x27xf32, #tpu.memory_space<smem>>
    %110 = vector.broadcast %109 : f32 to vector<32x32xf32>
    %111 = arith.mulf %110, %29 : vector<32x32xf32>
    %112 = arith.addf %108, %111 : vector<32x32xf32>
    %c0_123 = arith.constant 0 : index
    %c15 = arith.constant 15 : index
    %113 = memref.load %arg2[%c0_123, %c15] : memref<16x27xf32, #tpu.memory_space<smem>>
    %114 = vector.broadcast %113 : f32 to vector<32x32xf32>
    %115 = arith.mulf %114, %31 : vector<32x32xf32>
    %116 = arith.addf %112, %115 : vector<32x32xf32>
    %c0_124 = arith.constant 0 : index
    %c16 = arith.constant 16 : index
    %117 = memref.load %arg2[%c0_124, %c16] : memref<16x27xf32, #tpu.memory_space<smem>>
    %118 = vector.broadcast %117 : f32 to vector<32x32xf32>
    %119 = arith.mulf %118, %33 : vector<32x32xf32>
    %120 = arith.addf %116, %119 : vector<32x32xf32>
    %c0_125 = arith.constant 0 : index
    %c17 = arith.constant 17 : index
    %121 = memref.load %arg2[%c0_125, %c17] : memref<16x27xf32, #tpu.memory_space<smem>>
    %122 = vector.broadcast %121 : f32 to vector<32x32xf32>
    %123 = arith.mulf %122, %35 : vector<32x32xf32>
    %124 = arith.addf %120, %123 : vector<32x32xf32>
    %c0_126 = arith.constant 0 : index
    %c18 = arith.constant 18 : index
    %125 = memref.load %arg2[%c0_126, %c18] : memref<16x27xf32, #tpu.memory_space<smem>>
    %126 = vector.broadcast %125 : f32 to vector<32x32xf32>
    %127 = arith.mulf %126, %37 : vector<32x32xf32>
    %128 = arith.addf %124, %127 : vector<32x32xf32>
    %c0_127 = arith.constant 0 : index
    %c19 = arith.constant 19 : index
    %129 = memref.load %arg2[%c0_127, %c19] : memref<16x27xf32, #tpu.memory_space<smem>>
    %130 = vector.broadcast %129 : f32 to vector<32x32xf32>
    %131 = arith.mulf %130, %39 : vector<32x32xf32>
    %132 = arith.addf %128, %131 : vector<32x32xf32>
    %c0_128 = arith.constant 0 : index
    %c20 = arith.constant 20 : index
    %133 = memref.load %arg2[%c0_128, %c20] : memref<16x27xf32, #tpu.memory_space<smem>>
    %134 = vector.broadcast %133 : f32 to vector<32x32xf32>
    %135 = arith.mulf %134, %41 : vector<32x32xf32>
    %136 = arith.addf %132, %135 : vector<32x32xf32>
    %c0_129 = arith.constant 0 : index
    %c21 = arith.constant 21 : index
    %137 = memref.load %arg2[%c0_129, %c21] : memref<16x27xf32, #tpu.memory_space<smem>>
    %138 = vector.broadcast %137 : f32 to vector<32x32xf32>
    %139 = arith.mulf %138, %43 : vector<32x32xf32>
    %140 = arith.addf %136, %139 : vector<32x32xf32>
    %c0_130 = arith.constant 0 : index
    %c22 = arith.constant 22 : index
    %141 = memref.load %arg2[%c0_130, %c22] : memref<16x27xf32, #tpu.memory_space<smem>>
    %142 = vector.broadcast %141 : f32 to vector<32x32xf32>
    %143 = arith.mulf %142, %45 : vector<32x32xf32>
    %144 = arith.addf %140, %143 : vector<32x32xf32>
    %c0_131 = arith.constant 0 : index
    %c23 = arith.constant 23 : index
    %145 = memref.load %arg2[%c0_131, %c23] : memref<16x27xf32, #tpu.memory_space<smem>>
    %146 = vector.broadcast %145 : f32 to vector<32x32xf32>
    %147 = arith.mulf %146, %47 : vector<32x32xf32>
    %148 = arith.addf %144, %147 : vector<32x32xf32>
    %c0_132 = arith.constant 0 : index
    %c24 = arith.constant 24 : index
    %149 = memref.load %arg2[%c0_132, %c24] : memref<16x27xf32, #tpu.memory_space<smem>>
    %150 = vector.broadcast %149 : f32 to vector<32x32xf32>
    %151 = arith.mulf %150, %49 : vector<32x32xf32>
    %152 = arith.addf %148, %151 : vector<32x32xf32>
    %c0_133 = arith.constant 0 : index
    %c25 = arith.constant 25 : index
    %153 = memref.load %arg2[%c0_133, %c25] : memref<16x27xf32, #tpu.memory_space<smem>>
    %154 = vector.broadcast %153 : f32 to vector<32x32xf32>
    %155 = arith.mulf %154, %51 : vector<32x32xf32>
    %156 = arith.addf %152, %155 : vector<32x32xf32>
    %c0_134 = arith.constant 0 : index
    %c26 = arith.constant 26 : index
    %157 = memref.load %arg2[%c0_134, %c26] : memref<16x27xf32, #tpu.memory_space<smem>>
    %158 = vector.broadcast %157 : f32 to vector<32x32xf32>
    %159 = arith.mulf %158, %53 : vector<32x32xf32>
    %160 = arith.addf %156, %159 : vector<32x32xf32>
    %c0_135 = arith.constant 0 : index
    %161 = memref.load %arg3[%c0_135] : memref<16xf32, #tpu.memory_space<smem>>
    %162 = vector.broadcast %161 : f32 to vector<32x32xf32>
    %163 = arith.addf %160, %162 : vector<32x32xf32>
    %cst = arith.constant 0.000000e+00 : f32
    %cst_136 = arith.constant 5.000000e-01 : f32
    %164 = vector.broadcast %cst : f32 to vector<32x32xf32>
    %165 = arith.maximumf %164, %163 : vector<32x32xf32>
    %166 = vector.broadcast %cst_136 : f32 to vector<32x32xf32>
    %167 = arith.minimumf %166, %165 : vector<32x32xf32>
    %c0_137 = arith.constant 0 : index
    %c0_138 = arith.constant 0 : index
    %c0_139 = arith.constant 0 : index
    %c0_140 = arith.constant 0 : index
    %168 = vector.load %arg4[%c0_137, %c0_138, %c0_139, %c0_140] : memref<1x16x32x32xf32, #tpu.memory_space<vmem>>, vector<1x1x32x32xf32>
    %169 = vector.shape_cast %168 : vector<1x1x32x32xf32> to vector<32x32xf32>
    %170 = vector.shape_cast %167 : vector<32x32xf32> to vector<1x1x32x32xf32>
    tpu.vector_store %arg4[%c0_137, %c0_138, %c0_139, %c0_140], %170 {strides = array<i32>} : memref<1x16x32x32xf32, #tpu.memory_space<vmem>>, vector<1x1x32x32xf32>,
    %c1_141 = arith.constant 1 : index
    %c0_142 = arith.constant 0 : index
    %171 = memref.load %arg2[%c1_141, %c0_142] : memref<16x27xf32, #tpu.memory_space<smem>>
    %172 = vector.broadcast %171 : f32 to vector<32x32xf32>
    %173 = arith.mulf %172, %1 : vector<32x32xf32>
    %c1_143 = arith.constant 1 : index
    %c1_144 = arith.constant 1 : index
    %174 = memref.load %arg2[%c1_143, %c1_144] : memref<16x27xf32, #tpu.memory_space<smem>>
    %175 = vector.broadcast %174 : f32 to vector<32x32xf32>
    %176 = arith.mulf %175, %3 : vector<32x32xf32>
    %177 = arith.addf %173, %176 : vector<32x32xf32>
    %c1_145 = arith.constant 1 : index
    %c2_146 = arith.constant 2 : index
    %178 = memref.load %arg2[%c1_145, %c2_146] : memref<16x27xf32, #tpu.memory_space<smem>>
    %179 = vector.broadcast %178 : f32 to vector<32x32xf32>
    %180 = arith.mulf %179, %5 : vector<32x32xf32>
    %181 = arith.addf %177, %180 : vector<32x32xf32>
    %c1_147 = arith.constant 1 : index
    %c3_148 = arith.constant 3 : index
    %182 = memref.load %arg2[%c1_147, %c3_148] : memref<16x27xf32, #tpu.memory_space<smem>>
    %183 = vector.broadcast %182 : f32 to vector<32x32xf32>
    %184 = arith.mulf %183, %7 : vector<32x32xf32>
    %185 = arith.addf %181, %184 : vector<32x32xf32>
    %c1_149 = arith.constant 1 : index
    %c4_150 = arith.constant 4 : index
    %186 = memref.load %arg2[%c1_149, %c4_150] : memref<16x27xf32, #tpu.memory_space<smem>>
    %187 = vector.broadcast %186 : f32 to vector<32x32xf32>
    %188 = arith.mulf %187, %9 : vector<32x32xf32>
    %189 = arith.addf %185, %188 : vector<32x32xf32>
    %c1_151 = arith.constant 1 : index
    %c5_152 = arith.constant 5 : index
    %190 = memref.load %arg2[%c1_151, %c5_152] : memref<16x27xf32, #tpu.memory_space<smem>>
    %191 = vector.broadcast %190 : f32 to vector<32x32xf32>
    %192 = arith.mulf %191, %11 : vector<32x32xf32>
    %193 = arith.addf %189, %192 : vector<32x32xf32>
    %c1_153 = arith.constant 1 : index
    %c6_154 = arith.constant 6 : index
    %194 = memref.load %arg2[%c1_153, %c6_154] : memref<16x27xf32, #tpu.memory_space<smem>>
    %195 = vector.broadcast %194 : f32 to vector<32x32xf32>
    %196 = arith.mulf %195, %13 : vector<32x32xf32>
    %197 = arith.addf %193, %196 : vector<32x32xf32>
    %c1_155 = arith.constant 1 : index
    %c7_156 = arith.constant 7 : index
    %198 = memref.load %arg2[%c1_155, %c7_156] : memref<16x27xf32, #tpu.memory_space<smem>>
    %199 = vector.broadcast %198 : f32 to vector<32x32xf32>
    %200 = arith.mulf %199, %15 : vector<32x32xf32>
    %201 = arith.addf %197, %200 : vector<32x32xf32>
    %c1_157 = arith.constant 1 : index
    %c8_158 = arith.constant 8 : index
    %202 = memref.load %arg2[%c1_157, %c8_158] : memref<16x27xf32, #tpu.memory_space<smem>>
    %203 = vector.broadcast %202 : f32 to vector<32x32xf32>
    %204 = arith.mulf %203, %17 : vector<32x32xf32>
    %205 = arith.addf %201, %204 : vector<32x32xf32>
    %c1_159 = arith.constant 1 : index
    %c9_160 = arith.constant 9 : index
    %206 = memref.load %arg2[%c1_159, %c9_160] : memref<16x27xf32, #tpu.memory_space<smem>>
    %207 = vector.broadcast %206 : f32 to vector<32x32xf32>
    %208 = arith.mulf %207, %19 : vector<32x32xf32>
    %209 = arith.addf %205, %208 : vector<32x32xf32>
    %c1_161 = arith.constant 1 : index
    %c10_162 = arith.constant 10 : index
    %210 = memref.load %arg2[%c1_161, %c10_162] : memref<16x27xf32, #tpu.memory_space<smem>>
    %211 = vector.broadcast %210 : f32 to vector<32x32xf32>
    %212 = arith.mulf %211, %21 : vector<32x32xf32>
    %213 = arith.addf %209, %212 : vector<32x32xf32>
    %c1_163 = arith.constant 1 : index
    %c11_164 = arith.constant 11 : index
    %214 = memref.load %arg2[%c1_163, %c11_164] : memref<16x27xf32, #tpu.memory_space<smem>>
    %215 = vector.broadcast %214 : f32 to vector<32x32xf32>
    %216 = arith.mulf %215, %23 : vector<32x32xf32>
    %217 = arith.addf %213, %216 : vector<32x32xf32>
    %c1_165 = arith.constant 1 : index
    %c12_166 = arith.constant 12 : index
    %218 = memref.load %arg2[%c1_165, %c12_166] : memref<16x27xf32, #tpu.memory_space<smem>>
    %219 = vector.broadcast %218 : f32 to vector<32x32xf32>
    %220 = arith.mulf %219, %25 : vector<32x32xf32>
    %221 = arith.addf %217, %220 : vector<32x32xf32>
    %c1_167 = arith.constant 1 : index
    %c13_168 = arith.constant 13 : index
    %222 = memref.load %arg2[%c1_167, %c13_168] : memref<16x27xf32, #tpu.memory_space<smem>>
    %223 = vector.broadcast %222 : f32 to vector<32x32xf32>
    %224 = arith.mulf %223, %27 : vector<32x32xf32>
    %225 = arith.addf %221, %224 : vector<32x32xf32>
    %c1_169 = arith.constant 1 : index
    %c14_170 = arith.constant 14 : index
    %226 = memref.load %arg2[%c1_169, %c14_170] : memref<16x27xf32, #tpu.memory_space<smem>>
    %227 = vector.broadcast %226 : f32 to vector<32x32xf32>
    %228 = arith.mulf %227, %29 : vector<32x32xf32>
    %229 = arith.addf %225, %228 : vector<32x32xf32>
    %c1_171 = arith.constant 1 : index
    %c15_172 = arith.constant 15 : index
    %230 = memref.load %arg2[%c1_171, %c15_172] : memref<16x27xf32, #tpu.memory_space<smem>>
    %231 = vector.broadcast %230 : f32 to vector<32x32xf32>
    %232 = arith.mulf %231, %31 : vector<32x32xf32>
    %233 = arith.addf %229, %232 : vector<32x32xf32>
    %c1_173 = arith.constant 1 : index
    %c16_174 = arith.constant 16 : index
    %234 = memref.load %arg2[%c1_173, %c16_174] : memref<16x27xf32, #tpu.memory_space<smem>>
    %235 = vector.broadcast %234 : f32 to vector<32x32xf32>
    %236 = arith.mulf %235, %33 : vector<32x32xf32>
    %237 = arith.addf %233, %236 : vector<32x32xf32>
    %c1_175 = arith.constant 1 : index
    %c17_176 = arith.constant 17 : index
    %238 = memref.load %arg2[%c1_175, %c17_176] : memref<16x27xf32, #tpu.memory_space<smem>>
    %239 = vector.broadcast %238 : f32 to vector<32x32xf32>
    %240 = arith.mulf %239, %35 : vector<32x32xf32>
    %241 = arith.addf %237, %240 : vector<32x32xf32>
    %c1_177 = arith.constant 1 : index
    %c18_178 = arith.constant 18 : index
    %242 = memref.load %arg2[%c1_177, %c18_178] : memref<16x27xf32, #tpu.memory_space<smem>>
    %243 = vector.broadcast %242 : f32 to vector<32x32xf32>
    %244 = arith.mulf %243, %37 : vector<32x32xf32>
    %245 = arith.addf %241, %244 : vector<32x32xf32>
    %c1_179 = arith.constant 1 : index
    %c19_180 = arith.constant 19 : index
    %246 = memref.load %arg2[%c1_179, %c19_180] : memref<16x27xf32, #tpu.memory_space<smem>>
    %247 = vector.broadcast %246 : f32 to vector<32x32xf32>
    %248 = arith.mulf %247, %39 : vector<32x32xf32>
    %249 = arith.addf %245, %248 : vector<32x32xf32>
    %c1_181 = arith.constant 1 : index
    %c20_182 = arith.constant 20 : index
    %250 = memref.load %arg2[%c1_181, %c20_182] : memref<16x27xf32, #tpu.memory_space<smem>>
    %251 = vector.broadcast %250 : f32 to vector<32x32xf32>
    %252 = arith.mulf %251, %41 : vector<32x32xf32>
    %253 = arith.addf %249, %252 : vector<32x32xf32>
    %c1_183 = arith.constant 1 : index
    %c21_184 = arith.constant 21 : index
    %254 = memref.load %arg2[%c1_183, %c21_184] : memref<16x27xf32, #tpu.memory_space<smem>>
    %255 = vector.broadcast %254 : f32 to vector<32x32xf32>
    %256 = arith.mulf %255, %43 : vector<32x32xf32>
    %257 = arith.addf %253, %256 : vector<32x32xf32>
    %c1_185 = arith.constant 1 : index
    %c22_186 = arith.constant 22 : index
    %258 = memref.load %arg2[%c1_185, %c22_186] : memref<16x27xf32, #tpu.memory_space<smem>>
    %259 = vector.broadcast %258 : f32 to vector<32x32xf32>
    %260 = arith.mulf %259, %45 : vector<32x32xf32>
    %261 = arith.addf %257, %260 : vector<32x32xf32>
    %c1_187 = arith.constant 1 : index
    %c23_188 = arith.constant 23 : index
    %262 = memref.load %arg2[%c1_187, %c23_188] : memref<16x27xf32, #tpu.memory_space<smem>>
    %263 = vector.broadcast %262 : f32 to vector<32x32xf32>
    %264 = arith.mulf %263, %47 : vector<32x32xf32>
    %265 = arith.addf %261, %264 : vector<32x32xf32>
    %c1_189 = arith.constant 1 : index
    %c24_190 = arith.constant 24 : index
    %266 = memref.load %arg2[%c1_189, %c24_190] : memref<16x27xf32, #tpu.memory_space<smem>>
    %267 = vector.broadcast %266 : f32 to vector<32x32xf32>
    %268 = arith.mulf %267, %49 : vector<32x32xf32>
    %269 = arith.addf %265, %268 : vector<32x32xf32>
    %c1_191 = arith.constant 1 : index
    %c25_192 = arith.constant 25 : index
    %270 = memref.load %arg2[%c1_191, %c25_192] : memref<16x27xf32, #tpu.memory_space<smem>>
    %271 = vector.broadcast %270 : f32 to vector<32x32xf32>
    %272 = arith.mulf %271, %51 : vector<32x32xf32>
    %273 = arith.addf %269, %272 : vector<32x32xf32>
    %c1_193 = arith.constant 1 : index
    %c26_194 = arith.constant 26 : index
    %274 = memref.load %arg2[%c1_193, %c26_194] : memref<16x27xf32, #tpu.memory_space<smem>>
    %275 = vector.broadcast %274 : f32 to vector<32x32xf32>
    %276 = arith.mulf %275, %53 : vector<32x32xf32>
    %277 = arith.addf %273, %276 : vector<32x32xf32>
    %c1_195 = arith.constant 1 : index
    %278 = memref.load %arg3[%c1_195] : memref<16xf32, #tpu.memory_space<smem>>
    %279 = vector.broadcast %278 : f32 to vector<32x32xf32>
    %280 = arith.addf %277, %279 : vector<32x32xf32>
    %cst_196 = arith.constant 0.000000e+00 : f32
    %cst_197 = arith.constant 5.000000e-01 : f32
    %281 = vector.broadcast %cst_196 : f32 to vector<32x32xf32>
    %282 = arith.maximumf %281, %280 : vector<32x32xf32>
    %283 = vector.broadcast %cst_197 : f32 to vector<32x32xf32>
    %284 = arith.minimumf %283, %282 : vector<32x32xf32>
    %c0_198 = arith.constant 0 : index
    %c1_199 = arith.constant 1 : index
    %c0_200 = arith.constant 0 : index
    %c0_201 = arith.constant 0 : index
    %285 = vector.load %arg4[%c0_198, %c1_199, %c0_200, %c0_201] : memref<1x16x32x32xf32, #tpu.memory_space<vmem>>, vector<1x1x32x32xf32>
    %286 = vector.shape_cast %285 : vector<1x1x32x32xf32> to vector<32x32xf32>
    %287 = vector.shape_cast %284 : vector<32x32xf32> to vector<1x1x32x32xf32>
    tpu.vector_store %arg4[%c0_198, %c1_199, %c0_200, %c0_201], %287 {strides = array<i32>} : memref<1x16x32x32xf32, #tpu.memory_space<vmem>>, vector<1x1x32x32xf32>,
    %c2_202 = arith.constant 2 : index
    %c0_203 = arith.constant 0 : index
    %288 = memref.load %arg2[%c2_202, %c0_203] : memref<16x27xf32, #tpu.memory_space<smem>>
    %289 = vector.broadcast %288 : f32 to vector<32x32xf32>
    %290 = arith.mulf %289, %1 : vector<32x32xf32>
    %c2_204 = arith.constant 2 : index
    %c1_205 = arith.constant 1 : index
    %291 = memref.load %arg2[%c2_204, %c1_205] : memref<16x27xf32, #tpu.memory_space<smem>>
    %292 = vector.broadcast %291 : f32 to vector<32x32xf32>
    %293 = arith.mulf %292, %3 : vector<32x32xf32>
    %294 = arith.addf %290, %293 : vector<32x32xf32>
    %c2_206 = arith.constant 2 : index
    %c2_207 = arith.constant 2 : index
    %295 = memref.load %arg2[%c2_206, %c2_207] : memref<16x27xf32, #tpu.memory_space<smem>>
    %296 = vector.broadcast %295 : f32 to vector<32x32xf32>
    %297 = arith.mulf %296, %5 : vector<32x32xf32>
    %298 = arith.addf %294, %297 : vector<32x32xf32>
    %c2_208 = arith.constant 2 : index
    %c3_209 = arith.constant 3 : index
    %299 = memref.load %arg2[%c2_208, %c3_209] : memref<16x27xf32, #tpu.memory_space<smem>>
    %300 = vector.broadcast %299 : f32 to vector<32x32xf32>
    %301 = arith.mulf %300, %7 : vector<32x32xf32>
    %302 = arith.addf %298, %301 : vector<32x32xf32>
    %c2_210 = arith.constant 2 : index
    %c4_211 = arith.constant 4 : index
    %303 = memref.load %arg2[%c2_210, %c4_211] : memref<16x27xf32, #tpu.memory_space<smem>>
    %304 = vector.broadcast %303 : f32 to vector<32x32xf32>
    %305 = arith.mulf %304, %9 : vector<32x32xf32>
    %306 = arith.addf %302, %305 : vector<32x32xf32>
    %c2_212 = arith.constant 2 : index
    %c5_213 = arith.constant 5 : index
    %307 = memref.load %arg2[%c2_212, %c5_213] : memref<16x27xf32, #tpu.memory_space<smem>>
    %308 = vector.broadcast %307 : f32 to vector<32x32xf32>
    %309 = arith.mulf %308, %11 : vector<32x32xf32>
    %310 = arith.addf %306, %309 : vector<32x32xf32>
    %c2_214 = arith.constant 2 : index
    %c6_215 = arith.constant 6 : index
    %311 = memref.load %arg2[%c2_214, %c6_215] : memref<16x27xf32, #tpu.memory_space<smem>>
    %312 = vector.broadcast %311 : f32 to vector<32x32xf32>
    %313 = arith.mulf %312, %13 : vector<32x32xf32>
    %314 = arith.addf %310, %313 : vector<32x32xf32>
    %c2_216 = arith.constant 2 : index
    %c7_217 = arith.constant 7 : index
    %315 = memref.load %arg2[%c2_216, %c7_217] : memref<16x27xf32, #tpu.memory_space<smem>>
    %316 = vector.broadcast %315 : f32 to vector<32x32xf32>
    %317 = arith.mulf %316, %15 : vector<32x32xf32>
    %318 = arith.addf %314, %317 : vector<32x32xf32>
    %c2_218 = arith.constant 2 : index
    %c8_219 = arith.constant 8 : index
    %319 = memref.load %arg2[%c2_218, %c8_219] : memref<16x27xf32, #tpu.memory_space<smem>>
    %320 = vector.broadcast %319 : f32 to vector<32x32xf32>
    %321 = arith.mulf %320, %17 : vector<32x32xf32>
    %322 = arith.addf %318, %321 : vector<32x32xf32>
    %c2_220 = arith.constant 2 : index
    %c9_221 = arith.constant 9 : index
    %323 = memref.load %arg2[%c2_220, %c9_221] : memref<16x27xf32, #tpu.memory_space<smem>>
    %324 = vector.broadcast %323 : f32 to vector<32x32xf32>
    %325 = arith.mulf %324, %19 : vector<32x32xf32>
    %326 = arith.addf %322, %325 : vector<32x32xf32>
    %c2_222 = arith.constant 2 : index
    %c10_223 = arith.constant 10 : index
    %327 = memref.load %arg2[%c2_222, %c10_223] : memref<16x27xf32, #tpu.memory_space<smem>>
    %328 = vector.broadcast %327 : f32 to vector<32x32xf32>
    %329 = arith.mulf %328, %21 : vector<32x32xf32>
    %330 = arith.addf %326, %329 : vector<32x32xf32>
    %c2_224 = arith.constant 2 : index
    %c11_225 = arith.constant 11 : index
    %331 = memref.load %arg2[%c2_224, %c11_225] : memref<16x27xf32, #tpu.memory_space<smem>>
    %332 = vector.broadcast %331 : f32 to vector<32x32xf32>
    %333 = arith.mulf %332, %23 : vector<32x32xf32>
    %334 = arith.addf %330, %333 : vector<32x32xf32>
    %c2_226 = arith.constant 2 : index
    %c12_227 = arith.constant 12 : index
    %335 = memref.load %arg2[%c2_226, %c12_227] : memref<16x27xf32, #tpu.memory_space<smem>>
    %336 = vector.broadcast %335 : f32 to vector<32x32xf32>
    %337 = arith.mulf %336, %25 : vector<32x32xf32>
    %338 = arith.addf %334, %337 : vector<32x32xf32>
    %c2_228 = arith.constant 2 : index
    %c13_229 = arith.constant 13 : index
    %339 = memref.load %arg2[%c2_228, %c13_229] : memref<16x27xf32, #tpu.memory_space<smem>>
    %340 = vector.broadcast %339 : f32 to vector<32x32xf32>
    %341 = arith.mulf %340, %27 : vector<32x32xf32>
    %342 = arith.addf %338, %341 : vector<32x32xf32>
    %c2_230 = arith.constant 2 : index
    %c14_231 = arith.constant 14 : index
    %343 = memref.load %arg2[%c2_230, %c14_231] : memref<16x27xf32, #tpu.memory_space<smem>>
    %344 = vector.broadcast %343 : f32 to vector<32x32xf32>
    %345 = arith.mulf %344, %29 : vector<32x32xf32>
    %346 = arith.addf %342, %345 : vector<32x32xf32>
    %c2_232 = arith.constant 2 : index
    %c15_233 = arith.constant 15 : index
    %347 = memref.load %arg2[%c2_232, %c15_233] : memref<16x27xf32, #tpu.memory_space<smem>>
    %348 = vector.broadcast %347 : f32 to vector<32x32xf32>
    %349 = arith.mulf %348, %31 : vector<32x32xf32>
    %350 = arith.addf %346, %349 : vector<32x32xf32>
    %c2_234 = arith.constant 2 : index
    %c16_235 = arith.constant 16 : index
    %351 = memref.load %arg2[%c2_234, %c16_235] : memref<16x27xf32, #tpu.memory_space<smem>>
    %352 = vector.broadcast %351 : f32 to vector<32x32xf32>
    %353 = arith.mulf %352, %33 : vector<32x32xf32>
    %354 = arith.addf %350, %353 : vector<32x32xf32>
    %c2_236 = arith.constant 2 : index
    %c17_237 = arith.constant 17 : index
    %355 = memref.load %arg2[%c2_236, %c17_237] : memref<16x27xf32, #tpu.memory_space<smem>>
    %356 = vector.broadcast %355 : f32 to vector<32x32xf32>
    %357 = arith.mulf %356, %35 : vector<32x32xf32>
    %358 = arith.addf %354, %357 : vector<32x32xf32>
    %c2_238 = arith.constant 2 : index
    %c18_239 = arith.constant 18 : index
    %359 = memref.load %arg2[%c2_238, %c18_239] : memref<16x27xf32, #tpu.memory_space<smem>>
    %360 = vector.broadcast %359 : f32 to vector<32x32xf32>
    %361 = arith.mulf %360, %37 : vector<32x32xf32>
    %362 = arith.addf %358, %361 : vector<32x32xf32>
    %c2_240 = arith.constant 2 : index
    %c19_241 = arith.constant 19 : index
    %363 = memref.load %arg2[%c2_240, %c19_241] : memref<16x27xf32, #tpu.memory_space<smem>>
    %364 = vector.broadcast %363 : f32 to vector<32x32xf32>
    %365 = arith.mulf %364, %39 : vector<32x32xf32>
    %366 = arith.addf %362, %365 : vector<32x32xf32>
    %c2_242 = arith.constant 2 : index
    %c20_243 = arith.constant 20 : index
    %367 = memref.load %arg2[%c2_242, %c20_243] : memref<16x27xf32, #tpu.memory_space<smem>>
    %368 = vector.broadcast %367 : f32 to vector<32x32xf32>
    %369 = arith.mulf %368, %41 : vector<32x32xf32>
    %370 = arith.addf %366, %369 : vector<32x32xf32>
    %c2_244 = arith.constant 2 : index
    %c21_245 = arith.constant 21 : index
    %371 = memref.load %arg2[%c2_244, %c21_245] : memref<16x27xf32, #tpu.memory_space<smem>>
    %372 = vector.broadcast %371 : f32 to vector<32x32xf32>
    %373 = arith.mulf %372, %43 : vector<32x32xf32>
    %374 = arith.addf %370, %373 : vector<32x32xf32>
    %c2_246 = arith.constant 2 : index
    %c22_247 = arith.constant 22 : index
    %375 = memref.load %arg2[%c2_246, %c22_247] : memref<16x27xf32, #tpu.memory_space<smem>>
    %376 = vector.broadcast %375 : f32 to vector<32x32xf32>
    %377 = arith.mulf %376, %45 : vector<32x32xf32>
    %378 = arith.addf %374, %377 : vector<32x32xf32>
    %c2_248 = arith.constant 2 : index
    %c23_249 = arith.constant 23 : index
    %379 = memref.load %arg2[%c2_248, %c23_249] : memref<16x27xf32, #tpu.memory_space<smem>>
    %380 = vector.broadcast %379 : f32 to vector<32x32xf32>
    %381 = arith.mulf %380, %47 : vector<32x32xf32>
    %382 = arith.addf %378, %381 : vector<32x32xf32>
    %c2_250 = arith.constant 2 : index
    %c24_251 = arith.constant 24 : index
    %383 = memref.load %arg2[%c2_250, %c24_251] : memref<16x27xf32, #tpu.memory_space<smem>>
    %384 = vector.broadcast %383 : f32 to vector<32x32xf32>
    %385 = arith.mulf %384, %49 : vector<32x32xf32>
    %386 = arith.addf %382, %385 : vector<32x32xf32>
    %c2_252 = arith.constant 2 : index
    %c25_253 = arith.constant 25 : index
    %387 = memref.load %arg2[%c2_252, %c25_253] : memref<16x27xf32, #tpu.memory_space<smem>>
    %388 = vector.broadcast %387 : f32 to vector<32x32xf32>
    %389 = arith.mulf %388, %51 : vector<32x32xf32>
    %390 = arith.addf %386, %389 : vector<32x32xf32>
    %c2_254 = arith.constant 2 : index
    %c26_255 = arith.constant 26 : index
    %391 = memref.load %arg2[%c2_254, %c26_255] : memref<16x27xf32, #tpu.memory_space<smem>>
    %392 = vector.broadcast %391 : f32 to vector<32x32xf32>
    %393 = arith.mulf %392, %53 : vector<32x32xf32>
    %394 = arith.addf %390, %393 : vector<32x32xf32>
    %c2_256 = arith.constant 2 : index
    %395 = memref.load %arg3[%c2_256] : memref<16xf32, #tpu.memory_space<smem>>
    %396 = vector.broadcast %395 : f32 to vector<32x32xf32>
    %397 = arith.addf %394, %396 : vector<32x32xf32>
    %cst_257 = arith.constant 0.000000e+00 : f32
    %cst_258 = arith.constant 5.000000e-01 : f32
    %398 = vector.broadcast %cst_257 : f32 to vector<32x32xf32>
    %399 = arith.maximumf %398, %397 : vector<32x32xf32>
    %400 = vector.broadcast %cst_258 : f32 to vector<32x32xf32>
    %401 = arith.minimumf %400, %399 : vector<32x32xf32>
    %c0_259 = arith.constant 0 : index
    %c2_260 = arith.constant 2 : index
    %c0_261 = arith.constant 0 : index
    %c0_262 = arith.constant 0 : index
    %402 = vector.load %arg4[%c0_259, %c2_260, %c0_261, %c0_262] : memref<1x16x32x32xf32, #tpu.memory_space<vmem>>, vector<1x1x32x32xf32>
    %403 = vector.shape_cast %402 : vector<1x1x32x32xf32> to vector<32x32xf32>
    %404 = vector.shape_cast %401 : vector<32x32xf32> to vector<1x1x32x32xf32>
    tpu.vector_store %arg4[%c0_259, %c2_260, %c0_261, %c0_262], %404 {strides = array<i32>} : memref<1x16x32x32xf32, #tpu.memory_space<vmem>>, vector<1x1x32x32xf32>,
    %c3_263 = arith.constant 3 : index
    %c0_264 = arith.constant 0 : index
    %405 = memref.load %arg2[%c3_263, %c0_264] : memref<16x27xf32, #tpu.memory_space<smem>>
    %406 = vector.broadcast %405 : f32 to vector<32x32xf32>
    %407 = arith.mulf %406, %1 : vector<32x32xf32>
    %c3_265 = arith.constant 3 : index
    %c1_266 = arith.constant 1 : index
    %408 = memref.load %arg2[%c3_265, %c1_266] : memref<16x27xf32, #tpu.memory_space<smem>>
    %409 = vector.broadcast %408 : f32 to vector<32x32xf32>
    %410 = arith.mulf %409, %3 : vector<32x32xf32>
    %411 = arith.addf %407, %410 : vector<32x32xf32>
    %c3_267 = arith.constant 3 : index
    %c2_268 = arith.constant 2 : index
    %412 = memref.load %arg2[%c3_267, %c2_268] : memref<16x27xf32, #tpu.memory_space<smem>>
    %413 = vector.broadcast %412 : f32 to vector<32x32xf32>
    %414 = arith.mulf %413, %5 : vector<32x32xf32>
    %415 = arith.addf %411, %414 : vector<32x32xf32>
    %c3_269 = arith.constant 3 : index
    %c3_270 = arith.constant 3 : index
    %416 = memref.load %arg2[%c3_269, %c3_270] : memref<16x27xf32, #tpu.memory_space<smem>>
    %417 = vector.broadcast %416 : f32 to vector<32x32xf32>
    %418 = arith.mulf %417, %7 : vector<32x32xf32>
    %419 = arith.addf %415, %418 : vector<32x32xf32>
    %c3_271 = arith.constant 3 : index
    %c4_272 = arith.constant 4 : index
    %420 = memref.load %arg2[%c3_271, %c4_272] : memref<16x27xf32, #tpu.memory_space<smem>>
    %421 = vector.broadcast %420 : f32 to vector<32x32xf32>
    %422 = arith.mulf %421, %9 : vector<32x32xf32>
    %423 = arith.addf %419, %422 : vector<32x32xf32>
    %c3_273 = arith.constant 3 : index
    %c5_274 = arith.constant 5 : index
    %424 = memref.load %arg2[%c3_273, %c5_274] : memref<16x27xf32, #tpu.memory_space<smem>>
    %425 = vector.broadcast %424 : f32 to vector<32x32xf32>
    %426 = arith.mulf %425, %11 : vector<32x32xf32>
    %427 = arith.addf %423, %426 : vector<32x32xf32>
    %c3_275 = arith.constant 3 : index
    %c6_276 = arith.constant 6 : index
    %428 = memref.load %arg2[%c3_275, %c6_276] : memref<16x27xf32, #tpu.memory_space<smem>>
    %429 = vector.broadcast %428 : f32 to vector<32x32xf32>
    %430 = arith.mulf %429, %13 : vector<32x32xf32>
    %431 = arith.addf %427, %430 : vector<32x32xf32>
    %c3_277 = arith.constant 3 : index
    %c7_278 = arith.constant 7 : index
    %432 = memref.load %arg2[%c3_277, %c7_278] : memref<16x27xf32, #tpu.memory_space<smem>>
    %433 = vector.broadcast %432 : f32 to vector<32x32xf32>
    %434 = arith.mulf %433, %15 : vector<32x32xf32>
    %435 = arith.addf %431, %434 : vector<32x32xf32>
    %c3_279 = arith.constant 3 : index
    %c8_280 = arith.constant 8 : index
    %436 = memref.load %arg2[%c3_279, %c8_280] : memref<16x27xf32, #tpu.memory_space<smem>>
    %437 = vector.broadcast %436 : f32 to vector<32x32xf32>
    %438 = arith.mulf %437, %17 : vector<32x32xf32>
    %439 = arith.addf %435, %438 : vector<32x32xf32>
    %c3_281 = arith.constant 3 : index
    %c9_282 = arith.constant 9 : index
    %440 = memref.load %arg2[%c3_281, %c9_282] : memref<16x27xf32, #tpu.memory_space<smem>>
    %441 = vector.broadcast %440 : f32 to vector<32x32xf32>
    %442 = arith.mulf %441, %19 : vector<32x32xf32>
    %443 = arith.addf %439, %442 : vector<32x32xf32>
    %c3_283 = arith.constant 3 : index
    %c10_284 = arith.constant 10 : index
    %444 = memref.load %arg2[%c3_283, %c10_284] : memref<16x27xf32, #tpu.memory_space<smem>>
    %445 = vector.broadcast %444 : f32 to vector<32x32xf32>
    %446 = arith.mulf %445, %21 : vector<32x32xf32>
    %447 = arith.addf %443, %446 : vector<32x32xf32>
    %c3_285 = arith.constant 3 : index
    %c11_286 = arith.constant 11 : index
    %448 = memref.load %arg2[%c3_285, %c11_286] : memref<16x27xf32, #tpu.memory_space<smem>>
    %449 = vector.broadcast %448 : f32 to vector<32x32xf32>
    %450 = arith.mulf %449, %23 : vector<32x32xf32>
    %451 = arith.addf %447, %450 : vector<32x32xf32>
    %c3_287 = arith.constant 3 : index
    %c12_288 = arith.constant 12 : index
    %452 = memref.load %arg2[%c3_287, %c12_288] : memref<16x27xf32, #tpu.memory_space<smem>>
    %453 = vector.broadcast %452 : f32 to vector<32x32xf32>
    %454 = arith.mulf %453, %25 : vector<32x32xf32>
    %455 = arith.addf %451, %454 : vector<32x32xf32>
    %c3_289 = arith.constant 3 : index
    %c13_290 = arith.constant 13 : index
    %456 = memref.load %arg2[%c3_289, %c13_290] : memref<16x27xf32, #tpu.memory_space<smem>>
    %457 = vector.broadcast %456 : f32 to vector<32x32xf32>
    %458 = arith.mulf %457, %27 : vector<32x32xf32>
    %459 = arith.addf %455, %458 : vector<32x32xf32>
    %c3_291 = arith.constant 3 : index
    %c14_292 = arith.constant 14 : index
    %460 = memref.load %arg2[%c3_291, %c14_292] : memref<16x27xf32, #tpu.memory_space<smem>>
    %461 = vector.broadcast %460 : f32 to vector<32x32xf32>
    %462 = arith.mulf %461, %29 : vector<32x32xf32>
    %463 = arith.addf %459, %462 : vector<32x32xf32>
    %c3_293 = arith.constant 3 : index
    %c15_294 = arith.constant 15 : index
    %464 = memref.load %arg2[%c3_293, %c15_294] : memref<16x27xf32, #tpu.memory_space<smem>>
    %465 = vector.broadcast %464 : f32 to vector<32x32xf32>
    %466 = arith.mulf %465, %31 : vector<32x32xf32>
    %467 = arith.addf %463, %466 : vector<32x32xf32>
    %c3_295 = arith.constant 3 : index
    %c16_296 = arith.constant 16 : index
    %468 = memref.load %arg2[%c3_295, %c16_296] : memref<16x27xf32, #tpu.memory_space<smem>>
    %469 = vector.broadcast %468 : f32 to vector<32x32xf32>
    %470 = arith.mulf %469, %33 : vector<32x32xf32>
    %471 = arith.addf %467, %470 : vector<32x32xf32>
    %c3_297 = arith.constant 3 : index
    %c17_298 = arith.constant 17 : index
    %472 = memref.load %arg2[%c3_297, %c17_298] : memref<16x27xf32, #tpu.memory_space<smem>>
    %473 = vector.broadcast %472 : f32 to vector<32x32xf32>
    %474 = arith.mulf %473, %35 : vector<32x32xf32>
    %475 = arith.addf %471, %474 : vector<32x32xf32>
    %c3_299 = arith.constant 3 : index
    %c18_300 = arith.constant 18 : index
    %476 = memref.load %arg2[%c3_299, %c18_300] : memref<16x27xf32, #tpu.memory_space<smem>>
    %477 = vector.broadcast %476 : f32 to vector<32x32xf32>
    %478 = arith.mulf %477, %37 : vector<32x32xf32>
    %479 = arith.addf %475, %478 : vector<32x32xf32>
    %c3_301 = arith.constant 3 : index
    %c19_302 = arith.constant 19 : index
    %480 = memref.load %arg2[%c3_301, %c19_302] : memref<16x27xf32, #tpu.memory_space<smem>>
    %481 = vector.broadcast %480 : f32 to vector<32x32xf32>
    %482 = arith.mulf %481, %39 : vector<32x32xf32>
    %483 = arith.addf %479, %482 : vector<32x32xf32>
    %c3_303 = arith.constant 3 : index
    %c20_304 = arith.constant 20 : index
    %484 = memref.load %arg2[%c3_303, %c20_304] : memref<16x27xf32, #tpu.memory_space<smem>>
    %485 = vector.broadcast %484 : f32 to vector<32x32xf32>
    %486 = arith.mulf %485, %41 : vector<32x32xf32>
    %487 = arith.addf %483, %486 : vector<32x32xf32>
    %c3_305 = arith.constant 3 : index
    %c21_306 = arith.constant 21 : index
    %488 = memref.load %arg2[%c3_305, %c21_306] : memref<16x27xf32, #tpu.memory_space<smem>>
    %489 = vector.broadcast %488 : f32 to vector<32x32xf32>
    %490 = arith.mulf %489, %43 : vector<32x32xf32>
    %491 = arith.addf %487, %490 : vector<32x32xf32>
    %c3_307 = arith.constant 3 : index
    %c22_308 = arith.constant 22 : index
    %492 = memref.load %arg2[%c3_307, %c22_308] : memref<16x27xf32, #tpu.memory_space<smem>>
    %493 = vector.broadcast %492 : f32 to vector<32x32xf32>
    %494 = arith.mulf %493, %45 : vector<32x32xf32>
    %495 = arith.addf %491, %494 : vector<32x32xf32>
    %c3_309 = arith.constant 3 : index
    %c23_310 = arith.constant 23 : index
    %496 = memref.load %arg2[%c3_309, %c23_310] : memref<16x27xf32, #tpu.memory_space<smem>>
    %497 = vector.broadcast %496 : f32 to vector<32x32xf32>
    %498 = arith.mulf %497, %47 : vector<32x32xf32>
    %499 = arith.addf %495, %498 : vector<32x32xf32>
    %c3_311 = arith.constant 3 : index
    %c24_312 = arith.constant 24 : index
    %500 = memref.load %arg2[%c3_311, %c24_312] : memref<16x27xf32, #tpu.memory_space<smem>>
    %501 = vector.broadcast %500 : f32 to vector<32x32xf32>
    %502 = arith.mulf %501, %49 : vector<32x32xf32>
    %503 = arith.addf %499, %502 : vector<32x32xf32>
    %c3_313 = arith.constant 3 : index
    %c25_314 = arith.constant 25 : index
    %504 = memref.load %arg2[%c3_313, %c25_314] : memref<16x27xf32, #tpu.memory_space<smem>>
    %505 = vector.broadcast %504 : f32 to vector<32x32xf32>
    %506 = arith.mulf %505, %51 : vector<32x32xf32>
    %507 = arith.addf %503, %506 : vector<32x32xf32>
    %c3_315 = arith.constant 3 : index
    %c26_316 = arith.constant 26 : index
    %508 = memref.load %arg2[%c3_315, %c26_316] : memref<16x27xf32, #tpu.memory_space<smem>>
    %509 = vector.broadcast %508 : f32 to vector<32x32xf32>
    %510 = arith.mulf %509, %53 : vector<32x32xf32>
    %511 = arith.addf %507, %510 : vector<32x32xf32>
    %c3_317 = arith.constant 3 : index
    %512 = memref.load %arg3[%c3_317] : memref<16xf32, #tpu.memory_space<smem>>
    %513 = vector.broadcast %512 : f32 to vector<32x32xf32>
    %514 = arith.addf %511, %513 : vector<32x32xf32>
    %cst_318 = arith.constant 0.000000e+00 : f32
    %cst_319 = arith.constant 5.000000e-01 : f32
    %515 = vector.broadcast %cst_318 : f32 to vector<32x32xf32>
    %516 = arith.maximumf %515, %514 : vector<32x32xf32>
    %517 = vector.broadcast %cst_319 : f32 to vector<32x32xf32>
    %518 = arith.minimumf %517, %516 : vector<32x32xf32>
    %c0_320 = arith.constant 0 : index
    %c3_321 = arith.constant 3 : index
    %c0_322 = arith.constant 0 : index
    %c0_323 = arith.constant 0 : index
    %519 = vector.load %arg4[%c0_320, %c3_321, %c0_322, %c0_323] : memref<1x16x32x32xf32, #tpu.memory_space<vmem>>, vector<1x1x32x32xf32>
    %520 = vector.shape_cast %519 : vector<1x1x32x32xf32> to vector<32x32xf32>
    %521 = vector.shape_cast %518 : vector<32x32xf32> to vector<1x1x32x32xf32>
    tpu.vector_store %arg4[%c0_320, %c3_321, %c0_322, %c0_323], %521 {strides = array<i32>} : memref<1x16x32x32xf32, #tpu.memory_space<vmem>>, vector<1x1x32x32xf32>,
    %c4_324 = arith.constant 4 : index
    %c0_325 = arith.constant 0 : index
    %522 = memref.load %arg2[%c4_324, %c0_325] : memref<16x27xf32, #tpu.memory_space<smem>>
    %523 = vector.broadcast %522 : f32 to vector<32x32xf32>
    %524 = arith.mulf %523, %1 : vector<32x32xf32>
    %c4_326 = arith.constant 4 : index
    %c1_327 = arith.constant 1 : index
    %525 = memref.load %arg2[%c4_326, %c1_327] : memref<16x27xf32, #tpu.memory_space<smem>>
    %526 = vector.broadcast %525 : f32 to vector<32x32xf32>
    %527 = arith.mulf %526, %3 : vector<32x32xf32>
    %528 = arith.addf %524, %527 : vector<32x32xf32>
    %c4_328 = arith.constant 4 : index
    %c2_329 = arith.constant 2 : index
    %529 = memref.load %arg2[%c4_328, %c2_329] : memref<16x27xf32, #tpu.memory_space<smem>>
    %530 = vector.broadcast %529 : f32 to vector<32x32xf32>
    %531 = arith.mulf %530, %5 : vector<32x32xf32>
    %532 = arith.addf %528, %531 : vector<32x32xf32>
    %c4_330 = arith.constant 4 : index
    %c3_331 = arith.constant 3 : index
    %533 = memref.load %arg2[%c4_330, %c3_331] : memref<16x27xf32, #tpu.memory_space<smem>>
    %534 = vector.broadcast %533 : f32 to vector<32x32xf32>
    %535 = arith.mulf %534, %7 : vector<32x32xf32>
    %536 = arith.addf %532, %535 : vector<32x32xf32>
    %c4_332 = arith.constant 4 : index
    %c4_333 = arith.constant 4 : index
    %537 = memref.load %arg2[%c4_332, %c4_333] : memref<16x27xf32, #tpu.memory_space<smem>>
    %538 = vector.broadcast %537 : f32 to vector<32x32xf32>
    %539 = arith.mulf %538, %9 : vector<32x32xf32>
    %540 = arith.addf %536, %539 : vector<32x32xf32>
    %c4_334 = arith.constant 4 : index
    %c5_335 = arith.constant 5 : index
    %541 = memref.load %arg2[%c4_334, %c5_335] : memref<16x27xf32, #tpu.memory_space<smem>>
    %542 = vector.broadcast %541 : f32 to vector<32x32xf32>
    %543 = arith.mulf %542, %11 : vector<32x32xf32>
    %544 = arith.addf %540, %543 : vector<32x32xf32>
    %c4_336 = arith.constant 4 : index
    %c6_337 = arith.constant 6 : index
    %545 = memref.load %arg2[%c4_336, %c6_337] : memref<16x27xf32, #tpu.memory_space<smem>>
    %546 = vector.broadcast %545 : f32 to vector<32x32xf32>
    %547 = arith.mulf %546, %13 : vector<32x32xf32>
    %548 = arith.addf %544, %547 : vector<32x32xf32>
    %c4_338 = arith.constant 4 : index
    %c7_339 = arith.constant 7 : index
    %549 = memref.load %arg2[%c4_338, %c7_339] : memref<16x27xf32, #tpu.memory_space<smem>>
    %550 = vector.broadcast %549 : f32 to vector<32x32xf32>
    %551 = arith.mulf %550, %15 : vector<32x32xf32>
    %552 = arith.addf %548, %551 : vector<32x32xf32>
    %c4_340 = arith.constant 4 : index
    %c8_341 = arith.constant 8 : index
    %553 = memref.load %arg2[%c4_340, %c8_341] : memref<16x27xf32, #tpu.memory_space<smem>>
    %554 = vector.broadcast %553 : f32 to vector<32x32xf32>
    %555 = arith.mulf %554, %17 : vector<32x32xf32>
    %556 = arith.addf %552, %555 : vector<32x32xf32>
    %c4_342 = arith.constant 4 : index
    %c9_343 = arith.constant 9 : index
    %557 = memref.load %arg2[%c4_342, %c9_343] : memref<16x27xf32, #tpu.memory_space<smem>>
    %558 = vector.broadcast %557 : f32 to vector<32x32xf32>
    %559 = arith.mulf %558, %19 : vector<32x32xf32>
    %560 = arith.addf %556, %559 : vector<32x32xf32>
    %c4_344 = arith.constant 4 : index
    %c10_345 = arith.constant 10 : index
    %561 = memref.load %arg2[%c4_344, %c10_345] : memref<16x27xf32, #tpu.memory_space<smem>>
    %562 = vector.broadcast %561 : f32 to vector<32x32xf32>
    %563 = arith.mulf %562, %21 : vector<32x32xf32>
    %564 = arith.addf %560, %563 : vector<32x32xf32>
    %c4_346 = arith.constant 4 : index
    %c11_347 = arith.constant 11 : index
    %565 = memref.load %arg2[%c4_346, %c11_347] : memref<16x27xf32, #tpu.memory_space<smem>>
    %566 = vector.broadcast %565 : f32 to vector<32x32xf32>
    %567 = arith.mulf %566, %23 : vector<32x32xf32>
    %568 = arith.addf %564, %567 : vector<32x32xf32>
    %c4_348 = arith.constant 4 : index
    %c12_349 = arith.constant 12 : index
    %569 = memref.load %arg2[%c4_348, %c12_349] : memref<16x27xf32, #tpu.memory_space<smem>>
    %570 = vector.broadcast %569 : f32 to vector<32x32xf32>
    %571 = arith.mulf %570, %25 : vector<32x32xf32>
    %572 = arith.addf %568, %571 : vector<32x32xf32>
    %c4_350 = arith.constant 4 : index
    %c13_351 = arith.constant 13 : index
    %573 = memref.load %arg2[%c4_350, %c13_351] : memref<16x27xf32, #tpu.memory_space<smem>>
    %574 = vector.broadcast %573 : f32 to vector<32x32xf32>
    %575 = arith.mulf %574, %27 : vector<32x32xf32>
    %576 = arith.addf %572, %575 : vector<32x32xf32>
    %c4_352 = arith.constant 4 : index
    %c14_353 = arith.constant 14 : index
    %577 = memref.load %arg2[%c4_352, %c14_353] : memref<16x27xf32, #tpu.memory_space<smem>>
    %578 = vector.broadcast %577 : f32 to vector<32x32xf32>
    %579 = arith.mulf %578, %29 : vector<32x32xf32>
    %580 = arith.addf %576, %579 : vector<32x32xf32>
    %c4_354 = arith.constant 4 : index
    %c15_355 = arith.constant 15 : index
    %581 = memref.load %arg2[%c4_354, %c15_355] : memref<16x27xf32, #tpu.memory_space<smem>>
    %582 = vector.broadcast %581 : f32 to vector<32x32xf32>
    %583 = arith.mulf %582, %31 : vector<32x32xf32>
    %584 = arith.addf %580, %583 : vector<32x32xf32>
    %c4_356 = arith.constant 4 : index
    %c16_357 = arith.constant 16 : index
    %585 = memref.load %arg2[%c4_356, %c16_357] : memref<16x27xf32, #tpu.memory_space<smem>>
    %586 = vector.broadcast %585 : f32 to vector<32x32xf32>
    %587 = arith.mulf %586, %33 : vector<32x32xf32>
    %588 = arith.addf %584, %587 : vector<32x32xf32>
    %c4_358 = arith.constant 4 : index
    %c17_359 = arith.constant 17 : index
    %589 = memref.load %arg2[%c4_358, %c17_359] : memref<16x27xf32, #tpu.memory_space<smem>>
    %590 = vector.broadcast %589 : f32 to vector<32x32xf32>
    %591 = arith.mulf %590, %35 : vector<32x32xf32>
    %592 = arith.addf %588, %591 : vector<32x32xf32>
    %c4_360 = arith.constant 4 : index
    %c18_361 = arith.constant 18 : index
    %593 = memref.load %arg2[%c4_360, %c18_361] : memref<16x27xf32, #tpu.memory_space<smem>>
    %594 = vector.broadcast %593 : f32 to vector<32x32xf32>
    %595 = arith.mulf %594, %37 : vector<32x32xf32>
    %596 = arith.addf %592, %595 : vector<32x32xf32>
    %c4_362 = arith.constant 4 : index
    %c19_363 = arith.constant 19 : index
    %597 = memref.load %arg2[%c4_362, %c19_363] : memref<16x27xf32, #tpu.memory_space<smem>>
    %598 = vector.broadcast %597 : f32 to vector<32x32xf32>
    %599 = arith.mulf %598, %39 : vector<32x32xf32>
    %600 = arith.addf %596, %599 : vector<32x32xf32>
    %c4_364 = arith.constant 4 : index
    %c20_365 = arith.constant 20 : index
    %601 = memref.load %arg2[%c4_364, %c20_365] : memref<16x27xf32, #tpu.memory_space<smem>>
    %602 = vector.broadcast %601 : f32 to vector<32x32xf32>
    %603 = arith.mulf %602, %41 : vector<32x32xf32>
    %604 = arith.addf %600, %603 : vector<32x32xf32>
    %c4_366 = arith.constant 4 : index
    %c21_367 = arith.constant 21 : index
    %605 = memref.load %arg2[%c4_366, %c21_367] : memref<16x27xf32, #tpu.memory_space<smem>>
    %606 = vector.broadcast %605 : f32 to vector<32x32xf32>
    %607 = arith.mulf %606, %43 : vector<32x32xf32>
    %608 = arith.addf %604, %607 : vector<32x32xf32>
    %c4_368 = arith.constant 4 : index
    %c22_369 = arith.constant 22 : index
    %609 = memref.load %arg2[%c4_368, %c22_369] : memref<16x27xf32, #tpu.memory_space<smem>>
    %610 = vector.broadcast %609 : f32 to vector<32x32xf32>
    %611 = arith.mulf %610, %45 : vector<32x32xf32>
    %612 = arith.addf %608, %611 : vector<32x32xf32>
    %c4_370 = arith.constant 4 : index
    %c23_371 = arith.constant 23 : index
    %613 = memref.load %arg2[%c4_370, %c23_371] : memref<16x27xf32, #tpu.memory_space<smem>>
    %614 = vector.broadcast %613 : f32 to vector<32x32xf32>
    %615 = arith.mulf %614, %47 : vector<32x32xf32>
    %616 = arith.addf %612, %615 : vector<32x32xf32>
    %c4_372 = arith.constant 4 : index
    %c24_373 = arith.constant 24 : index
    %617 = memref.load %arg2[%c4_372, %c24_373] : memref<16x27xf32, #tpu.memory_space<smem>>
    %618 = vector.broadcast %617 : f32 to vector<32x32xf32>
    %619 = arith.mulf %618, %49 : vector<32x32xf32>
    %620 = arith.addf %616, %619 : vector<32x32xf32>
    %c4_374 = arith.constant 4 : index
    %c25_375 = arith.constant 25 : index
    %621 = memref.load %arg2[%c4_374, %c25_375] : memref<16x27xf32, #tpu.memory_space<smem>>
    %622 = vector.broadcast %621 : f32 to vector<32x32xf32>
    %623 = arith.mulf %622, %51 : vector<32x32xf32>
    %624 = arith.addf %620, %623 : vector<32x32xf32>
    %c4_376 = arith.constant 4 : index
    %c26_377 = arith.constant 26 : index
    %625 = memref.load %arg2[%c4_376, %c26_377] : memref<16x27xf32, #tpu.memory_space<smem>>
    %626 = vector.broadcast %625 : f32 to vector<32x32xf32>
    %627 = arith.mulf %626, %53 : vector<32x32xf32>
    %628 = arith.addf %624, %627 : vector<32x32xf32>
    %c4_378 = arith.constant 4 : index
    %629 = memref.load %arg3[%c4_378] : memref<16xf32, #tpu.memory_space<smem>>
    %630 = vector.broadcast %629 : f32 to vector<32x32xf32>
    %631 = arith.addf %628, %630 : vector<32x32xf32>
    %cst_379 = arith.constant 0.000000e+00 : f32
    %cst_380 = arith.constant 5.000000e-01 : f32
    %632 = vector.broadcast %cst_379 : f32 to vector<32x32xf32>
    %633 = arith.maximumf %632, %631 : vector<32x32xf32>
    %634 = vector.broadcast %cst_380 : f32 to vector<32x32xf32>
    %635 = arith.minimumf %634, %633 : vector<32x32xf32>
    %c0_381 = arith.constant 0 : index
    %c4_382 = arith.constant 4 : index
    %c0_383 = arith.constant 0 : index
    %c0_384 = arith.constant 0 : index
    %636 = vector.load %arg4[%c0_381, %c4_382, %c0_383, %c0_384] : memref<1x16x32x32xf32, #tpu.memory_space<vmem>>, vector<1x1x32x32xf32>
    %637 = vector.shape_cast %636 : vector<1x1x32x32xf32> to vector<32x32xf32>
    %638 = vector.shape_cast %635 : vector<32x32xf32> to vector<1x1x32x32xf32>
    tpu.vector_store %arg4[%c0_381, %c4_382, %c0_383, %c0_384], %638 {strides = array<i32>} : memref<1x16x32x32xf32, #tpu.memory_space<vmem>>, vector<1x1x32x32xf32>,
    %c5_385 = arith.constant 5 : index
    %c0_386 = arith.constant 0 : index
    %639 = memref.load %arg2[%c5_385, %c0_386] : memref<16x27xf32, #tpu.memory_space<smem>>
    %640 = vector.broadcast %639 : f32 to vector<32x32xf32>
    %641 = arith.mulf %640, %1 : vector<32x32xf32>
    %c5_387 = arith.constant 5 : index
    %c1_388 = arith.constant 1 : index
    %642 = memref.load %arg2[%c5_387, %c1_388] : memref<16x27xf32, #tpu.memory_space<smem>>
    %643 = vector.broadcast %642 : f32 to vector<32x32xf32>
    %644 = arith.mulf %643, %3 : vector<32x32xf32>
    %645 = arith.addf %641, %644 : vector<32x32xf32>
    %c5_389 = arith.constant 5 : index
    %c2_390 = arith.constant 2 : index
    %646 = memref.load %arg2[%c5_389, %c2_390] : memref<16x27xf32, #tpu.memory_space<smem>>
    %647 = vector.broadcast %646 : f32 to vector<32x32xf32>
    %648 = arith.mulf %647, %5 : vector<32x32xf32>
    %649 = arith.addf %645, %648 : vector<32x32xf32>
    %c5_391 = arith.constant 5 : index
    %c3_392 = arith.constant 3 : index
    %650 = memref.load %arg2[%c5_391, %c3_392] : memref<16x27xf32, #tpu.memory_space<smem>>
    %651 = vector.broadcast %650 : f32 to vector<32x32xf32>
    %652 = arith.mulf %651, %7 : vector<32x32xf32>
    %653 = arith.addf %649, %652 : vector<32x32xf32>
    %c5_393 = arith.constant 5 : index
    %c4_394 = arith.constant 4 : index
    %654 = memref.load %arg2[%c5_393, %c4_394] : memref<16x27xf32, #tpu.memory_space<smem>>
    %655 = vector.broadcast %654 : f32 to vector<32x32xf32>
    %656 = arith.mulf %655, %9 : vector<32x32xf32>
    %657 = arith.addf %653, %656 : vector<32x32xf32>
    %c5_395 = arith.constant 5 : index
    %c5_396 = arith.constant 5 : index
    %658 = memref.load %arg2[%c5_395, %c5_396] : memref<16x27xf32, #tpu.memory_space<smem>>
    %659 = vector.broadcast %658 : f32 to vector<32x32xf32>
    %660 = arith.mulf %659, %11 : vector<32x32xf32>
    %661 = arith.addf %657, %660 : vector<32x32xf32>
    %c5_397 = arith.constant 5 : index
    %c6_398 = arith.constant 6 : index
    %662 = memref.load %arg2[%c5_397, %c6_398] : memref<16x27xf32, #tpu.memory_space<smem>>
    %663 = vector.broadcast %662 : f32 to vector<32x32xf32>
    %664 = arith.mulf %663, %13 : vector<32x32xf32>
    %665 = arith.addf %661, %664 : vector<32x32xf32>
    %c5_399 = arith.constant 5 : index
    %c7_400 = arith.constant 7 : index
    %666 = memref.load %arg2[%c5_399, %c7_400] : memref<16x27xf32, #tpu.memory_space<smem>>
    %667 = vector.broadcast %666 : f32 to vector<32x32xf32>
    %668 = arith.mulf %667, %15 : vector<32x32xf32>
    %669 = arith.addf %665, %668 : vector<32x32xf32>
    %c5_401 = arith.constant 5 : index
    %c8_402 = arith.constant 8 : index
    %670 = memref.load %arg2[%c5_401, %c8_402] : memref<16x27xf32, #tpu.memory_space<smem>>
    %671 = vector.broadcast %670 : f32 to vector<32x32xf32>
    %672 = arith.mulf %671, %17 : vector<32x32xf32>
    %673 = arith.addf %669, %672 : vector<32x32xf32>
    %c5_403 = arith.constant 5 : index
    %c9_404 = arith.constant 9 : index
    %674 = memref.load %arg2[%c5_403, %c9_404] : memref<16x27xf32, #tpu.memory_space<smem>>
    %675 = vector.broadcast %674 : f32 to vector<32x32xf32>
    %676 = arith.mulf %675, %19 : vector<32x32xf32>
    %677 = arith.addf %673, %676 : vector<32x32xf32>
    %c5_405 = arith.constant 5 : index
    %c10_406 = arith.constant 10 : index
    %678 = memref.load %arg2[%c5_405, %c10_406] : memref<16x27xf32, #tpu.memory_space<smem>>
    %679 = vector.broadcast %678 : f32 to vector<32x32xf32>
    %680 = arith.mulf %679, %21 : vector<32x32xf32>
    %681 = arith.addf %677, %680 : vector<32x32xf32>
    %c5_407 = arith.constant 5 : index
    %c11_408 = arith.constant 11 : index
    %682 = memref.load %arg2[%c5_407, %c11_408] : memref<16x27xf32, #tpu.memory_space<smem>>
    %683 = vector.broadcast %682 : f32 to vector<32x32xf32>
    %684 = arith.mulf %683, %23 : vector<32x32xf32>
    %685 = arith.addf %681, %684 : vector<32x32xf32>
    %c5_409 = arith.constant 5 : index
    %c12_410 = arith.constant 12 : index
    %686 = memref.load %arg2[%c5_409, %c12_410] : memref<16x27xf32, #tpu.memory_space<smem>>
    %687 = vector.broadcast %686 : f32 to vector<32x32xf32>
    %688 = arith.mulf %687, %25 : vector<32x32xf32>
    %689 = arith.addf %685, %688 : vector<32x32xf32>
    %c5_411 = arith.constant 5 : index
    %c13_412 = arith.constant 13 : index
    %690 = memref.load %arg2[%c5_411, %c13_412] : memref<16x27xf32, #tpu.memory_space<smem>>
    %691 = vector.broadcast %690 : f32 to vector<32x32xf32>
    %692 = arith.mulf %691, %27 : vector<32x32xf32>
    %693 = arith.addf %689, %692 : vector<32x32xf32>
    %c5_413 = arith.constant 5 : index
    %c14_414 = arith.constant 14 : index
    %694 = memref.load %arg2[%c5_413, %c14_414] : memref<16x27xf32, #tpu.memory_space<smem>>
    %695 = vector.broadcast %694 : f32 to vector<32x32xf32>
    %696 = arith.mulf %695, %29 : vector<32x32xf32>
    %697 = arith.addf %693, %696 : vector<32x32xf32>
    %c5_415 = arith.constant 5 : index
    %c15_416 = arith.constant 15 : index
    %698 = memref.load %arg2[%c5_415, %c15_416] : memref<16x27xf32, #tpu.memory_space<smem>>
    %699 = vector.broadcast %698 : f32 to vector<32x32xf32>
    %700 = arith.mulf %699, %31 : vector<32x32xf32>
    %701 = arith.addf %697, %700 : vector<32x32xf32>
    %c5_417 = arith.constant 5 : index
    %c16_418 = arith.constant 16 : index
    %702 = memref.load %arg2[%c5_417, %c16_418] : memref<16x27xf32, #tpu.memory_space<smem>>
    %703 = vector.broadcast %702 : f32 to vector<32x32xf32>
    %704 = arith.mulf %703, %33 : vector<32x32xf32>
    %705 = arith.addf %701, %704 : vector<32x32xf32>
    %c5_419 = arith.constant 5 : index
    %c17_420 = arith.constant 17 : index
    %706 = memref.load %arg2[%c5_419, %c17_420] : memref<16x27xf32, #tpu.memory_space<smem>>
    %707 = vector.broadcast %706 : f32 to vector<32x32xf32>
    %708 = arith.mulf %707, %35 : vector<32x32xf32>
    %709 = arith.addf %705, %708 : vector<32x32xf32>
    %c5_421 = arith.constant 5 : index
    %c18_422 = arith.constant 18 : index
    %710 = memref.load %arg2[%c5_421, %c18_422] : memref<16x27xf32, #tpu.memory_space<smem>>
    %711 = vector.broadcast %710 : f32 to vector<32x32xf32>
    %712 = arith.mulf %711, %37 : vector<32x32xf32>
    %713 = arith.addf %709, %712 : vector<32x32xf32>
    %c5_423 = arith.constant 5 : index
    %c19_424 = arith.constant 19 : index
    %714 = memref.load %arg2[%c5_423, %c19_424] : memref<16x27xf32, #tpu.memory_space<smem>>
    %715 = vector.broadcast %714 : f32 to vector<32x32xf32>
    %716 = arith.mulf %715, %39 : vector<32x32xf32>
    %717 = arith.addf %713, %716 : vector<32x32xf32>
    %c5_425 = arith.constant 5 : index
    %c20_426 = arith.constant 20 : index
    %718 = memref.load %arg2[%c5_425, %c20_426] : memref<16x27xf32, #tpu.memory_space<smem>>
    %719 = vector.broadcast %718 : f32 to vector<32x32xf32>
    %720 = arith.mulf %719, %41 : vector<32x32xf32>
    %721 = arith.addf %717, %720 : vector<32x32xf32>
    %c5_427 = arith.constant 5 : index
    %c21_428 = arith.constant 21 : index
    %722 = memref.load %arg2[%c5_427, %c21_428] : memref<16x27xf32, #tpu.memory_space<smem>>
    %723 = vector.broadcast %722 : f32 to vector<32x32xf32>
    %724 = arith.mulf %723, %43 : vector<32x32xf32>
    %725 = arith.addf %721, %724 : vector<32x32xf32>
    %c5_429 = arith.constant 5 : index
    %c22_430 = arith.constant 22 : index
    %726 = memref.load %arg2[%c5_429, %c22_430] : memref<16x27xf32, #tpu.memory_space<smem>>
    %727 = vector.broadcast %726 : f32 to vector<32x32xf32>
    %728 = arith.mulf %727, %45 : vector<32x32xf32>
    %729 = arith.addf %725, %728 : vector<32x32xf32>
    %c5_431 = arith.constant 5 : index
    %c23_432 = arith.constant 23 : index
    %730 = memref.load %arg2[%c5_431, %c23_432] : memref<16x27xf32, #tpu.memory_space<smem>>
    %731 = vector.broadcast %730 : f32 to vector<32x32xf32>
    %732 = arith.mulf %731, %47 : vector<32x32xf32>
    %733 = arith.addf %729, %732 : vector<32x32xf32>
    %c5_433 = arith.constant 5 : index
    %c24_434 = arith.constant 24 : index
    %734 = memref.load %arg2[%c5_433, %c24_434] : memref<16x27xf32, #tpu.memory_space<smem>>
    %735 = vector.broadcast %734 : f32 to vector<32x32xf32>
    %736 = arith.mulf %735, %49 : vector<32x32xf32>
    %737 = arith.addf %733, %736 : vector<32x32xf32>
    %c5_435 = arith.constant 5 : index
    %c25_436 = arith.constant 25 : index
    %738 = memref.load %arg2[%c5_435, %c25_436] : memref<16x27xf32, #tpu.memory_space<smem>>
    %739 = vector.broadcast %738 : f32 to vector<32x32xf32>
    %740 = arith.mulf %739, %51 : vector<32x32xf32>
    %741 = arith.addf %737, %740 : vector<32x32xf32>
    %c5_437 = arith.constant 5 : index
    %c26_438 = arith.constant 26 : index
    %742 = memref.load %arg2[%c5_437, %c26_438] : memref<16x27xf32, #tpu.memory_space<smem>>
    %743 = vector.broadcast %742 : f32 to vector<32x32xf32>
    %744 = arith.mulf %743, %53 : vector<32x32xf32>
    %745 = arith.addf %741, %744 : vector<32x32xf32>
    %c5_439 = arith.constant 5 : index
    %746 = memref.load %arg3[%c5_439] : memref<16xf32, #tpu.memory_space<smem>>
    %747 = vector.broadcast %746 : f32 to vector<32x32xf32>
    %748 = arith.addf %745, %747 : vector<32x32xf32>
    %cst_440 = arith.constant 0.000000e+00 : f32
    %cst_441 = arith.constant 5.000000e-01 : f32
    %749 = vector.broadcast %cst_440 : f32 to vector<32x32xf32>
    %750 = arith.maximumf %749, %748 : vector<32x32xf32>
    %751 = vector.broadcast %cst_441 : f32 to vector<32x32xf32>
    %752 = arith.minimumf %751, %750 : vector<32x32xf32>
    %c0_442 = arith.constant 0 : index
    %c5_443 = arith.constant 5 : index
    %c0_444 = arith.constant 0 : index
    %c0_445 = arith.constant 0 : index
    %753 = vector.load %arg4[%c0_442, %c5_443, %c0_444, %c0_445] : memref<1x16x32x32xf32, #tpu.memory_space<vmem>>, vector<1x1x32x32xf32>
    %754 = vector.shape_cast %753 : vector<1x1x32x32xf32> to vector<32x32xf32>
    %755 = vector.shape_cast %752 : vector<32x32xf32> to vector<1x1x32x32xf32>
    tpu.vector_store %arg4[%c0_442, %c5_443, %c0_444, %c0_445], %755 {strides = array<i32>} : memref<1x16x32x32xf32, #tpu.memory_space<vmem>>, vector<1x1x32x32xf32>,
    %c6_446 = arith.constant 6 : index
    %c0_447 = arith.constant 0 : index
    %756 = memref.load %arg2[%c6_446, %c0_447] : memref<16x27xf32, #tpu.memory_space<smem>>
    %757 = vector.broadcast %756 : f32 to vector<32x32xf32>
    %758 = arith.mulf %757, %1 : vector<32x32xf32>
    %c6_448 = arith.constant 6 : index
    %c1_449 = arith.constant 1 : index
    %759 = memref.load %arg2[%c6_448, %c1_449] : memref<16x27xf32, #tpu.memory_space<smem>>
    %760 = vector.broadcast %759 : f32 to vector<32x32xf32>
    %761 = arith.mulf %760, %3 : vector<32x32xf32>
    %762 = arith.addf %758, %761 : vector<32x32xf32>
    %c6_450 = arith.constant 6 : index
    %c2_451 = arith.constant 2 : index
    %763 = memref.load %arg2[%c6_450, %c2_451] : memref<16x27xf32, #tpu.memory_space<smem>>
    %764 = vector.broadcast %763 : f32 to vector<32x32xf32>
    %765 = arith.mulf %764, %5 : vector<32x32xf32>
    %766 = arith.addf %762, %765 : vector<32x32xf32>
    %c6_452 = arith.constant 6 : index
    %c3_453 = arith.constant 3 : index
    %767 = memref.load %arg2[%c6_452, %c3_453] : memref<16x27xf32, #tpu.memory_space<smem>>
    %768 = vector.broadcast %767 : f32 to vector<32x32xf32>
    %769 = arith.mulf %768, %7 : vector<32x32xf32>
    %770 = arith.addf %766, %769 : vector<32x32xf32>
    %c6_454 = arith.constant 6 : index
    %c4_455 = arith.constant 4 : index
    %771 = memref.load %arg2[%c6_454, %c4_455] : memref<16x27xf32, #tpu.memory_space<smem>>
    %772 = vector.broadcast %771 : f32 to vector<32x32xf32>
    %773 = arith.mulf %772, %9 : vector<32x32xf32>
    %774 = arith.addf %770, %773 : vector<32x32xf32>
    %c6_456 = arith.constant 6 : index
    %c5_457 = arith.constant 5 : index
    %775 = memref.load %arg2[%c6_456, %c5_457] : memref<16x27xf32, #tpu.memory_space<smem>>
    %776 = vector.broadcast %775 : f32 to vector<32x32xf32>
    %777 = arith.mulf %776, %11 : vector<32x32xf32>
    %778 = arith.addf %774, %777 : vector<32x32xf32>
    %c6_458 = arith.constant 6 : index
    %c6_459 = arith.constant 6 : index
    %779 = memref.load %arg2[%c6_458, %c6_459] : memref<16x27xf32, #tpu.memory_space<smem>>
    %780 = vector.broadcast %779 : f32 to vector<32x32xf32>
    %781 = arith.mulf %780, %13 : vector<32x32xf32>
    %782 = arith.addf %778, %781 : vector<32x32xf32>
    %c6_460 = arith.constant 6 : index
    %c7_461 = arith.constant 7 : index
    %783 = memref.load %arg2[%c6_460, %c7_461] : memref<16x27xf32, #tpu.memory_space<smem>>
    %784 = vector.broadcast %783 : f32 to vector<32x32xf32>
    %785 = arith.mulf %784, %15 : vector<32x32xf32>
    %786 = arith.addf %782, %785 : vector<32x32xf32>
    %c6_462 = arith.constant 6 : index
    %c8_463 = arith.constant 8 : index
    %787 = memref.load %arg2[%c6_462, %c8_463] : memref<16x27xf32, #tpu.memory_space<smem>>
    %788 = vector.broadcast %787 : f32 to vector<32x32xf32>
    %789 = arith.mulf %788, %17 : vector<32x32xf32>
    %790 = arith.addf %786, %789 : vector<32x32xf32>
    %c6_464 = arith.constant 6 : index
    %c9_465 = arith.constant 9 : index
    %791 = memref.load %arg2[%c6_464, %c9_465] : memref<16x27xf32, #tpu.memory_space<smem>>
    %792 = vector.broadcast %791 : f32 to vector<32x32xf32>
    %793 = arith.mulf %792, %19 : vector<32x32xf32>
    %794 = arith.addf %790, %793 : vector<32x32xf32>
    %c6_466 = arith.constant 6 : index
    %c10_467 = arith.constant 10 : index
    %795 = memref.load %arg2[%c6_466, %c10_467] : memref<16x27xf32, #tpu.memory_space<smem>>
    %796 = vector.broadcast %795 : f32 to vector<32x32xf32>
    %797 = arith.mulf %796, %21 : vector<32x32xf32>
    %798 = arith.addf %794, %797 : vector<32x32xf32>
    %c6_468 = arith.constant 6 : index
    %c11_469 = arith.constant 11 : index
    %799 = memref.load %arg2[%c6_468, %c11_469] : memref<16x27xf32, #tpu.memory_space<smem>>
    %800 = vector.broadcast %799 : f32 to vector<32x32xf32>
    %801 = arith.mulf %800, %23 : vector<32x32xf32>
    %802 = arith.addf %798, %801 : vector<32x32xf32>
    %c6_470 = arith.constant 6 : index
    %c12_471 = arith.constant 12 : index
    %803 = memref.load %arg2[%c6_470, %c12_471] : memref<16x27xf32, #tpu.memory_space<smem>>
    %804 = vector.broadcast %803 : f32 to vector<32x32xf32>
    %805 = arith.mulf %804, %25 : vector<32x32xf32>
    %806 = arith.addf %802, %805 : vector<32x32xf32>
    %c6_472 = arith.constant 6 : index
    %c13_473 = arith.constant 13 : index
    %807 = memref.load %arg2[%c6_472, %c13_473] : memref<16x27xf32, #tpu.memory_space<smem>>
    %808 = vector.broadcast %807 : f32 to vector<32x32xf32>
    %809 = arith.mulf %808, %27 : vector<32x32xf32>
    %810 = arith.addf %806, %809 : vector<32x32xf32>
    %c6_474 = arith.constant 6 : index
    %c14_475 = arith.constant 14 : index
    %811 = memref.load %arg2[%c6_474, %c14_475] : memref<16x27xf32, #tpu.memory_space<smem>>
    %812 = vector.broadcast %811 : f32 to vector<32x32xf32>
    %813 = arith.mulf %812, %29 : vector<32x32xf32>
    %814 = arith.addf %810, %813 : vector<32x32xf32>
    %c6_476 = arith.constant 6 : index
    %c15_477 = arith.constant 15 : index
    %815 = memref.load %arg2[%c6_476, %c15_477] : memref<16x27xf32, #tpu.memory_space<smem>>
    %816 = vector.broadcast %815 : f32 to vector<32x32xf32>
    %817 = arith.mulf %816, %31 : vector<32x32xf32>
    %818 = arith.addf %814, %817 : vector<32x32xf32>
    %c6_478 = arith.constant 6 : index
    %c16_479 = arith.constant 16 : index
    %819 = memref.load %arg2[%c6_478, %c16_479] : memref<16x27xf32, #tpu.memory_space<smem>>
    %820 = vector.broadcast %819 : f32 to vector<32x32xf32>
    %821 = arith.mulf %820, %33 : vector<32x32xf32>
    %822 = arith.addf %818, %821 : vector<32x32xf32>
    %c6_480 = arith.constant 6 : index
    %c17_481 = arith.constant 17 : index
    %823 = memref.load %arg2[%c6_480, %c17_481] : memref<16x27xf32, #tpu.memory_space<smem>>
    %824 = vector.broadcast %823 : f32 to vector<32x32xf32>
    %825 = arith.mulf %824, %35 : vector<32x32xf32>
    %826 = arith.addf %822, %825 : vector<32x32xf32>
    %c6_482 = arith.constant 6 : index
    %c18_483 = arith.constant 18 : index
    %827 = memref.load %arg2[%c6_482, %c18_483] : memref<16x27xf32, #tpu.memory_space<smem>>
    %828 = vector.broadcast %827 : f32 to vector<32x32xf32>
    %829 = arith.mulf %828, %37 : vector<32x32xf32>
    %830 = arith.addf %826, %829 : vector<32x32xf32>
    %c6_484 = arith.constant 6 : index
    %c19_485 = arith.constant 19 : index
    %831 = memref.load %arg2[%c6_484, %c19_485] : memref<16x27xf32, #tpu.memory_space<smem>>
    %832 = vector.broadcast %831 : f32 to vector<32x32xf32>
    %833 = arith.mulf %832, %39 : vector<32x32xf32>
    %834 = arith.addf %830, %833 : vector<32x32xf32>
    %c6_486 = arith.constant 6 : index
    %c20_487 = arith.constant 20 : index
    %835 = memref.load %arg2[%c6_486, %c20_487] : memref<16x27xf32, #tpu.memory_space<smem>>
    %836 = vector.broadcast %835 : f32 to vector<32x32xf32>
    %837 = arith.mulf %836, %41 : vector<32x32xf32>
    %838 = arith.addf %834, %837 : vector<32x32xf32>
    %c6_488 = arith.constant 6 : index
    %c21_489 = arith.constant 21 : index
    %839 = memref.load %arg2[%c6_488, %c21_489] : memref<16x27xf32, #tpu.memory_space<smem>>
    %840 = vector.broadcast %839 : f32 to vector<32x32xf32>
    %841 = arith.mulf %840, %43 : vector<32x32xf32>
    %842 = arith.addf %838, %841 : vector<32x32xf32>
    %c6_490 = arith.constant 6 : index
    %c22_491 = arith.constant 22 : index
    %843 = memref.load %arg2[%c6_490, %c22_491] : memref<16x27xf32, #tpu.memory_space<smem>>
    %844 = vector.broadcast %843 : f32 to vector<32x32xf32>
    %845 = arith.mulf %844, %45 : vector<32x32xf32>
    %846 = arith.addf %842, %845 : vector<32x32xf32>
    %c6_492 = arith.constant 6 : index
    %c23_493 = arith.constant 23 : index
    %847 = memref.load %arg2[%c6_492, %c23_493] : memref<16x27xf32, #tpu.memory_space<smem>>
    %848 = vector.broadcast %847 : f32 to vector<32x32xf32>
    %849 = arith.mulf %848, %47 : vector<32x32xf32>
    %850 = arith.addf %846, %849 : vector<32x32xf32>
    %c6_494 = arith.constant 6 : index
    %c24_495 = arith.constant 24 : index
    %851 = memref.load %arg2[%c6_494, %c24_495] : memref<16x27xf32, #tpu.memory_space<smem>>
    %852 = vector.broadcast %851 : f32 to vector<32x32xf32>
    %853 = arith.mulf %852, %49 : vector<32x32xf32>
    %854 = arith.addf %850, %853 : vector<32x32xf32>
    %c6_496 = arith.constant 6 : index
    %c25_497 = arith.constant 25 : index
    %855 = memref.load %arg2[%c6_496, %c25_497] : memref<16x27xf32, #tpu.memory_space<smem>>
    %856 = vector.broadcast %855 : f32 to vector<32x32xf32>
    %857 = arith.mulf %856, %51 : vector<32x32xf32>
    %858 = arith.addf %854, %857 : vector<32x32xf32>
    %c6_498 = arith.constant 6 : index
    %c26_499 = arith.constant 26 : index
    %859 = memref.load %arg2[%c6_498, %c26_499] : memref<16x27xf32, #tpu.memory_space<smem>>
    %860 = vector.broadcast %859 : f32 to vector<32x32xf32>
    %861 = arith.mulf %860, %53 : vector<32x32xf32>
    %862 = arith.addf %858, %861 : vector<32x32xf32>
    %c6_500 = arith.constant 6 : index
    %863 = memref.load %arg3[%c6_500] : memref<16xf32, #tpu.memory_space<smem>>
    %864 = vector.broadcast %863 : f32 to vector<32x32xf32>
    %865 = arith.addf %862, %864 : vector<32x32xf32>
    %cst_501 = arith.constant 0.000000e+00 : f32
    %cst_502 = arith.constant 5.000000e-01 : f32
    %866 = vector.broadcast %cst_501 : f32 to vector<32x32xf32>
    %867 = arith.maximumf %866, %865 : vector<32x32xf32>
    %868 = vector.broadcast %cst_502 : f32 to vector<32x32xf32>
    %869 = arith.minimumf %868, %867 : vector<32x32xf32>
    %c0_503 = arith.constant 0 : index
    %c6_504 = arith.constant 6 : index
    %c0_505 = arith.constant 0 : index
    %c0_506 = arith.constant 0 : index
    %870 = vector.load %arg4[%c0_503, %c6_504, %c0_505, %c0_506] : memref<1x16x32x32xf32, #tpu.memory_space<vmem>>, vector<1x1x32x32xf32>
    %871 = vector.shape_cast %870 : vector<1x1x32x32xf32> to vector<32x32xf32>
    %872 = vector.shape_cast %869 : vector<32x32xf32> to vector<1x1x32x32xf32>
    tpu.vector_store %arg4[%c0_503, %c6_504, %c0_505, %c0_506], %872 {strides = array<i32>} : memref<1x16x32x32xf32, #tpu.memory_space<vmem>>, vector<1x1x32x32xf32>,
    %c7_507 = arith.constant 7 : index
    %c0_508 = arith.constant 0 : index
    %873 = memref.load %arg2[%c7_507, %c0_508] : memref<16x27xf32, #tpu.memory_space<smem>>
    %874 = vector.broadcast %873 : f32 to vector<32x32xf32>
    %875 = arith.mulf %874, %1 : vector<32x32xf32>
    %c7_509 = arith.constant 7 : index
    %c1_510 = arith.constant 1 : index
    %876 = memref.load %arg2[%c7_509, %c1_510] : memref<16x27xf32, #tpu.memory_space<smem>>
    %877 = vector.broadcast %876 : f32 to vector<32x32xf32>
    %878 = arith.mulf %877, %3 : vector<32x32xf32>
    %879 = arith.addf %875, %878 : vector<32x32xf32>
    %c7_511 = arith.constant 7 : index
    %c2_512 = arith.constant 2 : index
    %880 = memref.load %arg2[%c7_511, %c2_512] : memref<16x27xf32, #tpu.memory_space<smem>>
    %881 = vector.broadcast %880 : f32 to vector<32x32xf32>
    %882 = arith.mulf %881, %5 : vector<32x32xf32>
    %883 = arith.addf %879, %882 : vector<32x32xf32>
    %c7_513 = arith.constant 7 : index
    %c3_514 = arith.constant 3 : index
    %884 = memref.load %arg2[%c7_513, %c3_514] : memref<16x27xf32, #tpu.memory_space<smem>>
    %885 = vector.broadcast %884 : f32 to vector<32x32xf32>
    %886 = arith.mulf %885, %7 : vector<32x32xf32>
    %887 = arith.addf %883, %886 : vector<32x32xf32>
    %c7_515 = arith.constant 7 : index
    %c4_516 = arith.constant 4 : index
    %888 = memref.load %arg2[%c7_515, %c4_516] : memref<16x27xf32, #tpu.memory_space<smem>>
    %889 = vector.broadcast %888 : f32 to vector<32x32xf32>
    %890 = arith.mulf %889, %9 : vector<32x32xf32>
    %891 = arith.addf %887, %890 : vector<32x32xf32>
    %c7_517 = arith.constant 7 : index
    %c5_518 = arith.constant 5 : index
    %892 = memref.load %arg2[%c7_517, %c5_518] : memref<16x27xf32, #tpu.memory_space<smem>>
    %893 = vector.broadcast %892 : f32 to vector<32x32xf32>
    %894 = arith.mulf %893, %11 : vector<32x32xf32>
    %895 = arith.addf %891, %894 : vector<32x32xf32>
    %c7_519 = arith.constant 7 : index
    %c6_520 = arith.constant 6 : index
    %896 = memref.load %arg2[%c7_519, %c6_520] : memref<16x27xf32, #tpu.memory_space<smem>>
    %897 = vector.broadcast %896 : f32 to vector<32x32xf32>
    %898 = arith.mulf %897, %13 : vector<32x32xf32>
    %899 = arith.addf %895, %898 : vector<32x32xf32>
    %c7_521 = arith.constant 7 : index
    %c7_522 = arith.constant 7 : index
    %900 = memref.load %arg2[%c7_521, %c7_522] : memref<16x27xf32, #tpu.memory_space<smem>>
    %901 = vector.broadcast %900 : f32 to vector<32x32xf32>
    %902 = arith.mulf %901, %15 : vector<32x32xf32>
    %903 = arith.addf %899, %902 : vector<32x32xf32>
    %c7_523 = arith.constant 7 : index
    %c8_524 = arith.constant 8 : index
    %904 = memref.load %arg2[%c7_523, %c8_524] : memref<16x27xf32, #tpu.memory_space<smem>>
    %905 = vector.broadcast %904 : f32 to vector<32x32xf32>
    %906 = arith.mulf %905, %17 : vector<32x32xf32>
    %907 = arith.addf %903, %906 : vector<32x32xf32>
    %c7_525 = arith.constant 7 : index
    %c9_526 = arith.constant 9 : index
    %908 = memref.load %arg2[%c7_525, %c9_526] : memref<16x27xf32, #tpu.memory_space<smem>>
    %909 = vector.broadcast %908 : f32 to vector<32x32xf32>
    %910 = arith.mulf %909, %19 : vector<32x32xf32>
    %911 = arith.addf %907, %910 : vector<32x32xf32>
    %c7_527 = arith.constant 7 : index
    %c10_528 = arith.constant 10 : index
    %912 = memref.load %arg2[%c7_527, %c10_528] : memref<16x27xf32, #tpu.memory_space<smem>>
    %913 = vector.broadcast %912 : f32 to vector<32x32xf32>
    %914 = arith.mulf %913, %21 : vector<32x32xf32>
    %915 = arith.addf %911, %914 : vector<32x32xf32>
    %c7_529 = arith.constant 7 : index
    %c11_530 = arith.constant 11 : index
    %916 = memref.load %arg2[%c7_529, %c11_530] : memref<16x27xf32, #tpu.memory_space<smem>>
    %917 = vector.broadcast %916 : f32 to vector<32x32xf32>
    %918 = arith.mulf %917, %23 : vector<32x32xf32>
    %919 = arith.addf %915, %918 : vector<32x32xf32>
    %c7_531 = arith.constant 7 : index
    %c12_532 = arith.constant 12 : index
    %920 = memref.load %arg2[%c7_531, %c12_532] : memref<16x27xf32, #tpu.memory_space<smem>>
    %921 = vector.broadcast %920 : f32 to vector<32x32xf32>
    %922 = arith.mulf %921, %25 : vector<32x32xf32>
    %923 = arith.addf %919, %922 : vector<32x32xf32>
    %c7_533 = arith.constant 7 : index
    %c13_534 = arith.constant 13 : index
    %924 = memref.load %arg2[%c7_533, %c13_534] : memref<16x27xf32, #tpu.memory_space<smem>>
    %925 = vector.broadcast %924 : f32 to vector<32x32xf32>
    %926 = arith.mulf %925, %27 : vector<32x32xf32>
    %927 = arith.addf %923, %926 : vector<32x32xf32>
    %c7_535 = arith.constant 7 : index
    %c14_536 = arith.constant 14 : index
    %928 = memref.load %arg2[%c7_535, %c14_536] : memref<16x27xf32, #tpu.memory_space<smem>>
    %929 = vector.broadcast %928 : f32 to vector<32x32xf32>
    %930 = arith.mulf %929, %29 : vector<32x32xf32>
    %931 = arith.addf %927, %930 : vector<32x32xf32>
    %c7_537 = arith.constant 7 : index
    %c15_538 = arith.constant 15 : index
    %932 = memref.load %arg2[%c7_537, %c15_538] : memref<16x27xf32, #tpu.memory_space<smem>>
    %933 = vector.broadcast %932 : f32 to vector<32x32xf32>
    %934 = arith.mulf %933, %31 : vector<32x32xf32>
    %935 = arith.addf %931, %934 : vector<32x32xf32>
    %c7_539 = arith.constant 7 : index
    %c16_540 = arith.constant 16 : index
    %936 = memref.load %arg2[%c7_539, %c16_540] : memref<16x27xf32, #tpu.memory_space<smem>>
    %937 = vector.broadcast %936 : f32 to vector<32x32xf32>
    %938 = arith.mulf %937, %33 : vector<32x32xf32>
    %939 = arith.addf %935, %938 : vector<32x32xf32>
    %c7_541 = arith.constant 7 : index
    %c17_542 = arith.constant 17 : index
    %940 = memref.load %arg2[%c7_541, %c17_542] : memref<16x27xf32, #tpu.memory_space<smem>>
    %941 = vector.broadcast %940 : f32 to vector<32x32xf32>
    %942 = arith.mulf %941, %35 : vector<32x32xf32>
    %943 = arith.addf %939, %942 : vector<32x32xf32>
    %c7_543 = arith.constant 7 : index
    %c18_544 = arith.constant 18 : index
    %944 = memref.load %arg2[%c7_543, %c18_544] : memref<16x27xf32, #tpu.memory_space<smem>>
    %945 = vector.broadcast %944 : f32 to vector<32x32xf32>
    %946 = arith.mulf %945, %37 : vector<32x32xf32>
    %947 = arith.addf %943, %946 : vector<32x32xf32>
    %c7_545 = arith.constant 7 : index
    %c19_546 = arith.constant 19 : index
    %948 = memref.load %arg2[%c7_545, %c19_546] : memref<16x27xf32, #tpu.memory_space<smem>>
    %949 = vector.broadcast %948 : f32 to vector<32x32xf32>
    %950 = arith.mulf %949, %39 : vector<32x32xf32>
    %951 = arith.addf %947, %950 : vector<32x32xf32>
    %c7_547 = arith.constant 7 : index
    %c20_548 = arith.constant 20 : index
    %952 = memref.load %arg2[%c7_547, %c20_548] : memref<16x27xf32, #tpu.memory_space<smem>>
    %953 = vector.broadcast %952 : f32 to vector<32x32xf32>
    %954 = arith.mulf %953, %41 : vector<32x32xf32>
    %955 = arith.addf %951, %954 : vector<32x32xf32>
    %c7_549 = arith.constant 7 : index
    %c21_550 = arith.constant 21 : index
    %956 = memref.load %arg2[%c7_549, %c21_550] : memref<16x27xf32, #tpu.memory_space<smem>>
    %957 = vector.broadcast %956 : f32 to vector<32x32xf32>
    %958 = arith.mulf %957, %43 : vector<32x32xf32>
    %959 = arith.addf %955, %958 : vector<32x32xf32>
    %c7_551 = arith.constant 7 : index
    %c22_552 = arith.constant 22 : index
    %960 = memref.load %arg2[%c7_551, %c22_552] : memref<16x27xf32, #tpu.memory_space<smem>>
    %961 = vector.broadcast %960 : f32 to vector<32x32xf32>
    %962 = arith.mulf %961, %45 : vector<32x32xf32>
    %963 = arith.addf %959, %962 : vector<32x32xf32>
    %c7_553 = arith.constant 7 : index
    %c23_554 = arith.constant 23 : index
    %964 = memref.load %arg2[%c7_553, %c23_554] : memref<16x27xf32, #tpu.memory_space<smem>>
    %965 = vector.broadcast %964 : f32 to vector<32x32xf32>
    %966 = arith.mulf %965, %47 : vector<32x32xf32>
    %967 = arith.addf %963, %966 : vector<32x32xf32>
    %c7_555 = arith.constant 7 : index
    %c24_556 = arith.constant 24 : index
    %968 = memref.load %arg2[%c7_555, %c24_556] : memref<16x27xf32, #tpu.memory_space<smem>>
    %969 = vector.broadcast %968 : f32 to vector<32x32xf32>
    %970 = arith.mulf %969, %49 : vector<32x32xf32>
    %971 = arith.addf %967, %970 : vector<32x32xf32>
    %c7_557 = arith.constant 7 : index
    %c25_558 = arith.constant 25 : index
    %972 = memref.load %arg2[%c7_557, %c25_558] : memref<16x27xf32, #tpu.memory_space<smem>>
    %973 = vector.broadcast %972 : f32 to vector<32x32xf32>
    %974 = arith.mulf %973, %51 : vector<32x32xf32>
    %975 = arith.addf %971, %974 : vector<32x32xf32>
    %c7_559 = arith.constant 7 : index
    %c26_560 = arith.constant 26 : index
    %976 = memref.load %arg2[%c7_559, %c26_560] : memref<16x27xf32, #tpu.memory_space<smem>>
    %977 = vector.broadcast %976 : f32 to vector<32x32xf32>
    %978 = arith.mulf %977, %53 : vector<32x32xf32>
    %979 = arith.addf %975, %978 : vector<32x32xf32>
    %c7_561 = arith.constant 7 : index
    %980 = memref.load %arg3[%c7_561] : memref<16xf32, #tpu.memory_space<smem>>
    %981 = vector.broadcast %980 : f32 to vector<32x32xf32>
    %982 = arith.addf %979, %981 : vector<32x32xf32>
    %cst_562 = arith.constant 0.000000e+00 : f32
    %cst_563 = arith.constant 5.000000e-01 : f32
    %983 = vector.broadcast %cst_562 : f32 to vector<32x32xf32>
    %984 = arith.maximumf %983, %982 : vector<32x32xf32>
    %985 = vector.broadcast %cst_563 : f32 to vector<32x32xf32>
    %986 = arith.minimumf %985, %984 : vector<32x32xf32>
    %c0_564 = arith.constant 0 : index
    %c7_565 = arith.constant 7 : index
    %c0_566 = arith.constant 0 : index
    %c0_567 = arith.constant 0 : index
    %987 = vector.load %arg4[%c0_564, %c7_565, %c0_566, %c0_567] : memref<1x16x32x32xf32, #tpu.memory_space<vmem>>, vector<1x1x32x32xf32>
    %988 = vector.shape_cast %987 : vector<1x1x32x32xf32> to vector<32x32xf32>
    %989 = vector.shape_cast %986 : vector<32x32xf32> to vector<1x1x32x32xf32>
    tpu.vector_store %arg4[%c0_564, %c7_565, %c0_566, %c0_567], %989 {strides = array<i32>} : memref<1x16x32x32xf32, #tpu.memory_space<vmem>>, vector<1x1x32x32xf32>,
    %c8_568 = arith.constant 8 : index
    %c0_569 = arith.constant 0 : index
    %990 = memref.load %arg2[%c8_568, %c0_569] : memref<16x27xf32, #tpu.memory_space<smem>>
    %991 = vector.broadcast %990 : f32 to vector<32x32xf32>
    %992 = arith.mulf %991, %1 : vector<32x32xf32>
    %c8_570 = arith.constant 8 : index
    %c1_571 = arith.constant 1 : index
    %993 = memref.load %arg2[%c8_570, %c1_571] : memref<16x27xf32, #tpu.memory_space<smem>>
    %994 = vector.broadcast %993 : f32 to vector<32x32xf32>
    %995 = arith.mulf %994, %3 : vector<32x32xf32>
    %996 = arith.addf %992, %995 : vector<32x32xf32>
    %c8_572 = arith.constant 8 : index
    %c2_573 = arith.constant 2 : index
    %997 = memref.load %arg2[%c8_572, %c2_573] : memref<16x27xf32, #tpu.memory_space<smem>>
    %998 = vector.broadcast %997 : f32 to vector<32x32xf32>
    %999 = arith.mulf %998, %5 : vector<32x32xf32>
    %1000 = arith.addf %996, %999 : vector<32x32xf32>
    %c8_574 = arith.constant 8 : index
    %c3_575 = arith.constant 3 : index
    %1001 = memref.load %arg2[%c8_574, %c3_575] : memref<16x27xf32, #tpu.memory_space<smem>>
    %1002 = vector.broadcast %1001 : f32 to vector<32x32xf32>
    %1003 = arith.mulf %1002, %7 : vector<32x32xf32>
    %1004 = arith.addf %1000, %1003 : vector<32x32xf32>
    %c8_576 = arith.constant 8 : index
    %c4_577 = arith.constant 4 : index
    %1005 = memref.load %arg2[%c8_576, %c4_577] : memref<16x27xf32, #tpu.memory_space<smem>>
    %1006 = vector.broadcast %1005 : f32 to vector<32x32xf32>
    %1007 = arith.mulf %1006, %9 : vector<32x32xf32>
    %1008 = arith.addf %1004, %1007 : vector<32x32xf32>
    %c8_578 = arith.constant 8 : index
    %c5_579 = arith.constant 5 : index
    %1009 = memref.load %arg2[%c8_578, %c5_579] : memref<16x27xf32, #tpu.memory_space<smem>>
    %1010 = vector.broadcast %1009 : f32 to vector<32x32xf32>
    %1011 = arith.mulf %1010, %11 : vector<32x32xf32>
    %1012 = arith.addf %1008, %1011 : vector<32x32xf32>
    %c8_580 = arith.constant 8 : index
    %c6_581 = arith.constant 6 : index
    %1013 = memref.load %arg2[%c8_580, %c6_581] : memref<16x27xf32, #tpu.memory_space<smem>>
    %1014 = vector.broadcast %1013 : f32 to vector<32x32xf32>
    %1015 = arith.mulf %1014, %13 : vector<32x32xf32>
    %1016 = arith.addf %1012, %1015 : vector<32x32xf32>
    %c8_582 = arith.constant 8 : index
    %c7_583 = arith.constant 7 : index
    %1017 = memref.load %arg2[%c8_582, %c7_583] : memref<16x27xf32, #tpu.memory_space<smem>>
    %1018 = vector.broadcast %1017 : f32 to vector<32x32xf32>
    %1019 = arith.mulf %1018, %15 : vector<32x32xf32>
    %1020 = arith.addf %1016, %1019 : vector<32x32xf32>
    %c8_584 = arith.constant 8 : index
    %c8_585 = arith.constant 8 : index
    %1021 = memref.load %arg2[%c8_584, %c8_585] : memref<16x27xf32, #tpu.memory_space<smem>>
    %1022 = vector.broadcast %1021 : f32 to vector<32x32xf32>
    %1023 = arith.mulf %1022, %17 : vector<32x32xf32>
    %1024 = arith.addf %1020, %1023 : vector<32x32xf32>
    %c8_586 = arith.constant 8 : index
    %c9_587 = arith.constant 9 : index
    %1025 = memref.load %arg2[%c8_586, %c9_587] : memref<16x27xf32, #tpu.memory_space<smem>>
    %1026 = vector.broadcast %1025 : f32 to vector<32x32xf32>
    %1027 = arith.mulf %1026, %19 : vector<32x32xf32>
    %1028 = arith.addf %1024, %1027 : vector<32x32xf32>
    %c8_588 = arith.constant 8 : index
    %c10_589 = arith.constant 10 : index
    %1029 = memref.load %arg2[%c8_588, %c10_589] : memref<16x27xf32, #tpu.memory_space<smem>>
    %1030 = vector.broadcast %1029 : f32 to vector<32x32xf32>
    %1031 = arith.mulf %1030, %21 : vector<32x32xf32>
    %1032 = arith.addf %1028, %1031 : vector<32x32xf32>
    %c8_590 = arith.constant 8 : index
    %c11_591 = arith.constant 11 : index
    %1033 = memref.load %arg2[%c8_590, %c11_591] : memref<16x27xf32, #tpu.memory_space<smem>>
    %1034 = vector.broadcast %1033 : f32 to vector<32x32xf32>
    %1035 = arith.mulf %1034, %23 : vector<32x32xf32>
    %1036 = arith.addf %1032, %1035 : vector<32x32xf32>
    %c8_592 = arith.constant 8 : index
    %c12_593 = arith.constant 12 : index
    %1037 = memref.load %arg2[%c8_592, %c12_593] : memref<16x27xf32, #tpu.memory_space<smem>>
    %1038 = vector.broadcast %1037 : f32 to vector<32x32xf32>
    %1039 = arith.mulf %1038, %25 : vector<32x32xf32>
    %1040 = arith.addf %1036, %1039 : vector<32x32xf32>
    %c8_594 = arith.constant 8 : index
    %c13_595 = arith.constant 13 : index
    %1041 = memref.load %arg2[%c8_594, %c13_595] : memref<16x27xf32, #tpu.memory_space<smem>>
    %1042 = vector.broadcast %1041 : f32 to vector<32x32xf32>
    %1043 = arith.mulf %1042, %27 : vector<32x32xf32>
    %1044 = arith.addf %1040, %1043 : vector<32x32xf32>
    %c8_596 = arith.constant 8 : index
    %c14_597 = arith.constant 14 : index
    %1045 = memref.load %arg2[%c8_596, %c14_597] : memref<16x27xf32, #tpu.memory_space<smem>>
    %1046 = vector.broadcast %1045 : f32 to vector<32x32xf32>
    %1047 = arith.mulf %1046, %29 : vector<32x32xf32>
    %1048 = arith.addf %1044, %1047 : vector<32x32xf32>
    %c8_598 = arith.constant 8 : index
    %c15_599 = arith.constant 15 : index
    %1049 = memref.load %arg2[%c8_598, %c15_599] : memref<16x27xf32, #tpu.memory_space<smem>>
    %1050 = vector.broadcast %1049 : f32 to vector<32x32xf32>
    %1051 = arith.mulf %1050, %31 : vector<32x32xf32>
    %1052 = arith.addf %1048, %1051 : vector<32x32xf32>
    %c8_600 = arith.constant 8 : index
    %c16_601 = arith.constant 16 : index
    %1053 = memref.load %arg2[%c8_600, %c16_601] : memref<16x27xf32, #tpu.memory_space<smem>>
    %1054 = vector.broadcast %1053 : f32 to vector<32x32xf32>
    %1055 = arith.mulf %1054, %33 : vector<32x32xf32>
    %1056 = arith.addf %1052, %1055 : vector<32x32xf32>
    %c8_602 = arith.constant 8 : index
    %c17_603 = arith.constant 17 : index
    %1057 = memref.load %arg2[%c8_602, %c17_603] : memref<16x27xf32, #tpu.memory_space<smem>>
    %1058 = vector.broadcast %1057 : f32 to vector<32x32xf32>
    %1059 = arith.mulf %1058, %35 : vector<32x32xf32>
    %1060 = arith.addf %1056, %1059 : vector<32x32xf32>
    %c8_604 = arith.constant 8 : index
    %c18_605 = arith.constant 18 : index
    %1061 = memref.load %arg2[%c8_604, %c18_605] : memref<16x27xf32, #tpu.memory_space<smem>>
    %1062 = vector.broadcast %1061 : f32 to vector<32x32xf32>
    %1063 = arith.mulf %1062, %37 : vector<32x32xf32>
    %1064 = arith.addf %1060, %1063 : vector<32x32xf32>
    %c8_606 = arith.constant 8 : index
    %c19_607 = arith.constant 19 : index
    %1065 = memref.load %arg2[%c8_606, %c19_607] : memref<16x27xf32, #tpu.memory_space<smem>>
    %1066 = vector.broadcast %1065 : f32 to vector<32x32xf32>
    %1067 = arith.mulf %1066, %39 : vector<32x32xf32>
    %1068 = arith.addf %1064, %1067 : vector<32x32xf32>
    %c8_608 = arith.constant 8 : index
    %c20_609 = arith.constant 20 : index
    %1069 = memref.load %arg2[%c8_608, %c20_609] : memref<16x27xf32, #tpu.memory_space<smem>>
    %1070 = vector.broadcast %1069 : f32 to vector<32x32xf32>
    %1071 = arith.mulf %1070, %41 : vector<32x32xf32>
    %1072 = arith.addf %1068, %1071 : vector<32x32xf32>
    %c8_610 = arith.constant 8 : index
    %c21_611 = arith.constant 21 : index
    %1073 = memref.load %arg2[%c8_610, %c21_611] : memref<16x27xf32, #tpu.memory_space<smem>>
    %1074 = vector.broadcast %1073 : f32 to vector<32x32xf32>
    %1075 = arith.mulf %1074, %43 : vector<32x32xf32>
    %1076 = arith.addf %1072, %1075 : vector<32x32xf32>
    %c8_612 = arith.constant 8 : index
    %c22_613 = arith.constant 22 : index
    %1077 = memref.load %arg2[%c8_612, %c22_613] : memref<16x27xf32, #tpu.memory_space<smem>>
    %1078 = vector.broadcast %1077 : f32 to vector<32x32xf32>
    %1079 = arith.mulf %1078, %45 : vector<32x32xf32>
    %1080 = arith.addf %1076, %1079 : vector<32x32xf32>
    %c8_614 = arith.constant 8 : index
    %c23_615 = arith.constant 23 : index
    %1081 = memref.load %arg2[%c8_614, %c23_615] : memref<16x27xf32, #tpu.memory_space<smem>>
    %1082 = vector.broadcast %1081 : f32 to vector<32x32xf32>
    %1083 = arith.mulf %1082, %47 : vector<32x32xf32>
    %1084 = arith.addf %1080, %1083 : vector<32x32xf32>
    %c8_616 = arith.constant 8 : index
    %c24_617 = arith.constant 24 : index
    %1085 = memref.load %arg2[%c8_616, %c24_617] : memref<16x27xf32, #tpu.memory_space<smem>>
    %1086 = vector.broadcast %1085 : f32 to vector<32x32xf32>
    %1087 = arith.mulf %1086, %49 : vector<32x32xf32>
    %1088 = arith.addf %1084, %1087 : vector<32x32xf32>
    %c8_618 = arith.constant 8 : index
    %c25_619 = arith.constant 25 : index
    %1089 = memref.load %arg2[%c8_618, %c25_619] : memref<16x27xf32, #tpu.memory_space<smem>>
    %1090 = vector.broadcast %1089 : f32 to vector<32x32xf32>
    %1091 = arith.mulf %1090, %51 : vector<32x32xf32>
    %1092 = arith.addf %1088, %1091 : vector<32x32xf32>
    %c8_620 = arith.constant 8 : index
    %c26_621 = arith.constant 26 : index
    %1093 = memref.load %arg2[%c8_620, %c26_621] : memref<16x27xf32, #tpu.memory_space<smem>>
    %1094 = vector.broadcast %1093 : f32 to vector<32x32xf32>
    %1095 = arith.mulf %1094, %53 : vector<32x32xf32>
    %1096 = arith.addf %1092, %1095 : vector<32x32xf32>
    %c8_622 = arith.constant 8 : index
    %1097 = memref.load %arg3[%c8_622] : memref<16xf32, #tpu.memory_space<smem>>
    %1098 = vector.broadcast %1097 : f32 to vector<32x32xf32>
    %1099 = arith.addf %1096, %1098 : vector<32x32xf32>
    %cst_623 = arith.constant 0.000000e+00 : f32
    %cst_624 = arith.constant 5.000000e-01 : f32
    %1100 = vector.broadcast %cst_623 : f32 to vector<32x32xf32>
    %1101 = arith.maximumf %1100, %1099 : vector<32x32xf32>
    %1102 = vector.broadcast %cst_624 : f32 to vector<32x32xf32>
    %1103 = arith.minimumf %1102, %1101 : vector<32x32xf32>
    %c0_625 = arith.constant 0 : index
    %c8_626 = arith.constant 8 : index
    %c0_627 = arith.constant 0 : index
    %c0_628 = arith.constant 0 : index
    %1104 = vector.load %arg4[%c0_625, %c8_626, %c0_627, %c0_628] : memref<1x16x32x32xf32, #tpu.memory_space<vmem>>, vector<1x1x32x32xf32>
    %1105 = vector.shape_cast %1104 : vector<1x1x32x32xf32> to vector<32x32xf32>
    %1106 = vector.shape_cast %1103 : vector<32x32xf32> to vector<1x1x32x32xf32>
    tpu.vector_store %arg4[%c0_625, %c8_626, %c0_627, %c0_628], %1106 {strides = array<i32>} : memref<1x16x32x32xf32, #tpu.memory_space<vmem>>, vector<1x1x32x32xf32>,
    %c9_629 = arith.constant 9 : index
    %c0_630 = arith.constant 0 : index
    %1107 = memref.load %arg2[%c9_629, %c0_630] : memref<16x27xf32, #tpu.memory_space<smem>>
    %1108 = vector.broadcast %1107 : f32 to vector<32x32xf32>
    %1109 = arith.mulf %1108, %1 : vector<32x32xf32>
    %c9_631 = arith.constant 9 : index
    %c1_632 = arith.constant 1 : index
    %1110 = memref.load %arg2[%c9_631, %c1_632] : memref<16x27xf32, #tpu.memory_space<smem>>
    %1111 = vector.broadcast %1110 : f32 to vector<32x32xf32>
    %1112 = arith.mulf %1111, %3 : vector<32x32xf32>
    %1113 = arith.addf %1109, %1112 : vector<32x32xf32>
    %c9_633 = arith.constant 9 : index
    %c2_634 = arith.constant 2 : index
    %1114 = memref.load %arg2[%c9_633, %c2_634] : memref<16x27xf32, #tpu.memory_space<smem>>
    %1115 = vector.broadcast %1114 : f32 to vector<32x32xf32>
    %1116 = arith.mulf %1115, %5 : vector<32x32xf32>
    %1117 = arith.addf %1113, %1116 : vector<32x32xf32>
    %c9_635 = arith.constant 9 : index
    %c3_636 = arith.constant 3 : index
    %1118 = memref.load %arg2[%c9_635, %c3_636] : memref<16x27xf32, #tpu.memory_space<smem>>
    %1119 = vector.broadcast %1118 : f32 to vector<32x32xf32>
    %1120 = arith.mulf %1119, %7 : vector<32x32xf32>
    %1121 = arith.addf %1117, %1120 : vector<32x32xf32>
    %c9_637 = arith.constant 9 : index
    %c4_638 = arith.constant 4 : index
    %1122 = memref.load %arg2[%c9_637, %c4_638] : memref<16x27xf32, #tpu.memory_space<smem>>
    %1123 = vector.broadcast %1122 : f32 to vector<32x32xf32>
    %1124 = arith.mulf %1123, %9 : vector<32x32xf32>
    %1125 = arith.addf %1121, %1124 : vector<32x32xf32>
    %c9_639 = arith.constant 9 : index
    %c5_640 = arith.constant 5 : index
    %1126 = memref.load %arg2[%c9_639, %c5_640] : memref<16x27xf32, #tpu.memory_space<smem>>
    %1127 = vector.broadcast %1126 : f32 to vector<32x32xf32>
    %1128 = arith.mulf %1127, %11 : vector<32x32xf32>
    %1129 = arith.addf %1125, %1128 : vector<32x32xf32>
    %c9_641 = arith.constant 9 : index
    %c6_642 = arith.constant 6 : index
    %1130 = memref.load %arg2[%c9_641, %c6_642] : memref<16x27xf32, #tpu.memory_space<smem>>
    %1131 = vector.broadcast %1130 : f32 to vector<32x32xf32>
    %1132 = arith.mulf %1131, %13 : vector<32x32xf32>
    %1133 = arith.addf %1129, %1132 : vector<32x32xf32>
    %c9_643 = arith.constant 9 : index
    %c7_644 = arith.constant 7 : index
    %1134 = memref.load %arg2[%c9_643, %c7_644] : memref<16x27xf32, #tpu.memory_space<smem>>
    %1135 = vector.broadcast %1134 : f32 to vector<32x32xf32>
    %1136 = arith.mulf %1135, %15 : vector<32x32xf32>
    %1137 = arith.addf %1133, %1136 : vector<32x32xf32>
    %c9_645 = arith.constant 9 : index
    %c8_646 = arith.constant 8 : index
    %1138 = memref.load %arg2[%c9_645, %c8_646] : memref<16x27xf32, #tpu.memory_space<smem>>
    %1139 = vector.broadcast %1138 : f32 to vector<32x32xf32>
    %1140 = arith.mulf %1139, %17 : vector<32x32xf32>
    %1141 = arith.addf %1137, %1140 : vector<32x32xf32>
    %c9_647 = arith.constant 9 : index
    %c9_648 = arith.constant 9 : index
    %1142 = memref.load %arg2[%c9_647, %c9_648] : memref<16x27xf32, #tpu.memory_space<smem>>
    %1143 = vector.broadcast %1142 : f32 to vector<32x32xf32>
    %1144 = arith.mulf %1143, %19 : vector<32x32xf32>
    %1145 = arith.addf %1141, %1144 : vector<32x32xf32>
    %c9_649 = arith.constant 9 : index
    %c10_650 = arith.constant 10 : index
    %1146 = memref.load %arg2[%c9_649, %c10_650] : memref<16x27xf32, #tpu.memory_space<smem>>
    %1147 = vector.broadcast %1146 : f32 to vector<32x32xf32>
    %1148 = arith.mulf %1147, %21 : vector<32x32xf32>
    %1149 = arith.addf %1145, %1148 : vector<32x32xf32>
    %c9_651 = arith.constant 9 : index
    %c11_652 = arith.constant 11 : index
    %1150 = memref.load %arg2[%c9_651, %c11_652] : memref<16x27xf32, #tpu.memory_space<smem>>
    %1151 = vector.broadcast %1150 : f32 to vector<32x32xf32>
    %1152 = arith.mulf %1151, %23 : vector<32x32xf32>
    %1153 = arith.addf %1149, %1152 : vector<32x32xf32>
    %c9_653 = arith.constant 9 : index
    %c12_654 = arith.constant 12 : index
    %1154 = memref.load %arg2[%c9_653, %c12_654] : memref<16x27xf32, #tpu.memory_space<smem>>
    %1155 = vector.broadcast %1154 : f32 to vector<32x32xf32>
    %1156 = arith.mulf %1155, %25 : vector<32x32xf32>
    %1157 = arith.addf %1153, %1156 : vector<32x32xf32>
    %c9_655 = arith.constant 9 : index
    %c13_656 = arith.constant 13 : index
    %1158 = memref.load %arg2[%c9_655, %c13_656] : memref<16x27xf32, #tpu.memory_space<smem>>
    %1159 = vector.broadcast %1158 : f32 to vector<32x32xf32>
    %1160 = arith.mulf %1159, %27 : vector<32x32xf32>
    %1161 = arith.addf %1157, %1160 : vector<32x32xf32>
    %c9_657 = arith.constant 9 : index
    %c14_658 = arith.constant 14 : index
    %1162 = memref.load %arg2[%c9_657, %c14_658] : memref<16x27xf32, #tpu.memory_space<smem>>
    %1163 = vector.broadcast %1162 : f32 to vector<32x32xf32>
    %1164 = arith.mulf %1163, %29 : vector<32x32xf32>
    %1165 = arith.addf %1161, %1164 : vector<32x32xf32>
    %c9_659 = arith.constant 9 : index
    %c15_660 = arith.constant 15 : index
    %1166 = memref.load %arg2[%c9_659, %c15_660] : memref<16x27xf32, #tpu.memory_space<smem>>
    %1167 = vector.broadcast %1166 : f32 to vector<32x32xf32>
    %1168 = arith.mulf %1167, %31 : vector<32x32xf32>
    %1169 = arith.addf %1165, %1168 : vector<32x32xf32>
    %c9_661 = arith.constant 9 : index
    %c16_662 = arith.constant 16 : index
    %1170 = memref.load %arg2[%c9_661, %c16_662] : memref<16x27xf32, #tpu.memory_space<smem>>
    %1171 = vector.broadcast %1170 : f32 to vector<32x32xf32>
    %1172 = arith.mulf %1171, %33 : vector<32x32xf32>
    %1173 = arith.addf %1169, %1172 : vector<32x32xf32>
    %c9_663 = arith.constant 9 : index
    %c17_664 = arith.constant 17 : index
    %1174 = memref.load %arg2[%c9_663, %c17_664] : memref<16x27xf32, #tpu.memory_space<smem>>
    %1175 = vector.broadcast %1174 : f32 to vector<32x32xf32>
    %1176 = arith.mulf %1175, %35 : vector<32x32xf32>
    %1177 = arith.addf %1173, %1176 : vector<32x32xf32>
    %c9_665 = arith.constant 9 : index
    %c18_666 = arith.constant 18 : index
    %1178 = memref.load %arg2[%c9_665, %c18_666] : memref<16x27xf32, #tpu.memory_space<smem>>
    %1179 = vector.broadcast %1178 : f32 to vector<32x32xf32>
    %1180 = arith.mulf %1179, %37 : vector<32x32xf32>
    %1181 = arith.addf %1177, %1180 : vector<32x32xf32>
    %c9_667 = arith.constant 9 : index
    %c19_668 = arith.constant 19 : index
    %1182 = memref.load %arg2[%c9_667, %c19_668] : memref<16x27xf32, #tpu.memory_space<smem>>
    %1183 = vector.broadcast %1182 : f32 to vector<32x32xf32>
    %1184 = arith.mulf %1183, %39 : vector<32x32xf32>
    %1185 = arith.addf %1181, %1184 : vector<32x32xf32>
    %c9_669 = arith.constant 9 : index
    %c20_670 = arith.constant 20 : index
    %1186 = memref.load %arg2[%c9_669, %c20_670] : memref<16x27xf32, #tpu.memory_space<smem>>
    %1187 = vector.broadcast %1186 : f32 to vector<32x32xf32>
    %1188 = arith.mulf %1187, %41 : vector<32x32xf32>
    %1189 = arith.addf %1185, %1188 : vector<32x32xf32>
    %c9_671 = arith.constant 9 : index
    %c21_672 = arith.constant 21 : index
    %1190 = memref.load %arg2[%c9_671, %c21_672] : memref<16x27xf32, #tpu.memory_space<smem>>
    %1191 = vector.broadcast %1190 : f32 to vector<32x32xf32>
    %1192 = arith.mulf %1191, %43 : vector<32x32xf32>
    %1193 = arith.addf %1189, %1192 : vector<32x32xf32>
    %c9_673 = arith.constant 9 : index
    %c22_674 = arith.constant 22 : index
    %1194 = memref.load %arg2[%c9_673, %c22_674] : memref<16x27xf32, #tpu.memory_space<smem>>
    %1195 = vector.broadcast %1194 : f32 to vector<32x32xf32>
    %1196 = arith.mulf %1195, %45 : vector<32x32xf32>
    %1197 = arith.addf %1193, %1196 : vector<32x32xf32>
    %c9_675 = arith.constant 9 : index
    %c23_676 = arith.constant 23 : index
    %1198 = memref.load %arg2[%c9_675, %c23_676] : memref<16x27xf32, #tpu.memory_space<smem>>
    %1199 = vector.broadcast %1198 : f32 to vector<32x32xf32>
    %1200 = arith.mulf %1199, %47 : vector<32x32xf32>
    %1201 = arith.addf %1197, %1200 : vector<32x32xf32>
    %c9_677 = arith.constant 9 : index
    %c24_678 = arith.constant 24 : index
    %1202 = memref.load %arg2[%c9_677, %c24_678] : memref<16x27xf32, #tpu.memory_space<smem>>
    %1203 = vector.broadcast %1202 : f32 to vector<32x32xf32>
    %1204 = arith.mulf %1203, %49 : vector<32x32xf32>
    %1205 = arith.addf %1201, %1204 : vector<32x32xf32>
    %c9_679 = arith.constant 9 : index
    %c25_680 = arith.constant 25 : index
    %1206 = memref.load %arg2[%c9_679, %c25_680] : memref<16x27xf32, #tpu.memory_space<smem>>
    %1207 = vector.broadcast %1206 : f32 to vector<32x32xf32>
    %1208 = arith.mulf %1207, %51 : vector<32x32xf32>
    %1209 = arith.addf %1205, %1208 : vector<32x32xf32>
    %c9_681 = arith.constant 9 : index
    %c26_682 = arith.constant 26 : index
    %1210 = memref.load %arg2[%c9_681, %c26_682] : memref<16x27xf32, #tpu.memory_space<smem>>
    %1211 = vector.broadcast %1210 : f32 to vector<32x32xf32>
    %1212 = arith.mulf %1211, %53 : vector<32x32xf32>
    %1213 = arith.addf %1209, %1212 : vector<32x32xf32>
    %c9_683 = arith.constant 9 : index
    %1214 = memref.load %arg3[%c9_683] : memref<16xf32, #tpu.memory_space<smem>>
    %1215 = vector.broadcast %1214 : f32 to vector<32x32xf32>
    %1216 = arith.addf %1213, %1215 : vector<32x32xf32>
    %cst_684 = arith.constant 0.000000e+00 : f32
    %cst_685 = arith.constant 5.000000e-01 : f32
    %1217 = vector.broadcast %cst_684 : f32 to vector<32x32xf32>
    %1218 = arith.maximumf %1217, %1216 : vector<32x32xf32>
    %1219 = vector.broadcast %cst_685 : f32 to vector<32x32xf32>
    %1220 = arith.minimumf %1219, %1218 : vector<32x32xf32>
    %c0_686 = arith.constant 0 : index
    %c9_687 = arith.constant 9 : index
    %c0_688 = arith.constant 0 : index
    %c0_689 = arith.constant 0 : index
    %1221 = vector.load %arg4[%c0_686, %c9_687, %c0_688, %c0_689] : memref<1x16x32x32xf32, #tpu.memory_space<vmem>>, vector<1x1x32x32xf32>
    %1222 = vector.shape_cast %1221 : vector<1x1x32x32xf32> to vector<32x32xf32>
    %1223 = vector.shape_cast %1220 : vector<32x32xf32> to vector<1x1x32x32xf32>
    tpu.vector_store %arg4[%c0_686, %c9_687, %c0_688, %c0_689], %1223 {strides = array<i32>} : memref<1x16x32x32xf32, #tpu.memory_space<vmem>>, vector<1x1x32x32xf32>,
    %c10_690 = arith.constant 10 : index
    %c0_691 = arith.constant 0 : index
    %1224 = memref.load %arg2[%c10_690, %c0_691] : memref<16x27xf32, #tpu.memory_space<smem>>
    %1225 = vector.broadcast %1224 : f32 to vector<32x32xf32>
    %1226 = arith.mulf %1225, %1 : vector<32x32xf32>
    %c10_692 = arith.constant 10 : index
    %c1_693 = arith.constant 1 : index
    %1227 = memref.load %arg2[%c10_692, %c1_693] : memref<16x27xf32, #tpu.memory_space<smem>>
    %1228 = vector.broadcast %1227 : f32 to vector<32x32xf32>
    %1229 = arith.mulf %1228, %3 : vector<32x32xf32>
    %1230 = arith.addf %1226, %1229 : vector<32x32xf32>
    %c10_694 = arith.constant 10 : index
    %c2_695 = arith.constant 2 : index
    %1231 = memref.load %arg2[%c10_694, %c2_695] : memref<16x27xf32, #tpu.memory_space<smem>>
    %1232 = vector.broadcast %1231 : f32 to vector<32x32xf32>
    %1233 = arith.mulf %1232, %5 : vector<32x32xf32>
    %1234 = arith.addf %1230, %1233 : vector<32x32xf32>
    %c10_696 = arith.constant 10 : index
    %c3_697 = arith.constant 3 : index
    %1235 = memref.load %arg2[%c10_696, %c3_697] : memref<16x27xf32, #tpu.memory_space<smem>>
    %1236 = vector.broadcast %1235 : f32 to vector<32x32xf32>
    %1237 = arith.mulf %1236, %7 : vector<32x32xf32>
    %1238 = arith.addf %1234, %1237 : vector<32x32xf32>
    %c10_698 = arith.constant 10 : index
    %c4_699 = arith.constant 4 : index
    %1239 = memref.load %arg2[%c10_698, %c4_699] : memref<16x27xf32, #tpu.memory_space<smem>>
    %1240 = vector.broadcast %1239 : f32 to vector<32x32xf32>
    %1241 = arith.mulf %1240, %9 : vector<32x32xf32>
    %1242 = arith.addf %1238, %1241 : vector<32x32xf32>
    %c10_700 = arith.constant 10 : index
    %c5_701 = arith.constant 5 : index
    %1243 = memref.load %arg2[%c10_700, %c5_701] : memref<16x27xf32, #tpu.memory_space<smem>>
    %1244 = vector.broadcast %1243 : f32 to vector<32x32xf32>
    %1245 = arith.mulf %1244, %11 : vector<32x32xf32>
    %1246 = arith.addf %1242, %1245 : vector<32x32xf32>
    %c10_702 = arith.constant 10 : index
    %c6_703 = arith.constant 6 : index
    %1247 = memref.load %arg2[%c10_702, %c6_703] : memref<16x27xf32, #tpu.memory_space<smem>>
    %1248 = vector.broadcast %1247 : f32 to vector<32x32xf32>
    %1249 = arith.mulf %1248, %13 : vector<32x32xf32>
    %1250 = arith.addf %1246, %1249 : vector<32x32xf32>
    %c10_704 = arith.constant 10 : index
    %c7_705 = arith.constant 7 : index
    %1251 = memref.load %arg2[%c10_704, %c7_705] : memref<16x27xf32, #tpu.memory_space<smem>>
    %1252 = vector.broadcast %1251 : f32 to vector<32x32xf32>
    %1253 = arith.mulf %1252, %15 : vector<32x32xf32>
    %1254 = arith.addf %1250, %1253 : vector<32x32xf32>
    %c10_706 = arith.constant 10 : index
    %c8_707 = arith.constant 8 : index
    %1255 = memref.load %arg2[%c10_706, %c8_707] : memref<16x27xf32, #tpu.memory_space<smem>>
    %1256 = vector.broadcast %1255 : f32 to vector<32x32xf32>
    %1257 = arith.mulf %1256, %17 : vector<32x32xf32>
    %1258 = arith.addf %1254, %1257 : vector<32x32xf32>
    %c10_708 = arith.constant 10 : index
    %c9_709 = arith.constant 9 : index
    %1259 = memref.load %arg2[%c10_708, %c9_709] : memref<16x27xf32, #tpu.memory_space<smem>>
    %1260 = vector.broadcast %1259 : f32 to vector<32x32xf32>
    %1261 = arith.mulf %1260, %19 : vector<32x32xf32>
    %1262 = arith.addf %1258, %1261 : vector<32x32xf32>
    %c10_710 = arith.constant 10 : index
    %c10_711 = arith.constant 10 : index
    %1263 = memref.load %arg2[%c10_710, %c10_711] : memref<16x27xf32, #tpu.memory_space<smem>>
    %1264 = vector.broadcast %1263 : f32 to vector<32x32xf32>
    %1265 = arith.mulf %1264, %21 : vector<32x32xf32>
    %1266 = arith.addf %1262, %1265 : vector<32x32xf32>
    %c10_712 = arith.constant 10 : index
    %c11_713 = arith.constant 11 : index
    %1267 = memref.load %arg2[%c10_712, %c11_713] : memref<16x27xf32, #tpu.memory_space<smem>>
    %1268 = vector.broadcast %1267 : f32 to vector<32x32xf32>
    %1269 = arith.mulf %1268, %23 : vector<32x32xf32>
    %1270 = arith.addf %1266, %1269 : vector<32x32xf32>
    %c10_714 = arith.constant 10 : index
    %c12_715 = arith.constant 12 : index
    %1271 = memref.load %arg2[%c10_714, %c12_715] : memref<16x27xf32, #tpu.memory_space<smem>>
    %1272 = vector.broadcast %1271 : f32 to vector<32x32xf32>
    %1273 = arith.mulf %1272, %25 : vector<32x32xf32>
    %1274 = arith.addf %1270, %1273 : vector<32x32xf32>
    %c10_716 = arith.constant 10 : index
    %c13_717 = arith.constant 13 : index
    %1275 = memref.load %arg2[%c10_716, %c13_717] : memref<16x27xf32, #tpu.memory_space<smem>>
    %1276 = vector.broadcast %1275 : f32 to vector<32x32xf32>
    %1277 = arith.mulf %1276, %27 : vector<32x32xf32>
    %1278 = arith.addf %1274, %1277 : vector<32x32xf32>
    %c10_718 = arith.constant 10 : index
    %c14_719 = arith.constant 14 : index
    %1279 = memref.load %arg2[%c10_718, %c14_719] : memref<16x27xf32, #tpu.memory_space<smem>>
    %1280 = vector.broadcast %1279 : f32 to vector<32x32xf32>
    %1281 = arith.mulf %1280, %29 : vector<32x32xf32>
    %1282 = arith.addf %1278, %1281 : vector<32x32xf32>
    %c10_720 = arith.constant 10 : index
    %c15_721 = arith.constant 15 : index
    %1283 = memref.load %arg2[%c10_720, %c15_721] : memref<16x27xf32, #tpu.memory_space<smem>>
    %1284 = vector.broadcast %1283 : f32 to vector<32x32xf32>
    %1285 = arith.mulf %1284, %31 : vector<32x32xf32>
    %1286 = arith.addf %1282, %1285 : vector<32x32xf32>
    %c10_722 = arith.constant 10 : index
    %c16_723 = arith.constant 16 : index
    %1287 = memref.load %arg2[%c10_722, %c16_723] : memref<16x27xf32, #tpu.memory_space<smem>>
    %1288 = vector.broadcast %1287 : f32 to vector<32x32xf32>
    %1289 = arith.mulf %1288, %33 : vector<32x32xf32>
    %1290 = arith.addf %1286, %1289 : vector<32x32xf32>
    %c10_724 = arith.constant 10 : index
    %c17_725 = arith.constant 17 : index
    %1291 = memref.load %arg2[%c10_724, %c17_725] : memref<16x27xf32, #tpu.memory_space<smem>>
    %1292 = vector.broadcast %1291 : f32 to vector<32x32xf32>
    %1293 = arith.mulf %1292, %35 : vector<32x32xf32>
    %1294 = arith.addf %1290, %1293 : vector<32x32xf32>
    %c10_726 = arith.constant 10 : index
    %c18_727 = arith.constant 18 : index
    %1295 = memref.load %arg2[%c10_726, %c18_727] : memref<16x27xf32, #tpu.memory_space<smem>>
    %1296 = vector.broadcast %1295 : f32 to vector<32x32xf32>
    %1297 = arith.mulf %1296, %37 : vector<32x32xf32>
    %1298 = arith.addf %1294, %1297 : vector<32x32xf32>
    %c10_728 = arith.constant 10 : index
    %c19_729 = arith.constant 19 : index
    %1299 = memref.load %arg2[%c10_728, %c19_729] : memref<16x27xf32, #tpu.memory_space<smem>>
    %1300 = vector.broadcast %1299 : f32 to vector<32x32xf32>
    %1301 = arith.mulf %1300, %39 : vector<32x32xf32>
    %1302 = arith.addf %1298, %1301 : vector<32x32xf32>
    %c10_730 = arith.constant 10 : index
    %c20_731 = arith.constant 20 : index
    %1303 = memref.load %arg2[%c10_730, %c20_731] : memref<16x27xf32, #tpu.memory_space<smem>>
    %1304 = vector.broadcast %1303 : f32 to vector<32x32xf32>
    %1305 = arith.mulf %1304, %41 : vector<32x32xf32>
    %1306 = arith.addf %1302, %1305 : vector<32x32xf32>
    %c10_732 = arith.constant 10 : index
    %c21_733 = arith.constant 21 : index
    %1307 = memref.load %arg2[%c10_732, %c21_733] : memref<16x27xf32, #tpu.memory_space<smem>>
    %1308 = vector.broadcast %1307 : f32 to vector<32x32xf32>
    %1309 = arith.mulf %1308, %43 : vector<32x32xf32>
    %1310 = arith.addf %1306, %1309 : vector<32x32xf32>
    %c10_734 = arith.constant 10 : index
    %c22_735 = arith.constant 22 : index
    %1311 = memref.load %arg2[%c10_734, %c22_735] : memref<16x27xf32, #tpu.memory_space<smem>>
    %1312 = vector.broadcast %1311 : f32 to vector<32x32xf32>
    %1313 = arith.mulf %1312, %45 : vector<32x32xf32>
    %1314 = arith.addf %1310, %1313 : vector<32x32xf32>
    %c10_736 = arith.constant 10 : index
    %c23_737 = arith.constant 23 : index
    %1315 = memref.load %arg2[%c10_736, %c23_737] : memref<16x27xf32, #tpu.memory_space<smem>>
    %1316 = vector.broadcast %1315 : f32 to vector<32x32xf32>
    %1317 = arith.mulf %1316, %47 : vector<32x32xf32>
    %1318 = arith.addf %1314, %1317 : vector<32x32xf32>
    %c10_738 = arith.constant 10 : index
    %c24_739 = arith.constant 24 : index
    %1319 = memref.load %arg2[%c10_738, %c24_739] : memref<16x27xf32, #tpu.memory_space<smem>>
    %1320 = vector.broadcast %1319 : f32 to vector<32x32xf32>
    %1321 = arith.mulf %1320, %49 : vector<32x32xf32>
    %1322 = arith.addf %1318, %1321 : vector<32x32xf32>
    %c10_740 = arith.constant 10 : index
    %c25_741 = arith.constant 25 : index
    %1323 = memref.load %arg2[%c10_740, %c25_741] : memref<16x27xf32, #tpu.memory_space<smem>>
    %1324 = vector.broadcast %1323 : f32 to vector<32x32xf32>
    %1325 = arith.mulf %1324, %51 : vector<32x32xf32>
    %1326 = arith.addf %1322, %1325 : vector<32x32xf32>
    %c10_742 = arith.constant 10 : index
    %c26_743 = arith.constant 26 : index
    %1327 = memref.load %arg2[%c10_742, %c26_743] : memref<16x27xf32, #tpu.memory_space<smem>>
    %1328 = vector.broadcast %1327 : f32 to vector<32x32xf32>
    %1329 = arith.mulf %1328, %53 : vector<32x32xf32>
    %1330 = arith.addf %1326, %1329 : vector<32x32xf32>
    %c10_744 = arith.constant 10 : index
    %1331 = memref.load %arg3[%c10_744] : memref<16xf32, #tpu.memory_space<smem>>
    %1332 = vector.broadcast %1331 : f32 to vector<32x32xf32>
    %1333 = arith.addf %1330, %1332 : vector<32x32xf32>
    %cst_745 = arith.constant 0.000000e+00 : f32
    %cst_746 = arith.constant 5.000000e-01 : f32
    %1334 = vector.broadcast %cst_745 : f32 to vector<32x32xf32>
    %1335 = arith.maximumf %1334, %1333 : vector<32x32xf32>
    %1336 = vector.broadcast %cst_746 : f32 to vector<32x32xf32>
    %1337 = arith.minimumf %1336, %1335 : vector<32x32xf32>
    %c0_747 = arith.constant 0 : index
    %c10_748 = arith.constant 10 : index
    %c0_749 = arith.constant 0 : index
    %c0_750 = arith.constant 0 : index
    %1338 = vector.load %arg4[%c0_747, %c10_748, %c0_749, %c0_750] : memref<1x16x32x32xf32, #tpu.memory_space<vmem>>, vector<1x1x32x32xf32>
    %1339 = vector.shape_cast %1338 : vector<1x1x32x32xf32> to vector<32x32xf32>
    %1340 = vector.shape_cast %1337 : vector<32x32xf32> to vector<1x1x32x32xf32>
    tpu.vector_store %arg4[%c0_747, %c10_748, %c0_749, %c0_750], %1340 {strides = array<i32>} : memref<1x16x32x32xf32, #tpu.memory_space<vmem>>, vector<1x1x32x32xf32>,
    %c11_751 = arith.constant 11 : index
    %c0_752 = arith.constant 0 : index
    %1341 = memref.load %arg2[%c11_751, %c0_752] : memref<16x27xf32, #tpu.memory_space<smem>>
    %1342 = vector.broadcast %1341 : f32 to vector<32x32xf32>
    %1343 = arith.mulf %1342, %1 : vector<32x32xf32>
    %c11_753 = arith.constant 11 : index
    %c1_754 = arith.constant 1 : index
    %1344 = memref.load %arg2[%c11_753, %c1_754] : memref<16x27xf32, #tpu.memory_space<smem>>
    %1345 = vector.broadcast %1344 : f32 to vector<32x32xf32>
    %1346 = arith.mulf %1345, %3 : vector<32x32xf32>
    %1347 = arith.addf %1343, %1346 : vector<32x32xf32>
    %c11_755 = arith.constant 11 : index
    %c2_756 = arith.constant 2 : index
    %1348 = memref.load %arg2[%c11_755, %c2_756] : memref<16x27xf32, #tpu.memory_space<smem>>
    %1349 = vector.broadcast %1348 : f32 to vector<32x32xf32>
    %1350 = arith.mulf %1349, %5 : vector<32x32xf32>
    %1351 = arith.addf %1347, %1350 : vector<32x32xf32>
    %c11_757 = arith.constant 11 : index
    %c3_758 = arith.constant 3 : index
    %1352 = memref.load %arg2[%c11_757, %c3_758] : memref<16x27xf32, #tpu.memory_space<smem>>
    %1353 = vector.broadcast %1352 : f32 to vector<32x32xf32>
    %1354 = arith.mulf %1353, %7 : vector<32x32xf32>
    %1355 = arith.addf %1351, %1354 : vector<32x32xf32>
    %c11_759 = arith.constant 11 : index
    %c4_760 = arith.constant 4 : index
    %1356 = memref.load %arg2[%c11_759, %c4_760] : memref<16x27xf32, #tpu.memory_space<smem>>
    %1357 = vector.broadcast %1356 : f32 to vector<32x32xf32>
    %1358 = arith.mulf %1357, %9 : vector<32x32xf32>
    %1359 = arith.addf %1355, %1358 : vector<32x32xf32>
    %c11_761 = arith.constant 11 : index
    %c5_762 = arith.constant 5 : index
    %1360 = memref.load %arg2[%c11_761, %c5_762] : memref<16x27xf32, #tpu.memory_space<smem>>
    %1361 = vector.broadcast %1360 : f32 to vector<32x32xf32>
    %1362 = arith.mulf %1361, %11 : vector<32x32xf32>
    %1363 = arith.addf %1359, %1362 : vector<32x32xf32>
    %c11_763 = arith.constant 11 : index
    %c6_764 = arith.constant 6 : index
    %1364 = memref.load %arg2[%c11_763, %c6_764] : memref<16x27xf32, #tpu.memory_space<smem>>
    %1365 = vector.broadcast %1364 : f32 to vector<32x32xf32>
    %1366 = arith.mulf %1365, %13 : vector<32x32xf32>
    %1367 = arith.addf %1363, %1366 : vector<32x32xf32>
    %c11_765 = arith.constant 11 : index
    %c7_766 = arith.constant 7 : index
    %1368 = memref.load %arg2[%c11_765, %c7_766] : memref<16x27xf32, #tpu.memory_space<smem>>
    %1369 = vector.broadcast %1368 : f32 to vector<32x32xf32>
    %1370 = arith.mulf %1369, %15 : vector<32x32xf32>
    %1371 = arith.addf %1367, %1370 : vector<32x32xf32>
    %c11_767 = arith.constant 11 : index
    %c8_768 = arith.constant 8 : index
    %1372 = memref.load %arg2[%c11_767, %c8_768] : memref<16x27xf32, #tpu.memory_space<smem>>
    %1373 = vector.broadcast %1372 : f32 to vector<32x32xf32>
    %1374 = arith.mulf %1373, %17 : vector<32x32xf32>
    %1375 = arith.addf %1371, %1374 : vector<32x32xf32>
    %c11_769 = arith.constant 11 : index
    %c9_770 = arith.constant 9 : index
    %1376 = memref.load %arg2[%c11_769, %c9_770] : memref<16x27xf32, #tpu.memory_space<smem>>
    %1377 = vector.broadcast %1376 : f32 to vector<32x32xf32>
    %1378 = arith.mulf %1377, %19 : vector<32x32xf32>
    %1379 = arith.addf %1375, %1378 : vector<32x32xf32>
    %c11_771 = arith.constant 11 : index
    %c10_772 = arith.constant 10 : index
    %1380 = memref.load %arg2[%c11_771, %c10_772] : memref<16x27xf32, #tpu.memory_space<smem>>
    %1381 = vector.broadcast %1380 : f32 to vector<32x32xf32>
    %1382 = arith.mulf %1381, %21 : vector<32x32xf32>
    %1383 = arith.addf %1379, %1382 : vector<32x32xf32>
    %c11_773 = arith.constant 11 : index
    %c11_774 = arith.constant 11 : index
    %1384 = memref.load %arg2[%c11_773, %c11_774] : memref<16x27xf32, #tpu.memory_space<smem>>
    %1385 = vector.broadcast %1384 : f32 to vector<32x32xf32>
    %1386 = arith.mulf %1385, %23 : vector<32x32xf32>
    %1387 = arith.addf %1383, %1386 : vector<32x32xf32>
    %c11_775 = arith.constant 11 : index
    %c12_776 = arith.constant 12 : index
    %1388 = memref.load %arg2[%c11_775, %c12_776] : memref<16x27xf32, #tpu.memory_space<smem>>
    %1389 = vector.broadcast %1388 : f32 to vector<32x32xf32>
    %1390 = arith.mulf %1389, %25 : vector<32x32xf32>
    %1391 = arith.addf %1387, %1390 : vector<32x32xf32>
    %c11_777 = arith.constant 11 : index
    %c13_778 = arith.constant 13 : index
    %1392 = memref.load %arg2[%c11_777, %c13_778] : memref<16x27xf32, #tpu.memory_space<smem>>
    %1393 = vector.broadcast %1392 : f32 to vector<32x32xf32>
    %1394 = arith.mulf %1393, %27 : vector<32x32xf32>
    %1395 = arith.addf %1391, %1394 : vector<32x32xf32>
    %c11_779 = arith.constant 11 : index
    %c14_780 = arith.constant 14 : index
    %1396 = memref.load %arg2[%c11_779, %c14_780] : memref<16x27xf32, #tpu.memory_space<smem>>
    %1397 = vector.broadcast %1396 : f32 to vector<32x32xf32>
    %1398 = arith.mulf %1397, %29 : vector<32x32xf32>
    %1399 = arith.addf %1395, %1398 : vector<32x32xf32>
    %c11_781 = arith.constant 11 : index
    %c15_782 = arith.constant 15 : index
    %1400 = memref.load %arg2[%c11_781, %c15_782] : memref<16x27xf32, #tpu.memory_space<smem>>
    %1401 = vector.broadcast %1400 : f32 to vector<32x32xf32>
    %1402 = arith.mulf %1401, %31 : vector<32x32xf32>
    %1403 = arith.addf %1399, %1402 : vector<32x32xf32>
    %c11_783 = arith.constant 11 : index
    %c16_784 = arith.constant 16 : index
    %1404 = memref.load %arg2[%c11_783, %c16_784] : memref<16x27xf32, #tpu.memory_space<smem>>
    %1405 = vector.broadcast %1404 : f32 to vector<32x32xf32>
    %1406 = arith.mulf %1405, %33 : vector<32x32xf32>
    %1407 = arith.addf %1403, %1406 : vector<32x32xf32>
    %c11_785 = arith.constant 11 : index
    %c17_786 = arith.constant 17 : index
    %1408 = memref.load %arg2[%c11_785, %c17_786] : memref<16x27xf32, #tpu.memory_space<smem>>
    %1409 = vector.broadcast %1408 : f32 to vector<32x32xf32>
    %1410 = arith.mulf %1409, %35 : vector<32x32xf32>
    %1411 = arith.addf %1407, %1410 : vector<32x32xf32>
    %c11_787 = arith.constant 11 : index
    %c18_788 = arith.constant 18 : index
    %1412 = memref.load %arg2[%c11_787, %c18_788] : memref<16x27xf32, #tpu.memory_space<smem>>
    %1413 = vector.broadcast %1412 : f32 to vector<32x32xf32>
    %1414 = arith.mulf %1413, %37 : vector<32x32xf32>
    %1415 = arith.addf %1411, %1414 : vector<32x32xf32>
    %c11_789 = arith.constant 11 : index
    %c19_790 = arith.constant 19 : index
    %1416 = memref.load %arg2[%c11_789, %c19_790] : memref<16x27xf32, #tpu.memory_space<smem>>
    %1417 = vector.broadcast %1416 : f32 to vector<32x32xf32>
    %1418 = arith.mulf %1417, %39 : vector<32x32xf32>
    %1419 = arith.addf %1415, %1418 : vector<32x32xf32>
    %c11_791 = arith.constant 11 : index
    %c20_792 = arith.constant 20 : index
    %1420 = memref.load %arg2[%c11_791, %c20_792] : memref<16x27xf32, #tpu.memory_space<smem>>
    %1421 = vector.broadcast %1420 : f32 to vector<32x32xf32>
    %1422 = arith.mulf %1421, %41 : vector<32x32xf32>
    %1423 = arith.addf %1419, %1422 : vector<32x32xf32>
    %c11_793 = arith.constant 11 : index
    %c21_794 = arith.constant 21 : index
    %1424 = memref.load %arg2[%c11_793, %c21_794] : memref<16x27xf32, #tpu.memory_space<smem>>
    %1425 = vector.broadcast %1424 : f32 to vector<32x32xf32>
    %1426 = arith.mulf %1425, %43 : vector<32x32xf32>
    %1427 = arith.addf %1423, %1426 : vector<32x32xf32>
    %c11_795 = arith.constant 11 : index
    %c22_796 = arith.constant 22 : index
    %1428 = memref.load %arg2[%c11_795, %c22_796] : memref<16x27xf32, #tpu.memory_space<smem>>
    %1429 = vector.broadcast %1428 : f32 to vector<32x32xf32>
    %1430 = arith.mulf %1429, %45 : vector<32x32xf32>
    %1431 = arith.addf %1427, %1430 : vector<32x32xf32>
    %c11_797 = arith.constant 11 : index
    %c23_798 = arith.constant 23 : index
    %1432 = memref.load %arg2[%c11_797, %c23_798] : memref<16x27xf32, #tpu.memory_space<smem>>
    %1433 = vector.broadcast %1432 : f32 to vector<32x32xf32>
    %1434 = arith.mulf %1433, %47 : vector<32x32xf32>
    %1435 = arith.addf %1431, %1434 : vector<32x32xf32>
    %c11_799 = arith.constant 11 : index
    %c24_800 = arith.constant 24 : index
    %1436 = memref.load %arg2[%c11_799, %c24_800] : memref<16x27xf32, #tpu.memory_space<smem>>
    %1437 = vector.broadcast %1436 : f32 to vector<32x32xf32>
    %1438 = arith.mulf %1437, %49 : vector<32x32xf32>
    %1439 = arith.addf %1435, %1438 : vector<32x32xf32>
    %c11_801 = arith.constant 11 : index
    %c25_802 = arith.constant 25 : index
    %1440 = memref.load %arg2[%c11_801, %c25_802] : memref<16x27xf32, #tpu.memory_space<smem>>
    %1441 = vector.broadcast %1440 : f32 to vector<32x32xf32>
    %1442 = arith.mulf %1441, %51 : vector<32x32xf32>
    %1443 = arith.addf %1439, %1442 : vector<32x32xf32>
    %c11_803 = arith.constant 11 : index
    %c26_804 = arith.constant 26 : index
    %1444 = memref.load %arg2[%c11_803, %c26_804] : memref<16x27xf32, #tpu.memory_space<smem>>
    %1445 = vector.broadcast %1444 : f32 to vector<32x32xf32>
    %1446 = arith.mulf %1445, %53 : vector<32x32xf32>
    %1447 = arith.addf %1443, %1446 : vector<32x32xf32>
    %c11_805 = arith.constant 11 : index
    %1448 = memref.load %arg3[%c11_805] : memref<16xf32, #tpu.memory_space<smem>>
    %1449 = vector.broadcast %1448 : f32 to vector<32x32xf32>
    %1450 = arith.addf %1447, %1449 : vector<32x32xf32>
    %cst_806 = arith.constant 0.000000e+00 : f32
    %cst_807 = arith.constant 5.000000e-01 : f32
    %1451 = vector.broadcast %cst_806 : f32 to vector<32x32xf32>
    %1452 = arith.maximumf %1451, %1450 : vector<32x32xf32>
    %1453 = vector.broadcast %cst_807 : f32 to vector<32x32xf32>
    %1454 = arith.minimumf %1453, %1452 : vector<32x32xf32>
    %c0_808 = arith.constant 0 : index
    %c11_809 = arith.constant 11 : index
    %c0_810 = arith.constant 0 : index
    %c0_811 = arith.constant 0 : index
    %1455 = vector.load %arg4[%c0_808, %c11_809, %c0_810, %c0_811] : memref<1x16x32x32xf32, #tpu.memory_space<vmem>>, vector<1x1x32x32xf32>
    %1456 = vector.shape_cast %1455 : vector<1x1x32x32xf32> to vector<32x32xf32>
    %1457 = vector.shape_cast %1454 : vector<32x32xf32> to vector<1x1x32x32xf32>
    tpu.vector_store %arg4[%c0_808, %c11_809, %c0_810, %c0_811], %1457 {strides = array<i32>} : memref<1x16x32x32xf32, #tpu.memory_space<vmem>>, vector<1x1x32x32xf32>,
    %c12_812 = arith.constant 12 : index
    %c0_813 = arith.constant 0 : index
    %1458 = memref.load %arg2[%c12_812, %c0_813] : memref<16x27xf32, #tpu.memory_space<smem>>
    %1459 = vector.broadcast %1458 : f32 to vector<32x32xf32>
    %1460 = arith.mulf %1459, %1 : vector<32x32xf32>
    %c12_814 = arith.constant 12 : index
    %c1_815 = arith.constant 1 : index
    %1461 = memref.load %arg2[%c12_814, %c1_815] : memref<16x27xf32, #tpu.memory_space<smem>>
    %1462 = vector.broadcast %1461 : f32 to vector<32x32xf32>
    %1463 = arith.mulf %1462, %3 : vector<32x32xf32>
    %1464 = arith.addf %1460, %1463 : vector<32x32xf32>
    %c12_816 = arith.constant 12 : index
    %c2_817 = arith.constant 2 : index
    %1465 = memref.load %arg2[%c12_816, %c2_817] : memref<16x27xf32, #tpu.memory_space<smem>>
    %1466 = vector.broadcast %1465 : f32 to vector<32x32xf32>
    %1467 = arith.mulf %1466, %5 : vector<32x32xf32>
    %1468 = arith.addf %1464, %1467 : vector<32x32xf32>
    %c12_818 = arith.constant 12 : index
    %c3_819 = arith.constant 3 : index
    %1469 = memref.load %arg2[%c12_818, %c3_819] : memref<16x27xf32, #tpu.memory_space<smem>>
    %1470 = vector.broadcast %1469 : f32 to vector<32x32xf32>
    %1471 = arith.mulf %1470, %7 : vector<32x32xf32>
    %1472 = arith.addf %1468, %1471 : vector<32x32xf32>
    %c12_820 = arith.constant 12 : index
    %c4_821 = arith.constant 4 : index
    %1473 = memref.load %arg2[%c12_820, %c4_821] : memref<16x27xf32, #tpu.memory_space<smem>>
    %1474 = vector.broadcast %1473 : f32 to vector<32x32xf32>
    %1475 = arith.mulf %1474, %9 : vector<32x32xf32>
    %1476 = arith.addf %1472, %1475 : vector<32x32xf32>
    %c12_822 = arith.constant 12 : index
    %c5_823 = arith.constant 5 : index
    %1477 = memref.load %arg2[%c12_822, %c5_823] : memref<16x27xf32, #tpu.memory_space<smem>>
    %1478 = vector.broadcast %1477 : f32 to vector<32x32xf32>
    %1479 = arith.mulf %1478, %11 : vector<32x32xf32>
    %1480 = arith.addf %1476, %1479 : vector<32x32xf32>
    %c12_824 = arith.constant 12 : index
    %c6_825 = arith.constant 6 : index
    %1481 = memref.load %arg2[%c12_824, %c6_825] : memref<16x27xf32, #tpu.memory_space<smem>>
    %1482 = vector.broadcast %1481 : f32 to vector<32x32xf32>
    %1483 = arith.mulf %1482, %13 : vector<32x32xf32>
    %1484 = arith.addf %1480, %1483 : vector<32x32xf32>
    %c12_826 = arith.constant 12 : index
    %c7_827 = arith.constant 7 : index
    %1485 = memref.load %arg2[%c12_826, %c7_827] : memref<16x27xf32, #tpu.memory_space<smem>>
    %1486 = vector.broadcast %1485 : f32 to vector<32x32xf32>
    %1487 = arith.mulf %1486, %15 : vector<32x32xf32>
    %1488 = arith.addf %1484, %1487 : vector<32x32xf32>
    %c12_828 = arith.constant 12 : index
    %c8_829 = arith.constant 8 : index
    %1489 = memref.load %arg2[%c12_828, %c8_829] : memref<16x27xf32, #tpu.memory_space<smem>>
    %1490 = vector.broadcast %1489 : f32 to vector<32x32xf32>
    %1491 = arith.mulf %1490, %17 : vector<32x32xf32>
    %1492 = arith.addf %1488, %1491 : vector<32x32xf32>
    %c12_830 = arith.constant 12 : index
    %c9_831 = arith.constant 9 : index
    %1493 = memref.load %arg2[%c12_830, %c9_831] : memref<16x27xf32, #tpu.memory_space<smem>>
    %1494 = vector.broadcast %1493 : f32 to vector<32x32xf32>
    %1495 = arith.mulf %1494, %19 : vector<32x32xf32>
    %1496 = arith.addf %1492, %1495 : vector<32x32xf32>
    %c12_832 = arith.constant 12 : index
    %c10_833 = arith.constant 10 : index
    %1497 = memref.load %arg2[%c12_832, %c10_833] : memref<16x27xf32, #tpu.memory_space<smem>>
    %1498 = vector.broadcast %1497 : f32 to vector<32x32xf32>
    %1499 = arith.mulf %1498, %21 : vector<32x32xf32>
    %1500 = arith.addf %1496, %1499 : vector<32x32xf32>
    %c12_834 = arith.constant 12 : index
    %c11_835 = arith.constant 11 : index
    %1501 = memref.load %arg2[%c12_834, %c11_835] : memref<16x27xf32, #tpu.memory_space<smem>>
    %1502 = vector.broadcast %1501 : f32 to vector<32x32xf32>
    %1503 = arith.mulf %1502, %23 : vector<32x32xf32>
    %1504 = arith.addf %1500, %1503 : vector<32x32xf32>
    %c12_836 = arith.constant 12 : index
    %c12_837 = arith.constant 12 : index
    %1505 = memref.load %arg2[%c12_836, %c12_837] : memref<16x27xf32, #tpu.memory_space<smem>>
    %1506 = vector.broadcast %1505 : f32 to vector<32x32xf32>
    %1507 = arith.mulf %1506, %25 : vector<32x32xf32>
    %1508 = arith.addf %1504, %1507 : vector<32x32xf32>
    %c12_838 = arith.constant 12 : index
    %c13_839 = arith.constant 13 : index
    %1509 = memref.load %arg2[%c12_838, %c13_839] : memref<16x27xf32, #tpu.memory_space<smem>>
    %1510 = vector.broadcast %1509 : f32 to vector<32x32xf32>
    %1511 = arith.mulf %1510, %27 : vector<32x32xf32>
    %1512 = arith.addf %1508, %1511 : vector<32x32xf32>
    %c12_840 = arith.constant 12 : index
    %c14_841 = arith.constant 14 : index
    %1513 = memref.load %arg2[%c12_840, %c14_841] : memref<16x27xf32, #tpu.memory_space<smem>>
    %1514 = vector.broadcast %1513 : f32 to vector<32x32xf32>
    %1515 = arith.mulf %1514, %29 : vector<32x32xf32>
    %1516 = arith.addf %1512, %1515 : vector<32x32xf32>
    %c12_842 = arith.constant 12 : index
    %c15_843 = arith.constant 15 : index
    %1517 = memref.load %arg2[%c12_842, %c15_843] : memref<16x27xf32, #tpu.memory_space<smem>>
    %1518 = vector.broadcast %1517 : f32 to vector<32x32xf32>
    %1519 = arith.mulf %1518, %31 : vector<32x32xf32>
    %1520 = arith.addf %1516, %1519 : vector<32x32xf32>
    %c12_844 = arith.constant 12 : index
    %c16_845 = arith.constant 16 : index
    %1521 = memref.load %arg2[%c12_844, %c16_845] : memref<16x27xf32, #tpu.memory_space<smem>>
    %1522 = vector.broadcast %1521 : f32 to vector<32x32xf32>
    %1523 = arith.mulf %1522, %33 : vector<32x32xf32>
    %1524 = arith.addf %1520, %1523 : vector<32x32xf32>
    %c12_846 = arith.constant 12 : index
    %c17_847 = arith.constant 17 : index
    %1525 = memref.load %arg2[%c12_846, %c17_847] : memref<16x27xf32, #tpu.memory_space<smem>>
    %1526 = vector.broadcast %1525 : f32 to vector<32x32xf32>
    %1527 = arith.mulf %1526, %35 : vector<32x32xf32>
    %1528 = arith.addf %1524, %1527 : vector<32x32xf32>
    %c12_848 = arith.constant 12 : index
    %c18_849 = arith.constant 18 : index
    %1529 = memref.load %arg2[%c12_848, %c18_849] : memref<16x27xf32, #tpu.memory_space<smem>>
    %1530 = vector.broadcast %1529 : f32 to vector<32x32xf32>
    %1531 = arith.mulf %1530, %37 : vector<32x32xf32>
    %1532 = arith.addf %1528, %1531 : vector<32x32xf32>
    %c12_850 = arith.constant 12 : index
    %c19_851 = arith.constant 19 : index
    %1533 = memref.load %arg2[%c12_850, %c19_851] : memref<16x27xf32, #tpu.memory_space<smem>>
    %1534 = vector.broadcast %1533 : f32 to vector<32x32xf32>
    %1535 = arith.mulf %1534, %39 : vector<32x32xf32>
    %1536 = arith.addf %1532, %1535 : vector<32x32xf32>
    %c12_852 = arith.constant 12 : index
    %c20_853 = arith.constant 20 : index
    %1537 = memref.load %arg2[%c12_852, %c20_853] : memref<16x27xf32, #tpu.memory_space<smem>>
    %1538 = vector.broadcast %1537 : f32 to vector<32x32xf32>
    %1539 = arith.mulf %1538, %41 : vector<32x32xf32>
    %1540 = arith.addf %1536, %1539 : vector<32x32xf32>
    %c12_854 = arith.constant 12 : index
    %c21_855 = arith.constant 21 : index
    %1541 = memref.load %arg2[%c12_854, %c21_855] : memref<16x27xf32, #tpu.memory_space<smem>>
    %1542 = vector.broadcast %1541 : f32 to vector<32x32xf32>
    %1543 = arith.mulf %1542, %43 : vector<32x32xf32>
    %1544 = arith.addf %1540, %1543 : vector<32x32xf32>
    %c12_856 = arith.constant 12 : index
    %c22_857 = arith.constant 22 : index
    %1545 = memref.load %arg2[%c12_856, %c22_857] : memref<16x27xf32, #tpu.memory_space<smem>>
    %1546 = vector.broadcast %1545 : f32 to vector<32x32xf32>
    %1547 = arith.mulf %1546, %45 : vector<32x32xf32>
    %1548 = arith.addf %1544, %1547 : vector<32x32xf32>
    %c12_858 = arith.constant 12 : index
    %c23_859 = arith.constant 23 : index
    %1549 = memref.load %arg2[%c12_858, %c23_859] : memref<16x27xf32, #tpu.memory_space<smem>>
    %1550 = vector.broadcast %1549 : f32 to vector<32x32xf32>
    %1551 = arith.mulf %1550, %47 : vector<32x32xf32>
    %1552 = arith.addf %1548, %1551 : vector<32x32xf32>
    %c12_860 = arith.constant 12 : index
    %c24_861 = arith.constant 24 : index
    %1553 = memref.load %arg2[%c12_860, %c24_861] : memref<16x27xf32, #tpu.memory_space<smem>>
    %1554 = vector.broadcast %1553 : f32 to vector<32x32xf32>
    %1555 = arith.mulf %1554, %49 : vector<32x32xf32>
    %1556 = arith.addf %1552, %1555 : vector<32x32xf32>
    %c12_862 = arith.constant 12 : index
    %c25_863 = arith.constant 25 : index
    %1557 = memref.load %arg2[%c12_862, %c25_863] : memref<16x27xf32, #tpu.memory_space<smem>>
    %1558 = vector.broadcast %1557 : f32 to vector<32x32xf32>
    %1559 = arith.mulf %1558, %51 : vector<32x32xf32>
    %1560 = arith.addf %1556, %1559 : vector<32x32xf32>
    %c12_864 = arith.constant 12 : index
    %c26_865 = arith.constant 26 : index
    %1561 = memref.load %arg2[%c12_864, %c26_865] : memref<16x27xf32, #tpu.memory_space<smem>>
    %1562 = vector.broadcast %1561 : f32 to vector<32x32xf32>
    %1563 = arith.mulf %1562, %53 : vector<32x32xf32>
    %1564 = arith.addf %1560, %1563 : vector<32x32xf32>
    %c12_866 = arith.constant 12 : index
    %1565 = memref.load %arg3[%c12_866] : memref<16xf32, #tpu.memory_space<smem>>
    %1566 = vector.broadcast %1565 : f32 to vector<32x32xf32>
    %1567 = arith.addf %1564, %1566 : vector<32x32xf32>
    %cst_867 = arith.constant 0.000000e+00 : f32
    %cst_868 = arith.constant 5.000000e-01 : f32
    %1568 = vector.broadcast %cst_867 : f32 to vector<32x32xf32>
    %1569 = arith.maximumf %1568, %1567 : vector<32x32xf32>
    %1570 = vector.broadcast %cst_868 : f32 to vector<32x32xf32>
    %1571 = arith.minimumf %1570, %1569 : vector<32x32xf32>
    %c0_869 = arith.constant 0 : index
    %c12_870 = arith.constant 12 : index
    %c0_871 = arith.constant 0 : index
    %c0_872 = arith.constant 0 : index
    %1572 = vector.load %arg4[%c0_869, %c12_870, %c0_871, %c0_872] : memref<1x16x32x32xf32, #tpu.memory_space<vmem>>, vector<1x1x32x32xf32>
    %1573 = vector.shape_cast %1572 : vector<1x1x32x32xf32> to vector<32x32xf32>
    %1574 = vector.shape_cast %1571 : vector<32x32xf32> to vector<1x1x32x32xf32>
    tpu.vector_store %arg4[%c0_869, %c12_870, %c0_871, %c0_872], %1574 {strides = array<i32>} : memref<1x16x32x32xf32, #tpu.memory_space<vmem>>, vector<1x1x32x32xf32>,
    %c13_873 = arith.constant 13 : index
    %c0_874 = arith.constant 0 : index
    %1575 = memref.load %arg2[%c13_873, %c0_874] : memref<16x27xf32, #tpu.memory_space<smem>>
    %1576 = vector.broadcast %1575 : f32 to vector<32x32xf32>
    %1577 = arith.mulf %1576, %1 : vector<32x32xf32>
    %c13_875 = arith.constant 13 : index
    %c1_876 = arith.constant 1 : index
    %1578 = memref.load %arg2[%c13_875, %c1_876] : memref<16x27xf32, #tpu.memory_space<smem>>
    %1579 = vector.broadcast %1578 : f32 to vector<32x32xf32>
    %1580 = arith.mulf %1579, %3 : vector<32x32xf32>
    %1581 = arith.addf %1577, %1580 : vector<32x32xf32>
    %c13_877 = arith.constant 13 : index
    %c2_878 = arith.constant 2 : index
    %1582 = memref.load %arg2[%c13_877, %c2_878] : memref<16x27xf32, #tpu.memory_space<smem>>
    %1583 = vector.broadcast %1582 : f32 to vector<32x32xf32>
    %1584 = arith.mulf %1583, %5 : vector<32x32xf32>
    %1585 = arith.addf %1581, %1584 : vector<32x32xf32>
    %c13_879 = arith.constant 13 : index
    %c3_880 = arith.constant 3 : index
    %1586 = memref.load %arg2[%c13_879, %c3_880] : memref<16x27xf32, #tpu.memory_space<smem>>
    %1587 = vector.broadcast %1586 : f32 to vector<32x32xf32>
    %1588 = arith.mulf %1587, %7 : vector<32x32xf32>
    %1589 = arith.addf %1585, %1588 : vector<32x32xf32>
    %c13_881 = arith.constant 13 : index
    %c4_882 = arith.constant 4 : index
    %1590 = memref.load %arg2[%c13_881, %c4_882] : memref<16x27xf32, #tpu.memory_space<smem>>
    %1591 = vector.broadcast %1590 : f32 to vector<32x32xf32>
    %1592 = arith.mulf %1591, %9 : vector<32x32xf32>
    %1593 = arith.addf %1589, %1592 : vector<32x32xf32>
    %c13_883 = arith.constant 13 : index
    %c5_884 = arith.constant 5 : index
    %1594 = memref.load %arg2[%c13_883, %c5_884] : memref<16x27xf32, #tpu.memory_space<smem>>
    %1595 = vector.broadcast %1594 : f32 to vector<32x32xf32>
    %1596 = arith.mulf %1595, %11 : vector<32x32xf32>
    %1597 = arith.addf %1593, %1596 : vector<32x32xf32>
    %c13_885 = arith.constant 13 : index
    %c6_886 = arith.constant 6 : index
    %1598 = memref.load %arg2[%c13_885, %c6_886] : memref<16x27xf32, #tpu.memory_space<smem>>
    %1599 = vector.broadcast %1598 : f32 to vector<32x32xf32>
    %1600 = arith.mulf %1599, %13 : vector<32x32xf32>
    %1601 = arith.addf %1597, %1600 : vector<32x32xf32>
    %c13_887 = arith.constant 13 : index
    %c7_888 = arith.constant 7 : index
    %1602 = memref.load %arg2[%c13_887, %c7_888] : memref<16x27xf32, #tpu.memory_space<smem>>
    %1603 = vector.broadcast %1602 : f32 to vector<32x32xf32>
    %1604 = arith.mulf %1603, %15 : vector<32x32xf32>
    %1605 = arith.addf %1601, %1604 : vector<32x32xf32>
    %c13_889 = arith.constant 13 : index
    %c8_890 = arith.constant 8 : index
    %1606 = memref.load %arg2[%c13_889, %c8_890] : memref<16x27xf32, #tpu.memory_space<smem>>
    %1607 = vector.broadcast %1606 : f32 to vector<32x32xf32>
    %1608 = arith.mulf %1607, %17 : vector<32x32xf32>
    %1609 = arith.addf %1605, %1608 : vector<32x32xf32>
    %c13_891 = arith.constant 13 : index
    %c9_892 = arith.constant 9 : index
    %1610 = memref.load %arg2[%c13_891, %c9_892] : memref<16x27xf32, #tpu.memory_space<smem>>
    %1611 = vector.broadcast %1610 : f32 to vector<32x32xf32>
    %1612 = arith.mulf %1611, %19 : vector<32x32xf32>
    %1613 = arith.addf %1609, %1612 : vector<32x32xf32>
    %c13_893 = arith.constant 13 : index
    %c10_894 = arith.constant 10 : index
    %1614 = memref.load %arg2[%c13_893, %c10_894] : memref<16x27xf32, #tpu.memory_space<smem>>
    %1615 = vector.broadcast %1614 : f32 to vector<32x32xf32>
    %1616 = arith.mulf %1615, %21 : vector<32x32xf32>
    %1617 = arith.addf %1613, %1616 : vector<32x32xf32>
    %c13_895 = arith.constant 13 : index
    %c11_896 = arith.constant 11 : index
    %1618 = memref.load %arg2[%c13_895, %c11_896] : memref<16x27xf32, #tpu.memory_space<smem>>
    %1619 = vector.broadcast %1618 : f32 to vector<32x32xf32>
    %1620 = arith.mulf %1619, %23 : vector<32x32xf32>
    %1621 = arith.addf %1617, %1620 : vector<32x32xf32>
    %c13_897 = arith.constant 13 : index
    %c12_898 = arith.constant 12 : index
    %1622 = memref.load %arg2[%c13_897, %c12_898] : memref<16x27xf32, #tpu.memory_space<smem>>
    %1623 = vector.broadcast %1622 : f32 to vector<32x32xf32>
    %1624 = arith.mulf %1623, %25 : vector<32x32xf32>
    %1625 = arith.addf %1621, %1624 : vector<32x32xf32>
    %c13_899 = arith.constant 13 : index
    %c13_900 = arith.constant 13 : index
    %1626 = memref.load %arg2[%c13_899, %c13_900] : memref<16x27xf32, #tpu.memory_space<smem>>
    %1627 = vector.broadcast %1626 : f32 to vector<32x32xf32>
    %1628 = arith.mulf %1627, %27 : vector<32x32xf32>
    %1629 = arith.addf %1625, %1628 : vector<32x32xf32>
    %c13_901 = arith.constant 13 : index
    %c14_902 = arith.constant 14 : index
    %1630 = memref.load %arg2[%c13_901, %c14_902] : memref<16x27xf32, #tpu.memory_space<smem>>
    %1631 = vector.broadcast %1630 : f32 to vector<32x32xf32>
    %1632 = arith.mulf %1631, %29 : vector<32x32xf32>
    %1633 = arith.addf %1629, %1632 : vector<32x32xf32>
    %c13_903 = arith.constant 13 : index
    %c15_904 = arith.constant 15 : index
    %1634 = memref.load %arg2[%c13_903, %c15_904] : memref<16x27xf32, #tpu.memory_space<smem>>
    %1635 = vector.broadcast %1634 : f32 to vector<32x32xf32>
    %1636 = arith.mulf %1635, %31 : vector<32x32xf32>
    %1637 = arith.addf %1633, %1636 : vector<32x32xf32>
    %c13_905 = arith.constant 13 : index
    %c16_906 = arith.constant 16 : index
    %1638 = memref.load %arg2[%c13_905, %c16_906] : memref<16x27xf32, #tpu.memory_space<smem>>
    %1639 = vector.broadcast %1638 : f32 to vector<32x32xf32>
    %1640 = arith.mulf %1639, %33 : vector<32x32xf32>
    %1641 = arith.addf %1637, %1640 : vector<32x32xf32>
    %c13_907 = arith.constant 13 : index
    %c17_908 = arith.constant 17 : index
    %1642 = memref.load %arg2[%c13_907, %c17_908] : memref<16x27xf32, #tpu.memory_space<smem>>
    %1643 = vector.broadcast %1642 : f32 to vector<32x32xf32>
    %1644 = arith.mulf %1643, %35 : vector<32x32xf32>
    %1645 = arith.addf %1641, %1644 : vector<32x32xf32>
    %c13_909 = arith.constant 13 : index
    %c18_910 = arith.constant 18 : index
    %1646 = memref.load %arg2[%c13_909, %c18_910] : memref<16x27xf32, #tpu.memory_space<smem>>
    %1647 = vector.broadcast %1646 : f32 to vector<32x32xf32>
    %1648 = arith.mulf %1647, %37 : vector<32x32xf32>
    %1649 = arith.addf %1645, %1648 : vector<32x32xf32>
    %c13_911 = arith.constant 13 : index
    %c19_912 = arith.constant 19 : index
    %1650 = memref.load %arg2[%c13_911, %c19_912] : memref<16x27xf32, #tpu.memory_space<smem>>
    %1651 = vector.broadcast %1650 : f32 to vector<32x32xf32>
    %1652 = arith.mulf %1651, %39 : vector<32x32xf32>
    %1653 = arith.addf %1649, %1652 : vector<32x32xf32>
    %c13_913 = arith.constant 13 : index
    %c20_914 = arith.constant 20 : index
    %1654 = memref.load %arg2[%c13_913, %c20_914] : memref<16x27xf32, #tpu.memory_space<smem>>
    %1655 = vector.broadcast %1654 : f32 to vector<32x32xf32>
    %1656 = arith.mulf %1655, %41 : vector<32x32xf32>
    %1657 = arith.addf %1653, %1656 : vector<32x32xf32>
    %c13_915 = arith.constant 13 : index
    %c21_916 = arith.constant 21 : index
    %1658 = memref.load %arg2[%c13_915, %c21_916] : memref<16x27xf32, #tpu.memory_space<smem>>
    %1659 = vector.broadcast %1658 : f32 to vector<32x32xf32>
    %1660 = arith.mulf %1659, %43 : vector<32x32xf32>
    %1661 = arith.addf %1657, %1660 : vector<32x32xf32>
    %c13_917 = arith.constant 13 : index
    %c22_918 = arith.constant 22 : index
    %1662 = memref.load %arg2[%c13_917, %c22_918] : memref<16x27xf32, #tpu.memory_space<smem>>
    %1663 = vector.broadcast %1662 : f32 to vector<32x32xf32>
    %1664 = arith.mulf %1663, %45 : vector<32x32xf32>
    %1665 = arith.addf %1661, %1664 : vector<32x32xf32>
    %c13_919 = arith.constant 13 : index
    %c23_920 = arith.constant 23 : index
    %1666 = memref.load %arg2[%c13_919, %c23_920] : memref<16x27xf32, #tpu.memory_space<smem>>
    %1667 = vector.broadcast %1666 : f32 to vector<32x32xf32>
    %1668 = arith.mulf %1667, %47 : vector<32x32xf32>
    %1669 = arith.addf %1665, %1668 : vector<32x32xf32>
    %c13_921 = arith.constant 13 : index
    %c24_922 = arith.constant 24 : index
    %1670 = memref.load %arg2[%c13_921, %c24_922] : memref<16x27xf32, #tpu.memory_space<smem>>
    %1671 = vector.broadcast %1670 : f32 to vector<32x32xf32>
    %1672 = arith.mulf %1671, %49 : vector<32x32xf32>
    %1673 = arith.addf %1669, %1672 : vector<32x32xf32>
    %c13_923 = arith.constant 13 : index
    %c25_924 = arith.constant 25 : index
    %1674 = memref.load %arg2[%c13_923, %c25_924] : memref<16x27xf32, #tpu.memory_space<smem>>
    %1675 = vector.broadcast %1674 : f32 to vector<32x32xf32>
    %1676 = arith.mulf %1675, %51 : vector<32x32xf32>
    %1677 = arith.addf %1673, %1676 : vector<32x32xf32>
    %c13_925 = arith.constant 13 : index
    %c26_926 = arith.constant 26 : index
    %1678 = memref.load %arg2[%c13_925, %c26_926] : memref<16x27xf32, #tpu.memory_space<smem>>
    %1679 = vector.broadcast %1678 : f32 to vector<32x32xf32>
    %1680 = arith.mulf %1679, %53 : vector<32x32xf32>
    %1681 = arith.addf %1677, %1680 : vector<32x32xf32>
    %c13_927 = arith.constant 13 : index
    %1682 = memref.load %arg3[%c13_927] : memref<16xf32, #tpu.memory_space<smem>>
    %1683 = vector.broadcast %1682 : f32 to vector<32x32xf32>
    %1684 = arith.addf %1681, %1683 : vector<32x32xf32>
    %cst_928 = arith.constant 0.000000e+00 : f32
    %cst_929 = arith.constant 5.000000e-01 : f32
    %1685 = vector.broadcast %cst_928 : f32 to vector<32x32xf32>
    %1686 = arith.maximumf %1685, %1684 : vector<32x32xf32>
    %1687 = vector.broadcast %cst_929 : f32 to vector<32x32xf32>
    %1688 = arith.minimumf %1687, %1686 : vector<32x32xf32>
    %c0_930 = arith.constant 0 : index
    %c13_931 = arith.constant 13 : index
    %c0_932 = arith.constant 0 : index
    %c0_933 = arith.constant 0 : index
    %1689 = vector.load %arg4[%c0_930, %c13_931, %c0_932, %c0_933] : memref<1x16x32x32xf32, #tpu.memory_space<vmem>>, vector<1x1x32x32xf32>
    %1690 = vector.shape_cast %1689 : vector<1x1x32x32xf32> to vector<32x32xf32>
    %1691 = vector.shape_cast %1688 : vector<32x32xf32> to vector<1x1x32x32xf32>
    tpu.vector_store %arg4[%c0_930, %c13_931, %c0_932, %c0_933], %1691 {strides = array<i32>} : memref<1x16x32x32xf32, #tpu.memory_space<vmem>>, vector<1x1x32x32xf32>,
    %c14_934 = arith.constant 14 : index
    %c0_935 = arith.constant 0 : index
    %1692 = memref.load %arg2[%c14_934, %c0_935] : memref<16x27xf32, #tpu.memory_space<smem>>
    %1693 = vector.broadcast %1692 : f32 to vector<32x32xf32>
    %1694 = arith.mulf %1693, %1 : vector<32x32xf32>
    %c14_936 = arith.constant 14 : index
    %c1_937 = arith.constant 1 : index
    %1695 = memref.load %arg2[%c14_936, %c1_937] : memref<16x27xf32, #tpu.memory_space<smem>>
    %1696 = vector.broadcast %1695 : f32 to vector<32x32xf32>
    %1697 = arith.mulf %1696, %3 : vector<32x32xf32>
    %1698 = arith.addf %1694, %1697 : vector<32x32xf32>
    %c14_938 = arith.constant 14 : index
    %c2_939 = arith.constant 2 : index
    %1699 = memref.load %arg2[%c14_938, %c2_939] : memref<16x27xf32, #tpu.memory_space<smem>>
    %1700 = vector.broadcast %1699 : f32 to vector<32x32xf32>
    %1701 = arith.mulf %1700, %5 : vector<32x32xf32>
    %1702 = arith.addf %1698, %1701 : vector<32x32xf32>
    %c14_940 = arith.constant 14 : index
    %c3_941 = arith.constant 3 : index
    %1703 = memref.load %arg2[%c14_940, %c3_941] : memref<16x27xf32, #tpu.memory_space<smem>>
    %1704 = vector.broadcast %1703 : f32 to vector<32x32xf32>
    %1705 = arith.mulf %1704, %7 : vector<32x32xf32>
    %1706 = arith.addf %1702, %1705 : vector<32x32xf32>
    %c14_942 = arith.constant 14 : index
    %c4_943 = arith.constant 4 : index
    %1707 = memref.load %arg2[%c14_942, %c4_943] : memref<16x27xf32, #tpu.memory_space<smem>>
    %1708 = vector.broadcast %1707 : f32 to vector<32x32xf32>
    %1709 = arith.mulf %1708, %9 : vector<32x32xf32>
    %1710 = arith.addf %1706, %1709 : vector<32x32xf32>
    %c14_944 = arith.constant 14 : index
    %c5_945 = arith.constant 5 : index
    %1711 = memref.load %arg2[%c14_944, %c5_945] : memref<16x27xf32, #tpu.memory_space<smem>>
    %1712 = vector.broadcast %1711 : f32 to vector<32x32xf32>
    %1713 = arith.mulf %1712, %11 : vector<32x32xf32>
    %1714 = arith.addf %1710, %1713 : vector<32x32xf32>
    %c14_946 = arith.constant 14 : index
    %c6_947 = arith.constant 6 : index
    %1715 = memref.load %arg2[%c14_946, %c6_947] : memref<16x27xf32, #tpu.memory_space<smem>>
    %1716 = vector.broadcast %1715 : f32 to vector<32x32xf32>
    %1717 = arith.mulf %1716, %13 : vector<32x32xf32>
    %1718 = arith.addf %1714, %1717 : vector<32x32xf32>
    %c14_948 = arith.constant 14 : index
    %c7_949 = arith.constant 7 : index
    %1719 = memref.load %arg2[%c14_948, %c7_949] : memref<16x27xf32, #tpu.memory_space<smem>>
    %1720 = vector.broadcast %1719 : f32 to vector<32x32xf32>
    %1721 = arith.mulf %1720, %15 : vector<32x32xf32>
    %1722 = arith.addf %1718, %1721 : vector<32x32xf32>
    %c14_950 = arith.constant 14 : index
    %c8_951 = arith.constant 8 : index
    %1723 = memref.load %arg2[%c14_950, %c8_951] : memref<16x27xf32, #tpu.memory_space<smem>>
    %1724 = vector.broadcast %1723 : f32 to vector<32x32xf32>
    %1725 = arith.mulf %1724, %17 : vector<32x32xf32>
    %1726 = arith.addf %1722, %1725 : vector<32x32xf32>
    %c14_952 = arith.constant 14 : index
    %c9_953 = arith.constant 9 : index
    %1727 = memref.load %arg2[%c14_952, %c9_953] : memref<16x27xf32, #tpu.memory_space<smem>>
    %1728 = vector.broadcast %1727 : f32 to vector<32x32xf32>
    %1729 = arith.mulf %1728, %19 : vector<32x32xf32>
    %1730 = arith.addf %1726, %1729 : vector<32x32xf32>
    %c14_954 = arith.constant 14 : index
    %c10_955 = arith.constant 10 : index
    %1731 = memref.load %arg2[%c14_954, %c10_955] : memref<16x27xf32, #tpu.memory_space<smem>>
    %1732 = vector.broadcast %1731 : f32 to vector<32x32xf32>
    %1733 = arith.mulf %1732, %21 : vector<32x32xf32>
    %1734 = arith.addf %1730, %1733 : vector<32x32xf32>
    %c14_956 = arith.constant 14 : index
    %c11_957 = arith.constant 11 : index
    %1735 = memref.load %arg2[%c14_956, %c11_957] : memref<16x27xf32, #tpu.memory_space<smem>>
    %1736 = vector.broadcast %1735 : f32 to vector<32x32xf32>
    %1737 = arith.mulf %1736, %23 : vector<32x32xf32>
    %1738 = arith.addf %1734, %1737 : vector<32x32xf32>
    %c14_958 = arith.constant 14 : index
    %c12_959 = arith.constant 12 : index
    %1739 = memref.load %arg2[%c14_958, %c12_959] : memref<16x27xf32, #tpu.memory_space<smem>>
    %1740 = vector.broadcast %1739 : f32 to vector<32x32xf32>
    %1741 = arith.mulf %1740, %25 : vector<32x32xf32>
    %1742 = arith.addf %1738, %1741 : vector<32x32xf32>
    %c14_960 = arith.constant 14 : index
    %c13_961 = arith.constant 13 : index
    %1743 = memref.load %arg2[%c14_960, %c13_961] : memref<16x27xf32, #tpu.memory_space<smem>>
    %1744 = vector.broadcast %1743 : f32 to vector<32x32xf32>
    %1745 = arith.mulf %1744, %27 : vector<32x32xf32>
    %1746 = arith.addf %1742, %1745 : vector<32x32xf32>
    %c14_962 = arith.constant 14 : index
    %c14_963 = arith.constant 14 : index
    %1747 = memref.load %arg2[%c14_962, %c14_963] : memref<16x27xf32, #tpu.memory_space<smem>>
    %1748 = vector.broadcast %1747 : f32 to vector<32x32xf32>
    %1749 = arith.mulf %1748, %29 : vector<32x32xf32>
    %1750 = arith.addf %1746, %1749 : vector<32x32xf32>
    %c14_964 = arith.constant 14 : index
    %c15_965 = arith.constant 15 : index
    %1751 = memref.load %arg2[%c14_964, %c15_965] : memref<16x27xf32, #tpu.memory_space<smem>>
    %1752 = vector.broadcast %1751 : f32 to vector<32x32xf32>
    %1753 = arith.mulf %1752, %31 : vector<32x32xf32>
    %1754 = arith.addf %1750, %1753 : vector<32x32xf32>
    %c14_966 = arith.constant 14 : index
    %c16_967 = arith.constant 16 : index
    %1755 = memref.load %arg2[%c14_966, %c16_967] : memref<16x27xf32, #tpu.memory_space<smem>>
    %1756 = vector.broadcast %1755 : f32 to vector<32x32xf32>
    %1757 = arith.mulf %1756, %33 : vector<32x32xf32>
    %1758 = arith.addf %1754, %1757 : vector<32x32xf32>
    %c14_968 = arith.constant 14 : index
    %c17_969 = arith.constant 17 : index
    %1759 = memref.load %arg2[%c14_968, %c17_969] : memref<16x27xf32, #tpu.memory_space<smem>>
    %1760 = vector.broadcast %1759 : f32 to vector<32x32xf32>
    %1761 = arith.mulf %1760, %35 : vector<32x32xf32>
    %1762 = arith.addf %1758, %1761 : vector<32x32xf32>
    %c14_970 = arith.constant 14 : index
    %c18_971 = arith.constant 18 : index
    %1763 = memref.load %arg2[%c14_970, %c18_971] : memref<16x27xf32, #tpu.memory_space<smem>>
    %1764 = vector.broadcast %1763 : f32 to vector<32x32xf32>
    %1765 = arith.mulf %1764, %37 : vector<32x32xf32>
    %1766 = arith.addf %1762, %1765 : vector<32x32xf32>
    %c14_972 = arith.constant 14 : index
    %c19_973 = arith.constant 19 : index
    %1767 = memref.load %arg2[%c14_972, %c19_973] : memref<16x27xf32, #tpu.memory_space<smem>>
    %1768 = vector.broadcast %1767 : f32 to vector<32x32xf32>
    %1769 = arith.mulf %1768, %39 : vector<32x32xf32>
    %1770 = arith.addf %1766, %1769 : vector<32x32xf32>
    %c14_974 = arith.constant 14 : index
    %c20_975 = arith.constant 20 : index
    %1771 = memref.load %arg2[%c14_974, %c20_975] : memref<16x27xf32, #tpu.memory_space<smem>>
    %1772 = vector.broadcast %1771 : f32 to vector<32x32xf32>
    %1773 = arith.mulf %1772, %41 : vector<32x32xf32>
    %1774 = arith.addf %1770, %1773 : vector<32x32xf32>
    %c14_976 = arith.constant 14 : index
    %c21_977 = arith.constant 21 : index
    %1775 = memref.load %arg2[%c14_976, %c21_977] : memref<16x27xf32, #tpu.memory_space<smem>>
    %1776 = vector.broadcast %1775 : f32 to vector<32x32xf32>
    %1777 = arith.mulf %1776, %43 : vector<32x32xf32>
    %1778 = arith.addf %1774, %1777 : vector<32x32xf32>
    %c14_978 = arith.constant 14 : index
    %c22_979 = arith.constant 22 : index
    %1779 = memref.load %arg2[%c14_978, %c22_979] : memref<16x27xf32, #tpu.memory_space<smem>>
    %1780 = vector.broadcast %1779 : f32 to vector<32x32xf32>
    %1781 = arith.mulf %1780, %45 : vector<32x32xf32>
    %1782 = arith.addf %1778, %1781 : vector<32x32xf32>
    %c14_980 = arith.constant 14 : index
    %c23_981 = arith.constant 23 : index
    %1783 = memref.load %arg2[%c14_980, %c23_981] : memref<16x27xf32, #tpu.memory_space<smem>>
    %1784 = vector.broadcast %1783 : f32 to vector<32x32xf32>
    %1785 = arith.mulf %1784, %47 : vector<32x32xf32>
    %1786 = arith.addf %1782, %1785 : vector<32x32xf32>
    %c14_982 = arith.constant 14 : index
    %c24_983 = arith.constant 24 : index
    %1787 = memref.load %arg2[%c14_982, %c24_983] : memref<16x27xf32, #tpu.memory_space<smem>>
    %1788 = vector.broadcast %1787 : f32 to vector<32x32xf32>
    %1789 = arith.mulf %1788, %49 : vector<32x32xf32>
    %1790 = arith.addf %1786, %1789 : vector<32x32xf32>
    %c14_984 = arith.constant 14 : index
    %c25_985 = arith.constant 25 : index
    %1791 = memref.load %arg2[%c14_984, %c25_985] : memref<16x27xf32, #tpu.memory_space<smem>>
    %1792 = vector.broadcast %1791 : f32 to vector<32x32xf32>
    %1793 = arith.mulf %1792, %51 : vector<32x32xf32>
    %1794 = arith.addf %1790, %1793 : vector<32x32xf32>
    %c14_986 = arith.constant 14 : index
    %c26_987 = arith.constant 26 : index
    %1795 = memref.load %arg2[%c14_986, %c26_987] : memref<16x27xf32, #tpu.memory_space<smem>>
    %1796 = vector.broadcast %1795 : f32 to vector<32x32xf32>
    %1797 = arith.mulf %1796, %53 : vector<32x32xf32>
    %1798 = arith.addf %1794, %1797 : vector<32x32xf32>
    %c14_988 = arith.constant 14 : index
    %1799 = memref.load %arg3[%c14_988] : memref<16xf32, #tpu.memory_space<smem>>
    %1800 = vector.broadcast %1799 : f32 to vector<32x32xf32>
    %1801 = arith.addf %1798, %1800 : vector<32x32xf32>
    %cst_989 = arith.constant 0.000000e+00 : f32
    %cst_990 = arith.constant 5.000000e-01 : f32
    %1802 = vector.broadcast %cst_989 : f32 to vector<32x32xf32>
    %1803 = arith.maximumf %1802, %1801 : vector<32x32xf32>
    %1804 = vector.broadcast %cst_990 : f32 to vector<32x32xf32>
    %1805 = arith.minimumf %1804, %1803 : vector<32x32xf32>
    %c0_991 = arith.constant 0 : index
    %c14_992 = arith.constant 14 : index
    %c0_993 = arith.constant 0 : index
    %c0_994 = arith.constant 0 : index
    %1806 = vector.load %arg4[%c0_991, %c14_992, %c0_993, %c0_994] : memref<1x16x32x32xf32, #tpu.memory_space<vmem>>, vector<1x1x32x32xf32>
    %1807 = vector.shape_cast %1806 : vector<1x1x32x32xf32> to vector<32x32xf32>
    %1808 = vector.shape_cast %1805 : vector<32x32xf32> to vector<1x1x32x32xf32>
    tpu.vector_store %arg4[%c0_991, %c14_992, %c0_993, %c0_994], %1808 {strides = array<i32>} : memref<1x16x32x32xf32, #tpu.memory_space<vmem>>, vector<1x1x32x32xf32>,
    %c15_995 = arith.constant 15 : index
    %c0_996 = arith.constant 0 : index
    %1809 = memref.load %arg2[%c15_995, %c0_996] : memref<16x27xf32, #tpu.memory_space<smem>>
    %1810 = vector.broadcast %1809 : f32 to vector<32x32xf32>
    %1811 = arith.mulf %1810, %1 : vector<32x32xf32>
    %c15_997 = arith.constant 15 : index
    %c1_998 = arith.constant 1 : index
    %1812 = memref.load %arg2[%c15_997, %c1_998] : memref<16x27xf32, #tpu.memory_space<smem>>
    %1813 = vector.broadcast %1812 : f32 to vector<32x32xf32>
    %1814 = arith.mulf %1813, %3 : vector<32x32xf32>
    %1815 = arith.addf %1811, %1814 : vector<32x32xf32>
    %c15_999 = arith.constant 15 : index
    %c2_1000 = arith.constant 2 : index
    %1816 = memref.load %arg2[%c15_999, %c2_1000] : memref<16x27xf32, #tpu.memory_space<smem>>
    %1817 = vector.broadcast %1816 : f32 to vector<32x32xf32>
    %1818 = arith.mulf %1817, %5 : vector<32x32xf32>
    %1819 = arith.addf %1815, %1818 : vector<32x32xf32>
    %c15_1001 = arith.constant 15 : index
    %c3_1002 = arith.constant 3 : index
    %1820 = memref.load %arg2[%c15_1001, %c3_1002] : memref<16x27xf32, #tpu.memory_space<smem>>
    %1821 = vector.broadcast %1820 : f32 to vector<32x32xf32>
    %1822 = arith.mulf %1821, %7 : vector<32x32xf32>
    %1823 = arith.addf %1819, %1822 : vector<32x32xf32>
    %c15_1003 = arith.constant 15 : index
    %c4_1004 = arith.constant 4 : index
    %1824 = memref.load %arg2[%c15_1003, %c4_1004] : memref<16x27xf32, #tpu.memory_space<smem>>
    %1825 = vector.broadcast %1824 : f32 to vector<32x32xf32>
    %1826 = arith.mulf %1825, %9 : vector<32x32xf32>
    %1827 = arith.addf %1823, %1826 : vector<32x32xf32>
    %c15_1005 = arith.constant 15 : index
    %c5_1006 = arith.constant 5 : index
    %1828 = memref.load %arg2[%c15_1005, %c5_1006] : memref<16x27xf32, #tpu.memory_space<smem>>
    %1829 = vector.broadcast %1828 : f32 to vector<32x32xf32>
    %1830 = arith.mulf %1829, %11 : vector<32x32xf32>
    %1831 = arith.addf %1827, %1830 : vector<32x32xf32>
    %c15_1007 = arith.constant 15 : index
    %c6_1008 = arith.constant 6 : index
    %1832 = memref.load %arg2[%c15_1007, %c6_1008] : memref<16x27xf32, #tpu.memory_space<smem>>
    %1833 = vector.broadcast %1832 : f32 to vector<32x32xf32>
    %1834 = arith.mulf %1833, %13 : vector<32x32xf32>
    %1835 = arith.addf %1831, %1834 : vector<32x32xf32>
    %c15_1009 = arith.constant 15 : index
    %c7_1010 = arith.constant 7 : index
    %1836 = memref.load %arg2[%c15_1009, %c7_1010] : memref<16x27xf32, #tpu.memory_space<smem>>
    %1837 = vector.broadcast %1836 : f32 to vector<32x32xf32>
    %1838 = arith.mulf %1837, %15 : vector<32x32xf32>
    %1839 = arith.addf %1835, %1838 : vector<32x32xf32>
    %c15_1011 = arith.constant 15 : index
    %c8_1012 = arith.constant 8 : index
    %1840 = memref.load %arg2[%c15_1011, %c8_1012] : memref<16x27xf32, #tpu.memory_space<smem>>
    %1841 = vector.broadcast %1840 : f32 to vector<32x32xf32>
    %1842 = arith.mulf %1841, %17 : vector<32x32xf32>
    %1843 = arith.addf %1839, %1842 : vector<32x32xf32>
    %c15_1013 = arith.constant 15 : index
    %c9_1014 = arith.constant 9 : index
    %1844 = memref.load %arg2[%c15_1013, %c9_1014] : memref<16x27xf32, #tpu.memory_space<smem>>
    %1845 = vector.broadcast %1844 : f32 to vector<32x32xf32>
    %1846 = arith.mulf %1845, %19 : vector<32x32xf32>
    %1847 = arith.addf %1843, %1846 : vector<32x32xf32>
    %c15_1015 = arith.constant 15 : index
    %c10_1016 = arith.constant 10 : index
    %1848 = memref.load %arg2[%c15_1015, %c10_1016] : memref<16x27xf32, #tpu.memory_space<smem>>
    %1849 = vector.broadcast %1848 : f32 to vector<32x32xf32>
    %1850 = arith.mulf %1849, %21 : vector<32x32xf32>
    %1851 = arith.addf %1847, %1850 : vector<32x32xf32>
    %c15_1017 = arith.constant 15 : index
    %c11_1018 = arith.constant 11 : index
    %1852 = memref.load %arg2[%c15_1017, %c11_1018] : memref<16x27xf32, #tpu.memory_space<smem>>
    %1853 = vector.broadcast %1852 : f32 to vector<32x32xf32>
    %1854 = arith.mulf %1853, %23 : vector<32x32xf32>
    %1855 = arith.addf %1851, %1854 : vector<32x32xf32>
    %c15_1019 = arith.constant 15 : index
    %c12_1020 = arith.constant 12 : index
    %1856 = memref.load %arg2[%c15_1019, %c12_1020] : memref<16x27xf32, #tpu.memory_space<smem>>
    %1857 = vector.broadcast %1856 : f32 to vector<32x32xf32>
    %1858 = arith.mulf %1857, %25 : vector<32x32xf32>
    %1859 = arith.addf %1855, %1858 : vector<32x32xf32>
    %c15_1021 = arith.constant 15 : index
    %c13_1022 = arith.constant 13 : index
    %1860 = memref.load %arg2[%c15_1021, %c13_1022] : memref<16x27xf32, #tpu.memory_space<smem>>
    %1861 = vector.broadcast %1860 : f32 to vector<32x32xf32>
    %1862 = arith.mulf %1861, %27 : vector<32x32xf32>
    %1863 = arith.addf %1859, %1862 : vector<32x32xf32>
    %c15_1023 = arith.constant 15 : index
    %c14_1024 = arith.constant 14 : index
    %1864 = memref.load %arg2[%c15_1023, %c14_1024] : memref<16x27xf32, #tpu.memory_space<smem>>
    %1865 = vector.broadcast %1864 : f32 to vector<32x32xf32>
    %1866 = arith.mulf %1865, %29 : vector<32x32xf32>
    %1867 = arith.addf %1863, %1866 : vector<32x32xf32>
    %c15_1025 = arith.constant 15 : index
    %c15_1026 = arith.constant 15 : index
    %1868 = memref.load %arg2[%c15_1025, %c15_1026] : memref<16x27xf32, #tpu.memory_space<smem>>
    %1869 = vector.broadcast %1868 : f32 to vector<32x32xf32>
    %1870 = arith.mulf %1869, %31 : vector<32x32xf32>
    %1871 = arith.addf %1867, %1870 : vector<32x32xf32>
    %c15_1027 = arith.constant 15 : index
    %c16_1028 = arith.constant 16 : index
    %1872 = memref.load %arg2[%c15_1027, %c16_1028] : memref<16x27xf32, #tpu.memory_space<smem>>
    %1873 = vector.broadcast %1872 : f32 to vector<32x32xf32>
    %1874 = arith.mulf %1873, %33 : vector<32x32xf32>
    %1875 = arith.addf %1871, %1874 : vector<32x32xf32>
    %c15_1029 = arith.constant 15 : index
    %c17_1030 = arith.constant 17 : index
    %1876 = memref.load %arg2[%c15_1029, %c17_1030] : memref<16x27xf32, #tpu.memory_space<smem>>
    %1877 = vector.broadcast %1876 : f32 to vector<32x32xf32>
    %1878 = arith.mulf %1877, %35 : vector<32x32xf32>
    %1879 = arith.addf %1875, %1878 : vector<32x32xf32>
    %c15_1031 = arith.constant 15 : index
    %c18_1032 = arith.constant 18 : index
    %1880 = memref.load %arg2[%c15_1031, %c18_1032] : memref<16x27xf32, #tpu.memory_space<smem>>
    %1881 = vector.broadcast %1880 : f32 to vector<32x32xf32>
    %1882 = arith.mulf %1881, %37 : vector<32x32xf32>
    %1883 = arith.addf %1879, %1882 : vector<32x32xf32>
    %c15_1033 = arith.constant 15 : index
    %c19_1034 = arith.constant 19 : index
    %1884 = memref.load %arg2[%c15_1033, %c19_1034] : memref<16x27xf32, #tpu.memory_space<smem>>
    %1885 = vector.broadcast %1884 : f32 to vector<32x32xf32>
    %1886 = arith.mulf %1885, %39 : vector<32x32xf32>
    %1887 = arith.addf %1883, %1886 : vector<32x32xf32>
    %c15_1035 = arith.constant 15 : index
    %c20_1036 = arith.constant 20 : index
    %1888 = memref.load %arg2[%c15_1035, %c20_1036] : memref<16x27xf32, #tpu.memory_space<smem>>
    %1889 = vector.broadcast %1888 : f32 to vector<32x32xf32>
    %1890 = arith.mulf %1889, %41 : vector<32x32xf32>
    %1891 = arith.addf %1887, %1890 : vector<32x32xf32>
    %c15_1037 = arith.constant 15 : index
    %c21_1038 = arith.constant 21 : index
    %1892 = memref.load %arg2[%c15_1037, %c21_1038] : memref<16x27xf32, #tpu.memory_space<smem>>
    %1893 = vector.broadcast %1892 : f32 to vector<32x32xf32>
    %1894 = arith.mulf %1893, %43 : vector<32x32xf32>
    %1895 = arith.addf %1891, %1894 : vector<32x32xf32>
    %c15_1039 = arith.constant 15 : index
    %c22_1040 = arith.constant 22 : index
    %1896 = memref.load %arg2[%c15_1039, %c22_1040] : memref<16x27xf32, #tpu.memory_space<smem>>
    %1897 = vector.broadcast %1896 : f32 to vector<32x32xf32>
    %1898 = arith.mulf %1897, %45 : vector<32x32xf32>
    %1899 = arith.addf %1895, %1898 : vector<32x32xf32>
    %c15_1041 = arith.constant 15 : index
    %c23_1042 = arith.constant 23 : index
    %1900 = memref.load %arg2[%c15_1041, %c23_1042] : memref<16x27xf32, #tpu.memory_space<smem>>
    %1901 = vector.broadcast %1900 : f32 to vector<32x32xf32>
    %1902 = arith.mulf %1901, %47 : vector<32x32xf32>
    %1903 = arith.addf %1899, %1902 : vector<32x32xf32>
    %c15_1043 = arith.constant 15 : index
    %c24_1044 = arith.constant 24 : index
    %1904 = memref.load %arg2[%c15_1043, %c24_1044] : memref<16x27xf32, #tpu.memory_space<smem>>
    %1905 = vector.broadcast %1904 : f32 to vector<32x32xf32>
    %1906 = arith.mulf %1905, %49 : vector<32x32xf32>
    %1907 = arith.addf %1903, %1906 : vector<32x32xf32>
    %c15_1045 = arith.constant 15 : index
    %c25_1046 = arith.constant 25 : index
    %1908 = memref.load %arg2[%c15_1045, %c25_1046] : memref<16x27xf32, #tpu.memory_space<smem>>
    %1909 = vector.broadcast %1908 : f32 to vector<32x32xf32>
    %1910 = arith.mulf %1909, %51 : vector<32x32xf32>
    %1911 = arith.addf %1907, %1910 : vector<32x32xf32>
    %c15_1047 = arith.constant 15 : index
    %c26_1048 = arith.constant 26 : index
    %1912 = memref.load %arg2[%c15_1047, %c26_1048] : memref<16x27xf32, #tpu.memory_space<smem>>
    %1913 = vector.broadcast %1912 : f32 to vector<32x32xf32>
    %1914 = arith.mulf %1913, %53 : vector<32x32xf32>
    %1915 = arith.addf %1911, %1914 : vector<32x32xf32>
    %c15_1049 = arith.constant 15 : index
    %1916 = memref.load %arg3[%c15_1049] : memref<16xf32, #tpu.memory_space<smem>>
    %1917 = vector.broadcast %1916 : f32 to vector<32x32xf32>
    %1918 = arith.addf %1915, %1917 : vector<32x32xf32>
    %cst_1050 = arith.constant 0.000000e+00 : f32
    %cst_1051 = arith.constant 5.000000e-01 : f32
    %1919 = vector.broadcast %cst_1050 : f32 to vector<32x32xf32>
    %1920 = arith.maximumf %1919, %1918 : vector<32x32xf32>
    %1921 = vector.broadcast %cst_1051 : f32 to vector<32x32xf32>
    %1922 = arith.minimumf %1921, %1920 : vector<32x32xf32>
    %c0_1052 = arith.constant 0 : index
    %c15_1053 = arith.constant 15 : index
    %c0_1054 = arith.constant 0 : index
    %c0_1055 = arith.constant 0 : index
    %1923 = vector.load %arg4[%c0_1052, %c15_1053, %c0_1054, %c0_1055] : memref<1x16x32x32xf32, #tpu.memory_space<vmem>>, vector<1x1x32x32xf32>
    %1924 = vector.shape_cast %1923 : vector<1x1x32x32xf32> to vector<32x32xf32>
    %1925 = vector.shape_cast %1922 : vector<32x32xf32> to vector<1x1x32x32xf32>
    tpu.vector_store %arg4[%c0_1052, %c15_1053, %c0_1054, %c0_1055], %1925 {strides = array<i32>} : memref<1x16x32x32xf32, #tpu.memory_space<vmem>>, vector<1x1x32x32xf32>,
    return
  }
  func.func @transform_0(%arg0: i32) -> (i32, i32, i32, i32) {
    %c0_i32 = arith.constant 0 : i32
    %c0_i32_0 = arith.constant 0 : i32
    %c0_i32_1 = arith.constant 0 : i32
    %c0_i32_2 = arith.constant 0 : i32
    return %arg0, %c0_i32, %c0_i32_0, %c0_i32_1 : i32, i32, i32, i32
  }
  func.func @transform_1(%arg0: i32) -> (i32, i32) {
    %c0_i32 = arith.constant 0 : i32
    %c0_i32_0 = arith.constant 0 : i32
    %c0_i32_1 = arith.constant 0 : i32
    return %c0_i32, %c0_i32_0 : i32, i32
  }
  func.func @transform_2(%arg0: i32) -> i32 {
    %c0_i32 = arith.constant 0 : i32
    %c0_i32_0 = arith.constant 0 : i32
    return %c0_i32 : i32
  }
  func.func @transform_3(%arg0: i32) -> (i32, i32, i32, i32) {
    %c0_i32 = arith.constant 0 : i32
    %c0_i32_0 = arith.constant 0 : i32
    %c0_i32_1 = arith.constant 0 : i32
    %c0_i32_2 = arith.constant 0 : i32
    return %arg0, %c0_i32, %c0_i32_0, %c0_i32_1 : i32, i32, i32, i32
  }
}

</mosaic_0001>

<llo_original>
// kernel: model_forward.1
$region0: #{model_forward.1}
  #allocation0 [shape = 'u32[]', space=smem, size = 0x4, offset = 0x4, fixed_abs, tag = 'smem constant byte address 0x4 - core index']
  #allocation1 [shape = 'u32[144,128]{1,0:T(1,128)}', space=vmem, size = 0x12000, scoped, tag = 'internal scratch']
  %s0 = inlined_call_operand.vmem [shape: f32[2,3,34,34], index: 0, kind: input, shape index: {}]
  %s1 = inlined_call_operand.vmem [shape: f32[16,27], index: 1, kind: input, shape index: {}]
  %s2 = inlined_call_operand.vmem [shape: f32[16], index: 2, kind: input, shape index: {}]
  %s3 = inlined_call_operand.hbm [shape: f32[2,16,32,32], index: 3, kind: output, shape index: {}]
  %s4 = sld [smem:[#allocation0]]
  $region53: #{model_forward.1} parent=0
    _
  %s6 = ssub.s32 1, %s4
  %s7 = scalar_select 0, %s6, %s4
  $region1: #{model_forward.1} parent=0
    #allocation2 [shape = 'u8[8192]{0}', space=smem, size = 0x2000, scoped, tag = 'input window, operand 1, single buffered']
    #allocation3 [shape = 's32[2]{0}', space=sflag, size = 0x8, scoped, tag = 'scoped memory for model_forward.1']
    #allocation4 [shape = 's32[2]{0}', space=sflag, size = 0x8, scoped, tag = 'scoped memory for model_forward.1']
    #allocation5 [shape = 'u8[512]{0}', space=smem, size = 0x200, scoped, tag = 'input window, operand 2, single buffered']
    #allocation6 [shape = 's32[1]{0}', space=sflag, size = 0x4, scoped, tag = 'scoped memory for model_forward.1']
    #allocation7 [shape = 'u8[524288]{0}', space=vmem, size = 0x80000, scoped, tag = 'output window, operand 0']
    %8 = vsyncpa [#allocation4], 0
    %9 = vsyncpa [#allocation6], 0
    %10 = vsyncpa [#allocation3], 0
    %s11 = scalar_lea.sflag [#allocation3], 1
    %12 = vsyncpa %s11, 0
    loop: start=0, step=1, limit=4
    $region2: #{model_forward.1} parent=1 // loop_pre_header
      _
    $region3: #{model_forward.1} parent=1 // loop_header
      %s14 = sphi 0, %s18
      %p15 = scmp.ge.s32.totalorder %s14, 4
      %s24 = sphi 0, %s26
      %s27 = sphi 0, %s24
      %s28 = sphi 0, %s27
      %s44 = sphi 0, %s28
      %s48 = sphi 0, %s48
      %s50 = sphi 0, %s48
      %s51 = sphi 0, %s50
      %s65 = sphi 0, %s51
      %s69 = sphi 0, %s69
      %s71 = sphi 0, %s69
      %s72 = sphi 0, %s71
      %s86 = sphi 0, %s72
      %s92 = sphi 0, %s94
      %s95 = sphi 0, %s92
      %s96 = sphi 0, %s95
      %s112 = sphi 0, %s96
    $region4: #{model_forward.1} parent=1 // loop_header_branch
      %17 = sbr.rel (%p15) target = $region8
    $region5: #{model_forward.1} parent=1 // loop_body
      %s19 = ssub.s32 %s14, 1
      %s20 = ssub.s32 %s14, 2
      %s21 = sadd.s32 %s14, 1
      %s22 = ssub.s32 %s14, %s21
      %p23 = scmp.eq.s32.totalorder %s22, 0
      %s25 = sadd.s32 %s24, 1
      %s26 = scalar_select %p23, %s24, %s25
      %p29 = pneg %p23
      %p30 = scmp.eq.s32.totalorder %s14, 1
      %p31 = por %p29, %p30
      %p32 = scmp.ne.s32.totalorder %s24, %s27
      %p33 = scmp.eq.s32.totalorder %s14, 0
      %p34 = por %p32, %p33
      %p35 = scmp.ne.s32.totalorder %s24, %s27
      %p36 = scmp.eq.s32.totalorder %s19, 1
      %p37 = por %p35, %p36
      %p38 = scmp.ne.s32.totalorder %s27, %s28
      %p39 = scmp.eq.s32.totalorder %s19, 0
      %p40 = por %p38, %p39
      %p41 = scmp.ne.s32.totalorder %s27, %s28
      %p42 = scmp.eq.s32.totalorder %s20, 1
      %p43 = por %p41, %p42
      %p45 = scmp.ne.s32.totalorder %s28, %s44
      %p46 = scmp.eq.s32.totalorder %s20, 0
      %p47 = por %p45, %p46
      %s49 = sadd.s32 %s48, 1
      %p52 = scmp.eq.s32.totalorder %s14, 1
      %p53 = scmp.ne.s32.totalorder %s48, %s50
      %p54 = scmp.eq.s32.totalorder %s14, 0
      %p55 = por %p53, %p54
      %p56 = scmp.ne.s32.totalorder %s48, %s50
      %p57 = scmp.eq.s32.totalorder %s19, 1
      %p58 = por %p56, %p57
      %p59 = scmp.ne.s32.totalorder %s50, %s51
      %p60 = scmp.eq.s32.totalorder %s19, 0
      %p61 = por %p59, %p60
      %p62 = scmp.ne.s32.totalorder %s50, %s51
      %p63 = scmp.eq.s32.totalorder %s20, 1
      %p64 = por %p62, %p63
      %p66 = scmp.ne.s32.totalorder %s51, %s65
      %p67 = scmp.eq.s32.totalorder %s20, 0
      %p68 = por %p66, %p67
      %s70 = sadd.s32 %s69, 1
      %p73 = scmp.eq.s32.totalorder %s14, 1
      %p74 = scmp.ne.s32.totalorder %s69, %s71
      %p75 = scmp.eq.s32.totalorder %s14, 0
      %p76 = por %p74, %p75
      %p77 = scmp.ne.s32.totalorder %s69, %s71
      %p78 = scmp.eq.s32.totalorder %s19, 1
      %p79 = por %p77, %p78
      %p80 = scmp.ne.s32.totalorder %s71, %s72
      %p81 = scmp.eq.s32.totalorder %s19, 0
      %p82 = por %p80, %p81
      %p83 = scmp.ne.s32.totalorder %s71, %s72
      %p84 = scmp.eq.s32.totalorder %s20, 1
      %p85 = por %p83, %p84
      %p87 = scmp.ne.s32.totalorder %s72, %s86
      %p88 = scmp.eq.s32.totalorder %s20, 0
      %p89 = por %p87, %p88
      %s90 = ssub.s32 %s14, %s21
      %p91 = scmp.eq.s32.totalorder %s90, 0
      %s93 = sadd.s32 %s92, 1
      %s94 = scalar_select %p91, %s92, %s93
      %p97 = pneg %p91
      %p98 = scmp.eq.s32.totalorder %s14, 1
      %p99 = por %p97, %p98
      %p100 = scmp.ne.s32.totalorder %s92, %s95
      %p101 = scmp.eq.s32.totalorder %s14, 0
      %p102 = por %p100, %p101
      %p103 = scmp.ne.s32.totalorder %s92, %s95
      %p104 = scmp.eq.s32.totalorder %s19, 1
      %p105 = por %p103, %p104
      %p106 = scmp.ne.s32.totalorder %s95, %s96
      %p107 = scmp.eq.s32.totalorder %s19, 0
      %p108 = por %p106, %p107
      %p109 = scmp.ne.s32.totalorder %s95, %s96
      %p110 = scmp.eq.s32.totalorder %s20, 1
      %p111 = por %p109, %p110
      %p113 = scmp.ne.s32.totalorder %s96, %s112
      %p114 = scmp.eq.s32.totalorder %s20, 0
      %p115 = por %p113, %p114
      %p116 = scmp.le.s32.totalorder 1, %s14
      %p117 = scmp.lt.s32.totalorder %s14, 3
      %p118 = pnand %p116, %p117
      %p119 = pneg %p118
      // Predicated region
      $region9: #{model_forward.1} parent=5 // pred_check
        _
      $region10: #{model_forward.1} parent=5 // pred_check_branch
        %121 = sbr.rel (%p118) target = $region12
      $region11: #{model_forward.1} parent=5 // pred_region
        %s122 = ssub.s32 %s14, 1
        // Predicated region
        $region13: #{model_forward.1} parent=11 // pred_check
          %p123 = pneg %p61
        $region14: #{model_forward.1} parent=11 // pred_check_branch
          %125 = sbr.rel (%p123) target = $region16
        $region15: #{model_forward.1} parent=11 // pred_region
          %s127 = ssub.s32 256, 256
          %128 = vsyncadd [#allocation4], %s127
          %s129 = sshll.u32 %s1, 4
          %s130 = int_to_ptr.vmem [resolvable:$true] %s129
          %135 = dma.vmem_to_smem %s130, 256, [#allocation2], [#allocation4], 128, 128, 8
        $region16: #{model_forward.1} parent=11 // pred_fallthru
          _
        // Predicated region
        $region17: #{model_forward.1} parent=11 // pred_check
          %p136 = pneg %p82
        $region18: #{model_forward.1} parent=11 // pred_check_branch
          %138 = sbr.rel (%p136) target = $region20
        $region19: #{model_forward.1} parent=11 // pred_region
          %s140 = ssub.s32 16, 16
          %141 = vsyncadd [#allocation6], %s140
          %s143 = sshll.u32 %s2, 4
          %s144 = int_to_ptr.vmem [resolvable:$true] %s143
          %146 = dma.vmem_to_smem %s144, 16, [#allocation5], [#allocation6]
        $region20: #{model_forward.1} parent=11 // pred_fallthru
          _
      $region12: #{model_forward.1} parent=5 // pred_fallthru
        _
      %p147 = scmp.lt.s32.totalorder %s14, 2
      // Predicated region
      $region21: #{model_forward.1} parent=5 // pred_check
        %p148 = pneg %p147
      $region22: #{model_forward.1} parent=5 // pred_check_branch
        %150 = sbr.rel (%p148) target = $region24
      $region23: #{model_forward.1} parent=5 // pred_region
        // Predicated region
        $region25: #{model_forward.1} parent=23 // pred_check
          %p151 = pneg %p34
        $region26: #{model_forward.1} parent=23 // pred_check_branch
          %153 = sbr.rel (%p151) target = $region28
        $region27: #{model_forward.1} parent=23 // pred_region
          %p154 = scmp.lt.s32.totalorder %s14, 1
          %s155 = scalar_select %p154, %s14, 1
          %s156 = smul.addr %s155, 15
          %s157 = smul.addr %s156, 8
          %s158 = scalar_lea.vmem %s0, %s157
        $region28: #{model_forward.1} parent=23 // pred_fallthru
          _
      $region24: #{model_forward.1} parent=5 // pred_fallthru
        _
      %p159 = scmp.le.s32.totalorder 1, %s14
      %p160 = scmp.lt.s32.totalorder %s14, 3
      %p161 = pnand %p159, %p160
      %p162 = pneg %p161
      // Predicated region
      $region29: #{model_forward.1} parent=5 // pred_check
        _
      $region30: #{model_forward.1} parent=5 // pred_check_branch
        %164 = sbr.rel (%p161) target = $region32
      $region31: #{model_forward.1} parent=5 // pred_region
        %s165 = ssub.s32 %s14, 1
        // Predicated region
        $region33: #{model_forward.1} parent=31 // pred_check
          %p166 = pneg %p61
        $region34: #{model_forward.1} parent=31 // pred_check_branch
          %168 = sbr.rel (%p166) target = $region36
        $region35: #{model_forward.1} parent=31 // pred_region
          %169 = dma.done [#allocation4], 256
        $region36: #{model_forward.1} parent=31 // pred_fallthru
          _
        // Predicated region
        $region37: #{model_forward.1} parent=31 // pred_check
          %p170 = pneg %p82
        $region38: #{model_forward.1} parent=31 // pred_check_branch
          %172 = sbr.rel (%p170) target = $region40
        $region39: #{model_forward.1} parent=31 // pred_region
          %173 = dma.done [#allocation6], 16
        $region40: #{model_forward.1} parent=31 // pred_fallthru
          _
        %174 = sfence
        %p175 = scmp.lt.s32.totalorder %s19, 1
        %s176 = scalar_select %p175, %s19, 1
        %s177 = smul.addr %s176, 15
        %s178 = smul.addr %s177, 8
        %s179 = scalar_lea.vmem %s0, %s178
        %p180 = pneg %p40
        %p181 = pneg %p37
        %p182 = pneg %p61
        %p183 = pneg %p58
        %p184 = pneg %p82
        %p185 = pneg %p79
        %p186 = pneg %p108
        %p187 = pneg %p105
        %s188 = sand.u32 %s95, 1
        %s189 = scalar_lea.sflag [#allocation3], %s188
        %s190 = sand.u32 %s95, 1
        %s191 = smul.addr %s190, 512
        %s192 = scalar_lea.vmem [#allocation7], %s191
        %p193 = scmp.lt.s32.totalorder %s19, 1
        %s194 = scalar_select %p193, %s19, 1
        %s195 = smul.addr %s194, 15
        %s196 = smul.addr %s195, 8
        %s197 = scalar_lea.vmem %s0, %s196
        %v198 = vld [vmem:[%s197] sm:$0xff]
        %v199 = vld [vmem:[%s197 + $0x8] sm:$0xff]
        %v200 = vld [vmem:[%s197 + $0x10] sm:$0xff]
        %v201 = vld [vmem:[%s197 + $0x18] sm:$0xff]
        %v202 = vld [vmem:[%s197 + $0x1] sm:$0xff]
        %v203 = vld [vmem:[%s197 + $0x9] sm:$0xff]
        %v204 = vld [vmem:[%s197 + $0x11] sm:$0xff]
        %v205 = vld [vmem:[%s197 + $0x19] sm:$0xff]
        %v206 = vld [vmem:[%s197 + $0x2] sm:$0xff]
        %v207 = vld [vmem:[%s197 + $0xa] sm:$0xff]
        %v208 = vld [vmem:[%s197 + $0x12] sm:$0xff]
        %v209 = vld [vmem:[%s197 + $0x1a] sm:$0xff]
        %s210 = scalar_lea.vmem %s197, 40
        %v211 = vld [vmem:[%s210] sm:$0xff]
        %v212 = vld [vmem:[%s210 + $0x8] sm:$0xff]
        %v213 = vld [vmem:[%s210 + $0x10] sm:$0xff]
        %v214 = vld [vmem:[%s210 + $0x18] sm:$0xff]
        %v215 = vld [vmem:[%s210 + $0x1] sm:$0xff]
        %v216 = vld [vmem:[%s210 + $0x9] sm:$0xff]
        %v217 = vld [vmem:[%s210 + $0x11] sm:$0xff]
        %v218 = vld [vmem:[%s210 + $0x19] sm:$0xff]
        %v219 = vld [vmem:[%s210 + $0x2] sm:$0xff]
        %v220 = vld [vmem:[%s210 + $0xa] sm:$0xff]
        %v221 = vld [vmem:[%s210 + $0x12] sm:$0xff]
        %v222 = vld [vmem:[%s210 + $0x1a] sm:$0xff]
        %s223 = scalar_lea.vmem %s197, 80
        %v224 = vld [vmem:[%s223] sm:$0xff]
        %v225 = vld [vmem:[%s223 + $0x8] sm:$0xff]
        %v226 = vld [vmem:[%s223 + $0x10] sm:$0xff]
        %v227 = vld [vmem:[%s223 + $0x18] sm:$0xff]
        %v228 = vld [vmem:[%s223 + $0x1] sm:$0xff]
        %v229 = vld [vmem:[%s223 + $0x9] sm:$0xff]
        %v230 = vld [vmem:[%s223 + $0x11] sm:$0xff]
        %v231 = vld [vmem:[%s223 + $0x19] sm:$0xff]
        %v232 = vld [vmem:[%s223 + $0x2] sm:$0xff]
        %v233 = vld [vmem:[%s223 + $0xa] sm:$0xff]
        %v234 = vld [vmem:[%s223 + $0x12] sm:$0xff]
        %v235 = vld [vmem:[%s223 + $0x1a] sm:$0xff]
        %s236 = sld [smem:[#allocation2]]
        %v237 = vstv %s236
        %v238 = vmul.f32 %v237, %v198
        %v239 = vmul.f32 %v237, %v199
        %v240 = vmul.f32 %v237, %v200
        %v241 = vmul.f32 %v237, %v201
        %s242 = sld [smem:[#allocation2 + $0x1]]
        %v243 = vstv %s242
        %v244 = vmul.f32 %v243, %v198
        %v245 = vmul.f32 %v243, %v199
        %v246 = vmul.f32 %v243, %v200
        %v247 = vmul.f32 %v243, %v201
        %252 = vrot.lane.b32.xlu0 %v244, 127
        %v253 = vpop.permute.xlu0 %252
        %254 = vrot.lane.b32.xlu0 %v245, 127
        %v255 = vpop.permute.xlu0 %254
        %256 = vrot.lane.b32.xlu0 %v246, 127
        %v257 = vpop.permute.xlu0 %256
        %258 = vrot.lane.b32.xlu0 %v247, 127
        %v259 = vpop.permute.xlu0 %258
        %v264 = vadd.f32 %v238, %v253
        %v265 = vadd.f32 %v239, %v255
        %v266 = vadd.f32 %v240, %v257
        %v267 = vadd.f32 %v241, %v259
        %s268 = sld [smem:[#allocation2 + $0x2]]
        %v269 = vstv %s268
        %v270 = vmul.f32 %v269, %v198
        %v271 = vmul.f32 %v269, %v199
        %v272 = vmul.f32 %v269, %v200
        %v273 = vmul.f32 %v269, %v201
        %278 = vrot.lane.b32.xlu0 %v270, 126
        %v279 = vpop.permute.xlu0 %278
        %280 = vrot.lane.b32.xlu0 %v271, 126
        %v281 = vpop.permute.xlu0 %280
        %282 = vrot.lane.b32.xlu0 %v272, 126
        %v283 = vpop.permute.xlu0 %282
        %284 = vrot.lane.b32.xlu0 %v273, 126
        %v285 = vpop.permute.xlu0 %284
        %v290 = vadd.f32 %v264, %v279
        %v291 = vadd.f32 %v265, %v281
        %v292 = vadd.f32 %v266, %v283
        %v293 = vadd.f32 %v267, %v285
        %s294 = sld [smem:[#allocation2 + $0x3]]
        %v295 = vstv %s294
        %v296 = vmul.f32 %v295, %v202
        %v297 = vmul.f32 %v295, %v203
        %v298 = vmul.f32 %v295, %v204
        %v299 = vmul.f32 %v295, %v205
        %v300 = vadd.f32 %v290, %v296
        %v301 = vadd.f32 %v291, %v297
        %v302 = vadd.f32 %v292, %v298
        %v303 = vadd.f32 %v293, %v299
        %s304 = sld [smem:[#allocation2 + $0x4]]
        %v305 = vstv %s304
        %v306 = vmul.f32 %v305, %v202
        %v307 = vmul.f32 %v305, %v203
        %v308 = vmul.f32 %v305, %v204
        %v309 = vmul.f32 %v305, %v205
        %314 = vrot.lane.b32.xlu0 %v306, 127
        %v315 = vpop.permute.xlu0 %314
        %316 = vrot.lane.b32.xlu0 %v307, 127
        %v317 = vpop.permute.xlu0 %316
        %318 = vrot.lane.b32.xlu0 %v308, 127
        %v319 = vpop.permute.xlu0 %318
        %320 = vrot.lane.b32.xlu0 %v309, 127
        %v321 = vpop.permute.xlu0 %320
        %v326 = vadd.f32 %v300, %v315
        %v327 = vadd.f32 %v301, %v317
        %v328 = vadd.f32 %v302, %v319
        %v329 = vadd.f32 %v303, %v321
        %s330 = sld [smem:[#allocation2 + $0x5]]
        %v331 = vstv %s330
        %v332 = vmul.f32 %v331, %v202
        %v333 = vmul.f32 %v331, %v203
        %v334 = vmul.f32 %v331, %v204
        %v335 = vmul.f32 %v331, %v205
        %340 = vrot.lane.b32.xlu0 %v332, 126
        %v341 = vpop.permute.xlu0 %340
        %342 = vrot.lane.b32.xlu0 %v333, 126
        %v343 = vpop.permute.xlu0 %342
        %344 = vrot.lane.b32.xlu0 %v334, 126
        %v345 = vpop.permute.xlu0 %344
        %346 = vrot.lane.b32.xlu0 %v335, 126
        %v347 = vpop.permute.xlu0 %346
        %v352 = vadd.f32 %v326, %v341
        %v353 = vadd.f32 %v327, %v343
        %v354 = vadd.f32 %v328, %v345
        %v355 = vadd.f32 %v329, %v347
        %s356 = sld [smem:[#allocation2 + $0x6]]
        %v357 = vstv %s356
        %v358 = vmul.f32 %v357, %v206
        %v359 = vmul.f32 %v357, %v207
        %v360 = vmul.f32 %v357, %v208
        %v361 = vmul.f32 %v357, %v209
        %v362 = vadd.f32 %v352, %v358
        %v363 = vadd.f32 %v353, %v359
        %v364 = vadd.f32 %v354, %v360
        %v365 = vadd.f32 %v355, %v361
        %s366 = sld [smem:[#allocation2 + $0x7]]
        %v367 = vstv %s366
        %v368 = vmul.f32 %v367, %v206
        %v369 = vmul.f32 %v367, %v207
        %v370 = vmul.f32 %v367, %v208
        %v371 = vmul.f32 %v367, %v209
        %376 = vrot.lane.b32.xlu0 %v368, 127
        %v377 = vpop.permute.xlu0 %376
        %378 = vrot.lane.b32.xlu0 %v369, 127
        %v379 = vpop.permute.xlu0 %378
        %380 = vrot.lane.b32.xlu0 %v370, 127
        %v381 = vpop.permute.xlu0 %380
        %382 = vrot.lane.b32.xlu0 %v371, 127
        %v383 = vpop.permute.xlu0 %382
        %v388 = vadd.f32 %v362, %v377
        %v389 = vadd.f32 %v363, %v379
        %v390 = vadd.f32 %v364, %v381
        %v391 = vadd.f32 %v365, %v383
        %s392 = sld [smem:[#allocation2 + $0x8]]
        %v393 = vstv %s392
        %v394 = vmul.f32 %v393, %v206
        %v395 = vmul.f32 %v393, %v207
        %v396 = vmul.f32 %v393, %v208
        %v397 = vmul.f32 %v393, %v209
        %402 = vrot.lane.b32.xlu0 %v394, 126
        %v403 = vpop.permute.xlu0 %402
        %404 = vrot.lane.b32.xlu0 %v395, 126
        %v405 = vpop.permute.xlu0 %404
        %406 = vrot.lane.b32.xlu0 %v396, 126
        %v407 = vpop.permute.xlu0 %406
        %408 = vrot.lane.b32.xlu0 %v397, 126
        %v409 = vpop.permute.xlu0 %408
        %v414 = vadd.f32 %v388, %v403
        %v415 = vadd.f32 %v389, %v405
        %v416 = vadd.f32 %v390, %v407
        %v417 = vadd.f32 %v391, %v409
        %s418 = sld [smem:[#allocation2 + $0x9]]
        %v419 = vstv %s418
        %v420 = vmul.f32 %v419, %v211
        %v421 = vmul.f32 %v419, %v212
        %v422 = vmul.f32 %v419, %v213
        %v423 = vmul.f32 %v419, %v214
        %v424 = vadd.f32 %v414, %v420
        %v425 = vadd.f32 %v415, %v421
        %v426 = vadd.f32 %v416, %v422
        %v427 = vadd.f32 %v417, %v423
        %s428 = sld [smem:[#allocation2 + $0xa]]
        %v429 = vstv %s428
        %v430 = vmul.f32 %v429, %v211
        %v431 = vmul.f32 %v429, %v212
        %v432 = vmul.f32 %v429, %v213
        %v433 = vmul.f32 %v429, %v214
        %438 = vrot.lane.b32.xlu0 %v430, 127
        %v439 = vpop.permute.xlu0 %438
        %440 = vrot.lane.b32.xlu0 %v431, 127
        %v441 = vpop.permute.xlu0 %440
        %442 = vrot.lane.b32.xlu0 %v432, 127
        %v443 = vpop.permute.xlu0 %442
        %444 = vrot.lane.b32.xlu0 %v433, 127
        %v445 = vpop.permute.xlu0 %444
        %v450 = vadd.f32 %v424, %v439
        %v451 = vadd.f32 %v425, %v441
        %v452 = vadd.f32 %v426, %v443
        %v453 = vadd.f32 %v427, %v445
        %s454 = sld [smem:[#allocation2 + $0xb]]
        %v455 = vstv %s454
        %v456 = vmul.f32 %v455, %v211
        %v457 = vmul.f32 %v455, %v212
        %v458 = vmul.f32 %v455, %v213
        %v459 = vmul.f32 %v455, %v214
        %464 = vrot.lane.b32.xlu0 %v456, 126
        %v465 = vpop.permute.xlu0 %464
        %466 = vrot.lane.b32.xlu0 %v457, 126
        %v467 = vpop.permute.xlu0 %466
        %468 = vrot.lane.b32.xlu0 %v458, 126
        %v469 = vpop.permute.xlu0 %468
        %470 = vrot.lane.b32.xlu0 %v459, 126
        %v471 = vpop.permute.xlu0 %470
        %v476 = vadd.f32 %v450, %v465
        %v477 = vadd.f32 %v451, %v467
        %v478 = vadd.f32 %v452, %v469
        %v479 = vadd.f32 %v453, %v471
        %s480 = sld [smem:[#allocation2 + $0xc]]
        %v481 = vstv %s480
        %v482 = vmul.f32 %v481, %v215
        %v483 = vmul.f32 %v481, %v216
        %v484 = vmul.f32 %v481, %v217
        %v485 = vmul.f32 %v481, %v218
        %v486 = vadd.f32 %v476, %v482
        %v487 = vadd.f32 %v477, %v483
        %v488 = vadd.f32 %v478, %v484
        %v489 = vadd.f32 %v479, %v485
        %s490 = sld [smem:[#allocation2 + $0xd]]
        %v491 = vstv %s490
        %v492 = vmul.f32 %v491, %v215
        %v493 = vmul.f32 %v491, %v216
        %v494 = vmul.f32 %v491, %v217
        %v495 = vmul.f32 %v491, %v218
        %500 = vrot.lane.b32.xlu0 %v492, 127
        %v501 = vpop.permute.xlu0 %500
        %502 = vrot.lane.b32.xlu0 %v493, 127
        %v503 = vpop.permute.xlu0 %502
        %504 = vrot.lane.b32.xlu0 %v494, 127
        %v505 = vpop.permute.xlu0 %504
        %506 = vrot.lane.b32.xlu0 %v495, 127
        %v507 = vpop.permute.xlu0 %506
        %v512 = vadd.f32 %v486, %v501
        %v513 = vadd.f32 %v487, %v503
        %v514 = vadd.f32 %v488, %v505
        %v515 = vadd.f32 %v489, %v507
        %s516 = sld [smem:[#allocation2 + $0xe]]
        %v517 = vstv %s516
        %v518 = vmul.f32 %v517, %v215
        %v519 = vmul.f32 %v517, %v216
        %v520 = vmul.f32 %v517, %v217
        %v521 = vmul.f32 %v517, %v218
        %526 = vrot.lane.b32.xlu0 %v518, 126
        %v527 = vpop.permute.xlu0 %526
        %528 = vrot.lane.b32.xlu0 %v519, 126
        %v529 = vpop.permute.xlu0 %528
        %530 = vrot.lane.b32.xlu0 %v520, 126
        %v531 = vpop.permute.xlu0 %530
        %532 = vrot.lane.b32.xlu0 %v521, 126
        %v533 = vpop.permute.xlu0 %532
        %v538 = vadd.f32 %v512, %v527
        %v539 = vadd.f32 %v513, %v529
        %v540 = vadd.f32 %v514, %v531
        %v541 = vadd.f32 %v515, %v533
        %s542 = sld [smem:[#allocation2 + $0xf]]
        %v543 = vstv %s542
        %v544 = vmul.f32 %v543, %v219
        %v545 = vmul.f32 %v543, %v220
        %v546 = vmul.f32 %v543, %v221
        %v547 = vmul.f32 %v543, %v222
        %v548 = vadd.f32 %v538, %v544
        %v549 = vadd.f32 %v539, %v545
        %v550 = vadd.f32 %v540, %v546
        %v551 = vadd.f32 %v541, %v547
        %s552 = sld [smem:[#allocation2 + $0x10]]
        %v553 = vstv %s552
        %v554 = vmul.f32 %v553, %v219
        %v555 = vmul.f32 %v553, %v220
        %v556 = vmul.f32 %v553, %v221
        %v557 = vmul.f32 %v553, %v222
        %562 = vrot.lane.b32.xlu0 %v554, 127
        %v563 = vpop.permute.xlu0 %562
        %564 = vrot.lane.b32.xlu0 %v555, 127
        %v565 = vpop.permute.xlu0 %564
        %566 = vrot.lane.b32.xlu0 %v556, 127
        %v567 = vpop.permute.xlu0 %566
        %568 = vrot.lane.b32.xlu0 %v557, 127
        %v569 = vpop.permute.xlu0 %568
        %v574 = vadd.f32 %v548, %v563
        %v575 = vadd.f32 %v549, %v565
        %v576 = vadd.f32 %v550, %v567
        %v577 = vadd.f32 %v551, %v569
        %s578 = sld [smem:[#allocation2 + $0x11]]
        %v579 = vstv %s578
        %v580 = vmul.f32 %v579, %v219
        %v581 = vmul.f32 %v579, %v220
        %v582 = vmul.f32 %v579, %v221
        %v583 = vmul.f32 %v579, %v222
        %588 = vrot.lane.b32.xlu0 %v580, 126
        %v589 = vpop.permute.xlu0 %588
        %590 = vrot.lane.b32.xlu0 %v581, 126
        %v591 = vpop.permute.xlu0 %590
        %592 = vrot.lane.b32.xlu0 %v582, 126
        %v593 = vpop.permute.xlu0 %592
        %594 = vrot.lane.b32.xlu0 %v583, 126
        %v595 = vpop.permute.xlu0 %594
        %v600 = vadd.f32 %v574, %v589
        %v601 = vadd.f32 %v575, %v591
        %v602 = vadd.f32 %v576, %v593
        %v603 = vadd.f32 %v577, %v595
        %s604 = sld [smem:[#allocation2 + $0x12]]
        %v605 = vstv %s604
        %v606 = vmul.f32 %v605, %v224
        %v607 = vmul.f32 %v605, %v225
        %v608 = vmul.f32 %v605, %v226
        %v609 = vmul.f32 %v605, %v227
        %v610 = vadd.f32 %v600, %v606
        %v611 = vadd.f32 %v601, %v607
        %v612 = vadd.f32 %v602, %v608
        %v613 = vadd.f32 %v603, %v609
        %s614 = sld [smem:[#allocation2 + $0x13]]
        %v615 = vstv %s614
        %v616 = vmul.f32 %v615, %v224
        %v617 = vmul.f32 %v615, %v225
        %v618 = vmul.f32 %v615, %v226
        %v619 = vmul.f32 %v615, %v227
        %624 = vrot.lane.b32.xlu0 %v616, 127
        %v625 = vpop.permute.xlu0 %624
        %626 = vrot.lane.b32.xlu0 %v617, 127
        %v627 = vpop.permute.xlu0 %626
        %628 = vrot.lane.b32.xlu0 %v618, 127
        %v629 = vpop.permute.xlu0 %628
        %630 = vrot.lane.b32.xlu0 %v619, 127
        %v631 = vpop.permute.xlu0 %630
        %v636 = vadd.f32 %v610, %v625
        %v637 = vadd.f32 %v611, %v627
        %v638 = vadd.f32 %v612, %v629
        %v639 = vadd.f32 %v613, %v631
        %s640 = sld [smem:[#allocation2 + $0x14]]
        %v641 = vstv %s640
        %v642 = vmul.f32 %v641, %v224
        %v643 = vmul.f32 %v641, %v225
        %v644 = vmul.f32 %v641, %v226
        %v645 = vmul.f32 %v641, %v227
        %650 = vrot.lane.b32.xlu0 %v642, 126
        %v651 = vpop.permute.xlu0 %650
        %652 = vrot.lane.b32.xlu0 %v643, 126
        %v653 = vpop.permute.xlu0 %652
        %654 = vrot.lane.b32.xlu0 %v644, 126
        %v655 = vpop.permute.xlu0 %654
        %656 = vrot.lane.b32.xlu0 %v645, 126
        %v657 = vpop.permute.xlu0 %656
        %v662 = vadd.f32 %v636, %v651
        %v663 = vadd.f32 %v637, %v653
        %v664 = vadd.f32 %v638, %v655
        %v665 = vadd.f32 %v639, %v657
        %s666 = sld [smem:[#allocation2 + $0x15]]
        %v667 = vstv %s666
        %v668 = vmul.f32 %v667, %v228
        %v669 = vmul.f32 %v667, %v229
        %v670 = vmul.f32 %v667, %v230
        %v671 = vmul.f32 %v667, %v231
        %v672 = vadd.f32 %v662, %v668
        %v673 = vadd.f32 %v663, %v669
        %v674 = vadd.f32 %v664, %v670
        %v675 = vadd.f32 %v665, %v671
        %s676 = sld [smem:[#allocation2 + $0x16]]
        %v677 = vstv %s676
        %v678 = vmul.f32 %v677, %v228
        %v679 = vmul.f32 %v677, %v229
        %v680 = vmul.f32 %v677, %v230
        %v681 = vmul.f32 %v677, %v231
        %686 = vrot.lane.b32.xlu0 %v678, 127
        %v687 = vpop.permute.xlu0 %686
        %688 = vrot.lane.b32.xlu0 %v679, 127
        %v689 = vpop.permute.xlu0 %688
        %690 = vrot.lane.b32.xlu0 %v680, 127
        %v691 = vpop.permute.xlu0 %690
        %692 = vrot.lane.b32.xlu0 %v681, 127
        %v693 = vpop.permute.xlu0 %692
        %v698 = vadd.f32 %v672, %v687
        %v699 = vadd.f32 %v673, %v689
        %v700 = vadd.f32 %v674, %v691
        %v701 = vadd.f32 %v675, %v693
        %s702 = sld [smem:[#allocation2 + $0x17]]
        %v703 = vstv %s702
        %v704 = vmul.f32 %v703, %v228
        %v705 = vmul.f32 %v703, %v229
        %v706 = vmul.f32 %v703, %v230
        %v707 = vmul.f32 %v703, %v231
        %712 = vrot.lane.b32.xlu0 %v704, 126
        %v713 = vpop.permute.xlu0 %712
        %714 = vrot.lane.b32.xlu0 %v705, 126
        %v715 = vpop.permute.xlu0 %714
        %716 = vrot.lane.b32.xlu0 %v706, 126
        %v717 = vpop.permute.xlu0 %716
        %718 = vrot.lane.b32.xlu0 %v707, 126
        %v719 = vpop.permute.xlu0 %718
        %v724 = vadd.f32 %v698, %v713
        %v725 = vadd.f32 %v699, %v715
        %v726 = vadd.f32 %v700, %v717
        %v727 = vadd.f32 %v701, %v719
        %s728 = sld [smem:[#allocation2 + $0x18]]
        %v729 = vstv %s728
        %v730 = vmul.f32 %v729, %v232
        %v731 = vmul.f32 %v729, %v233
        %v732 = vmul.f32 %v729, %v234
        %v733 = vmul.f32 %v729, %v235
        %v734 = vadd.f32 %v724, %v730
        %v735 = vadd.f32 %v725, %v731
        %v736 = vadd.f32 %v726, %v732
        %v737 = vadd.f32 %v727, %v733
        %s738 = sld [smem:[#allocation2 + $0x19]]
        %v739 = vstv %s738
        %v740 = vmul.f32 %v739, %v232
        %v741 = vmul.f32 %v739, %v233
        %v742 = vmul.f32 %v739, %v234
        %v743 = vmul.f32 %v739, %v235
        %748 = vrot.lane.b32.xlu0 %v740, 127
        %v749 = vpop.permute.xlu0 %748
        %750 = vrot.lane.b32.xlu0 %v741, 127
        %v751 = vpop.permute.xlu0 %750
        %752 = vrot.lane.b32.xlu0 %v742, 127
        %v753 = vpop.permute.xlu0 %752
        %754 = vrot.lane.b32.xlu0 %v743, 127
        %v755 = vpop.permute.xlu0 %754
        %v760 = vadd.f32 %v734, %v749
        %v761 = vadd.f32 %v735, %v751
        %v762 = vadd.f32 %v736, %v753
        %v763 = vadd.f32 %v737, %v755
        %s764 = sld [smem:[#allocation2 + $0x1a]]
        %v765 = vstv %s764
        %v766 = vmul.f32 %v765, %v232
        %v767 = vmul.f32 %v765, %v233
        %v768 = vmul.f32 %v765, %v234
        %v769 = vmul.f32 %v765, %v235
        %774 = vrot.lane.b32.xlu0 %v766, 126
        %v775 = vpop.permute.xlu0 %774
        %776 = vrot.lane.b32.xlu0 %v767, 126
        %v777 = vpop.permute.xlu0 %776
        %778 = vrot.lane.b32.xlu0 %v768, 126
        %v779 = vpop.permute.xlu0 %778
        %780 = vrot.lane.b32.xlu0 %v769, 126
        %v781 = vpop.permute.xlu0 %780
        %v786 = vadd.f32 %v760, %v775
        %v787 = vadd.f32 %v761, %v777
        %v788 = vadd.f32 %v762, %v779
        %v789 = vadd.f32 %v763, %v781
        %s790 = sld [smem:[#allocation5]]
        %v791 = vstv %s790
        %v792 = vadd.f32 %v786, %v791
        %v793 = vadd.f32 %v787, %v791
        %v794 = vadd.f32 %v788, %v791
        %v795 = vadd.f32 %v789, %v791
        %v796 = vmax.f32 %v792, 0.0
        %v797 = vmax.f32 %v793, 0.0
        %v798 = vmax.f32 %v794, 0.0
        %v799 = vmax.f32 %v795, 0.0
        %v800 = vmin.f32 %v796, 0.5
        %v801 = vmin.f32 %v797, 0.5
        %v802 = vmin.f32 %v798, 0.5
        %v803 = vmin.f32 %v799, 0.5
        %vm804 = vcmask 261120
        %805 = vst.msk [vmem:[%s192] sm:$0xff] %vm804, %v800
        %806 = vst.msk [vmem:[%s192 + $0x8] sm:$0xff] %vm804, %v801
        %807 = vst.msk [vmem:[%s192 + $0x10] sm:$0xff] %vm804, %v802
        %808 = vst.msk [vmem:[%s192 + $0x18] sm:$0xff] %vm804, %v803
        %s809 = sld [smem:[#allocation2 + $0x80]]
        %v810 = vstv %s809
        %v811 = vmul.f32 %v810, %v198
        %v812 = vmul.f32 %v810, %v199
        %v813 = vmul.f32 %v810, %v200
        %v814 = vmul.f32 %v810, %v201
        %s815 = sld [smem:[#allocation2 + $0x81]]
        %v816 = vstv %s815
        %v817 = vmul.f32 %v816, %v198
        %v818 = vmul.f32 %v816, %v199
        %v819 = vmul.f32 %v816, %v200
        %v820 = vmul.f32 %v816, %v201
        %825 = vrot.lane.b32.xlu0 %v817, 127
        %v826 = vpop.permute.xlu0 %825
        %827 = vrot.lane.b32.xlu0 %v818, 127
        %v828 = vpop.permute.xlu0 %827
        %829 = vrot.lane.b32.xlu0 %v819, 127
        %v830 = vpop.permute.xlu0 %829
        %831 = vrot.lane.b32.xlu0 %v820, 127
        %v832 = vpop.permute.xlu0 %831
        %v837 = vadd.f32 %v811, %v826
        %v838 = vadd.f32 %v812, %v828
        %v839 = vadd.f32 %v813, %v830
        %v840 = vadd.f32 %v814, %v832
        %s841 = sld [smem:[#allocation2 + $0x82]]
        %v842 = vstv %s841
        %v843 = vmul.f32 %v842, %v198
        %v844 = vmul.f32 %v842, %v199
        %v845 = vmul.f32 %v842, %v200
        %v846 = vmul.f32 %v842, %v201
        %851 = vrot.lane.b32.xlu0 %v843, 126
        %v852 = vpop.permute.xlu0 %851
        %853 = vrot.lane.b32.xlu0 %v844, 126
        %v854 = vpop.permute.xlu0 %853
        %855 = vrot.lane.b32.xlu0 %v845, 126
        %v856 = vpop.permute.xlu0 %855
        %857 = vrot.lane.b32.xlu0 %v846, 126
        %v858 = vpop.permute.xlu0 %857
        %v863 = vadd.f32 %v837, %v852
        %v864 = vadd.f32 %v838, %v854
        %v865 = vadd.f32 %v839, %v856
        %v866 = vadd.f32 %v840, %v858
        %s867 = sld [smem:[#allocation2 + $0x83]]
        %v868 = vstv %s867
        %v869 = vmul.f32 %v868, %v202
        %v870 = vmul.f32 %v868, %v203
        %v871 = vmul.f32 %v868, %v204
        %v872 = vmul.f32 %v868, %v205
        %v873 = vadd.f32 %v863, %v869
        %v874 = vadd.f32 %v864, %v870
        %v875 = vadd.f32 %v865, %v871
        %v876 = vadd.f32 %v866, %v872
        %s877 = sld [smem:[#allocation2 + $0x84]]
        %v878 = vstv %s877
        %v879 = vmul.f32 %v878, %v202
        %v880 = vmul.f32 %v878, %v203
        %v881 = vmul.f32 %v878, %v204
        %v882 = vmul.f32 %v878, %v205
        %887 = vrot.lane.b32.xlu0 %v879, 127
        %v888 = vpop.permute.xlu0 %887
        %889 = vrot.lane.b32.xlu0 %v880, 127
        %v890 = vpop.permute.xlu0 %889
        %891 = vrot.lane.b32.xlu0 %v881, 127
        %v892 = vpop.permute.xlu0 %891
        %893 = vrot.lane.b32.xlu0 %v882, 127
        %v894 = vpop.permute.xlu0 %893
        %v899 = vadd.f32 %v873, %v888
        %v900 = vadd.f32 %v874, %v890
        %v901 = vadd.f32 %v875, %v892
        %v902 = vadd.f32 %v876, %v894
        %s903 = sld [smem:[#allocation2 + $0x85]]
        %v904 = vstv %s903
        %v905 = vmul.f32 %v904, %v202
        %v906 = vmul.f32 %v904, %v203
        %v907 = vmul.f32 %v904, %v204
        %v908 = vmul.f32 %v904, %v205
        %913 = vrot.lane.b32.xlu0 %v905, 126
        %v914 = vpop.permute.xlu0 %913
        %915 = vrot.lane.b32.xlu0 %v906, 126
        %v916 = vpop.permute.xlu0 %915
        %917 = vrot.lane.b32.xlu0 %v907, 126
        %v918 = vpop.permute.xlu0 %917
        %919 = vrot.lane.b32.xlu0 %v908, 126
        %v920 = vpop.permute.xlu0 %919
        %v925 = vadd.f32 %v899, %v914
        %v926 = vadd.f32 %v900, %v916
        %v927 = vadd.f32 %v901, %v918
        %v928 = vadd.f32 %v902, %v920
        %s929 = sld [smem:[#allocation2 + $0x86]]
        %v930 = vstv %s929
        %v931 = vmul.f32 %v930, %v206
        %v932 = vmul.f32 %v930, %v207
        %v933 = vmul.f32 %v930, %v208
        %v934 = vmul.f32 %v930, %v209
        %v935 = vadd.f32 %v925, %v931
        %v936 = vadd.f32 %v926, %v932
        %v937 = vadd.f32 %v927, %v933
        %v938 = vadd.f32 %v928, %v934
        %s939 = sld [smem:[#allocation2 + $0x87]]
        %v940 = vstv %s939
        %v941 = vmul.f32 %v940, %v206
        %v942 = vmul.f32 %v940, %v207
        %v943 = vmul.f32 %v940, %v208
        %v944 = vmul.f32 %v940, %v209
        %949 = vrot.lane.b32.xlu0 %v941, 127
        %v950 = vpop.permute.xlu0 %949
        %951 = vrot.lane.b32.xlu0 %v942, 127
        %v952 = vpop.permute.xlu0 %951
        %953 = vrot.lane.b32.xlu0 %v943, 127
        %v954 = vpop.permute.xlu0 %953
        %955 = vrot.lane.b32.xlu0 %v944, 127
        %v956 = vpop.permute.xlu0 %955
        %v961 = vadd.f32 %v935, %v950
        %v962 = vadd.f32 %v936, %v952
        %v963 = vadd.f32 %v937, %v954
        %v964 = vadd.f32 %v938, %v956
        %s965 = sld [smem:[#allocation2 + $0x88]]
        %v966 = vstv %s965
        %v967 = vmul.f32 %v966, %v206
        %v968 = vmul.f32 %v966, %v207
        %v969 = vmul.f32 %v966, %v208
        %v970 = vmul.f32 %v966, %v209
        %975 = vrot.lane.b32.xlu0 %v967, 126
        %v976 = vpop.permute.xlu0 %975
        %977 = vrot.lane.b32.xlu0 %v968, 126
        %v978 = vpop.permute.xlu0 %977
        %979 = vrot.lane.b32.xlu0 %v969, 126
        %v980 = vpop.permute.xlu0 %979
        %981 = vrot.lane.b32.xlu0 %v970, 126
        %v982 = vpop.permute.xlu0 %981
        %v987 = vadd.f32 %v961, %v976
        %v988 = vadd.f32 %v962, %v978
        %v989 = vadd.f32 %v963, %v980
        %v990 = vadd.f32 %v964, %v982
        %s991 = sld [smem:[#allocation2 + $0x89]]
        %v992 = vstv %s991
        %v993 = vmul.f32 %v992, %v211
        %v994 = vmul.f32 %v992, %v212
        %v995 = vmul.f32 %v992, %v213
        %v996 = vmul.f32 %v992, %v214
        %v997 = vadd.f32 %v987, %v993
        %v998 = vadd.f32 %v988, %v994
        %v999 = vadd.f32 %v989, %v995
        %v1000 = vadd.f32 %v990, %v996
        %s1001 = sld [smem:[#allocation2 + $0x8a]]
        %v1002 = vstv %s1001
        %v1003 = vmul.f32 %v1002, %v211
        %v1004 = vmul.f32 %v1002, %v212
        %v1005 = vmul.f32 %v1002, %v213
        %v1006 = vmul.f32 %v1002, %v214
        %1011 = vrot.lane.b32.xlu0 %v1003, 127
        %v1012 = vpop.permute.xlu0 %1011
        %1013 = vrot.lane.b32.xlu0 %v1004, 127
        %v1014 = vpop.permute.xlu0 %1013
        %1015 = vrot.lane.b32.xlu0 %v1005, 127
        %v1016 = vpop.permute.xlu0 %1015
        %1017 = vrot.lane.b32.xlu0 %v1006, 127
        %v1018 = vpop.permute.xlu0 %1017
        %v1023 = vadd.f32 %v997, %v1012
        %v1024 = vadd.f32 %v998, %v1014
        %v1025 = vadd.f32 %v999, %v1016
        %v1026 = vadd.f32 %v1000, %v1018
        %s1027 = sld [smem:[#allocation2 + $0x8b]]
        %v1028 = vstv %s1027
        %v1029 = vmul.f32 %v1028, %v211
        %v1030 = vmul.f32 %v1028, %v212
        %v1031 = vmul.f32 %v1028, %v213
        %v1032 = vmul.f32 %v1028, %v214
        %1037 = vrot.lane.b32.xlu0 %v1029, 126
        %v1038 = vpop.permute.xlu0 %1037
        %1039 = vrot.lane.b32.xlu0 %v1030, 126
        %v1040 = vpop.permute.xlu0 %1039
        %1041 = vrot.lane.b32.xlu0 %v1031, 126
        %v1042 = vpop.permute.xlu0 %1041
        %1043 = vrot.lane.b32.xlu0 %v1032, 126
        %v1044 = vpop.permute.xlu0 %1043
        %v1049 = vadd.f32 %v1023, %v1038
        %v1050 = vadd.f32 %v1024, %v1040
        %v1051 = vadd.f32 %v1025, %v1042
        %v1052 = vadd.f32 %v1026, %v1044
        %s1053 = sld [smem:[#allocation2 + $0x8c]]
        %v1054 = vstv %s1053
        %v1055 = vmul.f32 %v1054, %v215
        %v1056 = vmul.f32 %v1054, %v216
        %v1057 = vmul.f32 %v1054, %v217
        %v1058 = vmul.f32 %v1054, %v218
        %v1059 = vadd.f32 %v1049, %v1055
        %v1060 = vadd.f32 %v1050, %v1056
        %v1061 = vadd.f32 %v1051, %v1057
        %v1062 = vadd.f32 %v1052, %v1058
        %s1063 = sld [smem:[#allocation2 + $0x8d]]
        %v1064 = vstv %s1063
        %v1065 = vmul.f32 %v1064, %v215
        %v1066 = vmul.f32 %v1064, %v216
        %v1067 = vmul.f32 %v1064, %v217
        %v1068 = vmul.f32 %v1064, %v218
        %1073 = vrot.lane.b32.xlu0 %v1065, 127
        %v1074 = vpop.permute.xlu0 %1073
        %1075 = vrot.lane.b32.xlu0 %v1066, 127
        %v1076 = vpop.permute.xlu0 %1075
        %1077 = vrot.lane.b32.xlu0 %v1067, 127
        %v1078 = vpop.permute.xlu0 %1077
        %1079 = vrot.lane.b32.xlu0 %v1068, 127
        %v1080 = vpop.permute.xlu0 %1079
        %v1085 = vadd.f32 %v1059, %v1074
        %v1086 = vadd.f32 %v1060, %v1076
        %v1087 = vadd.f32 %v1061, %v1078
        %v1088 = vadd.f32 %v1062, %v1080
        %s1089 = sld [smem:[#allocation2 + $0x8e]]
        %v1090 = vstv %s1089
        %v1091 = vmul.f32 %v1090, %v215
        %v1092 = vmul.f32 %v1090, %v216
        %v1093 = vmul.f32 %v1090, %v217
        %v1094 = vmul.f32 %v1090, %v218
        %1099 = vrot.lane.b32.xlu0 %v1091, 126
        %v1100 = vpop.permute.xlu0 %1099
        %1101 = vrot.lane.b32.xlu0 %v1092, 126
        %v1102 = vpop.permute.xlu0 %1101
        %1103 = vrot.lane.b32.xlu0 %v1093, 126
        %v1104 = vpop.permute.xlu0 %1103
        %1105 = vrot.lane.b32.xlu0 %v1094, 126
        %v1106 = vpop.permute.xlu0 %1105
        %v1111 = vadd.f32 %v1085, %v1100
        %v1112 = vadd.f32 %v1086, %v1102
        %v1113 = vadd.f32 %v1087, %v1104
        %v1114 = vadd.f32 %v1088, %v1106
        %s1115 = sld [smem:[#allocation2 + $0x8f]]
        %v1116 = vstv %s1115
        %v1117 = vmul.f32 %v1116, %v219
        %v1118 = vmul.f32 %v1116, %v220
        %v1119 = vmul.f32 %v1116, %v221
        %v1120 = vmul.f32 %v1116, %v222
        %v1121 = vadd.f32 %v1111, %v1117
        %v1122 = vadd.f32 %v1112, %v1118
        %v1123 = vadd.f32 %v1113, %v1119
        %v1124 = vadd.f32 %v1114, %v1120
        %s1125 = sld [smem:[#allocation2 + $0x90]]
        %v1126 = vstv %s1125
        %v1127 = vmul.f32 %v1126, %v219
        %v1128 = vmul.f32 %v1126, %v220
        %v1129 = vmul.f32 %v1126, %v221
        %v1130 = vmul.f32 %v1126, %v222
        %1135 = vrot.lane.b32.xlu0 %v1127, 127
        %v1136 = vpop.permute.xlu0 %1135
        %1137 = vrot.lane.b32.xlu0 %v1128, 127
        %v1138 = vpop.permute.xlu0 %1137
        %1139 = vrot.lane.b32.xlu0 %v1129, 127
        %v1140 = vpop.permute.xlu0 %1139
        %1141 = vrot.lane.b32.xlu0 %v1130, 127
        %v1142 = vpop.permute.xlu0 %1141
        %v1147 = vadd.f32 %v1121, %v1136
        %v1148 = vadd.f32 %v1122, %v1138
        %v1149 = vadd.f32 %v1123, %v1140
        %v1150 = vadd.f32 %v1124, %v1142
        %s1151 = sld [smem:[#allocation2 + $0x91]]
        %v1152 = vstv %s1151
        %v1153 = vmul.f32 %v1152, %v219
        %v1154 = vmul.f32 %v1152, %v220
        %v1155 = vmul.f32 %v1152, %v221
        %v1156 = vmul.f32 %v1152, %v222
        %1161 = vrot.lane.b32.xlu0 %v1153, 126
        %v1162 = vpop.permute.xlu0 %1161
        %1163 = vrot.lane.b32.xlu0 %v1154, 126
        %v1164 = vpop.permute.xlu0 %1163
        %1165 = vrot.lane.b32.xlu0 %v1155, 126
        %v1166 = vpop.permute.xlu0 %1165
        %1167 = vrot.lane.b32.xlu0 %v1156, 126
        %v1168 = vpop.permute.xlu0 %1167
        %v1173 = vadd.f32 %v1147, %v1162
        %v1174 = vadd.f32 %v1148, %v1164
        %v1175 = vadd.f32 %v1149, %v1166
        %v1176 = vadd.f32 %v1150, %v1168
        %s1177 = sld [smem:[#allocation2 + $0x92]]
        %v1178 = vstv %s1177
        %v1179 = vmul.f32 %v1178, %v224
        %v1180 = vmul.f32 %v1178, %v225
        %v1181 = vmul.f32 %v1178, %v226
        %v1182 = vmul.f32 %v1178, %v227
        %v1183 = vadd.f32 %v1173, %v1179
        %v1184 = vadd.f32 %v1174, %v1180
        %v1185 = vadd.f32 %v1175, %v1181
        %v1186 = vadd.f32 %v1176, %v1182
        %s1187 = sld [smem:[#allocation2 + $0x93]]
        %v1188 = vstv %s1187
        %v1189 = vmul.f32 %v1188, %v224
        %v1190 = vmul.f32 %v1188, %v225
        %v1191 = vmul.f32 %v1188, %v226
        %v1192 = vmul.f32 %v1188, %v227
        %1197 = vrot.lane.b32.xlu0 %v1189, 127
        %v1198 = vpop.permute.xlu0 %1197
        %1199 = vrot.lane.b32.xlu0 %v1190, 127
        %v1200 = vpop.permute.xlu0 %1199
        %1201 = vrot.lane.b32.xlu0 %v1191, 127
        %v1202 = vpop.permute.xlu0 %1201
        %1203 = vrot.lane.b32.xlu0 %v1192, 127
        %v1204 = vpop.permute.xlu0 %1203
        %v1209 = vadd.f32 %v1183, %v1198
        %v1210 = vadd.f32 %v1184, %v1200
        %v1211 = vadd.f32 %v1185, %v1202
        %v1212 = vadd.f32 %v1186, %v1204
        %s1213 = sld [smem:[#allocation2 + $0x94]]
        %v1214 = vstv %s1213
        %v1215 = vmul.f32 %v1214, %v224
        %v1216 = vmul.f32 %v1214, %v225
        %v1217 = vmul.f32 %v1214, %v226
        %v1218 = vmul.f32 %v1214, %v227
        %1223 = vrot.lane.b32.xlu0 %v1215, 126
        %v1224 = vpop.permute.xlu0 %1223
        %1225 = vrot.lane.b32.xlu0 %v1216, 126
        %v1226 = vpop.permute.xlu0 %1225
        %1227 = vrot.lane.b32.xlu0 %v1217, 126
        %v1228 = vpop.permute.xlu0 %1227
        %1229 = vrot.lane.b32.xlu0 %v1218, 126
        %v1230 = vpop.permute.xlu0 %1229
        %v1235 = vadd.f32 %v1209, %v1224
        %v1236 = vadd.f32 %v1210, %v1226
        %v1237 = vadd.f32 %v1211, %v1228
        %v1238 = vadd.f32 %v1212, %v1230
        %s1239 = sld [smem:[#allocation2 + $0x95]]
        %v1240 = vstv %s1239
        %v1241 = vmul.f32 %v1240, %v228
        %v1242 = vmul.f32 %v1240, %v229
        %v1243 = vmul.f32 %v1240, %v230
        %v1244 = vmul.f32 %v1240, %v231
        %v1245 = vadd.f32 %v1235, %v1241
        %v1246 = vadd.f32 %v1236, %v1242
        %v1247 = vadd.f32 %v1237, %v1243
        %v1248 = vadd.f32 %v1238, %v1244
        %s1249 = sld [smem:[#allocation2 + $0x96]]
        %v1250 = vstv %s1249
        %v1251 = vmul.f32 %v1250, %v228
        %v1252 = vmul.f32 %v1250, %v229
        %v1253 = vmul.f32 %v1250, %v230
        %v1254 = vmul.f32 %v1250, %v231
        %1259 = vrot.lane.b32.xlu0 %v1251, 127
        %v1260 = vpop.permute.xlu0 %1259
        %1261 = vrot.lane.b32.xlu0 %v1252, 127
        %v1262 = vpop.permute.xlu0 %1261
        %1263 = vrot.lane.b32.xlu0 %v1253, 127
        %v1264 = vpop.permute.xlu0 %1263
        %1265 = vrot.lane.b32.xlu0 %v1254, 127
        %v1266 = vpop.permute.xlu0 %1265
        %v1271 = vadd.f32 %v1245, %v1260
        %v1272 = vadd.f32 %v1246, %v1262
        %v1273 = vadd.f32 %v1247, %v1264
        %v1274 = vadd.f32 %v1248, %v1266
        %s1275 = sld [smem:[#allocation2 + $0x97]]
        %v1276 = vstv %s1275
        %v1277 = vmul.f32 %v1276, %v228
        %v1278 = vmul.f32 %v1276, %v229
        %v1279 = vmul.f32 %v1276, %v230
        %v1280 = vmul.f32 %v1276, %v231
        %1285 = vrot.lane.b32.xlu0 %v1277, 126
        %v1286 = vpop.permute.xlu0 %1285
        %1287 = vrot.lane.b32.xlu0 %v1278, 126
        %v1288 = vpop.permute.xlu0 %1287
        %1289 = vrot.lane.b32.xlu0 %v1279, 126
        %v1290 = vpop.permute.xlu0 %1289
        %1291 = vrot.lane.b32.xlu0 %v1280, 126
        %v1292 = vpop.permute.xlu0 %1291
        %v1297 = vadd.f32 %v1271, %v1286
        %v1298 = vadd.f32 %v1272, %v1288
        %v1299 = vadd.f32 %v1273, %v1290
        %v1300 = vadd.f32 %v1274, %v1292
        %s1301 = sld [smem:[#allocation2 + $0x98]]
        %v1302 = vstv %s1301
        %v1303 = vmul.f32 %v1302, %v232
        %v1304 = vmul.f32 %v1302, %v233
        %v1305 = vmul.f32 %v1302, %v234
        %v1306 = vmul.f32 %v1302, %v235
        %v1307 = vadd.f32 %v1297, %v1303
        %v1308 = vadd.f32 %v1298, %v1304
        %v1309 = vadd.f32 %v1299, %v1305
        %v1310 = vadd.f32 %v1300, %v1306
        %s1311 = sld [smem:[#allocation2 + $0x99]]
        %v1312 = vstv %s1311
        %v1313 = vmul.f32 %v1312, %v232
        %v1314 = vmul.f32 %v1312, %v233
        %v1315 = vmul.f32 %v1312, %v234
        %v1316 = vmul.f32 %v1312, %v235
        %1321 = vrot.lane.b32.xlu0 %v1313, 127
        %v1322 = vpop.permute.xlu0 %1321
        %1323 = vrot.lane.b32.xlu0 %v1314, 127
        %v1324 = vpop.permute.xlu0 %1323
        %1325 = vrot.lane.b32.xlu0 %v1315, 127
        %v1326 = vpop.permute.xlu0 %1325
        %1327 = vrot.lane.b32.xlu0 %v1316, 127
        %v1328 = vpop.permute.xlu0 %1327
        %v1333 = vadd.f32 %v1307, %v1322
        %v1334 = vadd.f32 %v1308, %v1324
        %v1335 = vadd.f32 %v1309, %v1326
        %v1336 = vadd.f32 %v1310, %v1328
        %s1337 = sld [smem:[#allocation2 + $0x9a]]
        %v1338 = vstv %s1337
        %v1339 = vmul.f32 %v1338, %v232
        %v1340 = vmul.f32 %v1338, %v233
        %v1341 = vmul.f32 %v1338, %v234
        %v1342 = vmul.f32 %v1338, %v235
        %1347 = vrot.lane.b32.xlu0 %v1339, 126
        %v1348 = vpop.permute.xlu0 %1347
        %1349 = vrot.lane.b32.xlu0 %v1340, 126
        %v1350 = vpop.permute.xlu0 %1349
        %1351 = vrot.lane.b32.xlu0 %v1341, 126
        %v1352 = vpop.permute.xlu0 %1351
        %1353 = vrot.lane.b32.xlu0 %v1342, 126
        %v1354 = vpop.permute.xlu0 %1353
        %v1359 = vadd.f32 %v1333, %v1348
        %v1360 = vadd.f32 %v1334, %v1350
        %v1361 = vadd.f32 %v1335, %v1352
        %v1362 = vadd.f32 %v1336, %v1354
        %s1363 = sld [smem:[#allocation5 + $0x1]]
        %v1364 = vstv %s1363
        %v1365 = vadd.f32 %v1359, %v1364
        %v1366 = vadd.f32 %v1360, %v1364
        %v1367 = vadd.f32 %v1361, %v1364
        %v1368 = vadd.f32 %v1362, %v1364
        %v1369 = vmax.f32 %v1365, 0.0
        %v1370 = vmax.f32 %v1366, 0.0
        %v1371 = vmax.f32 %v1367, 0.0
        %v1372 = vmax.f32 %v1368, 0.0
        %v1373 = vmin.f32 %v1369, 0.5
        %v1374 = vmin.f32 %v1370, 0.5
        %v1375 = vmin.f32 %v1371, 0.5
        %v1376 = vmin.f32 %v1372, 0.5
        %s1377 = scalar_lea.vmem %s192, 32 [#allocation7]
        %1378 = vst.msk [vmem:[%s1377] sm:$0xff] %vm804, %v1373
        %1379 = vst.msk [vmem:[%s1377 + $0x8] sm:$0xff] %vm804, %v1374
        %1380 = vst.msk [vmem:[%s1377 + $0x10] sm:$0xff] %vm804, %v1375
        %1381 = vst.msk [vmem:[%s1377 + $0x18] sm:$0xff] %vm804, %v1376
        %s1382 = sld [smem:[#allocation2 + $0x100]]
        %v1383 = vstv %s1382
        %v1384 = vmul.f32 %v1383, %v198
        %v1385 = vmul.f32 %v1383, %v199
        %v1386 = vmul.f32 %v1383, %v200
        %v1387 = vmul.f32 %v1383, %v201
        %s1388 = sld [smem:[#allocation2 + $0x101]]
        %v1389 = vstv %s1388
        %v1390 = vmul.f32 %v1389, %v198
        %v1391 = vmul.f32 %v1389, %v199
        %v1392 = vmul.f32 %v1389, %v200
        %v1393 = vmul.f32 %v1389, %v201
        %1398 = vrot.lane.b32.xlu0 %v1390, 127
        %v1399 = vpop.permute.xlu0 %1398
        %1400 = vrot.lane.b32.xlu0 %v1391, 127
        %v1401 = vpop.permute.xlu0 %1400
        %1402 = vrot.lane.b32.xlu0 %v1392, 127
        %v1403 = vpop.permute.xlu0 %1402
        %1404 = vrot.lane.b32.xlu0 %v1393, 127
        %v1405 = vpop.permute.xlu0 %1404
        %v1410 = vadd.f32 %v1384, %v1399
        %v1411 = vadd.f32 %v1385, %v1401
        %v1412 = vadd.f32 %v1386, %v1403
        %v1413 = vadd.f32 %v1387, %v1405
        %s1414 = sld [smem:[#allocation2 + $0x102]]
        %v1415 = vstv %s1414
        %v1416 = vmul.f32 %v1415, %v198
        %v1417 = vmul.f32 %v1415, %v199
        %v1418 = vmul.f32 %v1415, %v200
        %v1419 = vmul.f32 %v1415, %v201
        %1424 = vrot.lane.b32.xlu0 %v1416, 126
        %v1425 = vpop.permute.xlu0 %1424
        %1426 = vrot.lane.b32.xlu0 %v1417, 126
        %v1427 = vpop.permute.xlu0 %1426
        %1428 = vrot.lane.b32.xlu0 %v1418, 126
        %v1429 = vpop.permute.xlu0 %1428
        %1430 = vrot.lane.b32.xlu0 %v1419, 126
        %v1431 = vpop.permute.xlu0 %1430
        %v1436 = vadd.f32 %v1410, %v1425
        %v1437 = vadd.f32 %v1411, %v1427
        %v1438 = vadd.f32 %v1412, %v1429
        %v1439 = vadd.f32 %v1413, %v1431
        %s1440 = sld [smem:[#allocation2 + $0x103]]
        %v1441 = vstv %s1440
        %v1442 = vmul.f32 %v1441, %v202
        %v1443 = vmul.f32 %v1441, %v203
        %v1444 = vmul.f32 %v1441, %v204
        %v1445 = vmul.f32 %v1441, %v205
        %v1446 = vadd.f32 %v1436, %v1442
        %v1447 = vadd.f32 %v1437, %v1443
        %v1448 = vadd.f32 %v1438, %v1444
        %v1449 = vadd.f32 %v1439, %v1445
        %s1450 = sld [smem:[#allocation2 + $0x104]]
        %v1451 = vstv %s1450
        %v1452 = vmul.f32 %v1451, %v202
        %v1453 = vmul.f32 %v1451, %v203
        %v1454 = vmul.f32 %v1451, %v204
        %v1455 = vmul.f32 %v1451, %v205
        %1460 = vrot.lane.b32.xlu0 %v1452, 127
        %v1461 = vpop.permute.xlu0 %1460
        %1462 = vrot.lane.b32.xlu0 %v1453, 127
        %v1463 = vpop.permute.xlu0 %1462
        %1464 = vrot.lane.b32.xlu0 %v1454, 127
        %v1465 = vpop.permute.xlu0 %1464
        %1466 = vrot.lane.b32.xlu0 %v1455, 127
        %v1467 = vpop.permute.xlu0 %1466
        %v1472 = vadd.f32 %v1446, %v1461
        %v1473 = vadd.f32 %v1447, %v1463
        %v1474 = vadd.f32 %v1448, %v1465
        %v1475 = vadd.f32 %v1449, %v1467
        %s1476 = sld [smem:[#allocation2 + $0x105]]
        %v1477 = vstv %s1476
        %v1478 = vmul.f32 %v1477, %v202
        %v1479 = vmul.f32 %v1477, %v203
        %v1480 = vmul.f32 %v1477, %v204
        %v1481 = vmul.f32 %v1477, %v205
        %1486 = vrot.lane.b32.xlu0 %v1478, 126
        %v1487 = vpop.permute.xlu0 %1486
        %1488 = vrot.lane.b32.xlu0 %v1479, 126
        %v1489 = vpop.permute.xlu0 %1488
        %1490 = vrot.lane.b32.xlu0 %v1480, 126
        %v1491 = vpop.permute.xlu0 %1490
        %1492 = vrot.lane.b32.xlu0 %v1481, 126
        %v1493 = vpop.permute.xlu0 %1492
        %v1498 = vadd.f32 %v1472, %v1487
        %v1499 = vadd.f32 %v1473, %v1489
        %v1500 = vadd.f32 %v1474, %v1491
        %v1501 = vadd.f32 %v1475, %v1493
        %s1502 = sld [smem:[#allocation2 + $0x106]]
        %v1503 = vstv %s1502
        %v1504 = vmul.f32 %v1503, %v206
        %v1505 = vmul.f32 %v1503, %v207
        %v1506 = vmul.f32 %v1503, %v208
        %v1507 = vmul.f32 %v1503, %v209
        %v1508 = vadd.f32 %v1498, %v1504
        %v1509 = vadd.f32 %v1499, %v1505
        %v1510 = vadd.f32 %v1500, %v1506
        %v1511 = vadd.f32 %v1501, %v1507
        %s1512 = sld [smem:[#allocation2 + $0x107]]
        %v1513 = vstv %s1512
        %v1514 = vmul.f32 %v1513, %v206
        %v1515 = vmul.f32 %v1513, %v207
        %v1516 = vmul.f32 %v1513, %v208
        %v1517 = vmul.f32 %v1513, %v209
        %1522 = vrot.lane.b32.xlu0 %v1514, 127
        %v1523 = vpop.permute.xlu0 %1522
        %1524 = vrot.lane.b32.xlu0 %v1515, 127
        %v1525 = vpop.permute.xlu0 %1524
        %1526 = vrot.lane.b32.xlu0 %v1516, 127
        %v1527 = vpop.permute.xlu0 %1526
        %1528 = vrot.lane.b32.xlu0 %v1517, 127
        %v1529 = vpop.permute.xlu0 %1528
        %v1534 = vadd.f32 %v1508, %v1523
        %v1535 = vadd.f32 %v1509, %v1525
        %v1536 = vadd.f32 %v1510, %v1527
        %v1537 = vadd.f32 %v1511, %v1529
        %s1538 = sld [smem:[#allocation2 + $0x108]]
        %v1539 = vstv %s1538
        %v1540 = vmul.f32 %v1539, %v206
        %v1541 = vmul.f32 %v1539, %v207
        %v1542 = vmul.f32 %v1539, %v208
        %v1543 = vmul.f32 %v1539, %v209
        %1548 = vrot.lane.b32.xlu0 %v1540, 126
        %v1549 = vpop.permute.xlu0 %1548
        %1550 = vrot.lane.b32.xlu0 %v1541, 126
        %v1551 = vpop.permute.xlu0 %1550
        %1552 = vrot.lane.b32.xlu0 %v1542, 126
        %v1553 = vpop.permute.xlu0 %1552
        %1554 = vrot.lane.b32.xlu0 %v1543, 126
        %v1555 = vpop.permute.xlu0 %1554
        %v1560 = vadd.f32 %v1534, %v1549
        %v1561 = vadd.f32 %v1535, %v1551
        %v1562 = vadd.f32 %v1536, %v1553
        %v1563 = vadd.f32 %v1537, %v1555
        %s1564 = sld [smem:[#allocation2 + $0x109]]
        %v1565 = vstv %s1564
        %v1566 = vmul.f32 %v1565, %v211
        %v1567 = vmul.f32 %v1565, %v212
        %v1568 = vmul.f32 %v1565, %v213
        %v1569 = vmul.f32 %v1565, %v214
        %v1570 = vadd.f32 %v1560, %v1566
        %v1571 = vadd.f32 %v1561, %v1567
        %v1572 = vadd.f32 %v1562, %v1568
        %v1573 = vadd.f32 %v1563, %v1569
        %s1574 = sld [smem:[#allocation2 + $0x10a]]
        %v1575 = vstv %s1574
        %v1576 = vmul.f32 %v1575, %v211
        %v1577 = vmul.f32 %v1575, %v212
        %v1578 = vmul.f32 %v1575, %v213
        %v1579 = vmul.f32 %v1575, %v214
        %1584 = vrot.lane.b32.xlu0 %v1576, 127
        %v1585 = vpop.permute.xlu0 %1584
        %1586 = vrot.lane.b32.xlu0 %v1577, 127
        %v1587 = vpop.permute.xlu0 %1586
        %1588 = vrot.lane.b32.xlu0 %v1578, 127
        %v1589 = vpop.permute.xlu0 %1588
        %1590 = vrot.lane.b32.xlu0 %v1579, 127
        %v1591 = vpop.permute.xlu0 %1590
        %v1596 = vadd.f32 %v1570, %v1585
        %v1597 = vadd.f32 %v1571, %v1587
        %v1598 = vadd.f32 %v1572, %v1589
        %v1599 = vadd.f32 %v1573, %v1591
        %s1600 = sld [smem:[#allocation2 + $0x10b]]
        %v1601 = vstv %s1600
        %v1602 = vmul.f32 %v1601, %v211
        %v1603 = vmul.f32 %v1601, %v212
        %v1604 = vmul.f32 %v1601, %v213
        %v1605 = vmul.f32 %v1601, %v214
        %1610 = vrot.lane.b32.xlu0 %v1602, 126
        %v1611 = vpop.permute.xlu0 %1610
        %1612 = vrot.lane.b32.xlu0 %v1603, 126
        %v1613 = vpop.permute.xlu0 %1612
        %1614 = vrot.lane.b32.xlu0 %v1604, 126
        %v1615 = vpop.permute.xlu0 %1614
        %1616 = vrot.lane.b32.xlu0 %v1605, 126
        %v1617 = vpop.permute.xlu0 %1616
        %v1622 = vadd.f32 %v1596, %v1611
        %v1623 = vadd.f32 %v1597, %v1613
        %v1624 = vadd.f32 %v1598, %v1615
        %v1625 = vadd.f32 %v1599, %v1617
        %s1626 = sld [smem:[#allocation2 + $0x10c]]
        %v1627 = vstv %s1626
        %v1628 = vmul.f32 %v1627, %v215
        %v1629 = vmul.f32 %v1627, %v216
        %v1630 = vmul.f32 %v1627, %v217
        %v1631 = vmul.f32 %v1627, %v218
        %v1632 = vadd.f32 %v1622, %v1628
        %v1633 = vadd.f32 %v1623, %v1629
        %v1634 = vadd.f32 %v1624, %v1630
        %v1635 = vadd.f32 %v1625, %v1631
        %s1636 = sld [smem:[#allocation2 + $0x10d]]
        %v1637 = vstv %s1636
        %v1638 = vmul.f32 %v1637, %v215
        %v1639 = vmul.f32 %v1637, %v216
        %v1640 = vmul.f32 %v1637, %v217
        %v1641 = vmul.f32 %v1637, %v218
        %1646 = vrot.lane.b32.xlu0 %v1638, 127
        %v1647 = vpop.permute.xlu0 %1646
        %1648 = vrot.lane.b32.xlu0 %v1639, 127
        %v1649 = vpop.permute.xlu0 %1648
        %1650 = vrot.lane.b32.xlu0 %v1640, 127
        %v1651 = vpop.permute.xlu0 %1650
        %1652 = vrot.lane.b32.xlu0 %v1641, 127
        %v1653 = vpop.permute.xlu0 %1652
        %v1658 = vadd.f32 %v1632, %v1647
        %v1659 = vadd.f32 %v1633, %v1649
        %v1660 = vadd.f32 %v1634, %v1651
        %v1661 = vadd.f32 %v1635, %v1653
        %s1662 = sld [smem:[#allocation2 + $0x10e]]
        %v1663 = vstv %s1662
        %v1664 = vmul.f32 %v1663, %v215
        %v1665 = vmul.f32 %v1663, %v216
        %v1666 = vmul.f32 %v1663, %v217
        %v1667 = vmul.f32 %v1663, %v218
        %1672 = vrot.lane.b32.xlu0 %v1664, 126
        %v1673 = vpop.permute.xlu0 %1672
        %1674 = vrot.lane.b32.xlu0 %v1665, 126
        %v1675 = vpop.permute.xlu0 %1674
        %1676 = vrot.lane.b32.xlu0 %v1666, 126
        %v1677 = vpop.permute.xlu0 %1676
        %1678 = vrot.lane.b32.xlu0 %v1667, 126
        %v1679 = vpop.permute.xlu0 %1678
        %v1684 = vadd.f32 %v1658, %v1673
        %v1685 = vadd.f32 %v1659, %v1675
        %v1686 = vadd.f32 %v1660, %v1677
        %v1687 = vadd.f32 %v1661, %v1679
        %s1688 = sld [smem:[#allocation2 + $0x10f]]
        %v1689 = vstv %s1688
        %v1690 = vmul.f32 %v1689, %v219
        %v1691 = vmul.f32 %v1689, %v220
        %v1692 = vmul.f32 %v1689, %v221
        %v1693 = vmul.f32 %v1689, %v222
        %v1694 = vadd.f32 %v1684, %v1690
        %v1695 = vadd.f32 %v1685, %v1691
        %v1696 = vadd.f32 %v1686, %v1692
        %v1697 = vadd.f32 %v1687, %v1693
        %s1698 = sld [smem:[#allocation2 + $0x110]]
        %v1699 = vstv %s1698
        %v1700 = vmul.f32 %v1699, %v219
        %v1701 = vmul.f32 %v1699, %v220
        %v1702 = vmul.f32 %v1699, %v221
        %v1703 = vmul.f32 %v1699, %v222
        %1708 = vrot.lane.b32.xlu0 %v1700, 127
        %v1709 = vpop.permute.xlu0 %1708
        %1710 = vrot.lane.b32.xlu0 %v1701, 127
        %v1711 = vpop.permute.xlu0 %1710
        %1712 = vrot.lane.b32.xlu0 %v1702, 127
        %v1713 = vpop.permute.xlu0 %1712
        %1714 = vrot.lane.b32.xlu0 %v1703, 127
        %v1715 = vpop.permute.xlu0 %1714
        %v1720 = vadd.f32 %v1694, %v1709
        %v1721 = vadd.f32 %v1695, %v1711
        %v1722 = vadd.f32 %v1696, %v1713
        %v1723 = vadd.f32 %v1697, %v1715
        %s1724 = sld [smem:[#allocation2 + $0x111]]
        %v1725 = vstv %s1724
        %v1726 = vmul.f32 %v1725, %v219
        %v1727 = vmul.f32 %v1725, %v220
        %v1728 = vmul.f32 %v1725, %v221
        %v1729 = vmul.f32 %v1725, %v222
        %1734 = vrot.lane.b32.xlu0 %v1726, 126
        %v1735 = vpop.permute.xlu0 %1734
        %1736 = vrot.lane.b32.xlu0 %v1727, 126
        %v1737 = vpop.permute.xlu0 %1736
        %1738 = vrot.lane.b32.xlu0 %v1728, 126
        %v1739 = vpop.permute.xlu0 %1738
        %1740 = vrot.lane.b32.xlu0 %v1729, 126
        %v1741 = vpop.permute.xlu0 %1740
        %v1746 = vadd.f32 %v1720, %v1735
        %v1747 = vadd.f32 %v1721, %v1737
        %v1748 = vadd.f32 %v1722, %v1739
        %v1749 = vadd.f32 %v1723, %v1741
        %s1750 = sld [smem:[#allocation2 + $0x112]]
        %v1751 = vstv %s1750
        %v1752 = vmul.f32 %v1751, %v224
        %v1753 = vmul.f32 %v1751, %v225
        %v1754 = vmul.f32 %v1751, %v226
        %v1755 = vmul.f32 %v1751, %v227
        %v1756 = vadd.f32 %v1746, %v1752
        %v1757 = vadd.f32 %v1747, %v1753
        %v1758 = vadd.f32 %v1748, %v1754
        %v1759 = vadd.f32 %v1749, %v1755
        %s1760 = sld [smem:[#allocation2 + $0x113]]
        %v1761 = vstv %s1760
        %v1762 = vmul.f32 %v1761, %v224
        %v1763 = vmul.f32 %v1761, %v225
        %v1764 = vmul.f32 %v1761, %v226
        %v1765 = vmul.f32 %v1761, %v227
        %1770 = vrot.lane.b32.xlu0 %v1762, 127
        %v1771 = vpop.permute.xlu0 %1770
        %1772 = vrot.lane.b32.xlu0 %v1763, 127
        %v1773 = vpop.permute.xlu0 %1772
        %1774 = vrot.lane.b32.xlu0 %v1764, 127
        %v1775 = vpop.permute.xlu0 %1774
        %1776 = vrot.lane.b32.xlu0 %v1765, 127
        %v1777 = vpop.permute.xlu0 %1776
        %v1782 = vadd.f32 %v1756, %v1771
        %v1783 = vadd.f32 %v1757, %v1773
        %v1784 = vadd.f32 %v1758, %v1775
        %v1785 = vadd.f32 %v1759, %v1777
        %s1786 = sld [smem:[#allocation2 + $0x114]]
        %v1787 = vstv %s1786
        %v1788 = vmul.f32 %v1787, %v224
        %v1789 = vmul.f32 %v1787, %v225
        %v1790 = vmul.f32 %v1787, %v226
        %v1791 = vmul.f32 %v1787, %v227
        %1796 = vrot.lane.b32.xlu0 %v1788, 126
        %v1797 = vpop.permute.xlu0 %1796
        %1798 = vrot.lane.b32.xlu0 %v1789, 126
        %v1799 = vpop.permute.xlu0 %1798
        %1800 = vrot.lane.b32.xlu0 %v1790, 126
        %v1801 = vpop.permute.xlu0 %1800
        %1802 = vrot.lane.b32.xlu0 %v1791, 126
        %v1803 = vpop.permute.xlu0 %1802
        %v1808 = vadd.f32 %v1782, %v1797
        %v1809 = vadd.f32 %v1783, %v1799
        %v1810 = vadd.f32 %v1784, %v1801
        %v1811 = vadd.f32 %v1785, %v1803
        %s1812 = sld [smem:[#allocation2 + $0x115]]
        %v1813 = vstv %s1812
        %v1814 = vmul.f32 %v1813, %v228
        %v1815 = vmul.f32 %v1813, %v229
        %v1816 = vmul.f32 %v1813, %v230
        %v1817 = vmul.f32 %v1813, %v231
        %v1818 = vadd.f32 %v1808, %v1814
        %v1819 = vadd.f32 %v1809, %v1815
        %v1820 = vadd.f32 %v1810, %v1816
        %v1821 = vadd.f32 %v1811, %v1817
        %s1822 = sld [smem:[#allocation2 + $0x116]]
        %v1823 = vstv %s1822
        %v1824 = vmul.f32 %v1823, %v228
        %v1825 = vmul.f32 %v1823, %v229
        %v1826 = vmul.f32 %v1823, %v230
        %v1827 = vmul.f32 %v1823, %v231
        %1832 = vrot.lane.b32.xlu0 %v1824, 127
        %v1833 = vpop.permute.xlu0 %1832
        %1834 = vrot.lane.b32.xlu0 %v1825, 127
        %v1835 = vpop.permute.xlu0 %1834
        %1836 = vrot.lane.b32.xlu0 %v1826, 127
        %v1837 = vpop.permute.xlu0 %1836
        %1838 = vrot.lane.b32.xlu0 %v1827, 127
        %v1839 = vpop.permute.xlu0 %1838
        %v1844 = vadd.f32 %v1818, %v1833
        %v1845 = vadd.f32 %v1819, %v1835
        %v1846 = vadd.f32 %v1820, %v1837
        %v1847 = vadd.f32 %v1821, %v1839
        %s1848 = sld [smem:[#allocation2 + $0x117]]
        %v1849 = vstv %s1848
        %v1850 = vmul.f32 %v1849, %v228
        %v1851 = vmul.f32 %v1849, %v229
        %v1852 = vmul.f32 %v1849, %v230
        %v1853 = vmul.f32 %v1849, %v231
        %1858 = vrot.lane.b32.xlu0 %v1850, 126
        %v1859 = vpop.permute.xlu0 %1858
        %1860 = vrot.lane.b32.xlu0 %v1851, 126
        %v1861 = vpop.permute.xlu0 %1860
        %1862 = vrot.lane.b32.xlu0 %v1852, 126
        %v1863 = vpop.permute.xlu0 %1862
        %1864 = vrot.lane.b32.xlu0 %v1853, 126
        %v1865 = vpop.permute.xlu0 %1864
        %v1870 = vadd.f32 %v1844, %v1859
        %v1871 = vadd.f32 %v1845, %v1861
        %v1872 = vadd.f32 %v1846, %v1863
        %v1873 = vadd.f32 %v1847, %v1865
        %s1874 = sld [smem:[#allocation2 + $0x118]]
        %v1875 = vstv %s1874
        %v1876 = vmul.f32 %v1875, %v232
        %v1877 = vmul.f32 %v1875, %v233
        %v1878 = vmul.f32 %v1875, %v234
        %v1879 = vmul.f32 %v1875, %v235
        %v1880 = vadd.f32 %v1870, %v1876
        %v1881 = vadd.f32 %v1871, %v1877
        %v1882 = vadd.f32 %v1872, %v1878
        %v1883 = vadd.f32 %v1873, %v1879
        %s1884 = sld [smem:[#allocation2 + $0x119]]
        %v1885 = vstv %s1884
        %v1886 = vmul.f32 %v1885, %v232
        %v1887 = vmul.f32 %v1885, %v233
        %v1888 = vmul.f32 %v1885, %v234
        %v1889 = vmul.f32 %v1885, %v235
        %1894 = vrot.lane.b32.xlu0 %v1886, 127
        %v1895 = vpop.permute.xlu0 %1894
        %1896 = vrot.lane.b32.xlu0 %v1887, 127
        %v1897 = vpop.permute.xlu0 %1896
        %1898 = vrot.lane.b32.xlu0 %v1888, 127
        %v1899 = vpop.permute.xlu0 %1898
        %1900 = vrot.lane.b32.xlu0 %v1889, 127
        %v1901 = vpop.permute.xlu0 %1900
        %v1906 = vadd.f32 %v1880, %v1895
        %v1907 = vadd.f32 %v1881, %v1897
        %v1908 = vadd.f32 %v1882, %v1899
        %v1909 = vadd.f32 %v1883, %v1901
        %s1910 = sld [smem:[#allocation2 + $0x11a]]
        %v1911 = vstv %s1910
        %v1912 = vmul.f32 %v1911, %v232
        %v1913 = vmul.f32 %v1911, %v233
        %v1914 = vmul.f32 %v1911, %v234
        %v1915 = vmul.f32 %v1911, %v235
        %1920 = vrot.lane.b32.xlu0 %v1912, 126
        %v1921 = vpop.permute.xlu0 %1920
        %1922 = vrot.lane.b32.xlu0 %v1913, 126
        %v1923 = vpop.permute.xlu0 %1922
        %1924 = vrot.lane.b32.xlu0 %v1914, 126
        %v1925 = vpop.permute.xlu0 %1924
        %1926 = vrot.lane.b32.xlu0 %v1915, 126
        %v1927 = vpop.permute.xlu0 %1926
        %v1932 = vadd.f32 %v1906, %v1921
        %v1933 = vadd.f32 %v1907, %v1923
        %v1934 = vadd.f32 %v1908, %v1925
        %v1935 = vadd.f32 %v1909, %v1927
        %s1936 = sld [smem:[#allocation5 + $0x2]]
        %v1937 = vstv %s1936
        %v1938 = vadd.f32 %v1932, %v1937
        %v1939 = vadd.f32 %v1933, %v1937
        %v1940 = vadd.f32 %v1934, %v1937
        %v1941 = vadd.f32 %v1935, %v1937
        %v1942 = vmax.f32 %v1938, 0.0
        %v1943 = vmax.f32 %v1939, 0.0
        %v1944 = vmax.f32 %v1940, 0.0
        %v1945 = vmax.f32 %v1941, 0.0
        %v1946 = vmin.f32 %v1942, 0.5
        %v1947 = vmin.f32 %v1943, 0.5
        %v1948 = vmin.f32 %v1944, 0.5
        %v1949 = vmin.f32 %v1945, 0.5
        %s1950 = scalar_lea.vmem %s192, 64 [#allocation7]
        %1951 = vst.msk [vmem:[%s1950] sm:$0xff] %vm804, %v1946
        %1952 = vst.msk [vmem:[%s1950 + $0x8] sm:$0xff] %vm804, %v1947
        %1953 = vst.msk [vmem:[%s1950 + $0x10] sm:$0xff] %vm804, %v1948
        %1954 = vst.msk [vmem:[%s1950 + $0x18] sm:$0xff] %vm804, %v1949
        %s1955 = sld [smem:[#allocation2 + $0x180]]
        %v1956 = vstv %s1955
        %v1957 = vmul.f32 %v1956, %v198
        %v1958 = vmul.f32 %v1956, %v199
        %v1959 = vmul.f32 %v1956, %v200
        %v1960 = vmul.f32 %v1956, %v201
        %s1961 = sld [smem:[#allocation2 + $0x181]]
        %v1962 = vstv %s1961
        %v1963 = vmul.f32 %v1962, %v198
        %v1964 = vmul.f32 %v1962, %v199
        %v1965 = vmul.f32 %v1962, %v200
        %v1966 = vmul.f32 %v1962, %v201
        %1971 = vrot.lane.b32.xlu0 %v1963, 127
        %v1972 = vpop.permute.xlu0 %1971
        %1973 = vrot.lane.b32.xlu0 %v1964, 127
        %v1974 = vpop.permute.xlu0 %1973
        %1975 = vrot.lane.b32.xlu0 %v1965, 127
        %v1976 = vpop.permute.xlu0 %1975
        %1977 = vrot.lane.b32.xlu0 %v1966, 127
        %v1978 = vpop.permute.xlu0 %1977
        %v1983 = vadd.f32 %v1957, %v1972
        %v1984 = vadd.f32 %v1958, %v1974
        %v1985 = vadd.f32 %v1959, %v1976
        %v1986 = vadd.f32 %v1960, %v1978
        %s1987 = sld [smem:[#allocation2 + $0x182]]
        %v1988 = vstv %s1987
        %v1989 = vmul.f32 %v1988, %v198
        %v1990 = vmul.f32 %v1988, %v199
        %v1991 = vmul.f32 %v1988, %v200
        %v1992 = vmul.f32 %v1988, %v201
        %1997 = vrot.lane.b32.xlu0 %v1989, 126
        %v1998 = vpop.permute.xlu0 %1997
        %1999 = vrot.lane.b32.xlu0 %v1990, 126
        %v2000 = vpop.permute.xlu0 %1999
        %2001 = vrot.lane.b32.xlu0 %v1991, 126
        %v2002 = vpop.permute.xlu0 %2001
        %2003 = vrot.lane.b32.xlu0 %v1992, 126
        %v2004 = vpop.permute.xlu0 %2003
        %v2009 = vadd.f32 %v1983, %v1998
        %v2010 = vadd.f32 %v1984, %v2000
        %v2011 = vadd.f32 %v1985, %v2002
        %v2012 = vadd.f32 %v1986, %v2004
        %s2013 = sld [smem:[#allocation2 + $0x183]]
        %v2014 = vstv %s2013
        %v2015 = vmul.f32 %v2014, %v202
        %v2016 = vmul.f32 %v2014, %v203
        %v2017 = vmul.f32 %v2014, %v204
        %v2018 = vmul.f32 %v2014, %v205
        %v2019 = vadd.f32 %v2009, %v2015
        %v2020 = vadd.f32 %v2010, %v2016
        %v2021 = vadd.f32 %v2011, %v2017
        %v2022 = vadd.f32 %v2012, %v2018
        %s2023 = sld [smem:[#allocation2 + $0x184]]
        %v2024 = vstv %s2023
        %v2025 = vmul.f32 %v2024, %v202
        %v2026 = vmul.f32 %v2024, %v203
        %v2027 = vmul.f32 %v2024, %v204
        %v2028 = vmul.f32 %v2024, %v205
        %2033 = vrot.lane.b32.xlu0 %v2025, 127
        %v2034 = vpop.permute.xlu0 %2033
        %2035 = vrot.lane.b32.xlu0 %v2026, 127
        %v2036 = vpop.permute.xlu0 %2035
        %2037 = vrot.lane.b32.xlu0 %v2027, 127
        %v2038 = vpop.permute.xlu0 %2037
        %2039 = vrot.lane.b32.xlu0 %v2028, 127
        %v2040 = vpop.permute.xlu0 %2039
        %v2045 = vadd.f32 %v2019, %v2034
        %v2046 = vadd.f32 %v2020, %v2036
        %v2047 = vadd.f32 %v2021, %v2038
        %v2048 = vadd.f32 %v2022, %v2040
        %s2049 = sld [smem:[#allocation2 + $0x185]]
        %v2050 = vstv %s2049
        %v2051 = vmul.f32 %v2050, %v202
        %v2052 = vmul.f32 %v2050, %v203
        %v2053 = vmul.f32 %v2050, %v204
        %v2054 = vmul.f32 %v2050, %v205
        %2059 = vrot.lane.b32.xlu0 %v2051, 126
        %v2060 = vpop.permute.xlu0 %2059
        %2061 = vrot.lane.b32.xlu0 %v2052, 126
        %v2062 = vpop.permute.xlu0 %2061
        %2063 = vrot.lane.b32.xlu0 %v2053, 126
        %v2064 = vpop.permute.xlu0 %2063
        %2065 = vrot.lane.b32.xlu0 %v2054, 126
        %v2066 = vpop.permute.xlu0 %2065
        %v2071 = vadd.f32 %v2045, %v2060
        %v2072 = vadd.f32 %v2046, %v2062
        %v2073 = vadd.f32 %v2047, %v2064
        %v2074 = vadd.f32 %v2048, %v2066
        %s2075 = sld [smem:[#allocation2 + $0x186]]
        %v2076 = vstv %s2075
        %v2077 = vmul.f32 %v2076, %v206
        %v2078 = vmul.f32 %v2076, %v207
        %v2079 = vmul.f32 %v2076, %v208
        %v2080 = vmul.f32 %v2076, %v209
        %v2081 = vadd.f32 %v2071, %v2077
        %v2082 = vadd.f32 %v2072, %v2078
        %v2083 = vadd.f32 %v2073, %v2079
        %v2084 = vadd.f32 %v2074, %v2080
        %s2085 = sld [smem:[#allocation2 + $0x187]]
        %v2086 = vstv %s2085
        %v2087 = vmul.f32 %v2086, %v206
        %v2088 = vmul.f32 %v2086, %v207
        %v2089 = vmul.f32 %v2086, %v208
        %v2090 = vmul.f32 %v2086, %v209
        %2095 = vrot.lane.b32.xlu0 %v2087, 127
        %v2096 = vpop.permute.xlu0 %2095
        %2097 = vrot.lane.b32.xlu0 %v2088, 127
        %v2098 = vpop.permute.xlu0 %2097
        %2099 = vrot.lane.b32.xlu0 %v2089, 127
        %v2100 = vpop.permute.xlu0 %2099
        %2101 = vrot.lane.b32.xlu0 %v2090, 127
        %v2102 = vpop.permute.xlu0 %2101
        %v2107 = vadd.f32 %v2081, %v2096
        %v2108 = vadd.f32 %v2082, %v2098
        %v2109 = vadd.f32 %v2083, %v2100
        %v2110 = vadd.f32 %v2084, %v2102
        %s2111 = sld [smem:[#allocation2 + $0x188]]
        %v2112 = vstv %s2111
        %v2113 = vmul.f32 %v2112, %v206
        %v2114 = vmul.f32 %v2112, %v207
        %v2115 = vmul.f32 %v2112, %v208
        %v2116 = vmul.f32 %v2112, %v209
        %2121 = vrot.lane.b32.xlu0 %v2113, 126
        %v2122 = vpop.permute.xlu0 %2121
        %2123 = vrot.lane.b32.xlu0 %v2114, 126
        %v2124 = vpop.permute.xlu0 %2123
        %2125 = vrot.lane.b32.xlu0 %v2115, 126
        %v2126 = vpop.permute.xlu0 %2125
        %2127 = vrot.lane.b32.xlu0 %v2116, 126
        %v2128 = vpop.permute.xlu0 %2127
        %v2133 = vadd.f32 %v2107, %v2122
        %v2134 = vadd.f32 %v2108, %v2124
        %v2135 = vadd.f32 %v2109, %v2126
        %v2136 = vadd.f32 %v2110, %v2128
        %s2137 = sld [smem:[#allocation2 + $0x189]]
        %v2138 = vstv %s2137
        %v2139 = vmul.f32 %v2138, %v211
        %v2140 = vmul.f32 %v2138, %v212
        %v2141 = vmul.f32 %v2138, %v213
        %v2142 = vmul.f32 %v2138, %v214
        %v2143 = vadd.f32 %v2133, %v2139
        %v2144 = vadd.f32 %v2134, %v2140
        %v2145 = vadd.f32 %v2135, %v2141
        %v2146 = vadd.f32 %v2136, %v2142
        %s2147 = sld [smem:[#allocation2 + $0x18a]]
        %v2148 = vstv %s2147
        %v2149 = vmul.f32 %v2148, %v211
        %v2150 = vmul.f32 %v2148, %v212
        %v2151 = vmul.f32 %v2148, %v213
        %v2152 = vmul.f32 %v2148, %v214
        %2157 = vrot.lane.b32.xlu0 %v2149, 127
        %v2158 = vpop.permute.xlu0 %2157
        %2159 = vrot.lane.b32.xlu0 %v2150, 127
        %v2160 = vpop.permute.xlu0 %2159
        %2161 = vrot.lane.b32.xlu0 %v2151, 127
        %v2162 = vpop.permute.xlu0 %2161
        %2163 = vrot.lane.b32.xlu0 %v2152, 127
        %v2164 = vpop.permute.xlu0 %2163
        %v2169 = vadd.f32 %v2143, %v2158
        %v2170 = vadd.f32 %v2144, %v2160
        %v2171 = vadd.f32 %v2145, %v2162
        %v2172 = vadd.f32 %v2146, %v2164
        %s2173 = sld [smem:[#allocation2 + $0x18b]]
        %v2174 = vstv %s2173
        %v2175 = vmul.f32 %v2174, %v211
        %v2176 = vmul.f32 %v2174, %v212
        %v2177 = vmul.f32 %v2174, %v213
        %v2178 = vmul.f32 %v2174, %v214
        %2183 = vrot.lane.b32.xlu0 %v2175, 126
        %v2184 = vpop.permute.xlu0 %2183
        %2185 = vrot.lane.b32.xlu0 %v2176, 126
        %v2186 = vpop.permute.xlu0 %2185
        %2187 = vrot.lane.b32.xlu0 %v2177, 126
        %v2188 = vpop.permute.xlu0 %2187
        %2189 = vrot.lane.b32.xlu0 %v2178, 126
        %v2190 = vpop.permute.xlu0 %2189
        %v2195 = vadd.f32 %v2169, %v2184
        %v2196 = vadd.f32 %v2170, %v2186
        %v2197 = vadd.f32 %v2171, %v2188
        %v2198 = vadd.f32 %v2172, %v2190
        %s2199 = sld [smem:[#allocation2 + $0x18c]]
        %v2200 = vstv %s2199
        %v2201 = vmul.f32 %v2200, %v215
        %v2202 = vmul.f32 %v2200, %v216
        %v2203 = vmul.f32 %v2200, %v217
        %v2204 = vmul.f32 %v2200, %v218
        %v2205 = vadd.f32 %v2195, %v2201
        %v2206 = vadd.f32 %v2196, %v2202
        %v2207 = vadd.f32 %v2197, %v2203
        %v2208 = vadd.f32 %v2198, %v2204
        %s2209 = sld [smem:[#allocation2 + $0x18d]]
        %v2210 = vstv %s2209
        %v2211 = vmul.f32 %v2210, %v215
        %v2212 = vmul.f32 %v2210, %v216
        %v2213 = vmul.f32 %v2210, %v217
        %v2214 = vmul.f32 %v2210, %v218
        %2219 = vrot.lane.b32.xlu0 %v2211, 127
        %v2220 = vpop.permute.xlu0 %2219
        %2221 = vrot.lane.b32.xlu0 %v2212, 127
        %v2222 = vpop.permute.xlu0 %2221
        %2223 = vrot.lane.b32.xlu0 %v2213, 127
        %v2224 = vpop.permute.xlu0 %2223
        %2225 = vrot.lane.b32.xlu0 %v2214, 127
        %v2226 = vpop.permute.xlu0 %2225
        %v2231 = vadd.f32 %v2205, %v2220
        %v2232 = vadd.f32 %v2206, %v2222
        %v2233 = vadd.f32 %v2207, %v2224
        %v2234 = vadd.f32 %v2208, %v2226
        %s2235 = sld [smem:[#allocation2 + $0x18e]]
        %v2236 = vstv %s2235
        %v2237 = vmul.f32 %v2236, %v215
        %v2238 = vmul.f32 %v2236, %v216
        %v2239 = vmul.f32 %v2236, %v217
        %v2240 = vmul.f32 %v2236, %v218
        %2245 = vrot.lane.b32.xlu0 %v2237, 126
        %v2246 = vpop.permute.xlu0 %2245
        %2247 = vrot.lane.b32.xlu0 %v2238, 126
        %v2248 = vpop.permute.xlu0 %2247
        %2249 = vrot.lane.b32.xlu0 %v2239, 126
        %v2250 = vpop.permute.xlu0 %2249
        %2251 = vrot.lane.b32.xlu0 %v2240, 126
        %v2252 = vpop.permute.xlu0 %2251
        %v2257 = vadd.f32 %v2231, %v2246
        %v2258 = vadd.f32 %v2232, %v2248
        %v2259 = vadd.f32 %v2233, %v2250
        %v2260 = vadd.f32 %v2234, %v2252
        %s2261 = sld [smem:[#allocation2 + $0x18f]]
        %v2262 = vstv %s2261
        %v2263 = vmul.f32 %v2262, %v219
        %v2264 = vmul.f32 %v2262, %v220
        %v2265 = vmul.f32 %v2262, %v221
        %v2266 = vmul.f32 %v2262, %v222
        %v2267 = vadd.f32 %v2257, %v2263
        %v2268 = vadd.f32 %v2258, %v2264
        %v2269 = vadd.f32 %v2259, %v2265
        %v2270 = vadd.f32 %v2260, %v2266
        %s2271 = sld [smem:[#allocation2 + $0x190]]
        %v2272 = vstv %s2271
        %v2273 = vmul.f32 %v2272, %v219
        %v2274 = vmul.f32 %v2272, %v220
        %v2275 = vmul.f32 %v2272, %v221
        %v2276 = vmul.f32 %v2272, %v222
        %2281 = vrot.lane.b32.xlu0 %v2273, 127
        %v2282 = vpop.permute.xlu0 %2281
        %2283 = vrot.lane.b32.xlu0 %v2274, 127
        %v2284 = vpop.permute.xlu0 %2283
        %2285 = vrot.lane.b32.xlu0 %v2275, 127
        %v2286 = vpop.permute.xlu0 %2285
        %2287 = vrot.lane.b32.xlu0 %v2276, 127
        %v2288 = vpop.permute.xlu0 %2287
        %v2293 = vadd.f32 %v2267, %v2282
        %v2294 = vadd.f32 %v2268, %v2284
        %v2295 = vadd.f32 %v2269, %v2286
        %v2296 = vadd.f32 %v2270, %v2288
        %s2297 = sld [smem:[#allocation2 + $0x191]]
        %v2298 = vstv %s2297
        %v2299 = vmul.f32 %v2298, %v219
        %v2300 = vmul.f32 %v2298, %v220
        %v2301 = vmul.f32 %v2298, %v221
        %v2302 = vmul.f32 %v2298, %v222
        %2307 = vrot.lane.b32.xlu0 %v2299, 126
        %v2308 = vpop.permute.xlu0 %2307
        %2309 = vrot.lane.b32.xlu0 %v2300, 126
        %v2310 = vpop.permute.xlu0 %2309
        %2311 = vrot.lane.b32.xlu0 %v2301, 126
        %v2312 = vpop.permute.xlu0 %2311
        %2313 = vrot.lane.b32.xlu0 %v2302, 126
        %v2314 = vpop.permute.xlu0 %2313
        %v2319 = vadd.f32 %v2293, %v2308
        %v2320 = vadd.f32 %v2294, %v2310
        %v2321 = vadd.f32 %v2295, %v2312
        %v2322 = vadd.f32 %v2296, %v2314
        %s2323 = sld [smem:[#allocation2 + $0x192]]
        %v2324 = vstv %s2323
        %v2325 = vmul.f32 %v2324, %v224
        %v2326 = vmul.f32 %v2324, %v225
        %v2327 = vmul.f32 %v2324, %v226
        %v2328 = vmul.f32 %v2324, %v227
        %v2329 = vadd.f32 %v2319, %v2325
        %v2330 = vadd.f32 %v2320, %v2326
        %v2331 = vadd.f32 %v2321, %v2327
        %v2332 = vadd.f32 %v2322, %v2328
        %s2333 = sld [smem:[#allocation2 + $0x193]]
        %v2334 = vstv %s2333
        %v2335 = vmul.f32 %v2334, %v224
        %v2336 = vmul.f32 %v2334, %v225
        %v2337 = vmul.f32 %v2334, %v226
        %v2338 = vmul.f32 %v2334, %v227
        %2343 = vrot.lane.b32.xlu0 %v2335, 127
        %v2344 = vpop.permute.xlu0 %2343
        %2345 = vrot.lane.b32.xlu0 %v2336, 127
        %v2346 = vpop.permute.xlu0 %2345
        %2347 = vrot.lane.b32.xlu0 %v2337, 127
        %v2348 = vpop.permute.xlu0 %2347
        %2349 = vrot.lane.b32.xlu0 %v2338, 127
        %v2350 = vpop.permute.xlu0 %2349
        %v2355 = vadd.f32 %v2329, %v2344
        %v2356 = vadd.f32 %v2330, %v2346
        %v2357 = vadd.f32 %v2331, %v2348
        %v2358 = vadd.f32 %v2332, %v2350
        %s2359 = sld [smem:[#allocation2 + $0x194]]
        %v2360 = vstv %s2359
        %v2361 = vmul.f32 %v2360, %v224
        %v2362 = vmul.f32 %v2360, %v225
        %v2363 = vmul.f32 %v2360, %v226
        %v2364 = vmul.f32 %v2360, %v227
        %2369 = vrot.lane.b32.xlu0 %v2361, 126
        %v2370 = vpop.permute.xlu0 %2369
        %2371 = vrot.lane.b32.xlu0 %v2362, 126
        %v2372 = vpop.permute.xlu0 %2371
        %2373 = vrot.lane.b32.xlu0 %v2363, 126
        %v2374 = vpop.permute.xlu0 %2373
        %2375 = vrot.lane.b32.xlu0 %v2364, 126
        %v2376 = vpop.permute.xlu0 %2375
        %v2381 = vadd.f32 %v2355, %v2370
        %v2382 = vadd.f32 %v2356, %v2372
        %v2383 = vadd.f32 %v2357, %v2374
        %v2384 = vadd.f32 %v2358, %v2376
        %s2385 = sld [smem:[#allocation2 + $0x195]]
        %v2386 = vstv %s2385
        %v2387 = vmul.f32 %v2386, %v228
        %v2388 = vmul.f32 %v2386, %v229
        %v2389 = vmul.f32 %v2386, %v230
        %v2390 = vmul.f32 %v2386, %v231
        %v2391 = vadd.f32 %v2381, %v2387
        %v2392 = vadd.f32 %v2382, %v2388
        %v2393 = vadd.f32 %v2383, %v2389
        %v2394 = vadd.f32 %v2384, %v2390
        %s2395 = sld [smem:[#allocation2 + $0x196]]
        %v2396 = vstv %s2395
        %v2397 = vmul.f32 %v2396, %v228
        %v2398 = vmul.f32 %v2396, %v229
        %v2399 = vmul.f32 %v2396, %v230
        %v2400 = vmul.f32 %v2396, %v231
        %2405 = vrot.lane.b32.xlu0 %v2397, 127
        %v2406 = vpop.permute.xlu0 %2405
        %2407 = vrot.lane.b32.xlu0 %v2398, 127
        %v2408 = vpop.permute.xlu0 %2407
        %2409 = vrot.lane.b32.xlu0 %v2399, 127
        %v2410 = vpop.permute.xlu0 %2409
        %2411 = vrot.lane.b32.xlu0 %v2400, 127
        %v2412 = vpop.permute.xlu0 %2411
        %v2417 = vadd.f32 %v2391, %v2406
        %v2418 = vadd.f32 %v2392, %v2408
        %v2419 = vadd.f32 %v2393, %v2410
        %v2420 = vadd.f32 %v2394, %v2412
        %s2421 = sld [smem:[#allocation2 + $0x197]]
        %v2422 = vstv %s2421
        %v2423 = vmul.f32 %v2422, %v228
        %v2424 = vmul.f32 %v2422, %v229
        %v2425 = vmul.f32 %v2422, %v230
        %v2426 = vmul.f32 %v2422, %v231
        %2431 = vrot.lane.b32.xlu0 %v2423, 126
        %v2432 = vpop.permute.xlu0 %2431
        %2433 = vrot.lane.b32.xlu0 %v2424, 126
        %v2434 = vpop.permute.xlu0 %2433
        %2435 = vrot.lane.b32.xlu0 %v2425, 126
        %v2436 = vpop.permute.xlu0 %2435
        %2437 = vrot.lane.b32.xlu0 %v2426, 126
        %v2438 = vpop.permute.xlu0 %2437
        %v2443 = vadd.f32 %v2417, %v2432
        %v2444 = vadd.f32 %v2418, %v2434
        %v2445 = vadd.f32 %v2419, %v2436
        %v2446 = vadd.f32 %v2420, %v2438
        %s2447 = sld [smem:[#allocation2 + $0x198]]
        %v2448 = vstv %s2447
        %v2449 = vmul.f32 %v2448, %v232
        %v2450 = vmul.f32 %v2448, %v233
        %v2451 = vmul.f32 %v2448, %v234
        %v2452 = vmul.f32 %v2448, %v235
        %v2453 = vadd.f32 %v2443, %v2449
        %v2454 = vadd.f32 %v2444, %v2450
        %v2455 = vadd.f32 %v2445, %v2451
        %v2456 = vadd.f32 %v2446, %v2452
        %s2457 = sld [smem:[#allocation2 + $0x199]]
        %v2458 = vstv %s2457
        %v2459 = vmul.f32 %v2458, %v232
        %v2460 = vmul.f32 %v2458, %v233
        %v2461 = vmul.f32 %v2458, %v234
        %v2462 = vmul.f32 %v2458, %v235
        %2467 = vrot.lane.b32.xlu0 %v2459, 127
        %v2468 = vpop.permute.xlu0 %2467
        %2469 = vrot.lane.b32.xlu0 %v2460, 127
        %v2470 = vpop.permute.xlu0 %2469
        %2471 = vrot.lane.b32.xlu0 %v2461, 127
        %v2472 = vpop.permute.xlu0 %2471
        %2473 = vrot.lane.b32.xlu0 %v2462, 127
        %v2474 = vpop.permute.xlu0 %2473
        %v2479 = vadd.f32 %v2453, %v2468
        %v2480 = vadd.f32 %v2454, %v2470
        %v2481 = vadd.f32 %v2455, %v2472
        %v2482 = vadd.f32 %v2456, %v2474
        %s2483 = sld [smem:[#allocation2 + $0x19a]]
        %v2484 = vstv %s2483
        %v2485 = vmul.f32 %v2484, %v232
        %v2486 = vmul.f32 %v2484, %v233
        %v2487 = vmul.f32 %v2484, %v234
        %v2488 = vmul.f32 %v2484, %v235
        %2493 = vrot.lane.b32.xlu0 %v2485, 126
        %v2494 = vpop.permute.xlu0 %2493
        %2495 = vrot.lane.b32.xlu0 %v2486, 126
        %v2496 = vpop.permute.xlu0 %2495
        %2497 = vrot.lane.b32.xlu0 %v2487, 126
        %v2498 = vpop.permute.xlu0 %2497
        %2499 = vrot.lane.b32.xlu0 %v2488, 126
        %v2500 = vpop.permute.xlu0 %2499
        %v2505 = vadd.f32 %v2479, %v2494
        %v2506 = vadd.f32 %v2480, %v2496
        %v2507 = vadd.f32 %v2481, %v2498
        %v2508 = vadd.f32 %v2482, %v2500
        %s2509 = sld [smem:[#allocation5 + $0x3]]
        %v2510 = vstv %s2509
        %v2511 = vadd.f32 %v2505, %v2510
        %v2512 = vadd.f32 %v2506, %v2510
        %v2513 = vadd.f32 %v2507, %v2510
        %v2514 = vadd.f32 %v2508, %v2510
        %v2515 = vmax.f32 %v2511, 0.0
        %v2516 = vmax.f32 %v2512, 0.0
        %v2517 = vmax.f32 %v2513, 0.0
        %v2518 = vmax.f32 %v2514, 0.0
        %v2519 = vmin.f32 %v2515, 0.5
        %v2520 = vmin.f32 %v2516, 0.5
        %v2521 = vmin.f32 %v2517, 0.5
        %v2522 = vmin.f32 %v2518, 0.5
        %s2523 = scalar_lea.vmem %s192, 96 [#allocation7]
        %2524 = vst.msk [vmem:[%s2523] sm:$0xff] %vm804, %v2519
        %2525 = vst.msk [vmem:[%s2523 + $0x8] sm:$0xff] %vm804, %v2520
        %2526 = vst.msk [vmem:[%s2523 + $0x10] sm:$0xff] %vm804, %v2521
        %2527 = vst.msk [vmem:[%s2523 + $0x18] sm:$0xff] %vm804, %v2522
        %s2528 = sld [smem:[#allocation2 + $0x200]]
        %v2529 = vstv %s2528
        %v2530 = vmul.f32 %v2529, %v198
        %v2531 = vmul.f32 %v2529, %v199
        %v2532 = vmul.f32 %v2529, %v200
        %v2533 = vmul.f32 %v2529, %v201
        %s2534 = sld [smem:[#allocation2 + $0x201]]
        %v2535 = vstv %s2534
        %v2536 = vmul.f32 %v2535, %v198
        %v2537 = vmul.f32 %v2535, %v199
        %v2538 = vmul.f32 %v2535, %v200
        %v2539 = vmul.f32 %v2535, %v201
        %2544 = vrot.lane.b32.xlu0 %v2536, 127
        %v2545 = vpop.permute.xlu0 %2544
        %2546 = vrot.lane.b32.xlu0 %v2537, 127
        %v2547 = vpop.permute.xlu0 %2546
        %2548 = vrot.lane.b32.xlu0 %v2538, 127
        %v2549 = vpop.permute.xlu0 %2548
        %2550 = vrot.lane.b32.xlu0 %v2539, 127
        %v2551 = vpop.permute.xlu0 %2550
        %v2556 = vadd.f32 %v2530, %v2545
        %v2557 = vadd.f32 %v2531, %v2547
        %v2558 = vadd.f32 %v2532, %v2549
        %v2559 = vadd.f32 %v2533, %v2551
        %s2560 = sld [smem:[#allocation2 + $0x202]]
        %v2561 = vstv %s2560
        %v2562 = vmul.f32 %v2561, %v198
        %v2563 = vmul.f32 %v2561, %v199
        %v2564 = vmul.f32 %v2561, %v200
        %v2565 = vmul.f32 %v2561, %v201
        %2570 = vrot.lane.b32.xlu0 %v2562, 126
        %v2571 = vpop.permute.xlu0 %2570
        %2572 = vrot.lane.b32.xlu0 %v2563, 126
        %v2573 = vpop.permute.xlu0 %2572
        %2574 = vrot.lane.b32.xlu0 %v2564, 126
        %v2575 = vpop.permute.xlu0 %2574
        %2576 = vrot.lane.b32.xlu0 %v2565, 126
        %v2577 = vpop.permute.xlu0 %2576
        %v2582 = vadd.f32 %v2556, %v2571
        %v2583 = vadd.f32 %v2557, %v2573
        %v2584 = vadd.f32 %v2558, %v2575
        %v2585 = vadd.f32 %v2559, %v2577
        %s2586 = sld [smem:[#allocation2 + $0x203]]
        %v2587 = vstv %s2586
        %v2588 = vmul.f32 %v2587, %v202
        %v2589 = vmul.f32 %v2587, %v203
        %v2590 = vmul.f32 %v2587, %v204
        %v2591 = vmul.f32 %v2587, %v205
        %v2592 = vadd.f32 %v2582, %v2588
        %v2593 = vadd.f32 %v2583, %v2589
        %v2594 = vadd.f32 %v2584, %v2590
        %v2595 = vadd.f32 %v2585, %v2591
        %s2596 = sld [smem:[#allocation2 + $0x204]]
        %v2597 = vstv %s2596
        %v2598 = vmul.f32 %v2597, %v202
        %v2599 = vmul.f32 %v2597, %v203
        %v2600 = vmul.f32 %v2597, %v204
        %v2601 = vmul.f32 %v2597, %v205
        %2606 = vrot.lane.b32.xlu0 %v2598, 127
        %v2607 = vpop.permute.xlu0 %2606
        %2608 = vrot.lane.b32.xlu0 %v2599, 127
        %v2609 = vpop.permute.xlu0 %2608
        %2610 = vrot.lane.b32.xlu0 %v2600, 127
        %v2611 = vpop.permute.xlu0 %2610
        %2612 = vrot.lane.b32.xlu0 %v2601, 127
        %v2613 = vpop.permute.xlu0 %2612
        %v2618 = vadd.f32 %v2592, %v2607
        %v2619 = vadd.f32 %v2593, %v2609
        %v2620 = vadd.f32 %v2594, %v2611
        %v2621 = vadd.f32 %v2595, %v2613
        %s2622 = sld [smem:[#allocation2 + $0x205]]
        %v2623 = vstv %s2622
        %v2624 = vmul.f32 %v2623, %v202
        %v2625 = vmul.f32 %v2623, %v203
        %v2626 = vmul.f32 %v2623, %v204
        %v2627 = vmul.f32 %v2623, %v205
        %2632 = vrot.lane.b32.xlu0 %v2624, 126
        %v2633 = vpop.permute.xlu0 %2632
        %2634 = vrot.lane.b32.xlu0 %v2625, 126
        %v2635 = vpop.permute.xlu0 %2634
        %2636 = vrot.lane.b32.xlu0 %v2626, 126
        %v2637 = vpop.permute.xlu0 %2636
        %2638 = vrot.lane.b32.xlu0 %v2627, 126
        %v2639 = vpop.permute.xlu0 %2638
        %v2644 = vadd.f32 %v2618, %v2633
        %v2645 = vadd.f32 %v2619, %v2635
        %v2646 = vadd.f32 %v2620, %v2637
        %v2647 = vadd.f32 %v2621, %v2639
        %s2648 = sld [smem:[#allocation2 + $0x206]]
        %v2649 = vstv %s2648
        %v2650 = vmul.f32 %v2649, %v206
        %v2651 = vmul.f32 %v2649, %v207
        %v2652 = vmul.f32 %v2649, %v208
        %v2653 = vmul.f32 %v2649, %v209
        %v2654 = vadd.f32 %v2644, %v2650
        %v2655 = vadd.f32 %v2645, %v2651
        %v2656 = vadd.f32 %v2646, %v2652
        %v2657 = vadd.f32 %v2647, %v2653
        %s2658 = sld [smem:[#allocation2 + $0x207]]
        %v2659 = vstv %s2658
        %v2660 = vmul.f32 %v2659, %v206
        %v2661 = vmul.f32 %v2659, %v207
        %v2662 = vmul.f32 %v2659, %v208
        %v2663 = vmul.f32 %v2659, %v209
        %2668 = vrot.lane.b32.xlu0 %v2660, 127
        %v2669 = vpop.permute.xlu0 %2668
        %2670 = vrot.lane.b32.xlu0 %v2661, 127
        %v2671 = vpop.permute.xlu0 %2670
        %2672 = vrot.lane.b32.xlu0 %v2662, 127
        %v2673 = vpop.permute.xlu0 %2672
        %2674 = vrot.lane.b32.xlu0 %v2663, 127
        %v2675 = vpop.permute.xlu0 %2674
        %v2680 = vadd.f32 %v2654, %v2669
        %v2681 = vadd.f32 %v2655, %v2671
        %v2682 = vadd.f32 %v2656, %v2673
        %v2683 = vadd.f32 %v2657, %v2675
        %s2684 = sld [smem:[#allocation2 + $0x208]]
        %v2685 = vstv %s2684
        %v2686 = vmul.f32 %v2685, %v206
        %v2687 = vmul.f32 %v2685, %v207
        %v2688 = vmul.f32 %v2685, %v208
        %v2689 = vmul.f32 %v2685, %v209
        %2694 = vrot.lane.b32.xlu0 %v2686, 126
        %v2695 = vpop.permute.xlu0 %2694
        %2696 = vrot.lane.b32.xlu0 %v2687, 126
        %v2697 = vpop.permute.xlu0 %2696
        %2698 = vrot.lane.b32.xlu0 %v2688, 126
        %v2699 = vpop.permute.xlu0 %2698
        %2700 = vrot.lane.b32.xlu0 %v2689, 126
        %v2701 = vpop.permute.xlu0 %2700
        %v2706 = vadd.f32 %v2680, %v2695
        %v2707 = vadd.f32 %v2681, %v2697
        %v2708 = vadd.f32 %v2682, %v2699
        %v2709 = vadd.f32 %v2683, %v2701
        %s2710 = sld [smem:[#allocation2 + $0x209]]
        %v2711 = vstv %s2710
        %v2712 = vmul.f32 %v2711, %v211
        %v2713 = vmul.f32 %v2711, %v212
        %v2714 = vmul.f32 %v2711, %v213
        %v2715 = vmul.f32 %v2711, %v214
        %v2716 = vadd.f32 %v2706, %v2712
        %v2717 = vadd.f32 %v2707, %v2713
        %v2718 = vadd.f32 %v2708, %v2714
        %v2719 = vadd.f32 %v2709, %v2715
        %s2720 = sld [smem:[#allocation2 + $0x20a]]
        %v2721 = vstv %s2720
        %v2722 = vmul.f32 %v2721, %v211
        %v2723 = vmul.f32 %v2721, %v212
        %v2724 = vmul.f32 %v2721, %v213
        %v2725 = vmul.f32 %v2721, %v214
        %2730 = vrot.lane.b32.xlu0 %v2722, 127
        %v2731 = vpop.permute.xlu0 %2730
        %2732 = vrot.lane.b32.xlu0 %v2723, 127
        %v2733 = vpop.permute.xlu0 %2732
        %2734 = vrot.lane.b32.xlu0 %v2724, 127
        %v2735 = vpop.permute.xlu0 %2734
        %2736 = vrot.lane.b32.xlu0 %v2725, 127
        %v2737 = vpop.permute.xlu0 %2736
        %v2742 = vadd.f32 %v2716, %v2731
        %v2743 = vadd.f32 %v2717, %v2733
        %v2744 = vadd.f32 %v2718, %v2735
        %v2745 = vadd.f32 %v2719, %v2737
        %s2746 = sld [smem:[#allocation2 + $0x20b]]
        %v2747 = vstv %s2746
        %v2748 = vmul.f32 %v2747, %v211
        %v2749 = vmul.f32 %v2747, %v212
        %v2750 = vmul.f32 %v2747, %v213
        %v2751 = vmul.f32 %v2747, %v214
        %2756 = vrot.lane.b32.xlu0 %v2748, 126
        %v2757 = vpop.permute.xlu0 %2756
        %2758 = vrot.lane.b32.xlu0 %v2749, 126
        %v2759 = vpop.permute.xlu0 %2758
        %2760 = vrot.lane.b32.xlu0 %v2750, 126
        %v2761 = vpop.permute.xlu0 %2760
        %2762 = vrot.lane.b32.xlu0 %v2751, 126
        %v2763 = vpop.permute.xlu0 %2762
        %v2768 = vadd.f32 %v2742, %v2757
        %v2769 = vadd.f32 %v2743, %v2759
        %v2770 = vadd.f32 %v2744, %v2761
        %v2771 = vadd.f32 %v2745, %v2763
        %s2772 = sld [smem:[#allocation2 + $0x20c]]
        %v2773 = vstv %s2772
        %v2774 = vmul.f32 %v2773, %v215
        %v2775 = vmul.f32 %v2773, %v216
        %v2776 = vmul.f32 %v2773, %v217
        %v2777 = vmul.f32 %v2773, %v218
        %v2778 = vadd.f32 %v2768, %v2774
        %v2779 = vadd.f32 %v2769, %v2775
        %v2780 = vadd.f32 %v2770, %v2776
        %v2781 = vadd.f32 %v2771, %v2777
        %s2782 = sld [smem:[#allocation2 + $0x20d]]
        %v2783 = vstv %s2782
        %v2784 = vmul.f32 %v2783, %v215
        %v2785 = vmul.f32 %v2783, %v216
        %v2786 = vmul.f32 %v2783, %v217
        %v2787 = vmul.f32 %v2783, %v218
        %2792 = vrot.lane.b32.xlu0 %v2784, 127
        %v2793 = vpop.permute.xlu0 %2792
        %2794 = vrot.lane.b32.xlu0 %v2785, 127
        %v2795 = vpop.permute.xlu0 %2794
        %2796 = vrot.lane.b32.xlu0 %v2786, 127
        %v2797 = vpop.permute.xlu0 %2796
        %2798 = vrot.lane.b32.xlu0 %v2787, 127
        %v2799 = vpop.permute.xlu0 %2798
        %v2804 = vadd.f32 %v2778, %v2793
        %v2805 = vadd.f32 %v2779, %v2795
        %v2806 = vadd.f32 %v2780, %v2797
        %v2807 = vadd.f32 %v2781, %v2799
        %s2808 = sld [smem:[#allocation2 + $0x20e]]
        %v2809 = vstv %s2808
        %v2810 = vmul.f32 %v2809, %v215
        %v2811 = vmul.f32 %v2809, %v216
        %v2812 = vmul.f32 %v2809, %v217
        %v2813 = vmul.f32 %v2809, %v218
        %2818 = vrot.lane.b32.xlu0 %v2810, 126
        %v2819 = vpop.permute.xlu0 %2818
        %2820 = vrot.lane.b32.xlu0 %v2811, 126
        %v2821 = vpop.permute.xlu0 %2820
        %2822 = vrot.lane.b32.xlu0 %v2812, 126
        %v2823 = vpop.permute.xlu0 %2822
        %2824 = vrot.lane.b32.xlu0 %v2813, 126
        %v2825 = vpop.permute.xlu0 %2824
        %v2830 = vadd.f32 %v2804, %v2819
        %v2831 = vadd.f32 %v2805, %v2821
        %v2832 = vadd.f32 %v2806, %v2823
        %v2833 = vadd.f32 %v2807, %v2825
        %s2834 = sld [smem:[#allocation2 + $0x20f]]
        %v2835 = vstv %s2834
        %v2836 = vmul.f32 %v2835, %v219
        %v2837 = vmul.f32 %v2835, %v220
        %v2838 = vmul.f32 %v2835, %v221
        %v2839 = vmul.f32 %v2835, %v222
        %v2840 = vadd.f32 %v2830, %v2836
        %v2841 = vadd.f32 %v2831, %v2837
        %v2842 = vadd.f32 %v2832, %v2838
        %v2843 = vadd.f32 %v2833, %v2839
        %s2844 = sld [smem:[#allocation2 + $0x210]]
        %v2845 = vstv %s2844
        %v2846 = vmul.f32 %v2845, %v219
        %v2847 = vmul.f32 %v2845, %v220
        %v2848 = vmul.f32 %v2845, %v221
        %v2849 = vmul.f32 %v2845, %v222
        %2854 = vrot.lane.b32.xlu0 %v2846, 127
        %v2855 = vpop.permute.xlu0 %2854
        %2856 = vrot.lane.b32.xlu0 %v2847, 127
        %v2857 = vpop.permute.xlu0 %2856
        %2858 = vrot.lane.b32.xlu0 %v2848, 127
        %v2859 = vpop.permute.xlu0 %2858
        %2860 = vrot.lane.b32.xlu0 %v2849, 127
        %v2861 = vpop.permute.xlu0 %2860
        %v2866 = vadd.f32 %v2840, %v2855
        %v2867 = vadd.f32 %v2841, %v2857
        %v2868 = vadd.f32 %v2842, %v2859
        %v2869 = vadd.f32 %v2843, %v2861
        %s2870 = sld [smem:[#allocation2 + $0x211]]
        %v2871 = vstv %s2870
        %v2872 = vmul.f32 %v2871, %v219
        %v2873 = vmul.f32 %v2871, %v220
        %v2874 = vmul.f32 %v2871, %v221
        %v2875 = vmul.f32 %v2871, %v222
        %2880 = vrot.lane.b32.xlu0 %v2872, 126
        %v2881 = vpop.permute.xlu0 %2880
        %2882 = vrot.lane.b32.xlu0 %v2873, 126
        %v2883 = vpop.permute.xlu0 %2882
        %2884 = vrot.lane.b32.xlu0 %v2874, 126
        %v2885 = vpop.permute.xlu0 %2884
        %2886 = vrot.lane.b32.xlu0 %v2875, 126
        %v2887 = vpop.permute.xlu0 %2886
        %v2892 = vadd.f32 %v2866, %v2881
        %v2893 = vadd.f32 %v2867, %v2883
        %v2894 = vadd.f32 %v2868, %v2885
        %v2895 = vadd.f32 %v2869, %v2887
        %s2896 = sld [smem:[#allocation2 + $0x212]]
        %v2897 = vstv %s2896
        %v2898 = vmul.f32 %v2897, %v224
        %v2899 = vmul.f32 %v2897, %v225
        %v2900 = vmul.f32 %v2897, %v226
        %v2901 = vmul.f32 %v2897, %v227
        %v2902 = vadd.f32 %v2892, %v2898
        %v2903 = vadd.f32 %v2893, %v2899
        %v2904 = vadd.f32 %v2894, %v2900
        %v2905 = vadd.f32 %v2895, %v2901
        %s2906 = sld [smem:[#allocation2 + $0x213]]
        %v2907 = vstv %s2906
        %v2908 = vmul.f32 %v2907, %v224
        %v2909 = vmul.f32 %v2907, %v225
        %v2910 = vmul.f32 %v2907, %v226
        %v2911 = vmul.f32 %v2907, %v227
        %2916 = vrot.lane.b32.xlu0 %v2908, 127
        %v2917 = vpop.permute.xlu0 %2916
        %2918 = vrot.lane.b32.xlu0 %v2909, 127
        %v2919 = vpop.permute.xlu0 %2918
        %2920 = vrot.lane.b32.xlu0 %v2910, 127
        %v2921 = vpop.permute.xlu0 %2920
        %2922 = vrot.lane.b32.xlu0 %v2911, 127
        %v2923 = vpop.permute.xlu0 %2922
        %v2928 = vadd.f32 %v2902, %v2917
        %v2929 = vadd.f32 %v2903, %v2919
        %v2930 = vadd.f32 %v2904, %v2921
        %v2931 = vadd.f32 %v2905, %v2923
        %s2932 = sld [smem:[#allocation2 + $0x214]]
        %v2933 = vstv %s2932
        %v2934 = vmul.f32 %v2933, %v224
        %v2935 = vmul.f32 %v2933, %v225
        %v2936 = vmul.f32 %v2933, %v226
        %v2937 = vmul.f32 %v2933, %v227
        %2942 = vrot.lane.b32.xlu0 %v2934, 126
        %v2943 = vpop.permute.xlu0 %2942
        %2944 = vrot.lane.b32.xlu0 %v2935, 126
        %v2945 = vpop.permute.xlu0 %2944
        %2946 = vrot.lane.b32.xlu0 %v2936, 126
        %v2947 = vpop.permute.xlu0 %2946
        %2948 = vrot.lane.b32.xlu0 %v2937, 126
        %v2949 = vpop.permute.xlu0 %2948
        %v2954 = vadd.f32 %v2928, %v2943
        %v2955 = vadd.f32 %v2929, %v2945
        %v2956 = vadd.f32 %v2930, %v2947
        %v2957 = vadd.f32 %v2931, %v2949
        %s2958 = sld [smem:[#allocation2 + $0x215]]
        %v2959 = vstv %s2958
        %v2960 = vmul.f32 %v2959, %v228
        %v2961 = vmul.f32 %v2959, %v229
        %v2962 = vmul.f32 %v2959, %v230
        %v2963 = vmul.f32 %v2959, %v231
        %v2964 = vadd.f32 %v2954, %v2960
        %v2965 = vadd.f32 %v2955, %v2961
        %v2966 = vadd.f32 %v2956, %v2962
        %v2967 = vadd.f32 %v2957, %v2963
        %s2968 = sld [smem:[#allocation2 + $0x216]]
        %v2969 = vstv %s2968
        %v2970 = vmul.f32 %v2969, %v228
        %v2971 = vmul.f32 %v2969, %v229
        %v2972 = vmul.f32 %v2969, %v230
        %v2973 = vmul.f32 %v2969, %v231
        %2978 = vrot.lane.b32.xlu0 %v2970, 127
        %v2979 = vpop.permute.xlu0 %2978
        %2980 = vrot.lane.b32.xlu0 %v2971, 127
        %v2981 = vpop.permute.xlu0 %2980
        %2982 = vrot.lane.b32.xlu0 %v2972, 127
        %v2983 = vpop.permute.xlu0 %2982
        %2984 = vrot.lane.b32.xlu0 %v2973, 127
        %v2985 = vpop.permute.xlu0 %2984
        %v2990 = vadd.f32 %v2964, %v2979
        %v2991 = vadd.f32 %v2965, %v2981
        %v2992 = vadd.f32 %v2966, %v2983
        %v2993 = vadd.f32 %v2967, %v2985
        %s2994 = sld [smem:[#allocation2 + $0x217]]
        %v2995 = vstv %s2994
        %v2996 = vmul.f32 %v2995, %v228
        %v2997 = vmul.f32 %v2995, %v229
        %v2998 = vmul.f32 %v2995, %v230
        %v2999 = vmul.f32 %v2995, %v231
        %3004 = vrot.lane.b32.xlu0 %v2996, 126
        %v3005 = vpop.permute.xlu0 %3004
        %3006 = vrot.lane.b32.xlu0 %v2997, 126
        %v3007 = vpop.permute.xlu0 %3006
        %3008 = vrot.lane.b32.xlu0 %v2998, 126
        %v3009 = vpop.permute.xlu0 %3008
        %3010 = vrot.lane.b32.xlu0 %v2999, 126
        %v3011 = vpop.permute.xlu0 %3010
        %v3016 = vadd.f32 %v2990, %v3005
        %v3017 = vadd.f32 %v2991, %v3007
        %v3018 = vadd.f32 %v2992, %v3009
        %v3019 = vadd.f32 %v2993, %v3011
        %s3020 = sld [smem:[#allocation2 + $0x218]]
        %v3021 = vstv %s3020
        %v3022 = vmul.f32 %v3021, %v232
        %v3023 = vmul.f32 %v3021, %v233
        %v3024 = vmul.f32 %v3021, %v234
        %v3025 = vmul.f32 %v3021, %v235
        %v3026 = vadd.f32 %v3016, %v3022
        %v3027 = vadd.f32 %v3017, %v3023
        %v3028 = vadd.f32 %v3018, %v3024
        %v3029 = vadd.f32 %v3019, %v3025
        %s3030 = sld [smem:[#allocation2 + $0x219]]
        %v3031 = vstv %s3030
        %v3032 = vmul.f32 %v3031, %v232
        %v3033 = vmul.f32 %v3031, %v233
        %v3034 = vmul.f32 %v3031, %v234
        %v3035 = vmul.f32 %v3031, %v235
        %3040 = vrot.lane.b32.xlu0 %v3032, 127
        %v3041 = vpop.permute.xlu0 %3040
        %3042 = vrot.lane.b32.xlu0 %v3033, 127
        %v3043 = vpop.permute.xlu0 %3042
        %3044 = vrot.lane.b32.xlu0 %v3034, 127
        %v3045 = vpop.permute.xlu0 %3044
        %3046 = vrot.lane.b32.xlu0 %v3035, 127
        %v3047 = vpop.permute.xlu0 %3046
        %v3052 = vadd.f32 %v3026, %v3041
        %v3053 = vadd.f32 %v3027, %v3043
        %v3054 = vadd.f32 %v3028, %v3045
        %v3055 = vadd.f32 %v3029, %v3047
        %s3056 = sld [smem:[#allocation2 + $0x21a]]
        %v3057 = vstv %s3056
        %v3058 = vmul.f32 %v3057, %v232
        %v3059 = vmul.f32 %v3057, %v233
        %v3060 = vmul.f32 %v3057, %v234
        %v3061 = vmul.f32 %v3057, %v235
        %3066 = vrot.lane.b32.xlu0 %v3058, 126
        %v3067 = vpop.permute.xlu0 %3066
        %3068 = vrot.lane.b32.xlu0 %v3059, 126
        %v3069 = vpop.permute.xlu0 %3068
        %3070 = vrot.lane.b32.xlu0 %v3060, 126
        %v3071 = vpop.permute.xlu0 %3070
        %3072 = vrot.lane.b32.xlu0 %v3061, 126
        %v3073 = vpop.permute.xlu0 %3072
        %v3078 = vadd.f32 %v3052, %v3067
        %v3079 = vadd.f32 %v3053, %v3069
        %v3080 = vadd.f32 %v3054, %v3071
        %v3081 = vadd.f32 %v3055, %v3073
        %s3082 = sld [smem:[#allocation5 + $0x4]]
        %v3083 = vstv %s3082
        %v3084 = vadd.f32 %v3078, %v3083
        %v3085 = vadd.f32 %v3079, %v3083
        %v3086 = vadd.f32 %v3080, %v3083
        %v3087 = vadd.f32 %v3081, %v3083
        %v3088 = vmax.f32 %v3084, 0.0
        %v3089 = vmax.f32 %v3085, 0.0
        %v3090 = vmax.f32 %v3086, 0.0
        %v3091 = vmax.f32 %v3087, 0.0
        %v3092 = vmin.f32 %v3088, 0.5
        %v3093 = vmin.f32 %v3089, 0.5
        %v3094 = vmin.f32 %v3090, 0.5
        %v3095 = vmin.f32 %v3091, 0.5
        %s3096 = scalar_lea.vmem %s192, 128 [#allocation7]
        %3097 = vst.msk [vmem:[%s3096] sm:$0xff] %vm804, %v3092
        %3098 = vst.msk [vmem:[%s3096 + $0x8] sm:$0xff] %vm804, %v3093
        %3099 = vst.msk [vmem:[%s3096 + $0x10] sm:$0xff] %vm804, %v3094
        %3100 = vst.msk [vmem:[%s3096 + $0x18] sm:$0xff] %vm804, %v3095
        %s3101 = sld [smem:[#allocation2 + $0x280]]
        %v3102 = vstv %s3101
        %v3103 = vmul.f32 %v3102, %v198
        %v3104 = vmul.f32 %v3102, %v199
        %v3105 = vmul.f32 %v3102, %v200
        %v3106 = vmul.f32 %v3102, %v201
        %s3107 = sld [smem:[#allocation2 + $0x281]]
        %v3108 = vstv %s3107
        %v3109 = vmul.f32 %v3108, %v198
        %v3110 = vmul.f32 %v3108, %v199
        %v3111 = vmul.f32 %v3108, %v200
        %v3112 = vmul.f32 %v3108, %v201
        %3117 = vrot.lane.b32.xlu0 %v3109, 127
        %v3118 = vpop.permute.xlu0 %3117
        %3119 = vrot.lane.b32.xlu0 %v3110, 127
        %v3120 = vpop.permute.xlu0 %3119
        %3121 = vrot.lane.b32.xlu0 %v3111, 127
        %v3122 = vpop.permute.xlu0 %3121
        %3123 = vrot.lane.b32.xlu0 %v3112, 127
        %v3124 = vpop.permute.xlu0 %3123
        %v3129 = vadd.f32 %v3103, %v3118
        %v3130 = vadd.f32 %v3104, %v3120
        %v3131 = vadd.f32 %v3105, %v3122
        %v3132 = vadd.f32 %v3106, %v3124
        %s3133 = sld [smem:[#allocation2 + $0x282]]
        %v3134 = vstv %s3133
        %v3135 = vmul.f32 %v3134, %v198
        %v3136 = vmul.f32 %v3134, %v199
        %v3137 = vmul.f32 %v3134, %v200
        %v3138 = vmul.f32 %v3134, %v201
        %3143 = vrot.lane.b32.xlu0 %v3135, 126
        %v3144 = vpop.permute.xlu0 %3143
        %3145 = vrot.lane.b32.xlu0 %v3136, 126
        %v3146 = vpop.permute.xlu0 %3145
        %3147 = vrot.lane.b32.xlu0 %v3137, 126
        %v3148 = vpop.permute.xlu0 %3147
        %3149 = vrot.lane.b32.xlu0 %v3138, 126
        %v3150 = vpop.permute.xlu0 %3149
        %v3155 = vadd.f32 %v3129, %v3144
        %v3156 = vadd.f32 %v3130, %v3146
        %v3157 = vadd.f32 %v3131, %v3148
        %v3158 = vadd.f32 %v3132, %v3150
        %s3159 = sld [smem:[#allocation2 + $0x283]]
        %v3160 = vstv %s3159
        %v3161 = vmul.f32 %v3160, %v202
        %v3162 = vmul.f32 %v3160, %v203
        %v3163 = vmul.f32 %v3160, %v204
        %v3164 = vmul.f32 %v3160, %v205
        %v3165 = vadd.f32 %v3155, %v3161
        %v3166 = vadd.f32 %v3156, %v3162
        %v3167 = vadd.f32 %v3157, %v3163
        %v3168 = vadd.f32 %v3158, %v3164
        %s3169 = sld [smem:[#allocation2 + $0x284]]
        %v3170 = vstv %s3169
        %v3171 = vmul.f32 %v3170, %v202
        %v3172 = vmul.f32 %v3170, %v203
        %v3173 = vmul.f32 %v3170, %v204
        %v3174 = vmul.f32 %v3170, %v205
        %3179 = vrot.lane.b32.xlu0 %v3171, 127
        %v3180 = vpop.permute.xlu0 %3179
        %3181 = vrot.lane.b32.xlu0 %v3172, 127
        %v3182 = vpop.permute.xlu0 %3181
        %3183 = vrot.lane.b32.xlu0 %v3173, 127
        %v3184 = vpop.permute.xlu0 %3183
        %3185 = vrot.lane.b32.xlu0 %v3174, 127
        %v3186 = vpop.permute.xlu0 %3185
        %v3191 = vadd.f32 %v3165, %v3180
        %v3192 = vadd.f32 %v3166, %v3182
        %v3193 = vadd.f32 %v3167, %v3184
        %v3194 = vadd.f32 %v3168, %v3186
        %s3195 = sld [smem:[#allocation2 + $0x285]]
        %v3196 = vstv %s3195
        %v3197 = vmul.f32 %v3196, %v202
        %v3198 = vmul.f32 %v3196, %v203
        %v3199 = vmul.f32 %v3196, %v204
        %v3200 = vmul.f32 %v3196, %v205
        %3205 = vrot.lane.b32.xlu0 %v3197, 126
        %v3206 = vpop.permute.xlu0 %3205
        %3207 = vrot.lane.b32.xlu0 %v3198, 126
        %v3208 = vpop.permute.xlu0 %3207
        %3209 = vrot.lane.b32.xlu0 %v3199, 126
        %v3210 = vpop.permute.xlu0 %3209
        %3211 = vrot.lane.b32.xlu0 %v3200, 126
        %v3212 = vpop.permute.xlu0 %3211
        %v3217 = vadd.f32 %v3191, %v3206
        %v3218 = vadd.f32 %v3192, %v3208
        %v3219 = vadd.f32 %v3193, %v3210
        %v3220 = vadd.f32 %v3194, %v3212
        %s3221 = sld [smem:[#allocation2 + $0x286]]
        %v3222 = vstv %s3221
        %v3223 = vmul.f32 %v3222, %v206
        %v3224 = vmul.f32 %v3222, %v207
        %v3225 = vmul.f32 %v3222, %v208
        %v3226 = vmul.f32 %v3222, %v209
        %v3227 = vadd.f32 %v3217, %v3223
        %v3228 = vadd.f32 %v3218, %v3224
        %v3229 = vadd.f32 %v3219, %v3225
        %v3230 = vadd.f32 %v3220, %v3226
        %s3231 = sld [smem:[#allocation2 + $0x287]]
        %v3232 = vstv %s3231
        %v3233 = vmul.f32 %v3232, %v206
        %v3234 = vmul.f32 %v3232, %v207
        %v3235 = vmul.f32 %v3232, %v208
        %v3236 = vmul.f32 %v3232, %v209
        %3241 = vrot.lane.b32.xlu0 %v3233, 127
        %v3242 = vpop.permute.xlu0 %3241
        %3243 = vrot.lane.b32.xlu0 %v3234, 127
        %v3244 = vpop.permute.xlu0 %3243
        %3245 = vrot.lane.b32.xlu0 %v3235, 127
        %v3246 = vpop.permute.xlu0 %3245
        %3247 = vrot.lane.b32.xlu0 %v3236, 127
        %v3248 = vpop.permute.xlu0 %3247
        %v3253 = vadd.f32 %v3227, %v3242
        %v3254 = vadd.f32 %v3228, %v3244
        %v3255 = vadd.f32 %v3229, %v3246
        %v3256 = vadd.f32 %v3230, %v3248
        %s3257 = sld [smem:[#allocation2 + $0x288]]
        %v3258 = vstv %s3257
        %v3259 = vmul.f32 %v3258, %v206
        %v3260 = vmul.f32 %v3258, %v207
        %v3261 = vmul.f32 %v3258, %v208
        %v3262 = vmul.f32 %v3258, %v209
        %3267 = vrot.lane.b32.xlu0 %v3259, 126
        %v3268 = vpop.permute.xlu0 %3267
        %3269 = vrot.lane.b32.xlu0 %v3260, 126
        %v3270 = vpop.permute.xlu0 %3269
        %3271 = vrot.lane.b32.xlu0 %v3261, 126
        %v3272 = vpop.permute.xlu0 %3271
        %3273 = vrot.lane.b32.xlu0 %v3262, 126
        %v3274 = vpop.permute.xlu0 %3273
        %v3279 = vadd.f32 %v3253, %v3268
        %v3280 = vadd.f32 %v3254, %v3270
        %v3281 = vadd.f32 %v3255, %v3272
        %v3282 = vadd.f32 %v3256, %v3274
        %s3283 = sld [smem:[#allocation2 + $0x289]]
        %v3284 = vstv %s3283
        %v3285 = vmul.f32 %v3284, %v211
        %v3286 = vmul.f32 %v3284, %v212
        %v3287 = vmul.f32 %v3284, %v213
        %v3288 = vmul.f32 %v3284, %v214
        %v3289 = vadd.f32 %v3279, %v3285
        %v3290 = vadd.f32 %v3280, %v3286
        %v3291 = vadd.f32 %v3281, %v3287
        %v3292 = vadd.f32 %v3282, %v3288
        %s3293 = sld [smem:[#allocation2 + $0x28a]]
        %v3294 = vstv %s3293
        %v3295 = vmul.f32 %v3294, %v211
        %v3296 = vmul.f32 %v3294, %v212
        %v3297 = vmul.f32 %v3294, %v213
        %v3298 = vmul.f32 %v3294, %v214
        %3303 = vrot.lane.b32.xlu0 %v3295, 127
        %v3304 = vpop.permute.xlu0 %3303
        %3305 = vrot.lane.b32.xlu0 %v3296, 127
        %v3306 = vpop.permute.xlu0 %3305
        %3307 = vrot.lane.b32.xlu0 %v3297, 127
        %v3308 = vpop.permute.xlu0 %3307
        %3309 = vrot.lane.b32.xlu0 %v3298, 127
        %v3310 = vpop.permute.xlu0 %3309
        %v3315 = vadd.f32 %v3289, %v3304
        %v3316 = vadd.f32 %v3290, %v3306
        %v3317 = vadd.f32 %v3291, %v3308
        %v3318 = vadd.f32 %v3292, %v3310
        %s3319 = sld [smem:[#allocation2 + $0x28b]]
        %v3320 = vstv %s3319
        %v3321 = vmul.f32 %v3320, %v211
        %v3322 = vmul.f32 %v3320, %v212
        %v3323 = vmul.f32 %v3320, %v213
        %v3324 = vmul.f32 %v3320, %v214
        %3329 = vrot.lane.b32.xlu0 %v3321, 126
        %v3330 = vpop.permute.xlu0 %3329
        %3331 = vrot.lane.b32.xlu0 %v3322, 126
        %v3332 = vpop.permute.xlu0 %3331
        %3333 = vrot.lane.b32.xlu0 %v3323, 126
        %v3334 = vpop.permute.xlu0 %3333
        %3335 = vrot.lane.b32.xlu0 %v3324, 126
        %v3336 = vpop.permute.xlu0 %3335
        %v3341 = vadd.f32 %v3315, %v3330
        %v3342 = vadd.f32 %v3316, %v3332
        %v3343 = vadd.f32 %v3317, %v3334
        %v3344 = vadd.f32 %v3318, %v3336
        %s3345 = sld [smem:[#allocation2 + $0x28c]]
        %v3346 = vstv %s3345
        %v3347 = vmul.f32 %v3346, %v215
        %v3348 = vmul.f32 %v3346, %v216
        %v3349 = vmul.f32 %v3346, %v217
        %v3350 = vmul.f32 %v3346, %v218
        %v3351 = vadd.f32 %v3341, %v3347
        %v3352 = vadd.f32 %v3342, %v3348
        %v3353 = vadd.f32 %v3343, %v3349
        %v3354 = vadd.f32 %v3344, %v3350
        %s3355 = sld [smem:[#allocation2 + $0x28d]]
        %v3356 = vstv %s3355
        %v3357 = vmul.f32 %v3356, %v215
        %v3358 = vmul.f32 %v3356, %v216
        %v3359 = vmul.f32 %v3356, %v217
        %v3360 = vmul.f32 %v3356, %v218
        %3365 = vrot.lane.b32.xlu0 %v3357, 127
        %v3366 = vpop.permute.xlu0 %3365
        %3367 = vrot.lane.b32.xlu0 %v3358, 127
        %v3368 = vpop.permute.xlu0 %3367
        %3369 = vrot.lane.b32.xlu0 %v3359, 127
        %v3370 = vpop.permute.xlu0 %3369
        %3371 = vrot.lane.b32.xlu0 %v3360, 127
        %v3372 = vpop.permute.xlu0 %3371
        %v3377 = vadd.f32 %v3351, %v3366
        %v3378 = vadd.f32 %v3352, %v3368
        %v3379 = vadd.f32 %v3353, %v3370
        %v3380 = vadd.f32 %v3354, %v3372
        %s3381 = sld [smem:[#allocation2 + $0x28e]]
        %v3382 = vstv %s3381
        %v3383 = vmul.f32 %v3382, %v215
        %v3384 = vmul.f32 %v3382, %v216
        %v3385 = vmul.f32 %v3382, %v217
        %v3386 = vmul.f32 %v3382, %v218
        %3391 = vrot.lane.b32.xlu0 %v3383, 126
        %v3392 = vpop.permute.xlu0 %3391
        %3393 = vrot.lane.b32.xlu0 %v3384, 126
        %v3394 = vpop.permute.xlu0 %3393
        %3395 = vrot.lane.b32.xlu0 %v3385, 126
        %v3396 = vpop.permute.xlu0 %3395
        %3397 = vrot.lane.b32.xlu0 %v3386, 126
        %v3398 = vpop.permute.xlu0 %3397
        %v3403 = vadd.f32 %v3377, %v3392
        %v3404 = vadd.f32 %v3378, %v3394
        %v3405 = vadd.f32 %v3379, %v3396
        %v3406 = vadd.f32 %v3380, %v3398
        %s3407 = sld [smem:[#allocation2 + $0x28f]]
        %v3408 = vstv %s3407
        %v3409 = vmul.f32 %v3408, %v219
        %v3410 = vmul.f32 %v3408, %v220
        %v3411 = vmul.f32 %v3408, %v221
        %v3412 = vmul.f32 %v3408, %v222
        %v3413 = vadd.f32 %v3403, %v3409
        %v3414 = vadd.f32 %v3404, %v3410
        %v3415 = vadd.f32 %v3405, %v3411
        %v3416 = vadd.f32 %v3406, %v3412
        %s3417 = sld [smem:[#allocation2 + $0x290]]
        %v3418 = vstv %s3417
        %v3419 = vmul.f32 %v3418, %v219
        %v3420 = vmul.f32 %v3418, %v220
        %v3421 = vmul.f32 %v3418, %v221
        %v3422 = vmul.f32 %v3418, %v222
        %3427 = vrot.lane.b32.xlu0 %v3419, 127
        %v3428 = vpop.permute.xlu0 %3427
        %3429 = vrot.lane.b32.xlu0 %v3420, 127
        %v3430 = vpop.permute.xlu0 %3429
        %3431 = vrot.lane.b32.xlu0 %v3421, 127
        %v3432 = vpop.permute.xlu0 %3431
        %3433 = vrot.lane.b32.xlu0 %v3422, 127
        %v3434 = vpop.permute.xlu0 %3433
        %v3439 = vadd.f32 %v3413, %v3428
        %v3440 = vadd.f32 %v3414, %v3430
        %v3441 = vadd.f32 %v3415, %v3432
        %v3442 = vadd.f32 %v3416, %v3434
        %s3443 = sld [smem:[#allocation2 + $0x291]]
        %v3444 = vstv %s3443
        %v3445 = vmul.f32 %v3444, %v219
        %v3446 = vmul.f32 %v3444, %v220
        %v3447 = vmul.f32 %v3444, %v221
        %v3448 = vmul.f32 %v3444, %v222
        %3453 = vrot.lane.b32.xlu0 %v3445, 126
        %v3454 = vpop.permute.xlu0 %3453
        %3455 = vrot.lane.b32.xlu0 %v3446, 126
        %v3456 = vpop.permute.xlu0 %3455
        %3457 = vrot.lane.b32.xlu0 %v3447, 126
        %v3458 = vpop.permute.xlu0 %3457
        %3459 = vrot.lane.b32.xlu0 %v3448, 126
        %v3460 = vpop.permute.xlu0 %3459
        %v3465 = vadd.f32 %v3439, %v3454
        %v3466 = vadd.f32 %v3440, %v3456
        %v3467 = vadd.f32 %v3441, %v3458
        %v3468 = vadd.f32 %v3442, %v3460
        %s3469 = sld [smem:[#allocation2 + $0x292]]
        %v3470 = vstv %s3469
        %v3471 = vmul.f32 %v3470, %v224
        %v3472 = vmul.f32 %v3470, %v225
        %v3473 = vmul.f32 %v3470, %v226
        %v3474 = vmul.f32 %v3470, %v227
        %v3475 = vadd.f32 %v3465, %v3471
        %v3476 = vadd.f32 %v3466, %v3472
        %v3477 = vadd.f32 %v3467, %v3473
        %v3478 = vadd.f32 %v3468, %v3474
        %s3479 = sld [smem:[#allocation2 + $0x293]]
        %v3480 = vstv %s3479
        %v3481 = vmul.f32 %v3480, %v224
        %v3482 = vmul.f32 %v3480, %v225
        %v3483 = vmul.f32 %v3480, %v226
        %v3484 = vmul.f32 %v3480, %v227
        %3489 = vrot.lane.b32.xlu0 %v3481, 127
        %v3490 = vpop.permute.xlu0 %3489
        %3491 = vrot.lane.b32.xlu0 %v3482, 127
        %v3492 = vpop.permute.xlu0 %3491
        %3493 = vrot.lane.b32.xlu0 %v3483, 127
        %v3494 = vpop.permute.xlu0 %3493
        %3495 = vrot.lane.b32.xlu0 %v3484, 127
        %v3496 = vpop.permute.xlu0 %3495
        %v3501 = vadd.f32 %v3475, %v3490
        %v3502 = vadd.f32 %v3476, %v3492
        %v3503 = vadd.f32 %v3477, %v3494
        %v3504 = vadd.f32 %v3478, %v3496
        %s3505 = sld [smem:[#allocation2 + $0x294]]
        %v3506 = vstv %s3505
        %v3507 = vmul.f32 %v3506, %v224
        %v3508 = vmul.f32 %v3506, %v225
        %v3509 = vmul.f32 %v3506, %v226
        %v3510 = vmul.f32 %v3506, %v227
        %3515 = vrot.lane.b32.xlu0 %v3507, 126
        %v3516 = vpop.permute.xlu0 %3515
        %3517 = vrot.lane.b32.xlu0 %v3508, 126
        %v3518 = vpop.permute.xlu0 %3517
        %3519 = vrot.lane.b32.xlu0 %v3509, 126
        %v3520 = vpop.permute.xlu0 %3519
        %3521 = vrot.lane.b32.xlu0 %v3510, 126
        %v3522 = vpop.permute.xlu0 %3521
        %v3527 = vadd.f32 %v3501, %v3516
        %v3528 = vadd.f32 %v3502, %v3518
        %v3529 = vadd.f32 %v3503, %v3520
        %v3530 = vadd.f32 %v3504, %v3522
        %s3531 = sld [smem:[#allocation2 + $0x295]]
        %v3532 = vstv %s3531
        %v3533 = vmul.f32 %v3532, %v228
        %v3534 = vmul.f32 %v3532, %v229
        %v3535 = vmul.f32 %v3532, %v230
        %v3536 = vmul.f32 %v3532, %v231
        %v3537 = vadd.f32 %v3527, %v3533
        %v3538 = vadd.f32 %v3528, %v3534
        %v3539 = vadd.f32 %v3529, %v3535
        %v3540 = vadd.f32 %v3530, %v3536
        %s3541 = sld [smem:[#allocation2 + $0x296]]
        %v3542 = vstv %s3541
        %v3543 = vmul.f32 %v3542, %v228
        %v3544 = vmul.f32 %v3542, %v229
        %v3545 = vmul.f32 %v3542, %v230
        %v3546 = vmul.f32 %v3542, %v231
        %3551 = vrot.lane.b32.xlu0 %v3543, 127
        %v3552 = vpop.permute.xlu0 %3551
        %3553 = vrot.lane.b32.xlu0 %v3544, 127
        %v3554 = vpop.permute.xlu0 %3553
        %3555 = vrot.lane.b32.xlu0 %v3545, 127
        %v3556 = vpop.permute.xlu0 %3555
        %3557 = vrot.lane.b32.xlu0 %v3546, 127
        %v3558 = vpop.permute.xlu0 %3557
        %v3563 = vadd.f32 %v3537, %v3552
        %v3564 = vadd.f32 %v3538, %v3554
        %v3565 = vadd.f32 %v3539, %v3556
        %v3566 = vadd.f32 %v3540, %v3558
        %s3567 = sld [smem:[#allocation2 + $0x297]]
        %v3568 = vstv %s3567
        %v3569 = vmul.f32 %v3568, %v228
        %v3570 = vmul.f32 %v3568, %v229
        %v3571 = vmul.f32 %v3568, %v230
        %v3572 = vmul.f32 %v3568, %v231
        %3577 = vrot.lane.b32.xlu0 %v3569, 126
        %v3578 = vpop.permute.xlu0 %3577
        %3579 = vrot.lane.b32.xlu0 %v3570, 126
        %v3580 = vpop.permute.xlu0 %3579
        %3581 = vrot.lane.b32.xlu0 %v3571, 126
        %v3582 = vpop.permute.xlu0 %3581
        %3583 = vrot.lane.b32.xlu0 %v3572, 126
        %v3584 = vpop.permute.xlu0 %3583
        %v3589 = vadd.f32 %v3563, %v3578
        %v3590 = vadd.f32 %v3564, %v3580
        %v3591 = vadd.f32 %v3565, %v3582
        %v3592 = vadd.f32 %v3566, %v3584
        %s3593 = sld [smem:[#allocation2 + $0x298]]
        %v3594 = vstv %s3593
        %v3595 = vmul.f32 %v3594, %v232
        %v3596 = vmul.f32 %v3594, %v233
        %v3597 = vmul.f32 %v3594, %v234
        %v3598 = vmul.f32 %v3594, %v235
        %v3599 = vadd.f32 %v3589, %v3595
        %v3600 = vadd.f32 %v3590, %v3596
        %v3601 = vadd.f32 %v3591, %v3597
        %v3602 = vadd.f32 %v3592, %v3598
        %s3603 = sld [smem:[#allocation2 + $0x299]]
        %v3604 = vstv %s3603
        %v3605 = vmul.f32 %v3604, %v232
        %v3606 = vmul.f32 %v3604, %v233
        %v3607 = vmul.f32 %v3604, %v234
        %v3608 = vmul.f32 %v3604, %v235
        %3613 = vrot.lane.b32.xlu0 %v3605, 127
        %v3614 = vpop.permute.xlu0 %3613
        %3615 = vrot.lane.b32.xlu0 %v3606, 127
        %v3616 = vpop.permute.xlu0 %3615
        %3617 = vrot.lane.b32.xlu0 %v3607, 127
        %v3618 = vpop.permute.xlu0 %3617
        %3619 = vrot.lane.b32.xlu0 %v3608, 127
        %v3620 = vpop.permute.xlu0 %3619
        %v3625 = vadd.f32 %v3599, %v3614
        %v3626 = vadd.f32 %v3600, %v3616
        %v3627 = vadd.f32 %v3601, %v3618
        %v3628 = vadd.f32 %v3602, %v3620
        %s3629 = sld [smem:[#allocation2 + $0x29a]]
        %v3630 = vstv %s3629
        %v3631 = vmul.f32 %v3630, %v232
        %v3632 = vmul.f32 %v3630, %v233
        %v3633 = vmul.f32 %v3630, %v234
        %v3634 = vmul.f32 %v3630, %v235
        %3639 = vrot.lane.b32.xlu0 %v3631, 126
        %v3640 = vpop.permute.xlu0 %3639
        %3641 = vrot.lane.b32.xlu0 %v3632, 126
        %v3642 = vpop.permute.xlu0 %3641
        %3643 = vrot.lane.b32.xlu0 %v3633, 126
        %v3644 = vpop.permute.xlu0 %3643
        %3645 = vrot.lane.b32.xlu0 %v3634, 126
        %v3646 = vpop.permute.xlu0 %3645
        %v3651 = vadd.f32 %v3625, %v3640
        %v3652 = vadd.f32 %v3626, %v3642
        %v3653 = vadd.f32 %v3627, %v3644
        %v3654 = vadd.f32 %v3628, %v3646
        %s3655 = sld [smem:[#allocation5 + $0x5]]
        %v3656 = vstv %s3655
        %v3657 = vadd.f32 %v3651, %v3656
        %v3658 = vadd.f32 %v3652, %v3656
        %v3659 = vadd.f32 %v3653, %v3656
        %v3660 = vadd.f32 %v3654, %v3656
        %v3661 = vmax.f32 %v3657, 0.0
        %v3662 = vmax.f32 %v3658, 0.0
        %v3663 = vmax.f32 %v3659, 0.0
        %v3664 = vmax.f32 %v3660, 0.0
        %v3665 = vmin.f32 %v3661, 0.5
        %v3666 = vmin.f32 %v3662, 0.5
        %v3667 = vmin.f32 %v3663, 0.5
        %v3668 = vmin.f32 %v3664, 0.5
        %s3669 = scalar_lea.vmem %s192, 160 [#allocation7]
        %3670 = vst.msk [vmem:[%s3669] sm:$0xff] %vm804, %v3665
        %3671 = vst.msk [vmem:[%s3669 + $0x8] sm:$0xff] %vm804, %v3666
        %3672 = vst.msk [vmem:[%s3669 + $0x10] sm:$0xff] %vm804, %v3667
        %3673 = vst.msk [vmem:[%s3669 + $0x18] sm:$0xff] %vm804, %v3668
        %s3674 = sld [smem:[#allocation2 + $0x300]]
        %v3675 = vstv %s3674
        %v3676 = vmul.f32 %v3675, %v198
        %v3677 = vmul.f32 %v3675, %v199
        %v3678 = vmul.f32 %v3675, %v200
        %v3679 = vmul.f32 %v3675, %v201
        %s3680 = sld [smem:[#allocation2 + $0x301]]
        %v3681 = vstv %s3680
        %v3682 = vmul.f32 %v3681, %v198
        %v3683 = vmul.f32 %v3681, %v199
        %v3684 = vmul.f32 %v3681, %v200
        %v3685 = vmul.f32 %v3681, %v201
        %3690 = vrot.lane.b32.xlu0 %v3682, 127
        %v3691 = vpop.permute.xlu0 %3690
        %3692 = vrot.lane.b32.xlu0 %v3683, 127
        %v3693 = vpop.permute.xlu0 %3692
        %3694 = vrot.lane.b32.xlu0 %v3684, 127
        %v3695 = vpop.permute.xlu0 %3694
        %3696 = vrot.lane.b32.xlu0 %v3685, 127
        %v3697 = vpop.permute.xlu0 %3696
        %v3702 = vadd.f32 %v3676, %v3691
        %v3703 = vadd.f32 %v3677, %v3693
        %v3704 = vadd.f32 %v3678, %v3695
        %v3705 = vadd.f32 %v3679, %v3697
        %s3706 = sld [smem:[#allocation2 + $0x302]]
        %v3707 = vstv %s3706
        %v3708 = vmul.f32 %v3707, %v198
        %v3709 = vmul.f32 %v3707, %v199
        %v3710 = vmul.f32 %v3707, %v200
        %v3711 = vmul.f32 %v3707, %v201
        %3716 = vrot.lane.b32.xlu0 %v3708, 126
        %v3717 = vpop.permute.xlu0 %3716
        %3718 = vrot.lane.b32.xlu0 %v3709, 126
        %v3719 = vpop.permute.xlu0 %3718
        %3720 = vrot.lane.b32.xlu0 %v3710, 126
        %v3721 = vpop.permute.xlu0 %3720
        %3722 = vrot.lane.b32.xlu0 %v3711, 126
        %v3723 = vpop.permute.xlu0 %3722
        %v3728 = vadd.f32 %v3702, %v3717
        %v3729 = vadd.f32 %v3703, %v3719
        %v3730 = vadd.f32 %v3704, %v3721
        %v3731 = vadd.f32 %v3705, %v3723
        %s3732 = sld [smem:[#allocation2 + $0x303]]
        %v3733 = vstv %s3732
        %v3734 = vmul.f32 %v3733, %v202
        %v3735 = vmul.f32 %v3733, %v203
        %v3736 = vmul.f32 %v3733, %v204
        %v3737 = vmul.f32 %v3733, %v205
        %v3738 = vadd.f32 %v3728, %v3734
        %v3739 = vadd.f32 %v3729, %v3735
        %v3740 = vadd.f32 %v3730, %v3736
        %v3741 = vadd.f32 %v3731, %v3737
        %s3742 = sld [smem:[#allocation2 + $0x304]]
        %v3743 = vstv %s3742
        %v3744 = vmul.f32 %v3743, %v202
        %v3745 = vmul.f32 %v3743, %v203
        %v3746 = vmul.f32 %v3743, %v204
        %v3747 = vmul.f32 %v3743, %v205
        %3752 = vrot.lane.b32.xlu0 %v3744, 127
        %v3753 = vpop.permute.xlu0 %3752
        %3754 = vrot.lane.b32.xlu0 %v3745, 127
        %v3755 = vpop.permute.xlu0 %3754
        %3756 = vrot.lane.b32.xlu0 %v3746, 127
        %v3757 = vpop.permute.xlu0 %3756
        %3758 = vrot.lane.b32.xlu0 %v3747, 127
        %v3759 = vpop.permute.xlu0 %3758
        %v3764 = vadd.f32 %v3738, %v3753
        %v3765 = vadd.f32 %v3739, %v3755
        %v3766 = vadd.f32 %v3740, %v3757
        %v3767 = vadd.f32 %v3741, %v3759
        %s3768 = sld [smem:[#allocation2 + $0x305]]
        %v3769 = vstv %s3768
        %v3770 = vmul.f32 %v3769, %v202
        %v3771 = vmul.f32 %v3769, %v203
        %v3772 = vmul.f32 %v3769, %v204
        %v3773 = vmul.f32 %v3769, %v205
        %3778 = vrot.lane.b32.xlu0 %v3770, 126
        %v3779 = vpop.permute.xlu0 %3778
        %3780 = vrot.lane.b32.xlu0 %v3771, 126
        %v3781 = vpop.permute.xlu0 %3780
        %3782 = vrot.lane.b32.xlu0 %v3772, 126
        %v3783 = vpop.permute.xlu0 %3782
        %3784 = vrot.lane.b32.xlu0 %v3773, 126
        %v3785 = vpop.permute.xlu0 %3784
        %v3790 = vadd.f32 %v3764, %v3779
        %v3791 = vadd.f32 %v3765, %v3781
        %v3792 = vadd.f32 %v3766, %v3783
        %v3793 = vadd.f32 %v3767, %v3785
        %s3794 = sld [smem:[#allocation2 + $0x306]]
        %v3795 = vstv %s3794
        %v3796 = vmul.f32 %v3795, %v206
        %v3797 = vmul.f32 %v3795, %v207
        %v3798 = vmul.f32 %v3795, %v208
        %v3799 = vmul.f32 %v3795, %v209
        %v3800 = vadd.f32 %v3790, %v3796
        %v3801 = vadd.f32 %v3791, %v3797
        %v3802 = vadd.f32 %v3792, %v3798
        %v3803 = vadd.f32 %v3793, %v3799
        %s3804 = sld [smem:[#allocation2 + $0x307]]
        %v3805 = vstv %s3804
        %v3806 = vmul.f32 %v3805, %v206
        %v3807 = vmul.f32 %v3805, %v207
        %v3808 = vmul.f32 %v3805, %v208
        %v3809 = vmul.f32 %v3805, %v209
        %3814 = vrot.lane.b32.xlu0 %v3806, 127
        %v3815 = vpop.permute.xlu0 %3814
        %3816 = vrot.lane.b32.xlu0 %v3807, 127
        %v3817 = vpop.permute.xlu0 %3816
        %3818 = vrot.lane.b32.xlu0 %v3808, 127
        %v3819 = vpop.permute.xlu0 %3818
        %3820 = vrot.lane.b32.xlu0 %v3809, 127
        %v3821 = vpop.permute.xlu0 %3820
        %v3826 = vadd.f32 %v3800, %v3815
        %v3827 = vadd.f32 %v3801, %v3817
        %v3828 = vadd.f32 %v3802, %v3819
        %v3829 = vadd.f32 %v3803, %v3821
        %s3830 = sld [smem:[#allocation2 + $0x308]]
        %v3831 = vstv %s3830
        %v3832 = vmul.f32 %v3831, %v206
        %v3833 = vmul.f32 %v3831, %v207
        %v3834 = vmul.f32 %v3831, %v208
        %v3835 = vmul.f32 %v3831, %v209
        %3840 = vrot.lane.b32.xlu0 %v3832, 126
        %v3841 = vpop.permute.xlu0 %3840
        %3842 = vrot.lane.b32.xlu0 %v3833, 126
        %v3843 = vpop.permute.xlu0 %3842
        %3844 = vrot.lane.b32.xlu0 %v3834, 126
        %v3845 = vpop.permute.xlu0 %3844
        %3846 = vrot.lane.b32.xlu0 %v3835, 126
        %v3847 = vpop.permute.xlu0 %3846
        %v3852 = vadd.f32 %v3826, %v3841
        %v3853 = vadd.f32 %v3827, %v3843
        %v3854 = vadd.f32 %v3828, %v3845
        %v3855 = vadd.f32 %v3829, %v3847
        %s3856 = sld [smem:[#allocation2 + $0x309]]
        %v3857 = vstv %s3856
        %v3858 = vmul.f32 %v3857, %v211
        %v3859 = vmul.f32 %v3857, %v212
        %v3860 = vmul.f32 %v3857, %v213
        %v3861 = vmul.f32 %v3857, %v214
        %v3862 = vadd.f32 %v3852, %v3858
        %v3863 = vadd.f32 %v3853, %v3859
        %v3864 = vadd.f32 %v3854, %v3860
        %v3865 = vadd.f32 %v3855, %v3861
        %s3866 = sld [smem:[#allocation2 + $0x30a]]
        %v3867 = vstv %s3866
        %v3868 = vmul.f32 %v3867, %v211
        %v3869 = vmul.f32 %v3867, %v212
        %v3870 = vmul.f32 %v3867, %v213
        %v3871 = vmul.f32 %v3867, %v214
        %3876 = vrot.lane.b32.xlu0 %v3868, 127
        %v3877 = vpop.permute.xlu0 %3876
        %3878 = vrot.lane.b32.xlu0 %v3869, 127
        %v3879 = vpop.permute.xlu0 %3878
        %3880 = vrot.lane.b32.xlu0 %v3870, 127
        %v3881 = vpop.permute.xlu0 %3880
        %3882 = vrot.lane.b32.xlu0 %v3871, 127
        %v3883 = vpop.permute.xlu0 %3882
        %v3888 = vadd.f32 %v3862, %v3877
        %v3889 = vadd.f32 %v3863, %v3879
        %v3890 = vadd.f32 %v3864, %v3881
        %v3891 = vadd.f32 %v3865, %v3883
        %s3892 = sld [smem:[#allocation2 + $0x30b]]
        %v3893 = vstv %s3892
        %v3894 = vmul.f32 %v3893, %v211
        %v3895 = vmul.f32 %v3893, %v212
        %v3896 = vmul.f32 %v3893, %v213
        %v3897 = vmul.f32 %v3893, %v214
        %3902 = vrot.lane.b32.xlu0 %v3894, 126
        %v3903 = vpop.permute.xlu0 %3902
        %3904 = vrot.lane.b32.xlu0 %v3895, 126
        %v3905 = vpop.permute.xlu0 %3904
        %3906 = vrot.lane.b32.xlu0 %v3896, 126
        %v3907 = vpop.permute.xlu0 %3906
        %3908 = vrot.lane.b32.xlu0 %v3897, 126
        %v3909 = vpop.permute.xlu0 %3908
        %v3914 = vadd.f32 %v3888, %v3903
        %v3915 = vadd.f32 %v3889, %v3905
        %v3916 = vadd.f32 %v3890, %v3907
        %v3917 = vadd.f32 %v3891, %v3909
        %s3918 = sld [smem:[#allocation2 + $0x30c]]
        %v3919 = vstv %s3918
        %v3920 = vmul.f32 %v3919, %v215
        %v3921 = vmul.f32 %v3919, %v216
        %v3922 = vmul.f32 %v3919, %v217
        %v3923 = vmul.f32 %v3919, %v218
        %v3924 = vadd.f32 %v3914, %v3920
        %v3925 = vadd.f32 %v3915, %v3921
        %v3926 = vadd.f32 %v3916, %v3922
        %v3927 = vadd.f32 %v3917, %v3923
        %s3928 = sld [smem:[#allocation2 + $0x30d]]
        %v3929 = vstv %s3928
        %v3930 = vmul.f32 %v3929, %v215
        %v3931 = vmul.f32 %v3929, %v216
        %v3932 = vmul.f32 %v3929, %v217
        %v3933 = vmul.f32 %v3929, %v218
        %3938 = vrot.lane.b32.xlu0 %v3930, 127
        %v3939 = vpop.permute.xlu0 %3938
        %3940 = vrot.lane.b32.xlu0 %v3931, 127
        %v3941 = vpop.permute.xlu0 %3940
        %3942 = vrot.lane.b32.xlu0 %v3932, 127
        %v3943 = vpop.permute.xlu0 %3942
        %3944 = vrot.lane.b32.xlu0 %v3933, 127
        %v3945 = vpop.permute.xlu0 %3944
        %v3950 = vadd.f32 %v3924, %v3939
        %v3951 = vadd.f32 %v3925, %v3941
        %v3952 = vadd.f32 %v3926, %v3943
        %v3953 = vadd.f32 %v3927, %v3945
        %s3954 = sld [smem:[#allocation2 + $0x30e]]
        %v3955 = vstv %s3954
        %v3956 = vmul.f32 %v3955, %v215
        %v3957 = vmul.f32 %v3955, %v216
        %v3958 = vmul.f32 %v3955, %v217
        %v3959 = vmul.f32 %v3955, %v218
        %3964 = vrot.lane.b32.xlu0 %v3956, 126
        %v3965 = vpop.permute.xlu0 %3964
        %3966 = vrot.lane.b32.xlu0 %v3957, 126
        %v3967 = vpop.permute.xlu0 %3966
        %3968 = vrot.lane.b32.xlu0 %v3958, 126
        %v3969 = vpop.permute.xlu0 %3968
        %3970 = vrot.lane.b32.xlu0 %v3959, 126
        %v3971 = vpop.permute.xlu0 %3970
        %v3976 = vadd.f32 %v3950, %v3965
        %v3977 = vadd.f32 %v3951, %v3967
        %v3978 = vadd.f32 %v3952, %v3969
        %v3979 = vadd.f32 %v3953, %v3971
        %s3980 = sld [smem:[#allocation2 + $0x30f]]
        %v3981 = vstv %s3980
        %v3982 = vmul.f32 %v3981, %v219
        %v3983 = vmul.f32 %v3981, %v220
        %v3984 = vmul.f32 %v3981, %v221
        %v3985 = vmul.f32 %v3981, %v222
        %v3986 = vadd.f32 %v3976, %v3982
        %v3987 = vadd.f32 %v3977, %v3983
        %v3988 = vadd.f32 %v3978, %v3984
        %v3989 = vadd.f32 %v3979, %v3985
        %s3990 = sld [smem:[#allocation2 + $0x310]]
        %v3991 = vstv %s3990
        %v3992 = vmul.f32 %v3991, %v219
        %v3993 = vmul.f32 %v3991, %v220
        %v3994 = vmul.f32 %v3991, %v221
        %v3995 = vmul.f32 %v3991, %v222
        %4000 = vrot.lane.b32.xlu0 %v3992, 127
        %v4001 = vpop.permute.xlu0 %4000
        %4002 = vrot.lane.b32.xlu0 %v3993, 127
        %v4003 = vpop.permute.xlu0 %4002
        %4004 = vrot.lane.b32.xlu0 %v3994, 127
        %v4005 = vpop.permute.xlu0 %4004
        %4006 = vrot.lane.b32.xlu0 %v3995, 127
        %v4007 = vpop.permute.xlu0 %4006
        %v4012 = vadd.f32 %v3986, %v4001
        %v4013 = vadd.f32 %v3987, %v4003
        %v4014 = vadd.f32 %v3988, %v4005
        %v4015 = vadd.f32 %v3989, %v4007
        %s4016 = sld [smem:[#allocation2 + $0x311]]
        %v4017 = vstv %s4016
        %v4018 = vmul.f32 %v4017, %v219
        %v4019 = vmul.f32 %v4017, %v220
        %v4020 = vmul.f32 %v4017, %v221
        %v4021 = vmul.f32 %v4017, %v222
        %4026 = vrot.lane.b32.xlu0 %v4018, 126
        %v4027 = vpop.permute.xlu0 %4026
        %4028 = vrot.lane.b32.xlu0 %v4019, 126
        %v4029 = vpop.permute.xlu0 %4028
        %4030 = vrot.lane.b32.xlu0 %v4020, 126
        %v4031 = vpop.permute.xlu0 %4030
        %4032 = vrot.lane.b32.xlu0 %v4021, 126
        %v4033 = vpop.permute.xlu0 %4032
        %v4038 = vadd.f32 %v4012, %v4027
        %v4039 = vadd.f32 %v4013, %v4029
        %v4040 = vadd.f32 %v4014, %v4031
        %v4041 = vadd.f32 %v4015, %v4033
        %s4042 = sld [smem:[#allocation2 + $0x312]]
        %v4043 = vstv %s4042
        %v4044 = vmul.f32 %v4043, %v224
        %v4045 = vmul.f32 %v4043, %v225
        %v4046 = vmul.f32 %v4043, %v226
        %v4047 = vmul.f32 %v4043, %v227
        %v4048 = vadd.f32 %v4038, %v4044
        %v4049 = vadd.f32 %v4039, %v4045
        %v4050 = vadd.f32 %v4040, %v4046
        %v4051 = vadd.f32 %v4041, %v4047
        %s4052 = sld [smem:[#allocation2 + $0x313]]
        %v4053 = vstv %s4052
        %v4054 = vmul.f32 %v4053, %v224
        %v4055 = vmul.f32 %v4053, %v225
        %v4056 = vmul.f32 %v4053, %v226
        %v4057 = vmul.f32 %v4053, %v227
        %4062 = vrot.lane.b32.xlu0 %v4054, 127
        %v4063 = vpop.permute.xlu0 %4062
        %4064 = vrot.lane.b32.xlu0 %v4055, 127
        %v4065 = vpop.permute.xlu0 %4064
        %4066 = vrot.lane.b32.xlu0 %v4056, 127
        %v4067 = vpop.permute.xlu0 %4066
        %4068 = vrot.lane.b32.xlu0 %v4057, 127
        %v4069 = vpop.permute.xlu0 %4068
        %v4074 = vadd.f32 %v4048, %v4063
        %v4075 = vadd.f32 %v4049, %v4065
        %v4076 = vadd.f32 %v4050, %v4067
        %v4077 = vadd.f32 %v4051, %v4069
        %s4078 = sld [smem:[#allocation2 + $0x314]]
        %v4079 = vstv %s4078
        %v4080 = vmul.f32 %v4079, %v224
        %v4081 = vmul.f32 %v4079, %v225
        %v4082 = vmul.f32 %v4079, %v226
        %v4083 = vmul.f32 %v4079, %v227
        %4088 = vrot.lane.b32.xlu0 %v4080, 126
        %v4089 = vpop.permute.xlu0 %4088
        %4090 = vrot.lane.b32.xlu0 %v4081, 126
        %v4091 = vpop.permute.xlu0 %4090
        %4092 = vrot.lane.b32.xlu0 %v4082, 126
        %v4093 = vpop.permute.xlu0 %4092
        %4094 = vrot.lane.b32.xlu0 %v4083, 126
        %v4095 = vpop.permute.xlu0 %4094
        %v4100 = vadd.f32 %v4074, %v4089
        %v4101 = vadd.f32 %v4075, %v4091
        %v4102 = vadd.f32 %v4076, %v4093
        %v4103 = vadd.f32 %v4077, %v4095
        %s4104 = sld [smem:[#allocation2 + $0x315]]
        %v4105 = vstv %s4104
        %v4106 = vmul.f32 %v4105, %v228
        %v4107 = vmul.f32 %v4105, %v229
        %v4108 = vmul.f32 %v4105, %v230
        %v4109 = vmul.f32 %v4105, %v231
        %v4110 = vadd.f32 %v4100, %v4106
        %v4111 = vadd.f32 %v4101, %v4107
        %v4112 = vadd.f32 %v4102, %v4108
        %v4113 = vadd.f32 %v4103, %v4109
        %s4114 = sld [smem:[#allocation2 + $0x316]]
        %v4115 = vstv %s4114
        %v4116 = vmul.f32 %v4115, %v228
        %v4117 = vmul.f32 %v4115, %v229
        %v4118 = vmul.f32 %v4115, %v230
        %v4119 = vmul.f32 %v4115, %v231
        %4124 = vrot.lane.b32.xlu0 %v4116, 127
        %v4125 = vpop.permute.xlu0 %4124
        %4126 = vrot.lane.b32.xlu0 %v4117, 127
        %v4127 = vpop.permute.xlu0 %4126
        %4128 = vrot.lane.b32.xlu0 %v4118, 127
        %v4129 = vpop.permute.xlu0 %4128
        %4130 = vrot.lane.b32.xlu0 %v4119, 127
        %v4131 = vpop.permute.xlu0 %4130
        %v4136 = vadd.f32 %v4110, %v4125
        %v4137 = vadd.f32 %v4111, %v4127
        %v4138 = vadd.f32 %v4112, %v4129
        %v4139 = vadd.f32 %v4113, %v4131
        %s4140 = sld [smem:[#allocation2 + $0x317]]
        %v4141 = vstv %s4140
        %v4142 = vmul.f32 %v4141, %v228
        %v4143 = vmul.f32 %v4141, %v229
        %v4144 = vmul.f32 %v4141, %v230
        %v4145 = vmul.f32 %v4141, %v231
        %4150 = vrot.lane.b32.xlu0 %v4142, 126
        %v4151 = vpop.permute.xlu0 %4150
        %4152 = vrot.lane.b32.xlu0 %v4143, 126
        %v4153 = vpop.permute.xlu0 %4152
        %4154 = vrot.lane.b32.xlu0 %v4144, 126
        %v4155 = vpop.permute.xlu0 %4154
        %4156 = vrot.lane.b32.xlu0 %v4145, 126
        %v4157 = vpop.permute.xlu0 %4156
        %v4162 = vadd.f32 %v4136, %v4151
        %v4163 = vadd.f32 %v4137, %v4153
        %v4164 = vadd.f32 %v4138, %v4155
        %v4165 = vadd.f32 %v4139, %v4157
        %s4166 = sld [smem:[#allocation2 + $0x318]]
        %v4167 = vstv %s4166
        %v4168 = vmul.f32 %v4167, %v232
        %v4169 = vmul.f32 %v4167, %v233
        %v4170 = vmul.f32 %v4167, %v234
        %v4171 = vmul.f32 %v4167, %v235
        %v4172 = vadd.f32 %v4162, %v4168
        %v4173 = vadd.f32 %v4163, %v4169
        %v4174 = vadd.f32 %v4164, %v4170
        %v4175 = vadd.f32 %v4165, %v4171
        %s4176 = sld [smem:[#allocation2 + $0x319]]
        %v4177 = vstv %s4176
        %v4178 = vmul.f32 %v4177, %v232
        %v4179 = vmul.f32 %v4177, %v233
        %v4180 = vmul.f32 %v4177, %v234
        %v4181 = vmul.f32 %v4177, %v235
        %4186 = vrot.lane.b32.xlu0 %v4178, 127
        %v4187 = vpop.permute.xlu0 %4186
        %4188 = vrot.lane.b32.xlu0 %v4179, 127
        %v4189 = vpop.permute.xlu0 %4188
        %4190 = vrot.lane.b32.xlu0 %v4180, 127
        %v4191 = vpop.permute.xlu0 %4190
        %4192 = vrot.lane.b32.xlu0 %v4181, 127
        %v4193 = vpop.permute.xlu0 %4192
        %v4198 = vadd.f32 %v4172, %v4187
        %v4199 = vadd.f32 %v4173, %v4189
        %v4200 = vadd.f32 %v4174, %v4191
        %v4201 = vadd.f32 %v4175, %v4193
        %s4202 = sld [smem:[#allocation2 + $0x31a]]
        %v4203 = vstv %s4202
        %v4204 = vmul.f32 %v4203, %v232
        %v4205 = vmul.f32 %v4203, %v233
        %v4206 = vmul.f32 %v4203, %v234
        %v4207 = vmul.f32 %v4203, %v235
        %4212 = vrot.lane.b32.xlu0 %v4204, 126
        %v4213 = vpop.permute.xlu0 %4212
        %4214 = vrot.lane.b32.xlu0 %v4205, 126
        %v4215 = vpop.permute.xlu0 %4214
        %4216 = vrot.lane.b32.xlu0 %v4206, 126
        %v4217 = vpop.permute.xlu0 %4216
        %4218 = vrot.lane.b32.xlu0 %v4207, 126
        %v4219 = vpop.permute.xlu0 %4218
        %v4224 = vadd.f32 %v4198, %v4213
        %v4225 = vadd.f32 %v4199, %v4215
        %v4226 = vadd.f32 %v4200, %v4217
        %v4227 = vadd.f32 %v4201, %v4219
        %s4228 = sld [smem:[#allocation5 + $0x6]]
        %v4229 = vstv %s4228
        %v4230 = vadd.f32 %v4224, %v4229
        %v4231 = vadd.f32 %v4225, %v4229
        %v4232 = vadd.f32 %v4226, %v4229
        %v4233 = vadd.f32 %v4227, %v4229
        %v4234 = vmax.f32 %v4230, 0.0
        %v4235 = vmax.f32 %v4231, 0.0
        %v4236 = vmax.f32 %v4232, 0.0
        %v4237 = vmax.f32 %v4233, 0.0
        %v4238 = vmin.f32 %v4234, 0.5
        %v4239 = vmin.f32 %v4235, 0.5
        %v4240 = vmin.f32 %v4236, 0.5
        %v4241 = vmin.f32 %v4237, 0.5
        %s4242 = scalar_lea.vmem %s192, 192 [#allocation7]
        %4243 = vst.msk [vmem:[%s4242] sm:$0xff] %vm804, %v4238
        %4244 = vst.msk [vmem:[%s4242 + $0x8] sm:$0xff] %vm804, %v4239
        %4245 = vst.msk [vmem:[%s4242 + $0x10] sm:$0xff] %vm804, %v4240
        %4246 = vst.msk [vmem:[%s4242 + $0x18] sm:$0xff] %vm804, %v4241
        %s4247 = sld [smem:[#allocation2 + $0x380]]
        %v4248 = vstv %s4247
        %v4249 = vmul.f32 %v4248, %v198
        %v4250 = vmul.f32 %v4248, %v199
        %v4251 = vmul.f32 %v4248, %v200
        %v4252 = vmul.f32 %v4248, %v201
        %s4253 = sld [smem:[#allocation2 + $0x381]]
        %v4254 = vstv %s4253
        %v4255 = vmul.f32 %v4254, %v198
        %v4256 = vmul.f32 %v4254, %v199
        %v4257 = vmul.f32 %v4254, %v200
        %v4258 = vmul.f32 %v4254, %v201
        %4263 = vrot.lane.b32.xlu0 %v4255, 127
        %v4264 = vpop.permute.xlu0 %4263
        %4265 = vrot.lane.b32.xlu0 %v4256, 127
        %v4266 = vpop.permute.xlu0 %4265
        %4267 = vrot.lane.b32.xlu0 %v4257, 127
        %v4268 = vpop.permute.xlu0 %4267
        %4269 = vrot.lane.b32.xlu0 %v4258, 127
        %v4270 = vpop.permute.xlu0 %4269
        %v4275 = vadd.f32 %v4249, %v4264
        %v4276 = vadd.f32 %v4250, %v4266
        %v4277 = vadd.f32 %v4251, %v4268
        %v4278 = vadd.f32 %v4252, %v4270
        %s4279 = sld [smem:[#allocation2 + $0x382]]
        %v4280 = vstv %s4279
        %v4281 = vmul.f32 %v4280, %v198
        %v4282 = vmul.f32 %v4280, %v199
        %v4283 = vmul.f32 %v4280, %v200
        %v4284 = vmul.f32 %v4280, %v201
        %4289 = vrot.lane.b32.xlu0 %v4281, 126
        %v4290 = vpop.permute.xlu0 %4289
        %4291 = vrot.lane.b32.xlu0 %v4282, 126
        %v4292 = vpop.permute.xlu0 %4291
        %4293 = vrot.lane.b32.xlu0 %v4283, 126
        %v4294 = vpop.permute.xlu0 %4293
        %4295 = vrot.lane.b32.xlu0 %v4284, 126
        %v4296 = vpop.permute.xlu0 %4295
        %v4301 = vadd.f32 %v4275, %v4290
        %v4302 = vadd.f32 %v4276, %v4292
        %v4303 = vadd.f32 %v4277, %v4294
        %v4304 = vadd.f32 %v4278, %v4296
        %s4305 = sld [smem:[#allocation2 + $0x383]]
        %v4306 = vstv %s4305
        %v4307 = vmul.f32 %v4306, %v202
        %v4308 = vmul.f32 %v4306, %v203
        %v4309 = vmul.f32 %v4306, %v204
        %v4310 = vmul.f32 %v4306, %v205
        %v4311 = vadd.f32 %v4301, %v4307
        %v4312 = vadd.f32 %v4302, %v4308
        %v4313 = vadd.f32 %v4303, %v4309
        %v4314 = vadd.f32 %v4304, %v4310
        %s4315 = sld [smem:[#allocation2 + $0x384]]
        %v4316 = vstv %s4315
        %v4317 = vmul.f32 %v4316, %v202
        %v4318 = vmul.f32 %v4316, %v203
        %v4319 = vmul.f32 %v4316, %v204
        %v4320 = vmul.f32 %v4316, %v205
        %4325 = vrot.lane.b32.xlu0 %v4317, 127
        %v4326 = vpop.permute.xlu0 %4325
        %4327 = vrot.lane.b32.xlu0 %v4318, 127
        %v4328 = vpop.permute.xlu0 %4327
        %4329 = vrot.lane.b32.xlu0 %v4319, 127
        %v4330 = vpop.permute.xlu0 %4329
        %4331 = vrot.lane.b32.xlu0 %v4320, 127
        %v4332 = vpop.permute.xlu0 %4331
        %v4337 = vadd.f32 %v4311, %v4326
        %v4338 = vadd.f32 %v4312, %v4328
        %v4339 = vadd.f32 %v4313, %v4330
        %v4340 = vadd.f32 %v4314, %v4332
        %s4341 = sld [smem:[#allocation2 + $0x385]]
        %v4342 = vstv %s4341
        %v4343 = vmul.f32 %v4342, %v202
        %v4344 = vmul.f32 %v4342, %v203
        %v4345 = vmul.f32 %v4342, %v204
        %v4346 = vmul.f32 %v4342, %v205
        %4351 = vrot.lane.b32.xlu0 %v4343, 126
        %v4352 = vpop.permute.xlu0 %4351
        %4353 = vrot.lane.b32.xlu0 %v4344, 126
        %v4354 = vpop.permute.xlu0 %4353
        %4355 = vrot.lane.b32.xlu0 %v4345, 126
        %v4356 = vpop.permute.xlu0 %4355
        %4357 = vrot.lane.b32.xlu0 %v4346, 126
        %v4358 = vpop.permute.xlu0 %4357
        %v4363 = vadd.f32 %v4337, %v4352
        %v4364 = vadd.f32 %v4338, %v4354
        %v4365 = vadd.f32 %v4339, %v4356
        %v4366 = vadd.f32 %v4340, %v4358
        %s4367 = sld [smem:[#allocation2 + $0x386]]
        %v4368 = vstv %s4367
        %v4369 = vmul.f32 %v4368, %v206
        %v4370 = vmul.f32 %v4368, %v207
        %v4371 = vmul.f32 %v4368, %v208
        %v4372 = vmul.f32 %v4368, %v209
        %v4373 = vadd.f32 %v4363, %v4369
        %v4374 = vadd.f32 %v4364, %v4370
        %v4375 = vadd.f32 %v4365, %v4371
        %v4376 = vadd.f32 %v4366, %v4372
        %s4377 = sld [smem:[#allocation2 + $0x387]]
        %v4378 = vstv %s4377
        %v4379 = vmul.f32 %v4378, %v206
        %v4380 = vmul.f32 %v4378, %v207
        %v4381 = vmul.f32 %v4378, %v208
        %v4382 = vmul.f32 %v4378, %v209
        %4387 = vrot.lane.b32.xlu0 %v4379, 127
        %v4388 = vpop.permute.xlu0 %4387
        %4389 = vrot.lane.b32.xlu0 %v4380, 127
        %v4390 = vpop.permute.xlu0 %4389
        %4391 = vrot.lane.b32.xlu0 %v4381, 127
        %v4392 = vpop.permute.xlu0 %4391
        %4393 = vrot.lane.b32.xlu0 %v4382, 127
        %v4394 = vpop.permute.xlu0 %4393
        %v4399 = vadd.f32 %v4373, %v4388
        %v4400 = vadd.f32 %v4374, %v4390
        %v4401 = vadd.f32 %v4375, %v4392
        %v4402 = vadd.f32 %v4376, %v4394
        %s4403 = sld [smem:[#allocation2 + $0x388]]
        %v4404 = vstv %s4403
        %v4405 = vmul.f32 %v4404, %v206
        %v4406 = vmul.f32 %v4404, %v207
        %v4407 = vmul.f32 %v4404, %v208
        %v4408 = vmul.f32 %v4404, %v209
        %4413 = vrot.lane.b32.xlu0 %v4405, 126
        %v4414 = vpop.permute.xlu0 %4413
        %4415 = vrot.lane.b32.xlu0 %v4406, 126
        %v4416 = vpop.permute.xlu0 %4415
        %4417 = vrot.lane.b32.xlu0 %v4407, 126
        %v4418 = vpop.permute.xlu0 %4417
        %4419 = vrot.lane.b32.xlu0 %v4408, 126
        %v4420 = vpop.permute.xlu0 %4419
        %v4425 = vadd.f32 %v4399, %v4414
        %v4426 = vadd.f32 %v4400, %v4416
        %v4427 = vadd.f32 %v4401, %v4418
        %v4428 = vadd.f32 %v4402, %v4420
        %s4429 = sld [smem:[#allocation2 + $0x389]]
        %v4430 = vstv %s4429
        %v4431 = vmul.f32 %v4430, %v211
        %v4432 = vmul.f32 %v4430, %v212
        %v4433 = vmul.f32 %v4430, %v213
        %v4434 = vmul.f32 %v4430, %v214
        %v4435 = vadd.f32 %v4425, %v4431
        %v4436 = vadd.f32 %v4426, %v4432
        %v4437 = vadd.f32 %v4427, %v4433
        %v4438 = vadd.f32 %v4428, %v4434
        %s4439 = sld [smem:[#allocation2 + $0x38a]]
        %v4440 = vstv %s4439
        %v4441 = vmul.f32 %v4440, %v211
        %v4442 = vmul.f32 %v4440, %v212
        %v4443 = vmul.f32 %v4440, %v213
        %v4444 = vmul.f32 %v4440, %v214
        %4449 = vrot.lane.b32.xlu0 %v4441, 127
        %v4450 = vpop.permute.xlu0 %4449
        %4451 = vrot.lane.b32.xlu0 %v4442, 127
        %v4452 = vpop.permute.xlu0 %4451
        %4453 = vrot.lane.b32.xlu0 %v4443, 127
        %v4454 = vpop.permute.xlu0 %4453
        %4455 = vrot.lane.b32.xlu0 %v4444, 127
        %v4456 = vpop.permute.xlu0 %4455
        %v4461 = vadd.f32 %v4435, %v4450
        %v4462 = vadd.f32 %v4436, %v4452
        %v4463 = vadd.f32 %v4437, %v4454
        %v4464 = vadd.f32 %v4438, %v4456
        %s4465 = sld [smem:[#allocation2 + $0x38b]]
        %v4466 = vstv %s4465
        %v4467 = vmul.f32 %v4466, %v211
        %v4468 = vmul.f32 %v4466, %v212
        %v4469 = vmul.f32 %v4466, %v213
        %v4470 = vmul.f32 %v4466, %v214
        %4475 = vrot.lane.b32.xlu0 %v4467, 126
        %v4476 = vpop.permute.xlu0 %4475
        %4477 = vrot.lane.b32.xlu0 %v4468, 126
        %v4478 = vpop.permute.xlu0 %4477
        %4479 = vrot.lane.b32.xlu0 %v4469, 126
        %v4480 = vpop.permute.xlu0 %4479
        %4481 = vrot.lane.b32.xlu0 %v4470, 126
        %v4482 = vpop.permute.xlu0 %4481
        %v4487 = vadd.f32 %v4461, %v4476
        %v4488 = vadd.f32 %v4462, %v4478
        %v4489 = vadd.f32 %v4463, %v4480
        %v4490 = vadd.f32 %v4464, %v4482
        %s4491 = sld [smem:[#allocation2 + $0x38c]]
        %v4492 = vstv %s4491
        %v4493 = vmul.f32 %v4492, %v215
        %v4494 = vmul.f32 %v4492, %v216
        %v4495 = vmul.f32 %v4492, %v217
        %v4496 = vmul.f32 %v4492, %v218
        %v4497 = vadd.f32 %v4487, %v4493
        %v4498 = vadd.f32 %v4488, %v4494
        %v4499 = vadd.f32 %v4489, %v4495
        %v4500 = vadd.f32 %v4490, %v4496
        %s4501 = sld [smem:[#allocation2 + $0x38d]]
        %v4502 = vstv %s4501
        %v4503 = vmul.f32 %v4502, %v215
        %v4504 = vmul.f32 %v4502, %v216
        %v4505 = vmul.f32 %v4502, %v217
        %v4506 = vmul.f32 %v4502, %v218
        %4511 = vrot.lane.b32.xlu0 %v4503, 127
        %v4512 = vpop.permute.xlu0 %4511
        %4513 = vrot.lane.b32.xlu0 %v4504, 127
        %v4514 = vpop.permute.xlu0 %4513
        %4515 = vrot.lane.b32.xlu0 %v4505, 127
        %v4516 = vpop.permute.xlu0 %4515
        %4517 = vrot.lane.b32.xlu0 %v4506, 127
        %v4518 = vpop.permute.xlu0 %4517
        %v4523 = vadd.f32 %v4497, %v4512
        %v4524 = vadd.f32 %v4498, %v4514
        %v4525 = vadd.f32 %v4499, %v4516
        %v4526 = vadd.f32 %v4500, %v4518
        %s4527 = sld [smem:[#allocation2 + $0x38e]]
        %v4528 = vstv %s4527
        %v4529 = vmul.f32 %v4528, %v215
        %v4530 = vmul.f32 %v4528, %v216
        %v4531 = vmul.f32 %v4528, %v217
        %v4532 = vmul.f32 %v4528, %v218
        %4537 = vrot.lane.b32.xlu0 %v4529, 126
        %v4538 = vpop.permute.xlu0 %4537
        %4539 = vrot.lane.b32.xlu0 %v4530, 126
        %v4540 = vpop.permute.xlu0 %4539
        %4541 = vrot.lane.b32.xlu0 %v4531, 126
        %v4542 = vpop.permute.xlu0 %4541
        %4543 = vrot.lane.b32.xlu0 %v4532, 126
        %v4544 = vpop.permute.xlu0 %4543
        %v4549 = vadd.f32 %v4523, %v4538
        %v4550 = vadd.f32 %v4524, %v4540
        %v4551 = vadd.f32 %v4525, %v4542
        %v4552 = vadd.f32 %v4526, %v4544
        %s4553 = sld [smem:[#allocation2 + $0x38f]]
        %v4554 = vstv %s4553
        %v4555 = vmul.f32 %v4554, %v219
        %v4556 = vmul.f32 %v4554, %v220
        %v4557 = vmul.f32 %v4554, %v221
        %v4558 = vmul.f32 %v4554, %v222
        %v4559 = vadd.f32 %v4549, %v4555
        %v4560 = vadd.f32 %v4550, %v4556
        %v4561 = vadd.f32 %v4551, %v4557
        %v4562 = vadd.f32 %v4552, %v4558
        %s4563 = sld [smem:[#allocation2 + $0x390]]
        %v4564 = vstv %s4563
        %v4565 = vmul.f32 %v4564, %v219
        %v4566 = vmul.f32 %v4564, %v220
        %v4567 = vmul.f32 %v4564, %v221
        %v4568 = vmul.f32 %v4564, %v222
        %4573 = vrot.lane.b32.xlu0 %v4565, 127
        %v4574 = vpop.permute.xlu0 %4573
        %4575 = vrot.lane.b32.xlu0 %v4566, 127
        %v4576 = vpop.permute.xlu0 %4575
        %4577 = vrot.lane.b32.xlu0 %v4567, 127
        %v4578 = vpop.permute.xlu0 %4577
        %4579 = vrot.lane.b32.xlu0 %v4568, 127
        %v4580 = vpop.permute.xlu0 %4579
        %v4585 = vadd.f32 %v4559, %v4574
        %v4586 = vadd.f32 %v4560, %v4576
        %v4587 = vadd.f32 %v4561, %v4578
        %v4588 = vadd.f32 %v4562, %v4580
        %s4589 = sld [smem:[#allocation2 + $0x391]]
        %v4590 = vstv %s4589
        %v4591 = vmul.f32 %v4590, %v219
        %v4592 = vmul.f32 %v4590, %v220
        %v4593 = vmul.f32 %v4590, %v221
        %v4594 = vmul.f32 %v4590, %v222
        %4599 = vrot.lane.b32.xlu0 %v4591, 126
        %v4600 = vpop.permute.xlu0 %4599
        %4601 = vrot.lane.b32.xlu0 %v4592, 126
        %v4602 = vpop.permute.xlu0 %4601
        %4603 = vrot.lane.b32.xlu0 %v4593, 126
        %v4604 = vpop.permute.xlu0 %4603
        %4605 = vrot.lane.b32.xlu0 %v4594, 126
        %v4606 = vpop.permute.xlu0 %4605
        %v4611 = vadd.f32 %v4585, %v4600
        %v4612 = vadd.f32 %v4586, %v4602
        %v4613 = vadd.f32 %v4587, %v4604
        %v4614 = vadd.f32 %v4588, %v4606
        %s4615 = sld [smem:[#allocation2 + $0x392]]
        %v4616 = vstv %s4615
        %v4617 = vmul.f32 %v4616, %v224
        %v4618 = vmul.f32 %v4616, %v225
        %v4619 = vmul.f32 %v4616, %v226
        %v4620 = vmul.f32 %v4616, %v227
        %v4621 = vadd.f32 %v4611, %v4617
        %v4622 = vadd.f32 %v4612, %v4618
        %v4623 = vadd.f32 %v4613, %v4619
        %v4624 = vadd.f32 %v4614, %v4620
        %s4625 = sld [smem:[#allocation2 + $0x393]]
        %v4626 = vstv %s4625
        %v4627 = vmul.f32 %v4626, %v224
        %v4628 = vmul.f32 %v4626, %v225
        %v4629 = vmul.f32 %v4626, %v226
        %v4630 = vmul.f32 %v4626, %v227
        %4635 = vrot.lane.b32.xlu0 %v4627, 127
        %v4636 = vpop.permute.xlu0 %4635
        %4637 = vrot.lane.b32.xlu0 %v4628, 127
        %v4638 = vpop.permute.xlu0 %4637
        %4639 = vrot.lane.b32.xlu0 %v4629, 127
        %v4640 = vpop.permute.xlu0 %4639
        %4641 = vrot.lane.b32.xlu0 %v4630, 127
        %v4642 = vpop.permute.xlu0 %4641
        %v4647 = vadd.f32 %v4621, %v4636
        %v4648 = vadd.f32 %v4622, %v4638
        %v4649 = vadd.f32 %v4623, %v4640
        %v4650 = vadd.f32 %v4624, %v4642
        %s4651 = sld [smem:[#allocation2 + $0x394]]
        %v4652 = vstv %s4651
        %v4653 = vmul.f32 %v4652, %v224
        %v4654 = vmul.f32 %v4652, %v225
        %v4655 = vmul.f32 %v4652, %v226
        %v4656 = vmul.f32 %v4652, %v227
        %4661 = vrot.lane.b32.xlu0 %v4653, 126
        %v4662 = vpop.permute.xlu0 %4661
        %4663 = vrot.lane.b32.xlu0 %v4654, 126
        %v4664 = vpop.permute.xlu0 %4663
        %4665 = vrot.lane.b32.xlu0 %v4655, 126
        %v4666 = vpop.permute.xlu0 %4665
        %4667 = vrot.lane.b32.xlu0 %v4656, 126
        %v4668 = vpop.permute.xlu0 %4667
        %v4673 = vadd.f32 %v4647, %v4662
        %v4674 = vadd.f32 %v4648, %v4664
        %v4675 = vadd.f32 %v4649, %v4666
        %v4676 = vadd.f32 %v4650, %v4668
        %s4677 = sld [smem:[#allocation2 + $0x395]]
        %v4678 = vstv %s4677
        %v4679 = vmul.f32 %v4678, %v228
        %v4680 = vmul.f32 %v4678, %v229
        %v4681 = vmul.f32 %v4678, %v230
        %v4682 = vmul.f32 %v4678, %v231
        %v4683 = vadd.f32 %v4673, %v4679
        %v4684 = vadd.f32 %v4674, %v4680
        %v4685 = vadd.f32 %v4675, %v4681
        %v4686 = vadd.f32 %v4676, %v4682
        %s4687 = sld [smem:[#allocation2 + $0x396]]
        %v4688 = vstv %s4687
        %v4689 = vmul.f32 %v4688, %v228
        %v4690 = vmul.f32 %v4688, %v229
        %v4691 = vmul.f32 %v4688, %v230
        %v4692 = vmul.f32 %v4688, %v231
        %4697 = vrot.lane.b32.xlu0 %v4689, 127
        %v4698 = vpop.permute.xlu0 %4697
        %4699 = vrot.lane.b32.xlu0 %v4690, 127
        %v4700 = vpop.permute.xlu0 %4699
        %4701 = vrot.lane.b32.xlu0 %v4691, 127
        %v4702 = vpop.permute.xlu0 %4701
        %4703 = vrot.lane.b32.xlu0 %v4692, 127
        %v4704 = vpop.permute.xlu0 %4703
        %v4709 = vadd.f32 %v4683, %v4698
        %v4710 = vadd.f32 %v4684, %v4700
        %v4711 = vadd.f32 %v4685, %v4702
        %v4712 = vadd.f32 %v4686, %v4704
        %s4713 = sld [smem:[#allocation2 + $0x397]]
        %v4714 = vstv %s4713
        %v4715 = vmul.f32 %v4714, %v228
        %v4716 = vmul.f32 %v4714, %v229
        %v4717 = vmul.f32 %v4714, %v230
        %v4718 = vmul.f32 %v4714, %v231
        %4723 = vrot.lane.b32.xlu0 %v4715, 126
        %v4724 = vpop.permute.xlu0 %4723
        %4725 = vrot.lane.b32.xlu0 %v4716, 126
        %v4726 = vpop.permute.xlu0 %4725
        %4727 = vrot.lane.b32.xlu0 %v4717, 126
        %v4728 = vpop.permute.xlu0 %4727
        %4729 = vrot.lane.b32.xlu0 %v4718, 126
        %v4730 = vpop.permute.xlu0 %4729
        %v4735 = vadd.f32 %v4709, %v4724
        %v4736 = vadd.f32 %v4710, %v4726
        %v4737 = vadd.f32 %v4711, %v4728
        %v4738 = vadd.f32 %v4712, %v4730
        %s4739 = sld [smem:[#allocation2 + $0x398]]
        %v4740 = vstv %s4739
        %v4741 = vmul.f32 %v4740, %v232
        %v4742 = vmul.f32 %v4740, %v233
        %v4743 = vmul.f32 %v4740, %v234
        %v4744 = vmul.f32 %v4740, %v235
        %v4745 = vadd.f32 %v4735, %v4741
        %v4746 = vadd.f32 %v4736, %v4742
        %v4747 = vadd.f32 %v4737, %v4743
        %v4748 = vadd.f32 %v4738, %v4744
        %s4749 = sld [smem:[#allocation2 + $0x399]]
        %v4750 = vstv %s4749
        %v4751 = vmul.f32 %v4750, %v232
        %v4752 = vmul.f32 %v4750, %v233
        %v4753 = vmul.f32 %v4750, %v234
        %v4754 = vmul.f32 %v4750, %v235
        %4759 = vrot.lane.b32.xlu0 %v4751, 127
        %v4760 = vpop.permute.xlu0 %4759
        %4761 = vrot.lane.b32.xlu0 %v4752, 127
        %v4762 = vpop.permute.xlu0 %4761
        %4763 = vrot.lane.b32.xlu0 %v4753, 127
        %v4764 = vpop.permute.xlu0 %4763
        %4765 = vrot.lane.b32.xlu0 %v4754, 127
        %v4766 = vpop.permute.xlu0 %4765
        %v4771 = vadd.f32 %v4745, %v4760
        %v4772 = vadd.f32 %v4746, %v4762
        %v4773 = vadd.f32 %v4747, %v4764
        %v4774 = vadd.f32 %v4748, %v4766
        %s4775 = sld [smem:[#allocation2 + $0x39a]]
        %v4776 = vstv %s4775
        %v4777 = vmul.f32 %v4776, %v232
        %v4778 = vmul.f32 %v4776, %v233
        %v4779 = vmul.f32 %v4776, %v234
        %v4780 = vmul.f32 %v4776, %v235
        %4785 = vrot.lane.b32.xlu0 %v4777, 126
        %v4786 = vpop.permute.xlu0 %4785
        %4787 = vrot.lane.b32.xlu0 %v4778, 126
        %v4788 = vpop.permute.xlu0 %4787
        %4789 = vrot.lane.b32.xlu0 %v4779, 126
        %v4790 = vpop.permute.xlu0 %4789
        %4791 = vrot.lane.b32.xlu0 %v4780, 126
        %v4792 = vpop.permute.xlu0 %4791
        %v4797 = vadd.f32 %v4771, %v4786
        %v4798 = vadd.f32 %v4772, %v4788
        %v4799 = vadd.f32 %v4773, %v4790
        %v4800 = vadd.f32 %v4774, %v4792
        %s4801 = sld [smem:[#allocation5 + $0x7]]
        %v4802 = vstv %s4801
        %v4803 = vadd.f32 %v4797, %v4802
        %v4804 = vadd.f32 %v4798, %v4802
        %v4805 = vadd.f32 %v4799, %v4802
        %v4806 = vadd.f32 %v4800, %v4802
        %v4807 = vmax.f32 %v4803, 0.0
        %v4808 = vmax.f32 %v4804, 0.0
        %v4809 = vmax.f32 %v4805, 0.0
        %v4810 = vmax.f32 %v4806, 0.0
        %v4811 = vmin.f32 %v4807, 0.5
        %v4812 = vmin.f32 %v4808, 0.5
        %v4813 = vmin.f32 %v4809, 0.5
        %v4814 = vmin.f32 %v4810, 0.5
        %s4815 = scalar_lea.vmem %s192, 224 [#allocation7]
        %4816 = vst.msk [vmem:[%s4815] sm:$0xff] %vm804, %v4811
        %4817 = vst.msk [vmem:[%s4815 + $0x8] sm:$0xff] %vm804, %v4812
        %4818 = vst.msk [vmem:[%s4815 + $0x10] sm:$0xff] %vm804, %v4813
        %4819 = vst.msk [vmem:[%s4815 + $0x18] sm:$0xff] %vm804, %v4814
        %s4820 = sld [smem:[#allocation2 + $0x400]]
        %v4821 = vstv %s4820
        %v4822 = vmul.f32 %v4821, %v198
        %v4823 = vmul.f32 %v4821, %v199
        %v4824 = vmul.f32 %v4821, %v200
        %v4825 = vmul.f32 %v4821, %v201
        %s4826 = sld [smem:[#allocation2 + $0x401]]
        %v4827 = vstv %s4826
        %v4828 = vmul.f32 %v4827, %v198
        %v4829 = vmul.f32 %v4827, %v199
        %v4830 = vmul.f32 %v4827, %v200
        %v4831 = vmul.f32 %v4827, %v201
        %4836 = vrot.lane.b32.xlu0 %v4828, 127
        %v4837 = vpop.permute.xlu0 %4836
        %4838 = vrot.lane.b32.xlu0 %v4829, 127
        %v4839 = vpop.permute.xlu0 %4838
        %4840 = vrot.lane.b32.xlu0 %v4830, 127
        %v4841 = vpop.permute.xlu0 %4840
        %4842 = vrot.lane.b32.xlu0 %v4831, 127
        %v4843 = vpop.permute.xlu0 %4842
        %v4848 = vadd.f32 %v4822, %v4837
        %v4849 = vadd.f32 %v4823, %v4839
        %v4850 = vadd.f32 %v4824, %v4841
        %v4851 = vadd.f32 %v4825, %v4843
        %s4852 = sld [smem:[#allocation2 + $0x402]]
        %v4853 = vstv %s4852
        %v4854 = vmul.f32 %v4853, %v198
        %v4855 = vmul.f32 %v4853, %v199
        %v4856 = vmul.f32 %v4853, %v200
        %v4857 = vmul.f32 %v4853, %v201
        %4862 = vrot.lane.b32.xlu0 %v4854, 126
        %v4863 = vpop.permute.xlu0 %4862
        %4864 = vrot.lane.b32.xlu0 %v4855, 126
        %v4865 = vpop.permute.xlu0 %4864
        %4866 = vrot.lane.b32.xlu0 %v4856, 126
        %v4867 = vpop.permute.xlu0 %4866
        %4868 = vrot.lane.b32.xlu0 %v4857, 126
        %v4869 = vpop.permute.xlu0 %4868
        %v4874 = vadd.f32 %v4848, %v4863
        %v4875 = vadd.f32 %v4849, %v4865
        %v4876 = vadd.f32 %v4850, %v4867
        %v4877 = vadd.f32 %v4851, %v4869
        %s4878 = sld [smem:[#allocation2 + $0x403]]
        %v4879 = vstv %s4878
        %v4880 = vmul.f32 %v4879, %v202
        %v4881 = vmul.f32 %v4879, %v203
        %v4882 = vmul.f32 %v4879, %v204
        %v4883 = vmul.f32 %v4879, %v205
        %v4884 = vadd.f32 %v4874, %v4880
        %v4885 = vadd.f32 %v4875, %v4881
        %v4886 = vadd.f32 %v4876, %v4882
        %v4887 = vadd.f32 %v4877, %v4883
        %s4888 = sld [smem:[#allocation2 + $0x404]]
        %v4889 = vstv %s4888
        %v4890 = vmul.f32 %v4889, %v202
        %v4891 = vmul.f32 %v4889, %v203
        %v4892 = vmul.f32 %v4889, %v204
        %v4893 = vmul.f32 %v4889, %v205
        %4898 = vrot.lane.b32.xlu0 %v4890, 127
        %v4899 = vpop.permute.xlu0 %4898
        %4900 = vrot.lane.b32.xlu0 %v4891, 127
        %v4901 = vpop.permute.xlu0 %4900
        %4902 = vrot.lane.b32.xlu0 %v4892, 127
        %v4903 = vpop.permute.xlu0 %4902
        %4904 = vrot.lane.b32.xlu0 %v4893, 127
        %v4905 = vpop.permute.xlu0 %4904
        %v4910 = vadd.f32 %v4884, %v4899
        %v4911 = vadd.f32 %v4885, %v4901
        %v4912 = vadd.f32 %v4886, %v4903
        %v4913 = vadd.f32 %v4887, %v4905
        %s4914 = sld [smem:[#allocation2 + $0x405]]
        %v4915 = vstv %s4914
        %v4916 = vmul.f32 %v4915, %v202
        %v4917 = vmul.f32 %v4915, %v203
        %v4918 = vmul.f32 %v4915, %v204
        %v4919 = vmul.f32 %v4915, %v205
        %4924 = vrot.lane.b32.xlu0 %v4916, 126
        %v4925 = vpop.permute.xlu0 %4924
        %4926 = vrot.lane.b32.xlu0 %v4917, 126
        %v4927 = vpop.permute.xlu0 %4926
        %4928 = vrot.lane.b32.xlu0 %v4918, 126
        %v4929 = vpop.permute.xlu0 %4928
        %4930 = vrot.lane.b32.xlu0 %v4919, 126
        %v4931 = vpop.permute.xlu0 %4930
        %v4936 = vadd.f32 %v4910, %v4925
        %v4937 = vadd.f32 %v4911, %v4927
        %v4938 = vadd.f32 %v4912, %v4929
        %v4939 = vadd.f32 %v4913, %v4931
        %s4940 = sld [smem:[#allocation2 + $0x406]]
        %v4941 = vstv %s4940
        %v4942 = vmul.f32 %v4941, %v206
        %v4943 = vmul.f32 %v4941, %v207
        %v4944 = vmul.f32 %v4941, %v208
        %v4945 = vmul.f32 %v4941, %v209
        %v4946 = vadd.f32 %v4936, %v4942
        %v4947 = vadd.f32 %v4937, %v4943
        %v4948 = vadd.f32 %v4938, %v4944
        %v4949 = vadd.f32 %v4939, %v4945
        %s4950 = sld [smem:[#allocation2 + $0x407]]
        %v4951 = vstv %s4950
        %v4952 = vmul.f32 %v4951, %v206
        %v4953 = vmul.f32 %v4951, %v207
        %v4954 = vmul.f32 %v4951, %v208
        %v4955 = vmul.f32 %v4951, %v209
        %4960 = vrot.lane.b32.xlu0 %v4952, 127
        %v4961 = vpop.permute.xlu0 %4960
        %4962 = vrot.lane.b32.xlu0 %v4953, 127
        %v4963 = vpop.permute.xlu0 %4962
        %4964 = vrot.lane.b32.xlu0 %v4954, 127
        %v4965 = vpop.permute.xlu0 %4964
        %4966 = vrot.lane.b32.xlu0 %v4955, 127
        %v4967 = vpop.permute.xlu0 %4966
        %v4972 = vadd.f32 %v4946, %v4961
        %v4973 = vadd.f32 %v4947, %v4963
        %v4974 = vadd.f32 %v4948, %v4965
        %v4975 = vadd.f32 %v4949, %v4967
        %s4976 = sld [smem:[#allocation2 + $0x408]]
        %v4977 = vstv %s4976
        %v4978 = vmul.f32 %v4977, %v206
        %v4979 = vmul.f32 %v4977, %v207
        %v4980 = vmul.f32 %v4977, %v208
        %v4981 = vmul.f32 %v4977, %v209
        %4986 = vrot.lane.b32.xlu0 %v4978, 126
        %v4987 = vpop.permute.xlu0 %4986
        %4988 = vrot.lane.b32.xlu0 %v4979, 126
        %v4989 = vpop.permute.xlu0 %4988
        %4990 = vrot.lane.b32.xlu0 %v4980, 126
        %v4991 = vpop.permute.xlu0 %4990
        %4992 = vrot.lane.b32.xlu0 %v4981, 126
        %v4993 = vpop.permute.xlu0 %4992
        %v4998 = vadd.f32 %v4972, %v4987
        %v4999 = vadd.f32 %v4973, %v4989
        %v5000 = vadd.f32 %v4974, %v4991
        %v5001 = vadd.f32 %v4975, %v4993
        %s5002 = sld [smem:[#allocation2 + $0x409]]
        %v5003 = vstv %s5002
        %v5004 = vmul.f32 %v5003, %v211
        %v5005 = vmul.f32 %v5003, %v212
        %v5006 = vmul.f32 %v5003, %v213
        %v5007 = vmul.f32 %v5003, %v214
        %v5008 = vadd.f32 %v4998, %v5004
        %v5009 = vadd.f32 %v4999, %v5005
        %v5010 = vadd.f32 %v5000, %v5006
        %v5011 = vadd.f32 %v5001, %v5007
        %s5012 = sld [smem:[#allocation2 + $0x40a]]
        %v5013 = vstv %s5012
        %v5014 = vmul.f32 %v5013, %v211
        %v5015 = vmul.f32 %v5013, %v212
        %v5016 = vmul.f32 %v5013, %v213
        %v5017 = vmul.f32 %v5013, %v214
        %5022 = vrot.lane.b32.xlu0 %v5014, 127
        %v5023 = vpop.permute.xlu0 %5022
        %5024 = vrot.lane.b32.xlu0 %v5015, 127
        %v5025 = vpop.permute.xlu0 %5024
        %5026 = vrot.lane.b32.xlu0 %v5016, 127
        %v5027 = vpop.permute.xlu0 %5026
        %5028 = vrot.lane.b32.xlu0 %v5017, 127
        %v5029 = vpop.permute.xlu0 %5028
        %v5034 = vadd.f32 %v5008, %v5023
        %v5035 = vadd.f32 %v5009, %v5025
        %v5036 = vadd.f32 %v5010, %v5027
        %v5037 = vadd.f32 %v5011, %v5029
        %s5038 = sld [smem:[#allocation2 + $0x40b]]
        %v5039 = vstv %s5038
        %v5040 = vmul.f32 %v5039, %v211
        %v5041 = vmul.f32 %v5039, %v212
        %v5042 = vmul.f32 %v5039, %v213
        %v5043 = vmul.f32 %v5039, %v214
        %5048 = vrot.lane.b32.xlu0 %v5040, 126
        %v5049 = vpop.permute.xlu0 %5048
        %5050 = vrot.lane.b32.xlu0 %v5041, 126
        %v5051 = vpop.permute.xlu0 %5050
        %5052 = vrot.lane.b32.xlu0 %v5042, 126
        %v5053 = vpop.permute.xlu0 %5052
        %5054 = vrot.lane.b32.xlu0 %v5043, 126
        %v5055 = vpop.permute.xlu0 %5054
        %v5060 = vadd.f32 %v5034, %v5049
        %v5061 = vadd.f32 %v5035, %v5051
        %v5062 = vadd.f32 %v5036, %v5053
        %v5063 = vadd.f32 %v5037, %v5055
        %s5064 = sld [smem:[#allocation2 + $0x40c]]
        %v5065 = vstv %s5064
        %v5066 = vmul.f32 %v5065, %v215
        %v5067 = vmul.f32 %v5065, %v216
        %v5068 = vmul.f32 %v5065, %v217
        %v5069 = vmul.f32 %v5065, %v218
        %v5070 = vadd.f32 %v5060, %v5066
        %v5071 = vadd.f32 %v5061, %v5067
        %v5072 = vadd.f32 %v5062, %v5068
        %v5073 = vadd.f32 %v5063, %v5069
        %s5074 = sld [smem:[#allocation2 + $0x40d]]
        %v5075 = vstv %s5074
        %v5076 = vmul.f32 %v5075, %v215
        %v5077 = vmul.f32 %v5075, %v216
        %v5078 = vmul.f32 %v5075, %v217
        %v5079 = vmul.f32 %v5075, %v218
        %5084 = vrot.lane.b32.xlu0 %v5076, 127
        %v5085 = vpop.permute.xlu0 %5084
        %5086 = vrot.lane.b32.xlu0 %v5077, 127
        %v5087 = vpop.permute.xlu0 %5086
        %5088 = vrot.lane.b32.xlu0 %v5078, 127
        %v5089 = vpop.permute.xlu0 %5088
        %5090 = vrot.lane.b32.xlu0 %v5079, 127
        %v5091 = vpop.permute.xlu0 %5090
        %v5096 = vadd.f32 %v5070, %v5085
        %v5097 = vadd.f32 %v5071, %v5087
        %v5098 = vadd.f32 %v5072, %v5089
        %v5099 = vadd.f32 %v5073, %v5091
        %s5100 = sld [smem:[#allocation2 + $0x40e]]
        %v5101 = vstv %s5100
        %v5102 = vmul.f32 %v5101, %v215
        %v5103 = vmul.f32 %v5101, %v216
        %v5104 = vmul.f32 %v5101, %v217
        %v5105 = vmul.f32 %v5101, %v218
        %5110 = vrot.lane.b32.xlu0 %v5102, 126
        %v5111 = vpop.permute.xlu0 %5110
        %5112 = vrot.lane.b32.xlu0 %v5103, 126
        %v5113 = vpop.permute.xlu0 %5112
        %5114 = vrot.lane.b32.xlu0 %v5104, 126
        %v5115 = vpop.permute.xlu0 %5114
        %5116 = vrot.lane.b32.xlu0 %v5105, 126
        %v5117 = vpop.permute.xlu0 %5116
        %v5122 = vadd.f32 %v5096, %v5111
        %v5123 = vadd.f32 %v5097, %v5113
        %v5124 = vadd.f32 %v5098, %v5115
        %v5125 = vadd.f32 %v5099, %v5117
        %s5126 = sld [smem:[#allocation2 + $0x40f]]
        %v5127 = vstv %s5126
        %v5128 = vmul.f32 %v5127, %v219
        %v5129 = vmul.f32 %v5127, %v220
        %v5130 = vmul.f32 %v5127, %v221
        %v5131 = vmul.f32 %v5127, %v222
        %v5132 = vadd.f32 %v5122, %v5128
        %v5133 = vadd.f32 %v5123, %v5129
        %v5134 = vadd.f32 %v5124, %v5130
        %v5135 = vadd.f32 %v5125, %v5131
        %s5136 = sld [smem:[#allocation2 + $0x410]]
        %v5137 = vstv %s5136
        %v5138 = vmul.f32 %v5137, %v219
        %v5139 = vmul.f32 %v5137, %v220
        %v5140 = vmul.f32 %v5137, %v221
        %v5141 = vmul.f32 %v5137, %v222
        %5146 = vrot.lane.b32.xlu0 %v5138, 127
        %v5147 = vpop.permute.xlu0 %5146
        %5148 = vrot.lane.b32.xlu0 %v5139, 127
        %v5149 = vpop.permute.xlu0 %5148
        %5150 = vrot.lane.b32.xlu0 %v5140, 127
        %v5151 = vpop.permute.xlu0 %5150
        %5152 = vrot.lane.b32.xlu0 %v5141, 127
        %v5153 = vpop.permute.xlu0 %5152
        %v5158 = vadd.f32 %v5132, %v5147
        %v5159 = vadd.f32 %v5133, %v5149
        %v5160 = vadd.f32 %v5134, %v5151
        %v5161 = vadd.f32 %v5135, %v5153
        %s5162 = sld [smem:[#allocation2 + $0x411]]
        %v5163 = vstv %s5162
        %v5164 = vmul.f32 %v5163, %v219
        %v5165 = vmul.f32 %v5163, %v220
        %v5166 = vmul.f32 %v5163, %v221
        %v5167 = vmul.f32 %v5163, %v222
        %5172 = vrot.lane.b32.xlu0 %v5164, 126
        %v5173 = vpop.permute.xlu0 %5172
        %5174 = vrot.lane.b32.xlu0 %v5165, 126
        %v5175 = vpop.permute.xlu0 %5174
        %5176 = vrot.lane.b32.xlu0 %v5166, 126
        %v5177 = vpop.permute.xlu0 %5176
        %5178 = vrot.lane.b32.xlu0 %v5167, 126
        %v5179 = vpop.permute.xlu0 %5178
        %v5184 = vadd.f32 %v5158, %v5173
        %v5185 = vadd.f32 %v5159, %v5175
        %v5186 = vadd.f32 %v5160, %v5177
        %v5187 = vadd.f32 %v5161, %v5179
        %s5188 = sld [smem:[#allocation2 + $0x412]]
        %v5189 = vstv %s5188
        %v5190 = vmul.f32 %v5189, %v224
        %v5191 = vmul.f32 %v5189, %v225
        %v5192 = vmul.f32 %v5189, %v226
        %v5193 = vmul.f32 %v5189, %v227
        %v5194 = vadd.f32 %v5184, %v5190
        %v5195 = vadd.f32 %v5185, %v5191
        %v5196 = vadd.f32 %v5186, %v5192
        %v5197 = vadd.f32 %v5187, %v5193
        %s5198 = sld [smem:[#allocation2 + $0x413]]
        %v5199 = vstv %s5198
        %v5200 = vmul.f32 %v5199, %v224
        %v5201 = vmul.f32 %v5199, %v225
        %v5202 = vmul.f32 %v5199, %v226
        %v5203 = vmul.f32 %v5199, %v227
        %5208 = vrot.lane.b32.xlu0 %v5200, 127
        %v5209 = vpop.permute.xlu0 %5208
        %5210 = vrot.lane.b32.xlu0 %v5201, 127
        %v5211 = vpop.permute.xlu0 %5210
        %5212 = vrot.lane.b32.xlu0 %v5202, 127
        %v5213 = vpop.permute.xlu0 %5212
        %5214 = vrot.lane.b32.xlu0 %v5203, 127
        %v5215 = vpop.permute.xlu0 %5214
        %v5220 = vadd.f32 %v5194, %v5209
        %v5221 = vadd.f32 %v5195, %v5211
        %v5222 = vadd.f32 %v5196, %v5213
        %v5223 = vadd.f32 %v5197, %v5215
        %s5224 = sld [smem:[#allocation2 + $0x414]]
        %v5225 = vstv %s5224
        %v5226 = vmul.f32 %v5225, %v224
        %v5227 = vmul.f32 %v5225, %v225
        %v5228 = vmul.f32 %v5225, %v226
        %v5229 = vmul.f32 %v5225, %v227
        %5234 = vrot.lane.b32.xlu0 %v5226, 126
        %v5235 = vpop.permute.xlu0 %5234
        %5236 = vrot.lane.b32.xlu0 %v5227, 126
        %v5237 = vpop.permute.xlu0 %5236
        %5238 = vrot.lane.b32.xlu0 %v5228, 126
        %v5239 = vpop.permute.xlu0 %5238
        %5240 = vrot.lane.b32.xlu0 %v5229, 126
        %v5241 = vpop.permute.xlu0 %5240
        %v5246 = vadd.f32 %v5220, %v5235
        %v5247 = vadd.f32 %v5221, %v5237
        %v5248 = vadd.f32 %v5222, %v5239
        %v5249 = vadd.f32 %v5223, %v5241
        %s5250 = sld [smem:[#allocation2 + $0x415]]
        %v5251 = vstv %s5250
        %v5252 = vmul.f32 %v5251, %v228
        %v5253 = vmul.f32 %v5251, %v229
        %v5254 = vmul.f32 %v5251, %v230
        %v5255 = vmul.f32 %v5251, %v231
        %v5256 = vadd.f32 %v5246, %v5252
        %v5257 = vadd.f32 %v5247, %v5253
        %v5258 = vadd.f32 %v5248, %v5254
        %v5259 = vadd.f32 %v5249, %v5255
        %s5260 = sld [smem:[#allocation2 + $0x416]]
        %v5261 = vstv %s5260
        %v5262 = vmul.f32 %v5261, %v228
        %v5263 = vmul.f32 %v5261, %v229
        %v5264 = vmul.f32 %v5261, %v230
        %v5265 = vmul.f32 %v5261, %v231
        %5270 = vrot.lane.b32.xlu0 %v5262, 127
        %v5271 = vpop.permute.xlu0 %5270
        %5272 = vrot.lane.b32.xlu0 %v5263, 127
        %v5273 = vpop.permute.xlu0 %5272
        %5274 = vrot.lane.b32.xlu0 %v5264, 127
        %v5275 = vpop.permute.xlu0 %5274
        %5276 = vrot.lane.b32.xlu0 %v5265, 127
        %v5277 = vpop.permute.xlu0 %5276
        %v5282 = vadd.f32 %v5256, %v5271
        %v5283 = vadd.f32 %v5257, %v5273
        %v5284 = vadd.f32 %v5258, %v5275
        %v5285 = vadd.f32 %v5259, %v5277
        %s5286 = sld [smem:[#allocation2 + $0x417]]
        %v5287 = vstv %s5286
        %v5288 = vmul.f32 %v5287, %v228
        %v5289 = vmul.f32 %v5287, %v229
        %v5290 = vmul.f32 %v5287, %v230
        %v5291 = vmul.f32 %v5287, %v231
        %5296 = vrot.lane.b32.xlu0 %v5288, 126
        %v5297 = vpop.permute.xlu0 %5296
        %5298 = vrot.lane.b32.xlu0 %v5289, 126
        %v5299 = vpop.permute.xlu0 %5298
        %5300 = vrot.lane.b32.xlu0 %v5290, 126
        %v5301 = vpop.permute.xlu0 %5300
        %5302 = vrot.lane.b32.xlu0 %v5291, 126
        %v5303 = vpop.permute.xlu0 %5302
        %v5308 = vadd.f32 %v5282, %v5297
        %v5309 = vadd.f32 %v5283, %v5299
        %v5310 = vadd.f32 %v5284, %v5301
        %v5311 = vadd.f32 %v5285, %v5303
        %s5312 = sld [smem:[#allocation2 + $0x418]]
        %v5313 = vstv %s5312
        %v5314 = vmul.f32 %v5313, %v232
        %v5315 = vmul.f32 %v5313, %v233
        %v5316 = vmul.f32 %v5313, %v234
        %v5317 = vmul.f32 %v5313, %v235
        %v5318 = vadd.f32 %v5308, %v5314
        %v5319 = vadd.f32 %v5309, %v5315
        %v5320 = vadd.f32 %v5310, %v5316
        %v5321 = vadd.f32 %v5311, %v5317
        %s5322 = sld [smem:[#allocation2 + $0x419]]
        %v5323 = vstv %s5322
        %v5324 = vmul.f32 %v5323, %v232
        %v5325 = vmul.f32 %v5323, %v233
        %v5326 = vmul.f32 %v5323, %v234
        %v5327 = vmul.f32 %v5323, %v235
        %5332 = vrot.lane.b32.xlu0 %v5324, 127
        %v5333 = vpop.permute.xlu0 %5332
        %5334 = vrot.lane.b32.xlu0 %v5325, 127
        %v5335 = vpop.permute.xlu0 %5334
        %5336 = vrot.lane.b32.xlu0 %v5326, 127
        %v5337 = vpop.permute.xlu0 %5336
        %5338 = vrot.lane.b32.xlu0 %v5327, 127
        %v5339 = vpop.permute.xlu0 %5338
        %v5344 = vadd.f32 %v5318, %v5333
        %v5345 = vadd.f32 %v5319, %v5335
        %v5346 = vadd.f32 %v5320, %v5337
        %v5347 = vadd.f32 %v5321, %v5339
        %s5348 = sld [smem:[#allocation2 + $0x41a]]
        %v5349 = vstv %s5348
        %v5350 = vmul.f32 %v5349, %v232
        %v5351 = vmul.f32 %v5349, %v233
        %v5352 = vmul.f32 %v5349, %v234
        %v5353 = vmul.f32 %v5349, %v235
        %5358 = vrot.lane.b32.xlu0 %v5350, 126
        %v5359 = vpop.permute.xlu0 %5358
        %5360 = vrot.lane.b32.xlu0 %v5351, 126
        %v5361 = vpop.permute.xlu0 %5360
        %5362 = vrot.lane.b32.xlu0 %v5352, 126
        %v5363 = vpop.permute.xlu0 %5362
        %5364 = vrot.lane.b32.xlu0 %v5353, 126
        %v5365 = vpop.permute.xlu0 %5364
        %v5370 = vadd.f32 %v5344, %v5359
        %v5371 = vadd.f32 %v5345, %v5361
        %v5372 = vadd.f32 %v5346, %v5363
        %v5373 = vadd.f32 %v5347, %v5365
        %s5374 = sld [smem:[#allocation5 + $0x8]]
        %v5375 = vstv %s5374
        %v5376 = vadd.f32 %v5370, %v5375
        %v5377 = vadd.f32 %v5371, %v5375
        %v5378 = vadd.f32 %v5372, %v5375
        %v5379 = vadd.f32 %v5373, %v5375
        %v5380 = vmax.f32 %v5376, 0.0
        %v5381 = vmax.f32 %v5377, 0.0
        %v5382 = vmax.f32 %v5378, 0.0
        %v5383 = vmax.f32 %v5379, 0.0
        %v5384 = vmin.f32 %v5380, 0.5
        %v5385 = vmin.f32 %v5381, 0.5
        %v5386 = vmin.f32 %v5382, 0.5
        %v5387 = vmin.f32 %v5383, 0.5
        %s5388 = scalar_lea.vmem %s192, 256 [#allocation7]
        %5389 = vst.msk [vmem:[%s5388] sm:$0xff] %vm804, %v5384
        %5390 = vst.msk [vmem:[%s5388 + $0x8] sm:$0xff] %vm804, %v5385
        %5391 = vst.msk [vmem:[%s5388 + $0x10] sm:$0xff] %vm804, %v5386
        %5392 = vst.msk [vmem:[%s5388 + $0x18] sm:$0xff] %vm804, %v5387
        %s5393 = sld [smem:[#allocation2 + $0x480]]
        %v5394 = vstv %s5393
        %v5395 = vmul.f32 %v5394, %v198
        %v5396 = vmul.f32 %v5394, %v199
        %v5397 = vmul.f32 %v5394, %v200
        %v5398 = vmul.f32 %v5394, %v201
        %s5399 = sld [smem:[#allocation2 + $0x481]]
        %v5400 = vstv %s5399
        %v5401 = vmul.f32 %v5400, %v198
        %v5402 = vmul.f32 %v5400, %v199
        %v5403 = vmul.f32 %v5400, %v200
        %v5404 = vmul.f32 %v5400, %v201
        %5409 = vrot.lane.b32.xlu0 %v5401, 127
        %v5410 = vpop.permute.xlu0 %5409
        %5411 = vrot.lane.b32.xlu0 %v5402, 127
        %v5412 = vpop.permute.xlu0 %5411
        %5413 = vrot.lane.b32.xlu0 %v5403, 127
        %v5414 = vpop.permute.xlu0 %5413
        %5415 = vrot.lane.b32.xlu0 %v5404, 127
        %v5416 = vpop.permute.xlu0 %5415
        %v5421 = vadd.f32 %v5395, %v5410
        %v5422 = vadd.f32 %v5396, %v5412
        %v5423 = vadd.f32 %v5397, %v5414
        %v5424 = vadd.f32 %v5398, %v5416
        %s5425 = sld [smem:[#allocation2 + $0x482]]
        %v5426 = vstv %s5425
        %v5427 = vmul.f32 %v5426, %v198
        %v5428 = vmul.f32 %v5426, %v199
        %v5429 = vmul.f32 %v5426, %v200
        %v5430 = vmul.f32 %v5426, %v201
        %5435 = vrot.lane.b32.xlu0 %v5427, 126
        %v5436 = vpop.permute.xlu0 %5435
        %5437 = vrot.lane.b32.xlu0 %v5428, 126
        %v5438 = vpop.permute.xlu0 %5437
        %5439 = vrot.lane.b32.xlu0 %v5429, 126
        %v5440 = vpop.permute.xlu0 %5439
        %5441 = vrot.lane.b32.xlu0 %v5430, 126
        %v5442 = vpop.permute.xlu0 %5441
        %v5447 = vadd.f32 %v5421, %v5436
        %v5448 = vadd.f32 %v5422, %v5438
        %v5449 = vadd.f32 %v5423, %v5440
        %v5450 = vadd.f32 %v5424, %v5442
        %s5451 = sld [smem:[#allocation2 + $0x483]]
        %v5452 = vstv %s5451
        %v5453 = vmul.f32 %v5452, %v202
        %v5454 = vmul.f32 %v5452, %v203
        %v5455 = vmul.f32 %v5452, %v204
        %v5456 = vmul.f32 %v5452, %v205
        %v5457 = vadd.f32 %v5447, %v5453
        %v5458 = vadd.f32 %v5448, %v5454
        %v5459 = vadd.f32 %v5449, %v5455
        %v5460 = vadd.f32 %v5450, %v5456
        %s5461 = sld [smem:[#allocation2 + $0x484]]
        %v5462 = vstv %s5461
        %v5463 = vmul.f32 %v5462, %v202
        %v5464 = vmul.f32 %v5462, %v203
        %v5465 = vmul.f32 %v5462, %v204
        %v5466 = vmul.f32 %v5462, %v205
        %5471 = vrot.lane.b32.xlu0 %v5463, 127
        %v5472 = vpop.permute.xlu0 %5471
        %5473 = vrot.lane.b32.xlu0 %v5464, 127
        %v5474 = vpop.permute.xlu0 %5473
        %5475 = vrot.lane.b32.xlu0 %v5465, 127
        %v5476 = vpop.permute.xlu0 %5475
        %5477 = vrot.lane.b32.xlu0 %v5466, 127
        %v5478 = vpop.permute.xlu0 %5477
        %v5483 = vadd.f32 %v5457, %v5472
        %v5484 = vadd.f32 %v5458, %v5474
        %v5485 = vadd.f32 %v5459, %v5476
        %v5486 = vadd.f32 %v5460, %v5478
        %s5487 = sld [smem:[#allocation2 + $0x485]]
        %v5488 = vstv %s5487
        %v5489 = vmul.f32 %v5488, %v202
        %v5490 = vmul.f32 %v5488, %v203
        %v5491 = vmul.f32 %v5488, %v204
        %v5492 = vmul.f32 %v5488, %v205
        %5497 = vrot.lane.b32.xlu0 %v5489, 126
        %v5498 = vpop.permute.xlu0 %5497
        %5499 = vrot.lane.b32.xlu0 %v5490, 126
        %v5500 = vpop.permute.xlu0 %5499
        %5501 = vrot.lane.b32.xlu0 %v5491, 126
        %v5502 = vpop.permute.xlu0 %5501
        %5503 = vrot.lane.b32.xlu0 %v5492, 126
        %v5504 = vpop.permute.xlu0 %5503
        %v5509 = vadd.f32 %v5483, %v5498
        %v5510 = vadd.f32 %v5484, %v5500
        %v5511 = vadd.f32 %v5485, %v5502
        %v5512 = vadd.f32 %v5486, %v5504
        %s5513 = sld [smem:[#allocation2 + $0x486]]
        %v5514 = vstv %s5513
        %v5515 = vmul.f32 %v5514, %v206
        %v5516 = vmul.f32 %v5514, %v207
        %v5517 = vmul.f32 %v5514, %v208
        %v5518 = vmul.f32 %v5514, %v209
        %v5519 = vadd.f32 %v5509, %v5515
        %v5520 = vadd.f32 %v5510, %v5516
        %v5521 = vadd.f32 %v5511, %v5517
        %v5522 = vadd.f32 %v5512, %v5518
        %s5523 = sld [smem:[#allocation2 + $0x487]]
        %v5524 = vstv %s5523
        %v5525 = vmul.f32 %v5524, %v206
        %v5526 = vmul.f32 %v5524, %v207
        %v5527 = vmul.f32 %v5524, %v208
        %v5528 = vmul.f32 %v5524, %v209
        %5533 = vrot.lane.b32.xlu0 %v5525, 127
        %v5534 = vpop.permute.xlu0 %5533
        %5535 = vrot.lane.b32.xlu0 %v5526, 127
        %v5536 = vpop.permute.xlu0 %5535
        %5537 = vrot.lane.b32.xlu0 %v5527, 127
        %v5538 = vpop.permute.xlu0 %5537
        %5539 = vrot.lane.b32.xlu0 %v5528, 127
        %v5540 = vpop.permute.xlu0 %5539
        %v5545 = vadd.f32 %v5519, %v5534
        %v5546 = vadd.f32 %v5520, %v5536
        %v5547 = vadd.f32 %v5521, %v5538
        %v5548 = vadd.f32 %v5522, %v5540
        %s5549 = sld [smem:[#allocation2 + $0x488]]
        %v5550 = vstv %s5549
        %v5551 = vmul.f32 %v5550, %v206
        %v5552 = vmul.f32 %v5550, %v207
        %v5553 = vmul.f32 %v5550, %v208
        %v5554 = vmul.f32 %v5550, %v209
        %5559 = vrot.lane.b32.xlu0 %v5551, 126
        %v5560 = vpop.permute.xlu0 %5559
        %5561 = vrot.lane.b32.xlu0 %v5552, 126
        %v5562 = vpop.permute.xlu0 %5561
        %5563 = vrot.lane.b32.xlu0 %v5553, 126
        %v5564 = vpop.permute.xlu0 %5563
        %5565 = vrot.lane.b32.xlu0 %v5554, 126
        %v5566 = vpop.permute.xlu0 %5565
        %v5571 = vadd.f32 %v5545, %v5560
        %v5572 = vadd.f32 %v5546, %v5562
        %v5573 = vadd.f32 %v5547, %v5564
        %v5574 = vadd.f32 %v5548, %v5566
        %s5575 = sld [smem:[#allocation2 + $0x489]]
        %v5576 = vstv %s5575
        %v5577 = vmul.f32 %v5576, %v211
        %v5578 = vmul.f32 %v5576, %v212
        %v5579 = vmul.f32 %v5576, %v213
        %v5580 = vmul.f32 %v5576, %v214
        %v5581 = vadd.f32 %v5571, %v5577
        %v5582 = vadd.f32 %v5572, %v5578
        %v5583 = vadd.f32 %v5573, %v5579
        %v5584 = vadd.f32 %v5574, %v5580
        %s5585 = sld [smem:[#allocation2 + $0x48a]]
        %v5586 = vstv %s5585
        %v5587 = vmul.f32 %v5586, %v211
        %v5588 = vmul.f32 %v5586, %v212
        %v5589 = vmul.f32 %v5586, %v213
        %v5590 = vmul.f32 %v5586, %v214
        %5595 = vrot.lane.b32.xlu0 %v5587, 127
        %v5596 = vpop.permute.xlu0 %5595
        %5597 = vrot.lane.b32.xlu0 %v5588, 127
        %v5598 = vpop.permute.xlu0 %5597
        %5599 = vrot.lane.b32.xlu0 %v5589, 127
        %v5600 = vpop.permute.xlu0 %5599
        %5601 = vrot.lane.b32.xlu0 %v5590, 127
        %v5602 = vpop.permute.xlu0 %5601
        %v5607 = vadd.f32 %v5581, %v5596
        %v5608 = vadd.f32 %v5582, %v5598
        %v5609 = vadd.f32 %v5583, %v5600
        %v5610 = vadd.f32 %v5584, %v5602
        %s5611 = sld [smem:[#allocation2 + $0x48b]]
        %v5612 = vstv %s5611
        %v5613 = vmul.f32 %v5612, %v211
        %v5614 = vmul.f32 %v5612, %v212
        %v5615 = vmul.f32 %v5612, %v213
        %v5616 = vmul.f32 %v5612, %v214
        %5621 = vrot.lane.b32.xlu0 %v5613, 126
        %v5622 = vpop.permute.xlu0 %5621
        %5623 = vrot.lane.b32.xlu0 %v5614, 126
        %v5624 = vpop.permute.xlu0 %5623
        %5625 = vrot.lane.b32.xlu0 %v5615, 126
        %v5626 = vpop.permute.xlu0 %5625
        %5627 = vrot.lane.b32.xlu0 %v5616, 126
        %v5628 = vpop.permute.xlu0 %5627
        %v5633 = vadd.f32 %v5607, %v5622
        %v5634 = vadd.f32 %v5608, %v5624
        %v5635 = vadd.f32 %v5609, %v5626
        %v5636 = vadd.f32 %v5610, %v5628
        %s5637 = sld [smem:[#allocation2 + $0x48c]]
        %v5638 = vstv %s5637
        %v5639 = vmul.f32 %v5638, %v215
        %v5640 = vmul.f32 %v5638, %v216
        %v5641 = vmul.f32 %v5638, %v217
        %v5642 = vmul.f32 %v5638, %v218
        %v5643 = vadd.f32 %v5633, %v5639
        %v5644 = vadd.f32 %v5634, %v5640
        %v5645 = vadd.f32 %v5635, %v5641
        %v5646 = vadd.f32 %v5636, %v5642
        %s5647 = sld [smem:[#allocation2 + $0x48d]]
        %v5648 = vstv %s5647
        %v5649 = vmul.f32 %v5648, %v215
        %v5650 = vmul.f32 %v5648, %v216
        %v5651 = vmul.f32 %v5648, %v217
        %v5652 = vmul.f32 %v5648, %v218
        %5657 = vrot.lane.b32.xlu0 %v5649, 127
        %v5658 = vpop.permute.xlu0 %5657
        %5659 = vrot.lane.b32.xlu0 %v5650, 127
        %v5660 = vpop.permute.xlu0 %5659
        %5661 = vrot.lane.b32.xlu0 %v5651, 127
        %v5662 = vpop.permute.xlu0 %5661
        %5663 = vrot.lane.b32.xlu0 %v5652, 127
        %v5664 = vpop.permute.xlu0 %5663
        %v5669 = vadd.f32 %v5643, %v5658
        %v5670 = vadd.f32 %v5644, %v5660
        %v5671 = vadd.f32 %v5645, %v5662
        %v5672 = vadd.f32 %v5646, %v5664
        %s5673 = sld [smem:[#allocation2 + $0x48e]]
        %v5674 = vstv %s5673
        %v5675 = vmul.f32 %v5674, %v215
        %v5676 = vmul.f32 %v5674, %v216
        %v5677 = vmul.f32 %v5674, %v217
        %v5678 = vmul.f32 %v5674, %v218
        %5683 = vrot.lane.b32.xlu0 %v5675, 126
        %v5684 = vpop.permute.xlu0 %5683
        %5685 = vrot.lane.b32.xlu0 %v5676, 126
        %v5686 = vpop.permute.xlu0 %5685
        %5687 = vrot.lane.b32.xlu0 %v5677, 126
        %v5688 = vpop.permute.xlu0 %5687
        %5689 = vrot.lane.b32.xlu0 %v5678, 126
        %v5690 = vpop.permute.xlu0 %5689
        %v5695 = vadd.f32 %v5669, %v5684
        %v5696 = vadd.f32 %v5670, %v5686
        %v5697 = vadd.f32 %v5671, %v5688
        %v5698 = vadd.f32 %v5672, %v5690
        %s5699 = sld [smem:[#allocation2 + $0x48f]]
        %v5700 = vstv %s5699
        %v5701 = vmul.f32 %v5700, %v219
        %v5702 = vmul.f32 %v5700, %v220
        %v5703 = vmul.f32 %v5700, %v221
        %v5704 = vmul.f32 %v5700, %v222
        %v5705 = vadd.f32 %v5695, %v5701
        %v5706 = vadd.f32 %v5696, %v5702
        %v5707 = vadd.f32 %v5697, %v5703
        %v5708 = vadd.f32 %v5698, %v5704
        %s5709 = sld [smem:[#allocation2 + $0x490]]
        %v5710 = vstv %s5709
        %v5711 = vmul.f32 %v5710, %v219
        %v5712 = vmul.f32 %v5710, %v220
        %v5713 = vmul.f32 %v5710, %v221
        %v5714 = vmul.f32 %v5710, %v222
        %5719 = vrot.lane.b32.xlu0 %v5711, 127
        %v5720 = vpop.permute.xlu0 %5719
        %5721 = vrot.lane.b32.xlu0 %v5712, 127
        %v5722 = vpop.permute.xlu0 %5721
        %5723 = vrot.lane.b32.xlu0 %v5713, 127
        %v5724 = vpop.permute.xlu0 %5723
        %5725 = vrot.lane.b32.xlu0 %v5714, 127
        %v5726 = vpop.permute.xlu0 %5725
        %v5731 = vadd.f32 %v5705, %v5720
        %v5732 = vadd.f32 %v5706, %v5722
        %v5733 = vadd.f32 %v5707, %v5724
        %v5734 = vadd.f32 %v5708, %v5726
        %s5735 = sld [smem:[#allocation2 + $0x491]]
        %v5736 = vstv %s5735
        %v5737 = vmul.f32 %v5736, %v219
        %v5738 = vmul.f32 %v5736, %v220
        %v5739 = vmul.f32 %v5736, %v221
        %v5740 = vmul.f32 %v5736, %v222
        %5745 = vrot.lane.b32.xlu0 %v5737, 126
        %v5746 = vpop.permute.xlu0 %5745
        %5747 = vrot.lane.b32.xlu0 %v5738, 126
        %v5748 = vpop.permute.xlu0 %5747
        %5749 = vrot.lane.b32.xlu0 %v5739, 126
        %v5750 = vpop.permute.xlu0 %5749
        %5751 = vrot.lane.b32.xlu0 %v5740, 126
        %v5752 = vpop.permute.xlu0 %5751
        %v5757 = vadd.f32 %v5731, %v5746
        %v5758 = vadd.f32 %v5732, %v5748
        %v5759 = vadd.f32 %v5733, %v5750
        %v5760 = vadd.f32 %v5734, %v5752
        %s5761 = sld [smem:[#allocation2 + $0x492]]
        %v5762 = vstv %s5761
        %v5763 = vmul.f32 %v5762, %v224
        %v5764 = vmul.f32 %v5762, %v225
        %v5765 = vmul.f32 %v5762, %v226
        %v5766 = vmul.f32 %v5762, %v227
        %v5767 = vadd.f32 %v5757, %v5763
        %v5768 = vadd.f32 %v5758, %v5764
        %v5769 = vadd.f32 %v5759, %v5765
        %v5770 = vadd.f32 %v5760, %v5766
        %s5771 = sld [smem:[#allocation2 + $0x493]]
        %v5772 = vstv %s5771
        %v5773 = vmul.f32 %v5772, %v224
        %v5774 = vmul.f32 %v5772, %v225
        %v5775 = vmul.f32 %v5772, %v226
        %v5776 = vmul.f32 %v5772, %v227
        %5781 = vrot.lane.b32.xlu0 %v5773, 127
        %v5782 = vpop.permute.xlu0 %5781
        %5783 = vrot.lane.b32.xlu0 %v5774, 127
        %v5784 = vpop.permute.xlu0 %5783
        %5785 = vrot.lane.b32.xlu0 %v5775, 127
        %v5786 = vpop.permute.xlu0 %5785
        %5787 = vrot.lane.b32.xlu0 %v5776, 127
        %v5788 = vpop.permute.xlu0 %5787
        %v5793 = vadd.f32 %v5767, %v5782
        %v5794 = vadd.f32 %v5768, %v5784
        %v5795 = vadd.f32 %v5769, %v5786
        %v5796 = vadd.f32 %v5770, %v5788
        %s5797 = sld [smem:[#allocation2 + $0x494]]
        %v5798 = vstv %s5797
        %v5799 = vmul.f32 %v5798, %v224
        %v5800 = vmul.f32 %v5798, %v225
        %v5801 = vmul.f32 %v5798, %v226
        %v5802 = vmul.f32 %v5798, %v227
        %5807 = vrot.lane.b32.xlu0 %v5799, 126
        %v5808 = vpop.permute.xlu0 %5807
        %5809 = vrot.lane.b32.xlu0 %v5800, 126
        %v5810 = vpop.permute.xlu0 %5809
        %5811 = vrot.lane.b32.xlu0 %v5801, 126
        %v5812 = vpop.permute.xlu0 %5811
        %5813 = vrot.lane.b32.xlu0 %v5802, 126
        %v5814 = vpop.permute.xlu0 %5813
        %v5819 = vadd.f32 %v5793, %v5808
        %v5820 = vadd.f32 %v5794, %v5810
        %v5821 = vadd.f32 %v5795, %v5812
        %v5822 = vadd.f32 %v5796, %v5814
        %s5823 = sld [smem:[#allocation2 + $0x495]]
        %v5824 = vstv %s5823
        %v5825 = vmul.f32 %v5824, %v228
        %v5826 = vmul.f32 %v5824, %v229
        %v5827 = vmul.f32 %v5824, %v230
        %v5828 = vmul.f32 %v5824, %v231
        %v5829 = vadd.f32 %v5819, %v5825
        %v5830 = vadd.f32 %v5820, %v5826
        %v5831 = vadd.f32 %v5821, %v5827
        %v5832 = vadd.f32 %v5822, %v5828
        %s5833 = sld [smem:[#allocation2 + $0x496]]
        %v5834 = vstv %s5833
        %v5835 = vmul.f32 %v5834, %v228
        %v5836 = vmul.f32 %v5834, %v229
        %v5837 = vmul.f32 %v5834, %v230
        %v5838 = vmul.f32 %v5834, %v231
        %5843 = vrot.lane.b32.xlu0 %v5835, 127
        %v5844 = vpop.permute.xlu0 %5843
        %5845 = vrot.lane.b32.xlu0 %v5836, 127
        %v5846 = vpop.permute.xlu0 %5845
        %5847 = vrot.lane.b32.xlu0 %v5837, 127
        %v5848 = vpop.permute.xlu0 %5847
        %5849 = vrot.lane.b32.xlu0 %v5838, 127
        %v5850 = vpop.permute.xlu0 %5849
        %v5855 = vadd.f32 %v5829, %v5844
        %v5856 = vadd.f32 %v5830, %v5846
        %v5857 = vadd.f32 %v5831, %v5848
        %v5858 = vadd.f32 %v5832, %v5850
        %s5859 = sld [smem:[#allocation2 + $0x497]]
        %v5860 = vstv %s5859
        %v5861 = vmul.f32 %v5860, %v228
        %v5862 = vmul.f32 %v5860, %v229
        %v5863 = vmul.f32 %v5860, %v230
        %v5864 = vmul.f32 %v5860, %v231
        %5869 = vrot.lane.b32.xlu0 %v5861, 126
        %v5870 = vpop.permute.xlu0 %5869
        %5871 = vrot.lane.b32.xlu0 %v5862, 126
        %v5872 = vpop.permute.xlu0 %5871
        %5873 = vrot.lane.b32.xlu0 %v5863, 126
        %v5874 = vpop.permute.xlu0 %5873
        %5875 = vrot.lane.b32.xlu0 %v5864, 126
        %v5876 = vpop.permute.xlu0 %5875
        %v5881 = vadd.f32 %v5855, %v5870
        %v5882 = vadd.f32 %v5856, %v5872
        %v5883 = vadd.f32 %v5857, %v5874
        %v5884 = vadd.f32 %v5858, %v5876
        %s5885 = sld [smem:[#allocation2 + $0x498]]
        %v5886 = vstv %s5885
        %v5887 = vmul.f32 %v5886, %v232
        %v5888 = vmul.f32 %v5886, %v233
        %v5889 = vmul.f32 %v5886, %v234
        %v5890 = vmul.f32 %v5886, %v235
        %v5891 = vadd.f32 %v5881, %v5887
        %v5892 = vadd.f32 %v5882, %v5888
        %v5893 = vadd.f32 %v5883, %v5889
        %v5894 = vadd.f32 %v5884, %v5890
        %s5895 = sld [smem:[#allocation2 + $0x499]]
        %v5896 = vstv %s5895
        %v5897 = vmul.f32 %v5896, %v232
        %v5898 = vmul.f32 %v5896, %v233
        %v5899 = vmul.f32 %v5896, %v234
        %v5900 = vmul.f32 %v5896, %v235
        %5905 = vrot.lane.b32.xlu0 %v5897, 127
        %v5906 = vpop.permute.xlu0 %5905
        %5907 = vrot.lane.b32.xlu0 %v5898, 127
        %v5908 = vpop.permute.xlu0 %5907
        %5909 = vrot.lane.b32.xlu0 %v5899, 127
        %v5910 = vpop.permute.xlu0 %5909
        %5911 = vrot.lane.b32.xlu0 %v5900, 127
        %v5912 = vpop.permute.xlu0 %5911
        %v5917 = vadd.f32 %v5891, %v5906
        %v5918 = vadd.f32 %v5892, %v5908
        %v5919 = vadd.f32 %v5893, %v5910
        %v5920 = vadd.f32 %v5894, %v5912
        %s5921 = sld [smem:[#allocation2 + $0x49a]]
        %v5922 = vstv %s5921
        %v5923 = vmul.f32 %v5922, %v232
        %v5924 = vmul.f32 %v5922, %v233
        %v5925 = vmul.f32 %v5922, %v234
        %v5926 = vmul.f32 %v5922, %v235
        %5931 = vrot.lane.b32.xlu0 %v5923, 126
        %v5932 = vpop.permute.xlu0 %5931
        %5933 = vrot.lane.b32.xlu0 %v5924, 126
        %v5934 = vpop.permute.xlu0 %5933
        %5935 = vrot.lane.b32.xlu0 %v5925, 126
        %v5936 = vpop.permute.xlu0 %5935
        %5937 = vrot.lane.b32.xlu0 %v5926, 126
        %v5938 = vpop.permute.xlu0 %5937
        %v5943 = vadd.f32 %v5917, %v5932
        %v5944 = vadd.f32 %v5918, %v5934
        %v5945 = vadd.f32 %v5919, %v5936
        %v5946 = vadd.f32 %v5920, %v5938
        %s5947 = sld [smem:[#allocation5 + $0x9]]
        %v5948 = vstv %s5947
        %v5949 = vadd.f32 %v5943, %v5948
        %v5950 = vadd.f32 %v5944, %v5948
        %v5951 = vadd.f32 %v5945, %v5948
        %v5952 = vadd.f32 %v5946, %v5948
        %v5953 = vmax.f32 %v5949, 0.0
        %v5954 = vmax.f32 %v5950, 0.0
        %v5955 = vmax.f32 %v5951, 0.0
        %v5956 = vmax.f32 %v5952, 0.0
        %v5957 = vmin.f32 %v5953, 0.5
        %v5958 = vmin.f32 %v5954, 0.5
        %v5959 = vmin.f32 %v5955, 0.5
        %v5960 = vmin.f32 %v5956, 0.5
        %s5961 = scalar_lea.vmem %s192, 288 [#allocation7]
        %5962 = vst.msk [vmem:[%s5961] sm:$0xff] %vm804, %v5957
        %5963 = vst.msk [vmem:[%s5961 + $0x8] sm:$0xff] %vm804, %v5958
        %5964 = vst.msk [vmem:[%s5961 + $0x10] sm:$0xff] %vm804, %v5959
        %5965 = vst.msk [vmem:[%s5961 + $0x18] sm:$0xff] %vm804, %v5960
        %s5966 = sld [smem:[#allocation2 + $0x500]]
        %v5967 = vstv %s5966
        %v5968 = vmul.f32 %v5967, %v198
        %v5969 = vmul.f32 %v5967, %v199
        %v5970 = vmul.f32 %v5967, %v200
        %v5971 = vmul.f32 %v5967, %v201
        %s5972 = sld [smem:[#allocation2 + $0x501]]
        %v5973 = vstv %s5972
        %v5974 = vmul.f32 %v5973, %v198
        %v5975 = vmul.f32 %v5973, %v199
        %v5976 = vmul.f32 %v5973, %v200
        %v5977 = vmul.f32 %v5973, %v201
        %5982 = vrot.lane.b32.xlu0 %v5974, 127
        %v5983 = vpop.permute.xlu0 %5982
        %5984 = vrot.lane.b32.xlu0 %v5975, 127
        %v5985 = vpop.permute.xlu0 %5984
        %5986 = vrot.lane.b32.xlu0 %v5976, 127
        %v5987 = vpop.permute.xlu0 %5986
        %5988 = vrot.lane.b32.xlu0 %v5977, 127
        %v5989 = vpop.permute.xlu0 %5988
        %v5994 = vadd.f32 %v5968, %v5983
        %v5995 = vadd.f32 %v5969, %v5985
        %v5996 = vadd.f32 %v5970, %v5987
        %v5997 = vadd.f32 %v5971, %v5989
        %s5998 = sld [smem:[#allocation2 + $0x502]]
        %v5999 = vstv %s5998
        %v6000 = vmul.f32 %v5999, %v198
        %v6001 = vmul.f32 %v5999, %v199
        %v6002 = vmul.f32 %v5999, %v200
        %v6003 = vmul.f32 %v5999, %v201
        %6008 = vrot.lane.b32.xlu0 %v6000, 126
        %v6009 = vpop.permute.xlu0 %6008
        %6010 = vrot.lane.b32.xlu0 %v6001, 126
        %v6011 = vpop.permute.xlu0 %6010
        %6012 = vrot.lane.b32.xlu0 %v6002, 126
        %v6013 = vpop.permute.xlu0 %6012
        %6014 = vrot.lane.b32.xlu0 %v6003, 126
        %v6015 = vpop.permute.xlu0 %6014
        %v6020 = vadd.f32 %v5994, %v6009
        %v6021 = vadd.f32 %v5995, %v6011
        %v6022 = vadd.f32 %v5996, %v6013
        %v6023 = vadd.f32 %v5997, %v6015
        %s6024 = sld [smem:[#allocation2 + $0x503]]
        %v6025 = vstv %s6024
        %v6026 = vmul.f32 %v6025, %v202
        %v6027 = vmul.f32 %v6025, %v203
        %v6028 = vmul.f32 %v6025, %v204
        %v6029 = vmul.f32 %v6025, %v205
        %v6030 = vadd.f32 %v6020, %v6026
        %v6031 = vadd.f32 %v6021, %v6027
        %v6032 = vadd.f32 %v6022, %v6028
        %v6033 = vadd.f32 %v6023, %v6029
        %s6034 = sld [smem:[#allocation2 + $0x504]]
        %v6035 = vstv %s6034
        %v6036 = vmul.f32 %v6035, %v202
        %v6037 = vmul.f32 %v6035, %v203
        %v6038 = vmul.f32 %v6035, %v204
        %v6039 = vmul.f32 %v6035, %v205
        %6044 = vrot.lane.b32.xlu0 %v6036, 127
        %v6045 = vpop.permute.xlu0 %6044
        %6046 = vrot.lane.b32.xlu0 %v6037, 127
        %v6047 = vpop.permute.xlu0 %6046
        %6048 = vrot.lane.b32.xlu0 %v6038, 127
        %v6049 = vpop.permute.xlu0 %6048
        %6050 = vrot.lane.b32.xlu0 %v6039, 127
        %v6051 = vpop.permute.xlu0 %6050
        %v6056 = vadd.f32 %v6030, %v6045
        %v6057 = vadd.f32 %v6031, %v6047
        %v6058 = vadd.f32 %v6032, %v6049
        %v6059 = vadd.f32 %v6033, %v6051
        %s6060 = sld [smem:[#allocation2 + $0x505]]
        %v6061 = vstv %s6060
        %v6062 = vmul.f32 %v6061, %v202
        %v6063 = vmul.f32 %v6061, %v203
        %v6064 = vmul.f32 %v6061, %v204
        %v6065 = vmul.f32 %v6061, %v205
        %6070 = vrot.lane.b32.xlu0 %v6062, 126
        %v6071 = vpop.permute.xlu0 %6070
        %6072 = vrot.lane.b32.xlu0 %v6063, 126
        %v6073 = vpop.permute.xlu0 %6072
        %6074 = vrot.lane.b32.xlu0 %v6064, 126
        %v6075 = vpop.permute.xlu0 %6074
        %6076 = vrot.lane.b32.xlu0 %v6065, 126
        %v6077 = vpop.permute.xlu0 %6076
        %v6082 = vadd.f32 %v6056, %v6071
        %v6083 = vadd.f32 %v6057, %v6073
        %v6084 = vadd.f32 %v6058, %v6075
        %v6085 = vadd.f32 %v6059, %v6077
        %s6086 = sld [smem:[#allocation2 + $0x506]]
        %v6087 = vstv %s6086
        %v6088 = vmul.f32 %v6087, %v206
        %v6089 = vmul.f32 %v6087, %v207
        %v6090 = vmul.f32 %v6087, %v208
        %v6091 = vmul.f32 %v6087, %v209
        %v6092 = vadd.f32 %v6082, %v6088
        %v6093 = vadd.f32 %v6083, %v6089
        %v6094 = vadd.f32 %v6084, %v6090
        %v6095 = vadd.f32 %v6085, %v6091
        %s6096 = sld [smem:[#allocation2 + $0x507]]
        %v6097 = vstv %s6096
        %v6098 = vmul.f32 %v6097, %v206
        %v6099 = vmul.f32 %v6097, %v207
        %v6100 = vmul.f32 %v6097, %v208
        %v6101 = vmul.f32 %v6097, %v209
        %6106 = vrot.lane.b32.xlu0 %v6098, 127
        %v6107 = vpop.permute.xlu0 %6106
        %6108 = vrot.lane.b32.xlu0 %v6099, 127
        %v6109 = vpop.permute.xlu0 %6108
        %6110 = vrot.lane.b32.xlu0 %v6100, 127
        %v6111 = vpop.permute.xlu0 %6110
        %6112 = vrot.lane.b32.xlu0 %v6101, 127
        %v6113 = vpop.permute.xlu0 %6112
        %v6118 = vadd.f32 %v6092, %v6107
        %v6119 = vadd.f32 %v6093, %v6109
        %v6120 = vadd.f32 %v6094, %v6111
        %v6121 = vadd.f32 %v6095, %v6113
        %s6122 = sld [smem:[#allocation2 + $0x508]]
        %v6123 = vstv %s6122
        %v6124 = vmul.f32 %v6123, %v206
        %v6125 = vmul.f32 %v6123, %v207
        %v6126 = vmul.f32 %v6123, %v208
        %v6127 = vmul.f32 %v6123, %v209
        %6132 = vrot.lane.b32.xlu0 %v6124, 126
        %v6133 = vpop.permute.xlu0 %6132
        %6134 = vrot.lane.b32.xlu0 %v6125, 126
        %v6135 = vpop.permute.xlu0 %6134
        %6136 = vrot.lane.b32.xlu0 %v6126, 126
        %v6137 = vpop.permute.xlu0 %6136
        %6138 = vrot.lane.b32.xlu0 %v6127, 126
        %v6139 = vpop.permute.xlu0 %6138
        %v6144 = vadd.f32 %v6118, %v6133
        %v6145 = vadd.f32 %v6119, %v6135
        %v6146 = vadd.f32 %v6120, %v6137
        %v6147 = vadd.f32 %v6121, %v6139
        %s6148 = sld [smem:[#allocation2 + $0x509]]
        %v6149 = vstv %s6148
        %v6150 = vmul.f32 %v6149, %v211
        %v6151 = vmul.f32 %v6149, %v212
        %v6152 = vmul.f32 %v6149, %v213
        %v6153 = vmul.f32 %v6149, %v214
        %v6154 = vadd.f32 %v6144, %v6150
        %v6155 = vadd.f32 %v6145, %v6151
        %v6156 = vadd.f32 %v6146, %v6152
        %v6157 = vadd.f32 %v6147, %v6153
        %s6158 = sld [smem:[#allocation2 + $0x50a]]
        %v6159 = vstv %s6158
        %v6160 = vmul.f32 %v6159, %v211
        %v6161 = vmul.f32 %v6159, %v212
        %v6162 = vmul.f32 %v6159, %v213
        %v6163 = vmul.f32 %v6159, %v214
        %6168 = vrot.lane.b32.xlu0 %v6160, 127
        %v6169 = vpop.permute.xlu0 %6168
        %6170 = vrot.lane.b32.xlu0 %v6161, 127
        %v6171 = vpop.permute.xlu0 %6170
        %6172 = vrot.lane.b32.xlu0 %v6162, 127
        %v6173 = vpop.permute.xlu0 %6172
        %6174 = vrot.lane.b32.xlu0 %v6163, 127
        %v6175 = vpop.permute.xlu0 %6174
        %v6180 = vadd.f32 %v6154, %v6169
        %v6181 = vadd.f32 %v6155, %v6171
        %v6182 = vadd.f32 %v6156, %v6173
        %v6183 = vadd.f32 %v6157, %v6175
        %s6184 = sld [smem:[#allocation2 + $0x50b]]
        %v6185 = vstv %s6184
        %v6186 = vmul.f32 %v6185, %v211
        %v6187 = vmul.f32 %v6185, %v212
        %v6188 = vmul.f32 %v6185, %v213
        %v6189 = vmul.f32 %v6185, %v214
        %6194 = vrot.lane.b32.xlu0 %v6186, 126
        %v6195 = vpop.permute.xlu0 %6194
        %6196 = vrot.lane.b32.xlu0 %v6187, 126
        %v6197 = vpop.permute.xlu0 %6196
        %6198 = vrot.lane.b32.xlu0 %v6188, 126
        %v6199 = vpop.permute.xlu0 %6198
        %6200 = vrot.lane.b32.xlu0 %v6189, 126
        %v6201 = vpop.permute.xlu0 %6200
        %v6206 = vadd.f32 %v6180, %v6195
        %v6207 = vadd.f32 %v6181, %v6197
        %v6208 = vadd.f32 %v6182, %v6199
        %v6209 = vadd.f32 %v6183, %v6201
        %s6210 = sld [smem:[#allocation2 + $0x50c]]
        %v6211 = vstv %s6210
        %v6212 = vmul.f32 %v6211, %v215
        %v6213 = vmul.f32 %v6211, %v216
        %v6214 = vmul.f32 %v6211, %v217
        %v6215 = vmul.f32 %v6211, %v218
        %v6216 = vadd.f32 %v6206, %v6212
        %v6217 = vadd.f32 %v6207, %v6213
        %v6218 = vadd.f32 %v6208, %v6214
        %v6219 = vadd.f32 %v6209, %v6215
        %s6220 = sld [smem:[#allocation2 + $0x50d]]
        %v6221 = vstv %s6220
        %v6222 = vmul.f32 %v6221, %v215
        %v6223 = vmul.f32 %v6221, %v216
        %v6224 = vmul.f32 %v6221, %v217
        %v6225 = vmul.f32 %v6221, %v218
        %6230 = vrot.lane.b32.xlu0 %v6222, 127
        %v6231 = vpop.permute.xlu0 %6230
        %6232 = vrot.lane.b32.xlu0 %v6223, 127
        %v6233 = vpop.permute.xlu0 %6232
        %6234 = vrot.lane.b32.xlu0 %v6224, 127
        %v6235 = vpop.permute.xlu0 %6234
        %6236 = vrot.lane.b32.xlu0 %v6225, 127
        %v6237 = vpop.permute.xlu0 %6236
        %v6242 = vadd.f32 %v6216, %v6231
        %v6243 = vadd.f32 %v6217, %v6233
        %v6244 = vadd.f32 %v6218, %v6235
        %v6245 = vadd.f32 %v6219, %v6237
        %s6246 = sld [smem:[#allocation2 + $0x50e]]
        %v6247 = vstv %s6246
        %v6248 = vmul.f32 %v6247, %v215
        %v6249 = vmul.f32 %v6247, %v216
        %v6250 = vmul.f32 %v6247, %v217
        %v6251 = vmul.f32 %v6247, %v218
        %6256 = vrot.lane.b32.xlu0 %v6248, 126
        %v6257 = vpop.permute.xlu0 %6256
        %6258 = vrot.lane.b32.xlu0 %v6249, 126
        %v6259 = vpop.permute.xlu0 %6258
        %6260 = vrot.lane.b32.xlu0 %v6250, 126
        %v6261 = vpop.permute.xlu0 %6260
        %6262 = vrot.lane.b32.xlu0 %v6251, 126
        %v6263 = vpop.permute.xlu0 %6262
        %v6268 = vadd.f32 %v6242, %v6257
        %v6269 = vadd.f32 %v6243, %v6259
        %v6270 = vadd.f32 %v6244, %v6261
        %v6271 = vadd.f32 %v6245, %v6263
        %s6272 = sld [smem:[#allocation2 + $0x50f]]
        %v6273 = vstv %s6272
        %v6274 = vmul.f32 %v6273, %v219
        %v6275 = vmul.f32 %v6273, %v220
        %v6276 = vmul.f32 %v6273, %v221
        %v6277 = vmul.f32 %v6273, %v222
        %v6278 = vadd.f32 %v6268, %v6274
        %v6279 = vadd.f32 %v6269, %v6275
        %v6280 = vadd.f32 %v6270, %v6276
        %v6281 = vadd.f32 %v6271, %v6277
        %s6282 = sld [smem:[#allocation2 + $0x510]]
        %v6283 = vstv %s6282
        %v6284 = vmul.f32 %v6283, %v219
        %v6285 = vmul.f32 %v6283, %v220
        %v6286 = vmul.f32 %v6283, %v221
        %v6287 = vmul.f32 %v6283, %v222
        %6292 = vrot.lane.b32.xlu0 %v6284, 127
        %v6293 = vpop.permute.xlu0 %6292
        %6294 = vrot.lane.b32.xlu0 %v6285, 127
        %v6295 = vpop.permute.xlu0 %6294
        %6296 = vrot.lane.b32.xlu0 %v6286, 127
        %v6297 = vpop.permute.xlu0 %6296
        %6298 = vrot.lane.b32.xlu0 %v6287, 127
        %v6299 = vpop.permute.xlu0 %6298
        %v6304 = vadd.f32 %v6278, %v6293
        %v6305 = vadd.f32 %v6279, %v6295
        %v6306 = vadd.f32 %v6280, %v6297
        %v6307 = vadd.f32 %v6281, %v6299
        %s6308 = sld [smem:[#allocation2 + $0x511]]
        %v6309 = vstv %s6308
        %v6310 = vmul.f32 %v6309, %v219
        %v6311 = vmul.f32 %v6309, %v220
        %v6312 = vmul.f32 %v6309, %v221
        %v6313 = vmul.f32 %v6309, %v222
        %6318 = vrot.lane.b32.xlu0 %v6310, 126
        %v6319 = vpop.permute.xlu0 %6318
        %6320 = vrot.lane.b32.xlu0 %v6311, 126
        %v6321 = vpop.permute.xlu0 %6320
        %6322 = vrot.lane.b32.xlu0 %v6312, 126
        %v6323 = vpop.permute.xlu0 %6322
        %6324 = vrot.lane.b32.xlu0 %v6313, 126
        %v6325 = vpop.permute.xlu0 %6324
        %v6330 = vadd.f32 %v6304, %v6319
        %v6331 = vadd.f32 %v6305, %v6321
        %v6332 = vadd.f32 %v6306, %v6323
        %v6333 = vadd.f32 %v6307, %v6325
        %s6334 = sld [smem:[#allocation2 + $0x512]]
        %v6335 = vstv %s6334
        %v6336 = vmul.f32 %v6335, %v224
        %v6337 = vmul.f32 %v6335, %v225
        %v6338 = vmul.f32 %v6335, %v226
        %v6339 = vmul.f32 %v6335, %v227
        %v6340 = vadd.f32 %v6330, %v6336
        %v6341 = vadd.f32 %v6331, %v6337
        %v6342 = vadd.f32 %v6332, %v6338
        %v6343 = vadd.f32 %v6333, %v6339
        %s6344 = sld [smem:[#allocation2 + $0x513]]
        %v6345 = vstv %s6344
        %v6346 = vmul.f32 %v6345, %v224
        %v6347 = vmul.f32 %v6345, %v225
        %v6348 = vmul.f32 %v6345, %v226
        %v6349 = vmul.f32 %v6345, %v227
        %6354 = vrot.lane.b32.xlu0 %v6346, 127
        %v6355 = vpop.permute.xlu0 %6354
        %6356 = vrot.lane.b32.xlu0 %v6347, 127
        %v6357 = vpop.permute.xlu0 %6356
        %6358 = vrot.lane.b32.xlu0 %v6348, 127
        %v6359 = vpop.permute.xlu0 %6358
        %6360 = vrot.lane.b32.xlu0 %v6349, 127
        %v6361 = vpop.permute.xlu0 %6360
        %v6366 = vadd.f32 %v6340, %v6355
        %v6367 = vadd.f32 %v6341, %v6357
        %v6368 = vadd.f32 %v6342, %v6359
        %v6369 = vadd.f32 %v6343, %v6361
        %s6370 = sld [smem:[#allocation2 + $0x514]]
        %v6371 = vstv %s6370
        %v6372 = vmul.f32 %v6371, %v224
        %v6373 = vmul.f32 %v6371, %v225
        %v6374 = vmul.f32 %v6371, %v226
        %v6375 = vmul.f32 %v6371, %v227
        %6380 = vrot.lane.b32.xlu0 %v6372, 126
        %v6381 = vpop.permute.xlu0 %6380
        %6382 = vrot.lane.b32.xlu0 %v6373, 126
        %v6383 = vpop.permute.xlu0 %6382
        %6384 = vrot.lane.b32.xlu0 %v6374, 126
        %v6385 = vpop.permute.xlu0 %6384
        %6386 = vrot.lane.b32.xlu0 %v6375, 126
        %v6387 = vpop.permute.xlu0 %6386
        %v6392 = vadd.f32 %v6366, %v6381
        %v6393 = vadd.f32 %v6367, %v6383
        %v6394 = vadd.f32 %v6368, %v6385
        %v6395 = vadd.f32 %v6369, %v6387
        %s6396 = sld [smem:[#allocation2 + $0x515]]
        %v6397 = vstv %s6396
        %v6398 = vmul.f32 %v6397, %v228
        %v6399 = vmul.f32 %v6397, %v229
        %v6400 = vmul.f32 %v6397, %v230
        %v6401 = vmul.f32 %v6397, %v231
        %v6402 = vadd.f32 %v6392, %v6398
        %v6403 = vadd.f32 %v6393, %v6399
        %v6404 = vadd.f32 %v6394, %v6400
        %v6405 = vadd.f32 %v6395, %v6401
        %s6406 = sld [smem:[#allocation2 + $0x516]]
        %v6407 = vstv %s6406
        %v6408 = vmul.f32 %v6407, %v228
        %v6409 = vmul.f32 %v6407, %v229
        %v6410 = vmul.f32 %v6407, %v230
        %v6411 = vmul.f32 %v6407, %v231
        %6416 = vrot.lane.b32.xlu0 %v6408, 127
        %v6417 = vpop.permute.xlu0 %6416
        %6418 = vrot.lane.b32.xlu0 %v6409, 127
        %v6419 = vpop.permute.xlu0 %6418
        %6420 = vrot.lane.b32.xlu0 %v6410, 127
        %v6421 = vpop.permute.xlu0 %6420
        %6422 = vrot.lane.b32.xlu0 %v6411, 127
        %v6423 = vpop.permute.xlu0 %6422
        %v6428 = vadd.f32 %v6402, %v6417
        %v6429 = vadd.f32 %v6403, %v6419
        %v6430 = vadd.f32 %v6404, %v6421
        %v6431 = vadd.f32 %v6405, %v6423
        %s6432 = sld [smem:[#allocation2 + $0x517]]
        %v6433 = vstv %s6432
        %v6434 = vmul.f32 %v6433, %v228
        %v6435 = vmul.f32 %v6433, %v229
        %v6436 = vmul.f32 %v6433, %v230
        %v6437 = vmul.f32 %v6433, %v231
        %6442 = vrot.lane.b32.xlu0 %v6434, 126
        %v6443 = vpop.permute.xlu0 %6442
        %6444 = vrot.lane.b32.xlu0 %v6435, 126
        %v6445 = vpop.permute.xlu0 %6444
        %6446 = vrot.lane.b32.xlu0 %v6436, 126
        %v6447 = vpop.permute.xlu0 %6446
        %6448 = vrot.lane.b32.xlu0 %v6437, 126
        %v6449 = vpop.permute.xlu0 %6448
        %v6454 = vadd.f32 %v6428, %v6443
        %v6455 = vadd.f32 %v6429, %v6445
        %v6456 = vadd.f32 %v6430, %v6447
        %v6457 = vadd.f32 %v6431, %v6449
        %s6458 = sld [smem:[#allocation2 + $0x518]]
        %v6459 = vstv %s6458
        %v6460 = vmul.f32 %v6459, %v232
        %v6461 = vmul.f32 %v6459, %v233
        %v6462 = vmul.f32 %v6459, %v234
        %v6463 = vmul.f32 %v6459, %v235
        %v6464 = vadd.f32 %v6454, %v6460
        %v6465 = vadd.f32 %v6455, %v6461
        %v6466 = vadd.f32 %v6456, %v6462
        %v6467 = vadd.f32 %v6457, %v6463
        %s6468 = sld [smem:[#allocation2 + $0x519]]
        %v6469 = vstv %s6468
        %v6470 = vmul.f32 %v6469, %v232
        %v6471 = vmul.f32 %v6469, %v233
        %v6472 = vmul.f32 %v6469, %v234
        %v6473 = vmul.f32 %v6469, %v235
        %6478 = vrot.lane.b32.xlu0 %v6470, 127
        %v6479 = vpop.permute.xlu0 %6478
        %6480 = vrot.lane.b32.xlu0 %v6471, 127
        %v6481 = vpop.permute.xlu0 %6480
        %6482 = vrot.lane.b32.xlu0 %v6472, 127
        %v6483 = vpop.permute.xlu0 %6482
        %6484 = vrot.lane.b32.xlu0 %v6473, 127
        %v6485 = vpop.permute.xlu0 %6484
        %v6490 = vadd.f32 %v6464, %v6479
        %v6491 = vadd.f32 %v6465, %v6481
        %v6492 = vadd.f32 %v6466, %v6483
        %v6493 = vadd.f32 %v6467, %v6485
        %s6494 = sld [smem:[#allocation2 + $0x51a]]
        %v6495 = vstv %s6494
        %v6496 = vmul.f32 %v6495, %v232
        %v6497 = vmul.f32 %v6495, %v233
        %v6498 = vmul.f32 %v6495, %v234
        %v6499 = vmul.f32 %v6495, %v235
        %6504 = vrot.lane.b32.xlu0 %v6496, 126
        %v6505 = vpop.permute.xlu0 %6504
        %6506 = vrot.lane.b32.xlu0 %v6497, 126
        %v6507 = vpop.permute.xlu0 %6506
        %6508 = vrot.lane.b32.xlu0 %v6498, 126
        %v6509 = vpop.permute.xlu0 %6508
        %6510 = vrot.lane.b32.xlu0 %v6499, 126
        %v6511 = vpop.permute.xlu0 %6510
        %v6516 = vadd.f32 %v6490, %v6505
        %v6517 = vadd.f32 %v6491, %v6507
        %v6518 = vadd.f32 %v6492, %v6509
        %v6519 = vadd.f32 %v6493, %v6511
        %s6520 = sld [smem:[#allocation5 + $0xa]]
        %v6521 = vstv %s6520
        %v6522 = vadd.f32 %v6516, %v6521
        %v6523 = vadd.f32 %v6517, %v6521
        %v6524 = vadd.f32 %v6518, %v6521
        %v6525 = vadd.f32 %v6519, %v6521
        %v6526 = vmax.f32 %v6522, 0.0
        %v6527 = vmax.f32 %v6523, 0.0
        %v6528 = vmax.f32 %v6524, 0.0
        %v6529 = vmax.f32 %v6525, 0.0
        %v6530 = vmin.f32 %v6526, 0.5
        %v6531 = vmin.f32 %v6527, 0.5
        %v6532 = vmin.f32 %v6528, 0.5
        %v6533 = vmin.f32 %v6529, 0.5
        %s6534 = scalar_lea.vmem %s192, 320 [#allocation7]
        %6535 = vst.msk [vmem:[%s6534] sm:$0xff] %vm804, %v6530
        %6536 = vst.msk [vmem:[%s6534 + $0x8] sm:$0xff] %vm804, %v6531
        %6537 = vst.msk [vmem:[%s6534 + $0x10] sm:$0xff] %vm804, %v6532
        %6538 = vst.msk [vmem:[%s6534 + $0x18] sm:$0xff] %vm804, %v6533
        %s6539 = sld [smem:[#allocation2 + $0x580]]
        %v6540 = vstv %s6539
        %v6541 = vmul.f32 %v6540, %v198
        %v6542 = vmul.f32 %v6540, %v199
        %v6543 = vmul.f32 %v6540, %v200
        %v6544 = vmul.f32 %v6540, %v201
        %s6545 = sld [smem:[#allocation2 + $0x581]]
        %v6546 = vstv %s6545
        %v6547 = vmul.f32 %v6546, %v198
        %v6548 = vmul.f32 %v6546, %v199
        %v6549 = vmul.f32 %v6546, %v200
        %v6550 = vmul.f32 %v6546, %v201
        %6555 = vrot.lane.b32.xlu0 %v6547, 127
        %v6556 = vpop.permute.xlu0 %6555
        %6557 = vrot.lane.b32.xlu0 %v6548, 127
        %v6558 = vpop.permute.xlu0 %6557
        %6559 = vrot.lane.b32.xlu0 %v6549, 127
        %v6560 = vpop.permute.xlu0 %6559
        %6561 = vrot.lane.b32.xlu0 %v6550, 127
        %v6562 = vpop.permute.xlu0 %6561
        %v6567 = vadd.f32 %v6541, %v6556
        %v6568 = vadd.f32 %v6542, %v6558
        %v6569 = vadd.f32 %v6543, %v6560
        %v6570 = vadd.f32 %v6544, %v6562
        %s6571 = sld [smem:[#allocation2 + $0x582]]
        %v6572 = vstv %s6571
        %v6573 = vmul.f32 %v6572, %v198
        %v6574 = vmul.f32 %v6572, %v199
        %v6575 = vmul.f32 %v6572, %v200
        %v6576 = vmul.f32 %v6572, %v201
        %6581 = vrot.lane.b32.xlu0 %v6573, 126
        %v6582 = vpop.permute.xlu0 %6581
        %6583 = vrot.lane.b32.xlu0 %v6574, 126
        %v6584 = vpop.permute.xlu0 %6583
        %6585 = vrot.lane.b32.xlu0 %v6575, 126
        %v6586 = vpop.permute.xlu0 %6585
        %6587 = vrot.lane.b32.xlu0 %v6576, 126
        %v6588 = vpop.permute.xlu0 %6587
        %v6593 = vadd.f32 %v6567, %v6582
        %v6594 = vadd.f32 %v6568, %v6584
        %v6595 = vadd.f32 %v6569, %v6586
        %v6596 = vadd.f32 %v6570, %v6588
        %s6597 = sld [smem:[#allocation2 + $0x583]]
        %v6598 = vstv %s6597
        %v6599 = vmul.f32 %v6598, %v202
        %v6600 = vmul.f32 %v6598, %v203
        %v6601 = vmul.f32 %v6598, %v204
        %v6602 = vmul.f32 %v6598, %v205
        %v6603 = vadd.f32 %v6593, %v6599
        %v6604 = vadd.f32 %v6594, %v6600
        %v6605 = vadd.f32 %v6595, %v6601
        %v6606 = vadd.f32 %v6596, %v6602
        %s6607 = sld [smem:[#allocation2 + $0x584]]
        %v6608 = vstv %s6607
        %v6609 = vmul.f32 %v6608, %v202
        %v6610 = vmul.f32 %v6608, %v203
        %v6611 = vmul.f32 %v6608, %v204
        %v6612 = vmul.f32 %v6608, %v205
        %6617 = vrot.lane.b32.xlu0 %v6609, 127
        %v6618 = vpop.permute.xlu0 %6617
        %6619 = vrot.lane.b32.xlu0 %v6610, 127
        %v6620 = vpop.permute.xlu0 %6619
        %6621 = vrot.lane.b32.xlu0 %v6611, 127
        %v6622 = vpop.permute.xlu0 %6621
        %6623 = vrot.lane.b32.xlu0 %v6612, 127
        %v6624 = vpop.permute.xlu0 %6623
        %v6629 = vadd.f32 %v6603, %v6618
        %v6630 = vadd.f32 %v6604, %v6620
        %v6631 = vadd.f32 %v6605, %v6622
        %v6632 = vadd.f32 %v6606, %v6624
        %s6633 = sld [smem:[#allocation2 + $0x585]]
        %v6634 = vstv %s6633
        %v6635 = vmul.f32 %v6634, %v202
        %v6636 = vmul.f32 %v6634, %v203
        %v6637 = vmul.f32 %v6634, %v204
        %v6638 = vmul.f32 %v6634, %v205
        %6643 = vrot.lane.b32.xlu0 %v6635, 126
        %v6644 = vpop.permute.xlu0 %6643
        %6645 = vrot.lane.b32.xlu0 %v6636, 126
        %v6646 = vpop.permute.xlu0 %6645
        %6647 = vrot.lane.b32.xlu0 %v6637, 126
        %v6648 = vpop.permute.xlu0 %6647
        %6649 = vrot.lane.b32.xlu0 %v6638, 126
        %v6650 = vpop.permute.xlu0 %6649
        %v6655 = vadd.f32 %v6629, %v6644
        %v6656 = vadd.f32 %v6630, %v6646
        %v6657 = vadd.f32 %v6631, %v6648
        %v6658 = vadd.f32 %v6632, %v6650
        %s6659 = sld [smem:[#allocation2 + $0x586]]
        %v6660 = vstv %s6659
        %v6661 = vmul.f32 %v6660, %v206
        %v6662 = vmul.f32 %v6660, %v207
        %v6663 = vmul.f32 %v6660, %v208
        %v6664 = vmul.f32 %v6660, %v209
        %v6665 = vadd.f32 %v6655, %v6661
        %v6666 = vadd.f32 %v6656, %v6662
        %v6667 = vadd.f32 %v6657, %v6663
        %v6668 = vadd.f32 %v6658, %v6664
        %s6669 = sld [smem:[#allocation2 + $0x587]]
        %v6670 = vstv %s6669
        %v6671 = vmul.f32 %v6670, %v206
        %v6672 = vmul.f32 %v6670, %v207
        %v6673 = vmul.f32 %v6670, %v208
        %v6674 = vmul.f32 %v6670, %v209
        %6679 = vrot.lane.b32.xlu0 %v6671, 127
        %v6680 = vpop.permute.xlu0 %6679
        %6681 = vrot.lane.b32.xlu0 %v6672, 127
        %v6682 = vpop.permute.xlu0 %6681
        %6683 = vrot.lane.b32.xlu0 %v6673, 127
        %v6684 = vpop.permute.xlu0 %6683
        %6685 = vrot.lane.b32.xlu0 %v6674, 127
        %v6686 = vpop.permute.xlu0 %6685
        %v6691 = vadd.f32 %v6665, %v6680
        %v6692 = vadd.f32 %v6666, %v6682
        %v6693 = vadd.f32 %v6667, %v6684
        %v6694 = vadd.f32 %v6668, %v6686
        %s6695 = sld [smem:[#allocation2 + $0x588]]
        %v6696 = vstv %s6695
        %v6697 = vmul.f32 %v6696, %v206
        %v6698 = vmul.f32 %v6696, %v207
        %v6699 = vmul.f32 %v6696, %v208
        %v6700 = vmul.f32 %v6696, %v209
        %6705 = vrot.lane.b32.xlu0 %v6697, 126
        %v6706 = vpop.permute.xlu0 %6705
        %6707 = vrot.lane.b32.xlu0 %v6698, 126
        %v6708 = vpop.permute.xlu0 %6707
        %6709 = vrot.lane.b32.xlu0 %v6699, 126
        %v6710 = vpop.permute.xlu0 %6709
        %6711 = vrot.lane.b32.xlu0 %v6700, 126
        %v6712 = vpop.permute.xlu0 %6711
        %v6717 = vadd.f32 %v6691, %v6706
        %v6718 = vadd.f32 %v6692, %v6708
        %v6719 = vadd.f32 %v6693, %v6710
        %v6720 = vadd.f32 %v6694, %v6712
        %s6721 = sld [smem:[#allocation2 + $0x589]]
        %v6722 = vstv %s6721
        %v6723 = vmul.f32 %v6722, %v211
        %v6724 = vmul.f32 %v6722, %v212
        %v6725 = vmul.f32 %v6722, %v213
        %v6726 = vmul.f32 %v6722, %v214
        %v6727 = vadd.f32 %v6717, %v6723
        %v6728 = vadd.f32 %v6718, %v6724
        %v6729 = vadd.f32 %v6719, %v6725
        %v6730 = vadd.f32 %v6720, %v6726
        %s6731 = sld [smem:[#allocation2 + $0x58a]]
        %v6732 = vstv %s6731
        %v6733 = vmul.f32 %v6732, %v211
        %v6734 = vmul.f32 %v6732, %v212
        %v6735 = vmul.f32 %v6732, %v213
        %v6736 = vmul.f32 %v6732, %v214
        %6741 = vrot.lane.b32.xlu0 %v6733, 127
        %v6742 = vpop.permute.xlu0 %6741
        %6743 = vrot.lane.b32.xlu0 %v6734, 127
        %v6744 = vpop.permute.xlu0 %6743
        %6745 = vrot.lane.b32.xlu0 %v6735, 127
        %v6746 = vpop.permute.xlu0 %6745
        %6747 = vrot.lane.b32.xlu0 %v6736, 127
        %v6748 = vpop.permute.xlu0 %6747
        %v6753 = vadd.f32 %v6727, %v6742
        %v6754 = vadd.f32 %v6728, %v6744
        %v6755 = vadd.f32 %v6729, %v6746
        %v6756 = vadd.f32 %v6730, %v6748
        %s6757 = sld [smem:[#allocation2 + $0x58b]]
        %v6758 = vstv %s6757
        %v6759 = vmul.f32 %v6758, %v211
        %v6760 = vmul.f32 %v6758, %v212
        %v6761 = vmul.f32 %v6758, %v213
        %v6762 = vmul.f32 %v6758, %v214
        %6767 = vrot.lane.b32.xlu0 %v6759, 126
        %v6768 = vpop.permute.xlu0 %6767
        %6769 = vrot.lane.b32.xlu0 %v6760, 126
        %v6770 = vpop.permute.xlu0 %6769
        %6771 = vrot.lane.b32.xlu0 %v6761, 126
        %v6772 = vpop.permute.xlu0 %6771
        %6773 = vrot.lane.b32.xlu0 %v6762, 126
        %v6774 = vpop.permute.xlu0 %6773
        %v6779 = vadd.f32 %v6753, %v6768
        %v6780 = vadd.f32 %v6754, %v6770
        %v6781 = vadd.f32 %v6755, %v6772
        %v6782 = vadd.f32 %v6756, %v6774
        %s6783 = sld [smem:[#allocation2 + $0x58c]]
        %v6784 = vstv %s6783
        %v6785 = vmul.f32 %v6784, %v215
        %v6786 = vmul.f32 %v6784, %v216
        %v6787 = vmul.f32 %v6784, %v217
        %v6788 = vmul.f32 %v6784, %v218
        %v6789 = vadd.f32 %v6779, %v6785
        %v6790 = vadd.f32 %v6780, %v6786
        %v6791 = vadd.f32 %v6781, %v6787
        %v6792 = vadd.f32 %v6782, %v6788
        %s6793 = sld [smem:[#allocation2 + $0x58d]]
        %v6794 = vstv %s6793
        %v6795 = vmul.f32 %v6794, %v215
        %v6796 = vmul.f32 %v6794, %v216
        %v6797 = vmul.f32 %v6794, %v217
        %v6798 = vmul.f32 %v6794, %v218
        %6803 = vrot.lane.b32.xlu0 %v6795, 127
        %v6804 = vpop.permute.xlu0 %6803
        %6805 = vrot.lane.b32.xlu0 %v6796, 127
        %v6806 = vpop.permute.xlu0 %6805
        %6807 = vrot.lane.b32.xlu0 %v6797, 127
        %v6808 = vpop.permute.xlu0 %6807
        %6809 = vrot.lane.b32.xlu0 %v6798, 127
        %v6810 = vpop.permute.xlu0 %6809
        %v6815 = vadd.f32 %v6789, %v6804
        %v6816 = vadd.f32 %v6790, %v6806
        %v6817 = vadd.f32 %v6791, %v6808
        %v6818 = vadd.f32 %v6792, %v6810
        %s6819 = sld [smem:[#allocation2 + $0x58e]]
        %v6820 = vstv %s6819
        %v6821 = vmul.f32 %v6820, %v215
        %v6822 = vmul.f32 %v6820, %v216
        %v6823 = vmul.f32 %v6820, %v217
        %v6824 = vmul.f32 %v6820, %v218
        %6829 = vrot.lane.b32.xlu0 %v6821, 126
        %v6830 = vpop.permute.xlu0 %6829
        %6831 = vrot.lane.b32.xlu0 %v6822, 126
        %v6832 = vpop.permute.xlu0 %6831
        %6833 = vrot.lane.b32.xlu0 %v6823, 126
        %v6834 = vpop.permute.xlu0 %6833
        %6835 = vrot.lane.b32.xlu0 %v6824, 126
        %v6836 = vpop.permute.xlu0 %6835
        %v6841 = vadd.f32 %v6815, %v6830
        %v6842 = vadd.f32 %v6816, %v6832
        %v6843 = vadd.f32 %v6817, %v6834
        %v6844 = vadd.f32 %v6818, %v6836
        %s6845 = sld [smem:[#allocation2 + $0x58f]]
        %v6846 = vstv %s6845
        %v6847 = vmul.f32 %v6846, %v219
        %v6848 = vmul.f32 %v6846, %v220
        %v6849 = vmul.f32 %v6846, %v221
        %v6850 = vmul.f32 %v6846, %v222
        %v6851 = vadd.f32 %v6841, %v6847
        %v6852 = vadd.f32 %v6842, %v6848
        %v6853 = vadd.f32 %v6843, %v6849
        %v6854 = vadd.f32 %v6844, %v6850
        %s6855 = sld [smem:[#allocation2 + $0x590]]
        %v6856 = vstv %s6855
        %v6857 = vmul.f32 %v6856, %v219
        %v6858 = vmul.f32 %v6856, %v220
        %v6859 = vmul.f32 %v6856, %v221
        %v6860 = vmul.f32 %v6856, %v222
        %6865 = vrot.lane.b32.xlu0 %v6857, 127
        %v6866 = vpop.permute.xlu0 %6865
        %6867 = vrot.lane.b32.xlu0 %v6858, 127
        %v6868 = vpop.permute.xlu0 %6867
        %6869 = vrot.lane.b32.xlu0 %v6859, 127
        %v6870 = vpop.permute.xlu0 %6869
        %6871 = vrot.lane.b32.xlu0 %v6860, 127
        %v6872 = vpop.permute.xlu0 %6871
        %v6877 = vadd.f32 %v6851, %v6866
        %v6878 = vadd.f32 %v6852, %v6868
        %v6879 = vadd.f32 %v6853, %v6870
        %v6880 = vadd.f32 %v6854, %v6872
        %s6881 = sld [smem:[#allocation2 + $0x591]]
        %v6882 = vstv %s6881
        %v6883 = vmul.f32 %v6882, %v219
        %v6884 = vmul.f32 %v6882, %v220
        %v6885 = vmul.f32 %v6882, %v221
        %v6886 = vmul.f32 %v6882, %v222
        %6891 = vrot.lane.b32.xlu0 %v6883, 126
        %v6892 = vpop.permute.xlu0 %6891
        %6893 = vrot.lane.b32.xlu0 %v6884, 126
        %v6894 = vpop.permute.xlu0 %6893
        %6895 = vrot.lane.b32.xlu0 %v6885, 126
        %v6896 = vpop.permute.xlu0 %6895
        %6897 = vrot.lane.b32.xlu0 %v6886, 126
        %v6898 = vpop.permute.xlu0 %6897
        %v6903 = vadd.f32 %v6877, %v6892
        %v6904 = vadd.f32 %v6878, %v6894
        %v6905 = vadd.f32 %v6879, %v6896
        %v6906 = vadd.f32 %v6880, %v6898
        %s6907 = sld [smem:[#allocation2 + $0x592]]
        %v6908 = vstv %s6907
        %v6909 = vmul.f32 %v6908, %v224
        %v6910 = vmul.f32 %v6908, %v225
        %v6911 = vmul.f32 %v6908, %v226
        %v6912 = vmul.f32 %v6908, %v227
        %v6913 = vadd.f32 %v6903, %v6909
        %v6914 = vadd.f32 %v6904, %v6910
        %v6915 = vadd.f32 %v6905, %v6911
        %v6916 = vadd.f32 %v6906, %v6912
        %s6917 = sld [smem:[#allocation2 + $0x593]]
        %v6918 = vstv %s6917
        %v6919 = vmul.f32 %v6918, %v224
        %v6920 = vmul.f32 %v6918, %v225
        %v6921 = vmul.f32 %v6918, %v226
        %v6922 = vmul.f32 %v6918, %v227
        %6927 = vrot.lane.b32.xlu0 %v6919, 127
        %v6928 = vpop.permute.xlu0 %6927
        %6929 = vrot.lane.b32.xlu0 %v6920, 127
        %v6930 = vpop.permute.xlu0 %6929
        %6931 = vrot.lane.b32.xlu0 %v6921, 127
        %v6932 = vpop.permute.xlu0 %6931
        %6933 = vrot.lane.b32.xlu0 %v6922, 127
        %v6934 = vpop.permute.xlu0 %6933
        %v6939 = vadd.f32 %v6913, %v6928
        %v6940 = vadd.f32 %v6914, %v6930
        %v6941 = vadd.f32 %v6915, %v6932
        %v6942 = vadd.f32 %v6916, %v6934
        %s6943 = sld [smem:[#allocation2 + $0x594]]
        %v6944 = vstv %s6943
        %v6945 = vmul.f32 %v6944, %v224
        %v6946 = vmul.f32 %v6944, %v225
        %v6947 = vmul.f32 %v6944, %v226
        %v6948 = vmul.f32 %v6944, %v227
        %6953 = vrot.lane.b32.xlu0 %v6945, 126
        %v6954 = vpop.permute.xlu0 %6953
        %6955 = vrot.lane.b32.xlu0 %v6946, 126
        %v6956 = vpop.permute.xlu0 %6955
        %6957 = vrot.lane.b32.xlu0 %v6947, 126
        %v6958 = vpop.permute.xlu0 %6957
        %6959 = vrot.lane.b32.xlu0 %v6948, 126
        %v6960 = vpop.permute.xlu0 %6959
        %v6965 = vadd.f32 %v6939, %v6954
        %v6966 = vadd.f32 %v6940, %v6956
        %v6967 = vadd.f32 %v6941, %v6958
        %v6968 = vadd.f32 %v6942, %v6960
        %s6969 = sld [smem:[#allocation2 + $0x595]]
        %v6970 = vstv %s6969
        %v6971 = vmul.f32 %v6970, %v228
        %v6972 = vmul.f32 %v6970, %v229
        %v6973 = vmul.f32 %v6970, %v230
        %v6974 = vmul.f32 %v6970, %v231
        %v6975 = vadd.f32 %v6965, %v6971
        %v6976 = vadd.f32 %v6966, %v6972
        %v6977 = vadd.f32 %v6967, %v6973
        %v6978 = vadd.f32 %v6968, %v6974
        %s6979 = sld [smem:[#allocation2 + $0x596]]
        %v6980 = vstv %s6979
        %v6981 = vmul.f32 %v6980, %v228
        %v6982 = vmul.f32 %v6980, %v229
        %v6983 = vmul.f32 %v6980, %v230
        %v6984 = vmul.f32 %v6980, %v231
        %6989 = vrot.lane.b32.xlu0 %v6981, 127
        %v6990 = vpop.permute.xlu0 %6989
        %6991 = vrot.lane.b32.xlu0 %v6982, 127
        %v6992 = vpop.permute.xlu0 %6991
        %6993 = vrot.lane.b32.xlu0 %v6983, 127
        %v6994 = vpop.permute.xlu0 %6993
        %6995 = vrot.lane.b32.xlu0 %v6984, 127
        %v6996 = vpop.permute.xlu0 %6995
        %v7001 = vadd.f32 %v6975, %v6990
        %v7002 = vadd.f32 %v6976, %v6992
        %v7003 = vadd.f32 %v6977, %v6994
        %v7004 = vadd.f32 %v6978, %v6996
        %s7005 = sld [smem:[#allocation2 + $0x597]]
        %v7006 = vstv %s7005
        %v7007 = vmul.f32 %v7006, %v228
        %v7008 = vmul.f32 %v7006, %v229
        %v7009 = vmul.f32 %v7006, %v230
        %v7010 = vmul.f32 %v7006, %v231
        %7015 = vrot.lane.b32.xlu0 %v7007, 126
        %v7016 = vpop.permute.xlu0 %7015
        %7017 = vrot.lane.b32.xlu0 %v7008, 126
        %v7018 = vpop.permute.xlu0 %7017
        %7019 = vrot.lane.b32.xlu0 %v7009, 126
        %v7020 = vpop.permute.xlu0 %7019
        %7021 = vrot.lane.b32.xlu0 %v7010, 126
        %v7022 = vpop.permute.xlu0 %7021
        %v7027 = vadd.f32 %v7001, %v7016
        %v7028 = vadd.f32 %v7002, %v7018
        %v7029 = vadd.f32 %v7003, %v7020
        %v7030 = vadd.f32 %v7004, %v7022
        %s7031 = sld [smem:[#allocation2 + $0x598]]
        %v7032 = vstv %s7031
        %v7033 = vmul.f32 %v7032, %v232
        %v7034 = vmul.f32 %v7032, %v233
        %v7035 = vmul.f32 %v7032, %v234
        %v7036 = vmul.f32 %v7032, %v235
        %v7037 = vadd.f32 %v7027, %v7033
        %v7038 = vadd.f32 %v7028, %v7034
        %v7039 = vadd.f32 %v7029, %v7035
        %v7040 = vadd.f32 %v7030, %v7036
        %s7041 = sld [smem:[#allocation2 + $0x599]]
        %v7042 = vstv %s7041
        %v7043 = vmul.f32 %v7042, %v232
        %v7044 = vmul.f32 %v7042, %v233
        %v7045 = vmul.f32 %v7042, %v234
        %v7046 = vmul.f32 %v7042, %v235
        %7051 = vrot.lane.b32.xlu0 %v7043, 127
        %v7052 = vpop.permute.xlu0 %7051
        %7053 = vrot.lane.b32.xlu0 %v7044, 127
        %v7054 = vpop.permute.xlu0 %7053
        %7055 = vrot.lane.b32.xlu0 %v7045, 127
        %v7056 = vpop.permute.xlu0 %7055
        %7057 = vrot.lane.b32.xlu0 %v7046, 127
        %v7058 = vpop.permute.xlu0 %7057
        %v7063 = vadd.f32 %v7037, %v7052
        %v7064 = vadd.f32 %v7038, %v7054
        %v7065 = vadd.f32 %v7039, %v7056
        %v7066 = vadd.f32 %v7040, %v7058
        %s7067 = sld [smem:[#allocation2 + $0x59a]]
        %v7068 = vstv %s7067
        %v7069 = vmul.f32 %v7068, %v232
        %v7070 = vmul.f32 %v7068, %v233
        %v7071 = vmul.f32 %v7068, %v234
        %v7072 = vmul.f32 %v7068, %v235
        %7077 = vrot.lane.b32.xlu0 %v7069, 126
        %v7078 = vpop.permute.xlu0 %7077
        %7079 = vrot.lane.b32.xlu0 %v7070, 126
        %v7080 = vpop.permute.xlu0 %7079
        %7081 = vrot.lane.b32.xlu0 %v7071, 126
        %v7082 = vpop.permute.xlu0 %7081
        %7083 = vrot.lane.b32.xlu0 %v7072, 126
        %v7084 = vpop.permute.xlu0 %7083
        %v7089 = vadd.f32 %v7063, %v7078
        %v7090 = vadd.f32 %v7064, %v7080
        %v7091 = vadd.f32 %v7065, %v7082
        %v7092 = vadd.f32 %v7066, %v7084
        %s7093 = sld [smem:[#allocation5 + $0xb]]
        %v7094 = vstv %s7093
        %v7095 = vadd.f32 %v7089, %v7094
        %v7096 = vadd.f32 %v7090, %v7094
        %v7097 = vadd.f32 %v7091, %v7094
        %v7098 = vadd.f32 %v7092, %v7094
        %v7099 = vmax.f32 %v7095, 0.0
        %v7100 = vmax.f32 %v7096, 0.0
        %v7101 = vmax.f32 %v7097, 0.0
        %v7102 = vmax.f32 %v7098, 0.0
        %v7103 = vmin.f32 %v7099, 0.5
        %v7104 = vmin.f32 %v7100, 0.5
        %v7105 = vmin.f32 %v7101, 0.5
        %v7106 = vmin.f32 %v7102, 0.5
        %s7107 = scalar_lea.vmem %s192, 352 [#allocation7]
        %7108 = vst.msk [vmem:[%s7107] sm:$0xff] %vm804, %v7103
        %7109 = vst.msk [vmem:[%s7107 + $0x8] sm:$0xff] %vm804, %v7104
        %7110 = vst.msk [vmem:[%s7107 + $0x10] sm:$0xff] %vm804, %v7105
        %7111 = vst.msk [vmem:[%s7107 + $0x18] sm:$0xff] %vm804, %v7106
        %s7112 = sld [smem:[#allocation2 + $0x600]]
        %v7113 = vstv %s7112
        %v7114 = vmul.f32 %v7113, %v198
        %v7115 = vmul.f32 %v7113, %v199
        %v7116 = vmul.f32 %v7113, %v200
        %v7117 = vmul.f32 %v7113, %v201
        %s7118 = sld [smem:[#allocation2 + $0x601]]
        %v7119 = vstv %s7118
        %v7120 = vmul.f32 %v7119, %v198
        %v7121 = vmul.f32 %v7119, %v199
        %v7122 = vmul.f32 %v7119, %v200
        %v7123 = vmul.f32 %v7119, %v201
        %7128 = vrot.lane.b32.xlu0 %v7120, 127
        %v7129 = vpop.permute.xlu0 %7128
        %7130 = vrot.lane.b32.xlu0 %v7121, 127
        %v7131 = vpop.permute.xlu0 %7130
        %7132 = vrot.lane.b32.xlu0 %v7122, 127
        %v7133 = vpop.permute.xlu0 %7132
        %7134 = vrot.lane.b32.xlu0 %v7123, 127
        %v7135 = vpop.permute.xlu0 %7134
        %v7140 = vadd.f32 %v7114, %v7129
        %v7141 = vadd.f32 %v7115, %v7131
        %v7142 = vadd.f32 %v7116, %v7133
        %v7143 = vadd.f32 %v7117, %v7135
        %s7144 = sld [smem:[#allocation2 + $0x602]]
        %v7145 = vstv %s7144
        %v7146 = vmul.f32 %v7145, %v198
        %v7147 = vmul.f32 %v7145, %v199
        %v7148 = vmul.f32 %v7145, %v200
        %v7149 = vmul.f32 %v7145, %v201
        %7154 = vrot.lane.b32.xlu0 %v7146, 126
        %v7155 = vpop.permute.xlu0 %7154
        %7156 = vrot.lane.b32.xlu0 %v7147, 126
        %v7157 = vpop.permute.xlu0 %7156
        %7158 = vrot.lane.b32.xlu0 %v7148, 126
        %v7159 = vpop.permute.xlu0 %7158
        %7160 = vrot.lane.b32.xlu0 %v7149, 126
        %v7161 = vpop.permute.xlu0 %7160
        %v7166 = vadd.f32 %v7140, %v7155
        %v7167 = vadd.f32 %v7141, %v7157
        %v7168 = vadd.f32 %v7142, %v7159
        %v7169 = vadd.f32 %v7143, %v7161
        %s7170 = sld [smem:[#allocation2 + $0x603]]
        %v7171 = vstv %s7170
        %v7172 = vmul.f32 %v7171, %v202
        %v7173 = vmul.f32 %v7171, %v203
        %v7174 = vmul.f32 %v7171, %v204
        %v7175 = vmul.f32 %v7171, %v205
        %v7176 = vadd.f32 %v7166, %v7172
        %v7177 = vadd.f32 %v7167, %v7173
        %v7178 = vadd.f32 %v7168, %v7174
        %v7179 = vadd.f32 %v7169, %v7175
        %s7180 = sld [smem:[#allocation2 + $0x604]]
        %v7181 = vstv %s7180
        %v7182 = vmul.f32 %v7181, %v202
        %v7183 = vmul.f32 %v7181, %v203
        %v7184 = vmul.f32 %v7181, %v204
        %v7185 = vmul.f32 %v7181, %v205
        %7190 = vrot.lane.b32.xlu0 %v7182, 127
        %v7191 = vpop.permute.xlu0 %7190
        %7192 = vrot.lane.b32.xlu0 %v7183, 127
        %v7193 = vpop.permute.xlu0 %7192
        %7194 = vrot.lane.b32.xlu0 %v7184, 127
        %v7195 = vpop.permute.xlu0 %7194
        %7196 = vrot.lane.b32.xlu0 %v7185, 127
        %v7197 = vpop.permute.xlu0 %7196
        %v7202 = vadd.f32 %v7176, %v7191
        %v7203 = vadd.f32 %v7177, %v7193
        %v7204 = vadd.f32 %v7178, %v7195
        %v7205 = vadd.f32 %v7179, %v7197
        %s7206 = sld [smem:[#allocation2 + $0x605]]
        %v7207 = vstv %s7206
        %v7208 = vmul.f32 %v7207, %v202
        %v7209 = vmul.f32 %v7207, %v203
        %v7210 = vmul.f32 %v7207, %v204
        %v7211 = vmul.f32 %v7207, %v205
        %7216 = vrot.lane.b32.xlu0 %v7208, 126
        %v7217 = vpop.permute.xlu0 %7216
        %7218 = vrot.lane.b32.xlu0 %v7209, 126
        %v7219 = vpop.permute.xlu0 %7218
        %7220 = vrot.lane.b32.xlu0 %v7210, 126
        %v7221 = vpop.permute.xlu0 %7220
        %7222 = vrot.lane.b32.xlu0 %v7211, 126
        %v7223 = vpop.permute.xlu0 %7222
        %v7228 = vadd.f32 %v7202, %v7217
        %v7229 = vadd.f32 %v7203, %v7219
        %v7230 = vadd.f32 %v7204, %v7221
        %v7231 = vadd.f32 %v7205, %v7223
        %s7232 = sld [smem:[#allocation2 + $0x606]]
        %v7233 = vstv %s7232
        %v7234 = vmul.f32 %v7233, %v206
        %v7235 = vmul.f32 %v7233, %v207
        %v7236 = vmul.f32 %v7233, %v208
        %v7237 = vmul.f32 %v7233, %v209
        %v7238 = vadd.f32 %v7228, %v7234
        %v7239 = vadd.f32 %v7229, %v7235
        %v7240 = vadd.f32 %v7230, %v7236
        %v7241 = vadd.f32 %v7231, %v7237
        %s7242 = sld [smem:[#allocation2 + $0x607]]
        %v7243 = vstv %s7242
        %v7244 = vmul.f32 %v7243, %v206
        %v7245 = vmul.f32 %v7243, %v207
        %v7246 = vmul.f32 %v7243, %v208
        %v7247 = vmul.f32 %v7243, %v209
        %7252 = vrot.lane.b32.xlu0 %v7244, 127
        %v7253 = vpop.permute.xlu0 %7252
        %7254 = vrot.lane.b32.xlu0 %v7245, 127
        %v7255 = vpop.permute.xlu0 %7254
        %7256 = vrot.lane.b32.xlu0 %v7246, 127
        %v7257 = vpop.permute.xlu0 %7256
        %7258 = vrot.lane.b32.xlu0 %v7247, 127
        %v7259 = vpop.permute.xlu0 %7258
        %v7264 = vadd.f32 %v7238, %v7253
        %v7265 = vadd.f32 %v7239, %v7255
        %v7266 = vadd.f32 %v7240, %v7257
        %v7267 = vadd.f32 %v7241, %v7259
        %s7268 = sld [smem:[#allocation2 + $0x608]]
        %v7269 = vstv %s7268
        %v7270 = vmul.f32 %v7269, %v206
        %v7271 = vmul.f32 %v7269, %v207
        %v7272 = vmul.f32 %v7269, %v208
        %v7273 = vmul.f32 %v7269, %v209
        %7278 = vrot.lane.b32.xlu0 %v7270, 126
        %v7279 = vpop.permute.xlu0 %7278
        %7280 = vrot.lane.b32.xlu0 %v7271, 126
        %v7281 = vpop.permute.xlu0 %7280
        %7282 = vrot.lane.b32.xlu0 %v7272, 126
        %v7283 = vpop.permute.xlu0 %7282
        %7284 = vrot.lane.b32.xlu0 %v7273, 126
        %v7285 = vpop.permute.xlu0 %7284
        %v7290 = vadd.f32 %v7264, %v7279
        %v7291 = vadd.f32 %v7265, %v7281
        %v7292 = vadd.f32 %v7266, %v7283
        %v7293 = vadd.f32 %v7267, %v7285
        %s7294 = sld [smem:[#allocation2 + $0x609]]
        %v7295 = vstv %s7294
        %v7296 = vmul.f32 %v7295, %v211
        %v7297 = vmul.f32 %v7295, %v212
        %v7298 = vmul.f32 %v7295, %v213
        %v7299 = vmul.f32 %v7295, %v214
        %v7300 = vadd.f32 %v7290, %v7296
        %v7301 = vadd.f32 %v7291, %v7297
        %v7302 = vadd.f32 %v7292, %v7298
        %v7303 = vadd.f32 %v7293, %v7299
        %s7304 = sld [smem:[#allocation2 + $0x60a]]
        %v7305 = vstv %s7304
        %v7306 = vmul.f32 %v7305, %v211
        %v7307 = vmul.f32 %v7305, %v212
        %v7308 = vmul.f32 %v7305, %v213
        %v7309 = vmul.f32 %v7305, %v214
        %7314 = vrot.lane.b32.xlu0 %v7306, 127
        %v7315 = vpop.permute.xlu0 %7314
        %7316 = vrot.lane.b32.xlu0 %v7307, 127
        %v7317 = vpop.permute.xlu0 %7316
        %7318 = vrot.lane.b32.xlu0 %v7308, 127
        %v7319 = vpop.permute.xlu0 %7318
        %7320 = vrot.lane.b32.xlu0 %v7309, 127
        %v7321 = vpop.permute.xlu0 %7320
        %v7326 = vadd.f32 %v7300, %v7315
        %v7327 = vadd.f32 %v7301, %v7317
        %v7328 = vadd.f32 %v7302, %v7319
        %v7329 = vadd.f32 %v7303, %v7321
        %s7330 = sld [smem:[#allocation2 + $0x60b]]
        %v7331 = vstv %s7330
        %v7332 = vmul.f32 %v7331, %v211
        %v7333 = vmul.f32 %v7331, %v212
        %v7334 = vmul.f32 %v7331, %v213
        %v7335 = vmul.f32 %v7331, %v214
        %7340 = vrot.lane.b32.xlu0 %v7332, 126
        %v7341 = vpop.permute.xlu0 %7340
        %7342 = vrot.lane.b32.xlu0 %v7333, 126
        %v7343 = vpop.permute.xlu0 %7342
        %7344 = vrot.lane.b32.xlu0 %v7334, 126
        %v7345 = vpop.permute.xlu0 %7344
        %7346 = vrot.lane.b32.xlu0 %v7335, 126
        %v7347 = vpop.permute.xlu0 %7346
        %v7352 = vadd.f32 %v7326, %v7341
        %v7353 = vadd.f32 %v7327, %v7343
        %v7354 = vadd.f32 %v7328, %v7345
        %v7355 = vadd.f32 %v7329, %v7347
        %s7356 = sld [smem:[#allocation2 + $0x60c]]
        %v7357 = vstv %s7356
        %v7358 = vmul.f32 %v7357, %v215
        %v7359 = vmul.f32 %v7357, %v216
        %v7360 = vmul.f32 %v7357, %v217
        %v7361 = vmul.f32 %v7357, %v218
        %v7362 = vadd.f32 %v7352, %v7358
        %v7363 = vadd.f32 %v7353, %v7359
        %v7364 = vadd.f32 %v7354, %v7360
        %v7365 = vadd.f32 %v7355, %v7361
        %s7366 = sld [smem:[#allocation2 + $0x60d]]
        %v7367 = vstv %s7366
        %v7368 = vmul.f32 %v7367, %v215
        %v7369 = vmul.f32 %v7367, %v216
        %v7370 = vmul.f32 %v7367, %v217
        %v7371 = vmul.f32 %v7367, %v218
        %7376 = vrot.lane.b32.xlu0 %v7368, 127
        %v7377 = vpop.permute.xlu0 %7376
        %7378 = vrot.lane.b32.xlu0 %v7369, 127
        %v7379 = vpop.permute.xlu0 %7378
        %7380 = vrot.lane.b32.xlu0 %v7370, 127
        %v7381 = vpop.permute.xlu0 %7380
        %7382 = vrot.lane.b32.xlu0 %v7371, 127
        %v7383 = vpop.permute.xlu0 %7382
        %v7388 = vadd.f32 %v7362, %v7377
        %v7389 = vadd.f32 %v7363, %v7379
        %v7390 = vadd.f32 %v7364, %v7381
        %v7391 = vadd.f32 %v7365, %v7383
        %s7392 = sld [smem:[#allocation2 + $0x60e]]
        %v7393 = vstv %s7392
        %v7394 = vmul.f32 %v7393, %v215
        %v7395 = vmul.f32 %v7393, %v216
        %v7396 = vmul.f32 %v7393, %v217
        %v7397 = vmul.f32 %v7393, %v218
        %7402 = vrot.lane.b32.xlu0 %v7394, 126
        %v7403 = vpop.permute.xlu0 %7402
        %7404 = vrot.lane.b32.xlu0 %v7395, 126
        %v7405 = vpop.permute.xlu0 %7404
        %7406 = vrot.lane.b32.xlu0 %v7396, 126
        %v7407 = vpop.permute.xlu0 %7406
        %7408 = vrot.lane.b32.xlu0 %v7397, 126
        %v7409 = vpop.permute.xlu0 %7408
        %v7414 = vadd.f32 %v7388, %v7403
        %v7415 = vadd.f32 %v7389, %v7405
        %v7416 = vadd.f32 %v7390, %v7407
        %v7417 = vadd.f32 %v7391, %v7409
        %s7418 = sld [smem:[#allocation2 + $0x60f]]
        %v7419 = vstv %s7418
        %v7420 = vmul.f32 %v7419, %v219
        %v7421 = vmul.f32 %v7419, %v220
        %v7422 = vmul.f32 %v7419, %v221
        %v7423 = vmul.f32 %v7419, %v222
        %v7424 = vadd.f32 %v7414, %v7420
        %v7425 = vadd.f32 %v7415, %v7421
        %v7426 = vadd.f32 %v7416, %v7422
        %v7427 = vadd.f32 %v7417, %v7423
        %s7428 = sld [smem:[#allocation2 + $0x610]]
        %v7429 = vstv %s7428
        %v7430 = vmul.f32 %v7429, %v219
        %v7431 = vmul.f32 %v7429, %v220
        %v7432 = vmul.f32 %v7429, %v221
        %v7433 = vmul.f32 %v7429, %v222
        %7438 = vrot.lane.b32.xlu0 %v7430, 127
        %v7439 = vpop.permute.xlu0 %7438
        %7440 = vrot.lane.b32.xlu0 %v7431, 127
        %v7441 = vpop.permute.xlu0 %7440
        %7442 = vrot.lane.b32.xlu0 %v7432, 127
        %v7443 = vpop.permute.xlu0 %7442
        %7444 = vrot.lane.b32.xlu0 %v7433, 127
        %v7445 = vpop.permute.xlu0 %7444
        %v7450 = vadd.f32 %v7424, %v7439
        %v7451 = vadd.f32 %v7425, %v7441
        %v7452 = vadd.f32 %v7426, %v7443
        %v7453 = vadd.f32 %v7427, %v7445
        %s7454 = sld [smem:[#allocation2 + $0x611]]
        %v7455 = vstv %s7454
        %v7456 = vmul.f32 %v7455, %v219
        %v7457 = vmul.f32 %v7455, %v220
        %v7458 = vmul.f32 %v7455, %v221
        %v7459 = vmul.f32 %v7455, %v222
        %7464 = vrot.lane.b32.xlu0 %v7456, 126
        %v7465 = vpop.permute.xlu0 %7464
        %7466 = vrot.lane.b32.xlu0 %v7457, 126
        %v7467 = vpop.permute.xlu0 %7466
        %7468 = vrot.lane.b32.xlu0 %v7458, 126
        %v7469 = vpop.permute.xlu0 %7468
        %7470 = vrot.lane.b32.xlu0 %v7459, 126
        %v7471 = vpop.permute.xlu0 %7470
        %v7476 = vadd.f32 %v7450, %v7465
        %v7477 = vadd.f32 %v7451, %v7467
        %v7478 = vadd.f32 %v7452, %v7469
        %v7479 = vadd.f32 %v7453, %v7471
        %s7480 = sld [smem:[#allocation2 + $0x612]]
        %v7481 = vstv %s7480
        %v7482 = vmul.f32 %v7481, %v224
        %v7483 = vmul.f32 %v7481, %v225
        %v7484 = vmul.f32 %v7481, %v226
        %v7485 = vmul.f32 %v7481, %v227
        %v7486 = vadd.f32 %v7476, %v7482
        %v7487 = vadd.f32 %v7477, %v7483
        %v7488 = vadd.f32 %v7478, %v7484
        %v7489 = vadd.f32 %v7479, %v7485
        %s7490 = sld [smem:[#allocation2 + $0x613]]
        %v7491 = vstv %s7490
        %v7492 = vmul.f32 %v7491, %v224
        %v7493 = vmul.f32 %v7491, %v225
        %v7494 = vmul.f32 %v7491, %v226
        %v7495 = vmul.f32 %v7491, %v227
        %7500 = vrot.lane.b32.xlu0 %v7492, 127
        %v7501 = vpop.permute.xlu0 %7500
        %7502 = vrot.lane.b32.xlu0 %v7493, 127
        %v7503 = vpop.permute.xlu0 %7502
        %7504 = vrot.lane.b32.xlu0 %v7494, 127
        %v7505 = vpop.permute.xlu0 %7504
        %7506 = vrot.lane.b32.xlu0 %v7495, 127
        %v7507 = vpop.permute.xlu0 %7506
        %v7512 = vadd.f32 %v7486, %v7501
        %v7513 = vadd.f32 %v7487, %v7503
        %v7514 = vadd.f32 %v7488, %v7505
        %v7515 = vadd.f32 %v7489, %v7507
        %s7516 = sld [smem:[#allocation2 + $0x614]]
        %v7517 = vstv %s7516
        %v7518 = vmul.f32 %v7517, %v224
        %v7519 = vmul.f32 %v7517, %v225
        %v7520 = vmul.f32 %v7517, %v226
        %v7521 = vmul.f32 %v7517, %v227
        %7526 = vrot.lane.b32.xlu0 %v7518, 126
        %v7527 = vpop.permute.xlu0 %7526
        %7528 = vrot.lane.b32.xlu0 %v7519, 126
        %v7529 = vpop.permute.xlu0 %7528
        %7530 = vrot.lane.b32.xlu0 %v7520, 126
        %v7531 = vpop.permute.xlu0 %7530
        %7532 = vrot.lane.b32.xlu0 %v7521, 126
        %v7533 = vpop.permute.xlu0 %7532
        %v7538 = vadd.f32 %v7512, %v7527
        %v7539 = vadd.f32 %v7513, %v7529
        %v7540 = vadd.f32 %v7514, %v7531
        %v7541 = vadd.f32 %v7515, %v7533
        %s7542 = sld [smem:[#allocation2 + $0x615]]
        %v7543 = vstv %s7542
        %v7544 = vmul.f32 %v7543, %v228
        %v7545 = vmul.f32 %v7543, %v229
        %v7546 = vmul.f32 %v7543, %v230
        %v7547 = vmul.f32 %v7543, %v231
        %v7548 = vadd.f32 %v7538, %v7544
        %v7549 = vadd.f32 %v7539, %v7545
        %v7550 = vadd.f32 %v7540, %v7546
        %v7551 = vadd.f32 %v7541, %v7547
        %s7552 = sld [smem:[#allocation2 + $0x616]]
        %v7553 = vstv %s7552
        %v7554 = vmul.f32 %v7553, %v228
        %v7555 = vmul.f32 %v7553, %v229
        %v7556 = vmul.f32 %v7553, %v230
        %v7557 = vmul.f32 %v7553, %v231
        %7562 = vrot.lane.b32.xlu0 %v7554, 127
        %v7563 = vpop.permute.xlu0 %7562
        %7564 = vrot.lane.b32.xlu0 %v7555, 127
        %v7565 = vpop.permute.xlu0 %7564
        %7566 = vrot.lane.b32.xlu0 %v7556, 127
        %v7567 = vpop.permute.xlu0 %7566
        %7568 = vrot.lane.b32.xlu0 %v7557, 127
        %v7569 = vpop.permute.xlu0 %7568
        %v7574 = vadd.f32 %v7548, %v7563
        %v7575 = vadd.f32 %v7549, %v7565
        %v7576 = vadd.f32 %v7550, %v7567
        %v7577 = vadd.f32 %v7551, %v7569
        %s7578 = sld [smem:[#allocation2 + $0x617]]
        %v7579 = vstv %s7578
        %v7580 = vmul.f32 %v7579, %v228
        %v7581 = vmul.f32 %v7579, %v229
        %v7582 = vmul.f32 %v7579, %v230
        %v7583 = vmul.f32 %v7579, %v231
        %7588 = vrot.lane.b32.xlu0 %v7580, 126
        %v7589 = vpop.permute.xlu0 %7588
        %7590 = vrot.lane.b32.xlu0 %v7581, 126
        %v7591 = vpop.permute.xlu0 %7590
        %7592 = vrot.lane.b32.xlu0 %v7582, 126
        %v7593 = vpop.permute.xlu0 %7592
        %7594 = vrot.lane.b32.xlu0 %v7583, 126
        %v7595 = vpop.permute.xlu0 %7594
        %v7600 = vadd.f32 %v7574, %v7589
        %v7601 = vadd.f32 %v7575, %v7591
        %v7602 = vadd.f32 %v7576, %v7593
        %v7603 = vadd.f32 %v7577, %v7595
        %s7604 = sld [smem:[#allocation2 + $0x618]]
        %v7605 = vstv %s7604
        %v7606 = vmul.f32 %v7605, %v232
        %v7607 = vmul.f32 %v7605, %v233
        %v7608 = vmul.f32 %v7605, %v234
        %v7609 = vmul.f32 %v7605, %v235
        %v7610 = vadd.f32 %v7600, %v7606
        %v7611 = vadd.f32 %v7601, %v7607
        %v7612 = vadd.f32 %v7602, %v7608
        %v7613 = vadd.f32 %v7603, %v7609
        %s7614 = sld [smem:[#allocation2 + $0x619]]
        %v7615 = vstv %s7614
        %v7616 = vmul.f32 %v7615, %v232
        %v7617 = vmul.f32 %v7615, %v233
        %v7618 = vmul.f32 %v7615, %v234
        %v7619 = vmul.f32 %v7615, %v235
        %7624 = vrot.lane.b32.xlu0 %v7616, 127
        %v7625 = vpop.permute.xlu0 %7624
        %7626 = vrot.lane.b32.xlu0 %v7617, 127
        %v7627 = vpop.permute.xlu0 %7626
        %7628 = vrot.lane.b32.xlu0 %v7618, 127
        %v7629 = vpop.permute.xlu0 %7628
        %7630 = vrot.lane.b32.xlu0 %v7619, 127
        %v7631 = vpop.permute.xlu0 %7630
        %v7636 = vadd.f32 %v7610, %v7625
        %v7637 = vadd.f32 %v7611, %v7627
        %v7638 = vadd.f32 %v7612, %v7629
        %v7639 = vadd.f32 %v7613, %v7631
        %s7640 = sld [smem:[#allocation2 + $0x61a]]
        %v7641 = vstv %s7640
        %v7642 = vmul.f32 %v7641, %v232
        %v7643 = vmul.f32 %v7641, %v233
        %v7644 = vmul.f32 %v7641, %v234
        %v7645 = vmul.f32 %v7641, %v235
        %7650 = vrot.lane.b32.xlu0 %v7642, 126
        %v7651 = vpop.permute.xlu0 %7650
        %7652 = vrot.lane.b32.xlu0 %v7643, 126
        %v7653 = vpop.permute.xlu0 %7652
        %7654 = vrot.lane.b32.xlu0 %v7644, 126
        %v7655 = vpop.permute.xlu0 %7654
        %7656 = vrot.lane.b32.xlu0 %v7645, 126
        %v7657 = vpop.permute.xlu0 %7656
        %v7662 = vadd.f32 %v7636, %v7651
        %v7663 = vadd.f32 %v7637, %v7653
        %v7664 = vadd.f32 %v7638, %v7655
        %v7665 = vadd.f32 %v7639, %v7657
        %s7666 = sld [smem:[#allocation5 + $0xc]]
        %v7667 = vstv %s7666
        %v7668 = vadd.f32 %v7662, %v7667
        %v7669 = vadd.f32 %v7663, %v7667
        %v7670 = vadd.f32 %v7664, %v7667
        %v7671 = vadd.f32 %v7665, %v7667
        %v7672 = vmax.f32 %v7668, 0.0
        %v7673 = vmax.f32 %v7669, 0.0
        %v7674 = vmax.f32 %v7670, 0.0
        %v7675 = vmax.f32 %v7671, 0.0
        %v7676 = vmin.f32 %v7672, 0.5
        %v7677 = vmin.f32 %v7673, 0.5
        %v7678 = vmin.f32 %v7674, 0.5
        %v7679 = vmin.f32 %v7675, 0.5
        %s7680 = scalar_lea.vmem %s192, 384 [#allocation7]
        %7681 = vst.msk [vmem:[%s7680] sm:$0xff] %vm804, %v7676
        %7682 = vst.msk [vmem:[%s7680 + $0x8] sm:$0xff] %vm804, %v7677
        %7683 = vst.msk [vmem:[%s7680 + $0x10] sm:$0xff] %vm804, %v7678
        %7684 = vst.msk [vmem:[%s7680 + $0x18] sm:$0xff] %vm804, %v7679
        %s7685 = sld [smem:[#allocation2 + $0x680]]
        %v7686 = vstv %s7685
        %v7687 = vmul.f32 %v7686, %v198
        %v7688 = vmul.f32 %v7686, %v199
        %v7689 = vmul.f32 %v7686, %v200
        %v7690 = vmul.f32 %v7686, %v201
        %s7691 = sld [smem:[#allocation2 + $0x681]]
        %v7692 = vstv %s7691
        %v7693 = vmul.f32 %v7692, %v198
        %v7694 = vmul.f32 %v7692, %v199
        %v7695 = vmul.f32 %v7692, %v200
        %v7696 = vmul.f32 %v7692, %v201
        %7701 = vrot.lane.b32.xlu0 %v7693, 127
        %v7702 = vpop.permute.xlu0 %7701
        %7703 = vrot.lane.b32.xlu0 %v7694, 127
        %v7704 = vpop.permute.xlu0 %7703
        %7705 = vrot.lane.b32.xlu0 %v7695, 127
        %v7706 = vpop.permute.xlu0 %7705
        %7707 = vrot.lane.b32.xlu0 %v7696, 127
        %v7708 = vpop.permute.xlu0 %7707
        %v7713 = vadd.f32 %v7687, %v7702
        %v7714 = vadd.f32 %v7688, %v7704
        %v7715 = vadd.f32 %v7689, %v7706
        %v7716 = vadd.f32 %v7690, %v7708
        %s7717 = sld [smem:[#allocation2 + $0x682]]
        %v7718 = vstv %s7717
        %v7719 = vmul.f32 %v7718, %v198
        %v7720 = vmul.f32 %v7718, %v199
        %v7721 = vmul.f32 %v7718, %v200
        %v7722 = vmul.f32 %v7718, %v201
        %7727 = vrot.lane.b32.xlu0 %v7719, 126
        %v7728 = vpop.permute.xlu0 %7727
        %7729 = vrot.lane.b32.xlu0 %v7720, 126
        %v7730 = vpop.permute.xlu0 %7729
        %7731 = vrot.lane.b32.xlu0 %v7721, 126
        %v7732 = vpop.permute.xlu0 %7731
        %7733 = vrot.lane.b32.xlu0 %v7722, 126
        %v7734 = vpop.permute.xlu0 %7733
        %v7739 = vadd.f32 %v7713, %v7728
        %v7740 = vadd.f32 %v7714, %v7730
        %v7741 = vadd.f32 %v7715, %v7732
        %v7742 = vadd.f32 %v7716, %v7734
        %s7743 = sld [smem:[#allocation2 + $0x683]]
        %v7744 = vstv %s7743
        %v7745 = vmul.f32 %v7744, %v202
        %v7746 = vmul.f32 %v7744, %v203
        %v7747 = vmul.f32 %v7744, %v204
        %v7748 = vmul.f32 %v7744, %v205
        %v7749 = vadd.f32 %v7739, %v7745
        %v7750 = vadd.f32 %v7740, %v7746
        %v7751 = vadd.f32 %v7741, %v7747
        %v7752 = vadd.f32 %v7742, %v7748
        %s7753 = sld [smem:[#allocation2 + $0x684]]
        %v7754 = vstv %s7753
        %v7755 = vmul.f32 %v7754, %v202
        %v7756 = vmul.f32 %v7754, %v203
        %v7757 = vmul.f32 %v7754, %v204
        %v7758 = vmul.f32 %v7754, %v205
        %7763 = vrot.lane.b32.xlu0 %v7755, 127
        %v7764 = vpop.permute.xlu0 %7763
        %7765 = vrot.lane.b32.xlu0 %v7756, 127
        %v7766 = vpop.permute.xlu0 %7765
        %7767 = vrot.lane.b32.xlu0 %v7757, 127
        %v7768 = vpop.permute.xlu0 %7767
        %7769 = vrot.lane.b32.xlu0 %v7758, 127
        %v7770 = vpop.permute.xlu0 %7769
        %v7775 = vadd.f32 %v7749, %v7764
        %v7776 = vadd.f32 %v7750, %v7766
        %v7777 = vadd.f32 %v7751, %v7768
        %v7778 = vadd.f32 %v7752, %v7770
        %s7779 = sld [smem:[#allocation2 + $0x685]]
        %v7780 = vstv %s7779
        %v7781 = vmul.f32 %v7780, %v202
        %v7782 = vmul.f32 %v7780, %v203
        %v7783 = vmul.f32 %v7780, %v204
        %v7784 = vmul.f32 %v7780, %v205
        %7789 = vrot.lane.b32.xlu0 %v7781, 126
        %v7790 = vpop.permute.xlu0 %7789
        %7791 = vrot.lane.b32.xlu0 %v7782, 126
        %v7792 = vpop.permute.xlu0 %7791
        %7793 = vrot.lane.b32.xlu0 %v7783, 126
        %v7794 = vpop.permute.xlu0 %7793
        %7795 = vrot.lane.b32.xlu0 %v7784, 126
        %v7796 = vpop.permute.xlu0 %7795
        %v7801 = vadd.f32 %v7775, %v7790
        %v7802 = vadd.f32 %v7776, %v7792
        %v7803 = vadd.f32 %v7777, %v7794
        %v7804 = vadd.f32 %v7778, %v7796
        %s7805 = sld [smem:[#allocation2 + $0x686]]
        %v7806 = vstv %s7805
        %v7807 = vmul.f32 %v7806, %v206
        %v7808 = vmul.f32 %v7806, %v207
        %v7809 = vmul.f32 %v7806, %v208
        %v7810 = vmul.f32 %v7806, %v209
        %v7811 = vadd.f32 %v7801, %v7807
        %v7812 = vadd.f32 %v7802, %v7808
        %v7813 = vadd.f32 %v7803, %v7809
        %v7814 = vadd.f32 %v7804, %v7810
        %s7815 = sld [smem:[#allocation2 + $0x687]]
        %v7816 = vstv %s7815
        %v7817 = vmul.f32 %v7816, %v206
        %v7818 = vmul.f32 %v7816, %v207
        %v7819 = vmul.f32 %v7816, %v208
        %v7820 = vmul.f32 %v7816, %v209
        %7825 = vrot.lane.b32.xlu0 %v7817, 127
        %v7826 = vpop.permute.xlu0 %7825
        %7827 = vrot.lane.b32.xlu0 %v7818, 127
        %v7828 = vpop.permute.xlu0 %7827
        %7829 = vrot.lane.b32.xlu0 %v7819, 127
        %v7830 = vpop.permute.xlu0 %7829
        %7831 = vrot.lane.b32.xlu0 %v7820, 127
        %v7832 = vpop.permute.xlu0 %7831
        %v7837 = vadd.f32 %v7811, %v7826
        %v7838 = vadd.f32 %v7812, %v7828
        %v7839 = vadd.f32 %v7813, %v7830
        %v7840 = vadd.f32 %v7814, %v7832
        %s7841 = sld [smem:[#allocation2 + $0x688]]
        %v7842 = vstv %s7841
        %v7843 = vmul.f32 %v7842, %v206
        %v7844 = vmul.f32 %v7842, %v207
        %v7845 = vmul.f32 %v7842, %v208
        %v7846 = vmul.f32 %v7842, %v209
        %7851 = vrot.lane.b32.xlu0 %v7843, 126
        %v7852 = vpop.permute.xlu0 %7851
        %7853 = vrot.lane.b32.xlu0 %v7844, 126
        %v7854 = vpop.permute.xlu0 %7853
        %7855 = vrot.lane.b32.xlu0 %v7845, 126
        %v7856 = vpop.permute.xlu0 %7855
        %7857 = vrot.lane.b32.xlu0 %v7846, 126
        %v7858 = vpop.permute.xlu0 %7857
        %v7863 = vadd.f32 %v7837, %v7852
        %v7864 = vadd.f32 %v7838, %v7854
        %v7865 = vadd.f32 %v7839, %v7856
        %v7866 = vadd.f32 %v7840, %v7858
        %s7867 = sld [smem:[#allocation2 + $0x689]]
        %v7868 = vstv %s7867
        %v7869 = vmul.f32 %v7868, %v211
        %v7870 = vmul.f32 %v7868, %v212
        %v7871 = vmul.f32 %v7868, %v213
        %v7872 = vmul.f32 %v7868, %v214
        %v7873 = vadd.f32 %v7863, %v7869
        %v7874 = vadd.f32 %v7864, %v7870
        %v7875 = vadd.f32 %v7865, %v7871
        %v7876 = vadd.f32 %v7866, %v7872
        %s7877 = sld [smem:[#allocation2 + $0x68a]]
        %v7878 = vstv %s7877
        %v7879 = vmul.f32 %v7878, %v211
        %v7880 = vmul.f32 %v7878, %v212
        %v7881 = vmul.f32 %v7878, %v213
        %v7882 = vmul.f32 %v7878, %v214
        %7887 = vrot.lane.b32.xlu0 %v7879, 127
        %v7888 = vpop.permute.xlu0 %7887
        %7889 = vrot.lane.b32.xlu0 %v7880, 127
        %v7890 = vpop.permute.xlu0 %7889
        %7891 = vrot.lane.b32.xlu0 %v7881, 127
        %v7892 = vpop.permute.xlu0 %7891
        %7893 = vrot.lane.b32.xlu0 %v7882, 127
        %v7894 = vpop.permute.xlu0 %7893
        %v7899 = vadd.f32 %v7873, %v7888
        %v7900 = vadd.f32 %v7874, %v7890
        %v7901 = vadd.f32 %v7875, %v7892
        %v7902 = vadd.f32 %v7876, %v7894
        %s7903 = sld [smem:[#allocation2 + $0x68b]]
        %v7904 = vstv %s7903
        %v7905 = vmul.f32 %v7904, %v211
        %v7906 = vmul.f32 %v7904, %v212
        %v7907 = vmul.f32 %v7904, %v213
        %v7908 = vmul.f32 %v7904, %v214
        %7913 = vrot.lane.b32.xlu0 %v7905, 126
        %v7914 = vpop.permute.xlu0 %7913
        %7915 = vrot.lane.b32.xlu0 %v7906, 126
        %v7916 = vpop.permute.xlu0 %7915
        %7917 = vrot.lane.b32.xlu0 %v7907, 126
        %v7918 = vpop.permute.xlu0 %7917
        %7919 = vrot.lane.b32.xlu0 %v7908, 126
        %v7920 = vpop.permute.xlu0 %7919
        %v7925 = vadd.f32 %v7899, %v7914
        %v7926 = vadd.f32 %v7900, %v7916
        %v7927 = vadd.f32 %v7901, %v7918
        %v7928 = vadd.f32 %v7902, %v7920
        %s7929 = sld [smem:[#allocation2 + $0x68c]]
        %v7930 = vstv %s7929
        %v7931 = vmul.f32 %v7930, %v215
        %v7932 = vmul.f32 %v7930, %v216
        %v7933 = vmul.f32 %v7930, %v217
        %v7934 = vmul.f32 %v7930, %v218
        %v7935 = vadd.f32 %v7925, %v7931
        %v7936 = vadd.f32 %v7926, %v7932
        %v7937 = vadd.f32 %v7927, %v7933
        %v7938 = vadd.f32 %v7928, %v7934
        %s7939 = sld [smem:[#allocation2 + $0x68d]]
        %v7940 = vstv %s7939
        %v7941 = vmul.f32 %v7940, %v215
        %v7942 = vmul.f32 %v7940, %v216
        %v7943 = vmul.f32 %v7940, %v217
        %v7944 = vmul.f32 %v7940, %v218
        %7949 = vrot.lane.b32.xlu0 %v7941, 127
        %v7950 = vpop.permute.xlu0 %7949
        %7951 = vrot.lane.b32.xlu0 %v7942, 127
        %v7952 = vpop.permute.xlu0 %7951
        %7953 = vrot.lane.b32.xlu0 %v7943, 127
        %v7954 = vpop.permute.xlu0 %7953
        %7955 = vrot.lane.b32.xlu0 %v7944, 127
        %v7956 = vpop.permute.xlu0 %7955
        %v7961 = vadd.f32 %v7935, %v7950
        %v7962 = vadd.f32 %v7936, %v7952
        %v7963 = vadd.f32 %v7937, %v7954
        %v7964 = vadd.f32 %v7938, %v7956
        %s7965 = sld [smem:[#allocation2 + $0x68e]]
        %v7966 = vstv %s7965
        %v7967 = vmul.f32 %v7966, %v215
        %v7968 = vmul.f32 %v7966, %v216
        %v7969 = vmul.f32 %v7966, %v217
        %v7970 = vmul.f32 %v7966, %v218
        %7975 = vrot.lane.b32.xlu0 %v7967, 126
        %v7976 = vpop.permute.xlu0 %7975
        %7977 = vrot.lane.b32.xlu0 %v7968, 126
        %v7978 = vpop.permute.xlu0 %7977
        %7979 = vrot.lane.b32.xlu0 %v7969, 126
        %v7980 = vpop.permute.xlu0 %7979
        %7981 = vrot.lane.b32.xlu0 %v7970, 126
        %v7982 = vpop.permute.xlu0 %7981
        %v7987 = vadd.f32 %v7961, %v7976
        %v7988 = vadd.f32 %v7962, %v7978
        %v7989 = vadd.f32 %v7963, %v7980
        %v7990 = vadd.f32 %v7964, %v7982
        %s7991 = sld [smem:[#allocation2 + $0x68f]]
        %v7992 = vstv %s7991
        %v7993 = vmul.f32 %v7992, %v219
        %v7994 = vmul.f32 %v7992, %v220
        %v7995 = vmul.f32 %v7992, %v221
        %v7996 = vmul.f32 %v7992, %v222
        %v7997 = vadd.f32 %v7987, %v7993
        %v7998 = vadd.f32 %v7988, %v7994
        %v7999 = vadd.f32 %v7989, %v7995
        %v8000 = vadd.f32 %v7990, %v7996
        %s8001 = sld [smem:[#allocation2 + $0x690]]
        %v8002 = vstv %s8001
        %v8003 = vmul.f32 %v8002, %v219
        %v8004 = vmul.f32 %v8002, %v220
        %v8005 = vmul.f32 %v8002, %v221
        %v8006 = vmul.f32 %v8002, %v222
        %8011 = vrot.lane.b32.xlu0 %v8003, 127
        %v8012 = vpop.permute.xlu0 %8011
        %8013 = vrot.lane.b32.xlu0 %v8004, 127
        %v8014 = vpop.permute.xlu0 %8013
        %8015 = vrot.lane.b32.xlu0 %v8005, 127
        %v8016 = vpop.permute.xlu0 %8015
        %8017 = vrot.lane.b32.xlu0 %v8006, 127
        %v8018 = vpop.permute.xlu0 %8017
        %v8023 = vadd.f32 %v7997, %v8012
        %v8024 = vadd.f32 %v7998, %v8014
        %v8025 = vadd.f32 %v7999, %v8016
        %v8026 = vadd.f32 %v8000, %v8018
        %s8027 = sld [smem:[#allocation2 + $0x691]]
        %v8028 = vstv %s8027
        %v8029 = vmul.f32 %v8028, %v219
        %v8030 = vmul.f32 %v8028, %v220
        %v8031 = vmul.f32 %v8028, %v221
        %v8032 = vmul.f32 %v8028, %v222
        %8037 = vrot.lane.b32.xlu0 %v8029, 126
        %v8038 = vpop.permute.xlu0 %8037
        %8039 = vrot.lane.b32.xlu0 %v8030, 126
        %v8040 = vpop.permute.xlu0 %8039
        %8041 = vrot.lane.b32.xlu0 %v8031, 126
        %v8042 = vpop.permute.xlu0 %8041
        %8043 = vrot.lane.b32.xlu0 %v8032, 126
        %v8044 = vpop.permute.xlu0 %8043
        %v8049 = vadd.f32 %v8023, %v8038
        %v8050 = vadd.f32 %v8024, %v8040
        %v8051 = vadd.f32 %v8025, %v8042
        %v8052 = vadd.f32 %v8026, %v8044
        %s8053 = sld [smem:[#allocation2 + $0x692]]
        %v8054 = vstv %s8053
        %v8055 = vmul.f32 %v8054, %v224
        %v8056 = vmul.f32 %v8054, %v225
        %v8057 = vmul.f32 %v8054, %v226
        %v8058 = vmul.f32 %v8054, %v227
        %v8059 = vadd.f32 %v8049, %v8055
        %v8060 = vadd.f32 %v8050, %v8056
        %v8061 = vadd.f32 %v8051, %v8057
        %v8062 = vadd.f32 %v8052, %v8058
        %s8063 = sld [smem:[#allocation2 + $0x693]]
        %v8064 = vstv %s8063
        %v8065 = vmul.f32 %v8064, %v224
        %v8066 = vmul.f32 %v8064, %v225
        %v8067 = vmul.f32 %v8064, %v226
        %v8068 = vmul.f32 %v8064, %v227
        %8073 = vrot.lane.b32.xlu0 %v8065, 127
        %v8074 = vpop.permute.xlu0 %8073
        %8075 = vrot.lane.b32.xlu0 %v8066, 127
        %v8076 = vpop.permute.xlu0 %8075
        %8077 = vrot.lane.b32.xlu0 %v8067, 127
        %v8078 = vpop.permute.xlu0 %8077
        %8079 = vrot.lane.b32.xlu0 %v8068, 127
        %v8080 = vpop.permute.xlu0 %8079
        %v8085 = vadd.f32 %v8059, %v8074
        %v8086 = vadd.f32 %v8060, %v8076
        %v8087 = vadd.f32 %v8061, %v8078
        %v8088 = vadd.f32 %v8062, %v8080
        %s8089 = sld [smem:[#allocation2 + $0x694]]
        %v8090 = vstv %s8089
        %v8091 = vmul.f32 %v8090, %v224
        %v8092 = vmul.f32 %v8090, %v225
        %v8093 = vmul.f32 %v8090, %v226
        %v8094 = vmul.f32 %v8090, %v227
        %8099 = vrot.lane.b32.xlu0 %v8091, 126
        %v8100 = vpop.permute.xlu0 %8099
        %8101 = vrot.lane.b32.xlu0 %v8092, 126
        %v8102 = vpop.permute.xlu0 %8101
        %8103 = vrot.lane.b32.xlu0 %v8093, 126
        %v8104 = vpop.permute.xlu0 %8103
        %8105 = vrot.lane.b32.xlu0 %v8094, 126
        %v8106 = vpop.permute.xlu0 %8105
        %v8111 = vadd.f32 %v8085, %v8100
        %v8112 = vadd.f32 %v8086, %v8102
        %v8113 = vadd.f32 %v8087, %v8104
        %v8114 = vadd.f32 %v8088, %v8106
        %s8115 = sld [smem:[#allocation2 + $0x695]]
        %v8116 = vstv %s8115
        %v8117 = vmul.f32 %v8116, %v228
        %v8118 = vmul.f32 %v8116, %v229
        %v8119 = vmul.f32 %v8116, %v230
        %v8120 = vmul.f32 %v8116, %v231
        %v8121 = vadd.f32 %v8111, %v8117
        %v8122 = vadd.f32 %v8112, %v8118
        %v8123 = vadd.f32 %v8113, %v8119
        %v8124 = vadd.f32 %v8114, %v8120
        %s8125 = sld [smem:[#allocation2 + $0x696]]
        %v8126 = vstv %s8125
        %v8127 = vmul.f32 %v8126, %v228
        %v8128 = vmul.f32 %v8126, %v229
        %v8129 = vmul.f32 %v8126, %v230
        %v8130 = vmul.f32 %v8126, %v231
        %8135 = vrot.lane.b32.xlu0 %v8127, 127
        %v8136 = vpop.permute.xlu0 %8135
        %8137 = vrot.lane.b32.xlu0 %v8128, 127
        %v8138 = vpop.permute.xlu0 %8137
        %8139 = vrot.lane.b32.xlu0 %v8129, 127
        %v8140 = vpop.permute.xlu0 %8139
        %8141 = vrot.lane.b32.xlu0 %v8130, 127
        %v8142 = vpop.permute.xlu0 %8141
        %v8147 = vadd.f32 %v8121, %v8136
        %v8148 = vadd.f32 %v8122, %v8138
        %v8149 = vadd.f32 %v8123, %v8140
        %v8150 = vadd.f32 %v8124, %v8142
        %s8151 = sld [smem:[#allocation2 + $0x697]]
        %v8152 = vstv %s8151
        %v8153 = vmul.f32 %v8152, %v228
        %v8154 = vmul.f32 %v8152, %v229
        %v8155 = vmul.f32 %v8152, %v230
        %v8156 = vmul.f32 %v8152, %v231
        %8161 = vrot.lane.b32.xlu0 %v8153, 126
        %v8162 = vpop.permute.xlu0 %8161
        %8163 = vrot.lane.b32.xlu0 %v8154, 126
        %v8164 = vpop.permute.xlu0 %8163
        %8165 = vrot.lane.b32.xlu0 %v8155, 126
        %v8166 = vpop.permute.xlu0 %8165
        %8167 = vrot.lane.b32.xlu0 %v8156, 126
        %v8168 = vpop.permute.xlu0 %8167
        %v8173 = vadd.f32 %v8147, %v8162
        %v8174 = vadd.f32 %v8148, %v8164
        %v8175 = vadd.f32 %v8149, %v8166
        %v8176 = vadd.f32 %v8150, %v8168
        %s8177 = sld [smem:[#allocation2 + $0x698]]
        %v8178 = vstv %s8177
        %v8179 = vmul.f32 %v8178, %v232
        %v8180 = vmul.f32 %v8178, %v233
        %v8181 = vmul.f32 %v8178, %v234
        %v8182 = vmul.f32 %v8178, %v235
        %v8183 = vadd.f32 %v8173, %v8179
        %v8184 = vadd.f32 %v8174, %v8180
        %v8185 = vadd.f32 %v8175, %v8181
        %v8186 = vadd.f32 %v8176, %v8182
        %s8187 = sld [smem:[#allocation2 + $0x699]]
        %v8188 = vstv %s8187
        %v8189 = vmul.f32 %v8188, %v232
        %v8190 = vmul.f32 %v8188, %v233
        %v8191 = vmul.f32 %v8188, %v234
        %v8192 = vmul.f32 %v8188, %v235
        %8197 = vrot.lane.b32.xlu0 %v8189, 127
        %v8198 = vpop.permute.xlu0 %8197
        %8199 = vrot.lane.b32.xlu0 %v8190, 127
        %v8200 = vpop.permute.xlu0 %8199
        %8201 = vrot.lane.b32.xlu0 %v8191, 127
        %v8202 = vpop.permute.xlu0 %8201
        %8203 = vrot.lane.b32.xlu0 %v8192, 127
        %v8204 = vpop.permute.xlu0 %8203
        %v8209 = vadd.f32 %v8183, %v8198
        %v8210 = vadd.f32 %v8184, %v8200
        %v8211 = vadd.f32 %v8185, %v8202
        %v8212 = vadd.f32 %v8186, %v8204
        %s8213 = sld [smem:[#allocation2 + $0x69a]]
        %v8214 = vstv %s8213
        %v8215 = vmul.f32 %v8214, %v232
        %v8216 = vmul.f32 %v8214, %v233
        %v8217 = vmul.f32 %v8214, %v234
        %v8218 = vmul.f32 %v8214, %v235
        %8223 = vrot.lane.b32.xlu0 %v8215, 126
        %v8224 = vpop.permute.xlu0 %8223
        %8225 = vrot.lane.b32.xlu0 %v8216, 126
        %v8226 = vpop.permute.xlu0 %8225
        %8227 = vrot.lane.b32.xlu0 %v8217, 126
        %v8228 = vpop.permute.xlu0 %8227
        %8229 = vrot.lane.b32.xlu0 %v8218, 126
        %v8230 = vpop.permute.xlu0 %8229
        %v8235 = vadd.f32 %v8209, %v8224
        %v8236 = vadd.f32 %v8210, %v8226
        %v8237 = vadd.f32 %v8211, %v8228
        %v8238 = vadd.f32 %v8212, %v8230
        %s8239 = sld [smem:[#allocation5 + $0xd]]
        %v8240 = vstv %s8239
        %v8241 = vadd.f32 %v8235, %v8240
        %v8242 = vadd.f32 %v8236, %v8240
        %v8243 = vadd.f32 %v8237, %v8240
        %v8244 = vadd.f32 %v8238, %v8240
        %v8245 = vmax.f32 %v8241, 0.0
        %v8246 = vmax.f32 %v8242, 0.0
        %v8247 = vmax.f32 %v8243, 0.0
        %v8248 = vmax.f32 %v8244, 0.0
        %v8249 = vmin.f32 %v8245, 0.5
        %v8250 = vmin.f32 %v8246, 0.5
        %v8251 = vmin.f32 %v8247, 0.5
        %v8252 = vmin.f32 %v8248, 0.5
        %s8253 = scalar_lea.vmem %s192, 416 [#allocation7]
        %8254 = vst.msk [vmem:[%s8253] sm:$0xff] %vm804, %v8249
        %8255 = vst.msk [vmem:[%s8253 + $0x8] sm:$0xff] %vm804, %v8250
        %8256 = vst.msk [vmem:[%s8253 + $0x10] sm:$0xff] %vm804, %v8251
        %8257 = vst.msk [vmem:[%s8253 + $0x18] sm:$0xff] %vm804, %v8252
        %s8258 = sld [smem:[#allocation2 + $0x700]]
        %v8259 = vstv %s8258
        %v8260 = vmul.f32 %v8259, %v198
        %v8261 = vmul.f32 %v8259, %v199
        %v8262 = vmul.f32 %v8259, %v200
        %v8263 = vmul.f32 %v8259, %v201
        %s8264 = sld [smem:[#allocation2 + $0x701]]
        %v8265 = vstv %s8264
        %v8266 = vmul.f32 %v8265, %v198
        %v8267 = vmul.f32 %v8265, %v199
        %v8268 = vmul.f32 %v8265, %v200
        %v8269 = vmul.f32 %v8265, %v201
        %8274 = vrot.lane.b32.xlu0 %v8266, 127
        %v8275 = vpop.permute.xlu0 %8274
        %8276 = vrot.lane.b32.xlu0 %v8267, 127
        %v8277 = vpop.permute.xlu0 %8276
        %8278 = vrot.lane.b32.xlu0 %v8268, 127
        %v8279 = vpop.permute.xlu0 %8278
        %8280 = vrot.lane.b32.xlu0 %v8269, 127
        %v8281 = vpop.permute.xlu0 %8280
        %v8286 = vadd.f32 %v8260, %v8275
        %v8287 = vadd.f32 %v8261, %v8277
        %v8288 = vadd.f32 %v8262, %v8279
        %v8289 = vadd.f32 %v8263, %v8281
        %s8290 = sld [smem:[#allocation2 + $0x702]]
        %v8291 = vstv %s8290
        %v8292 = vmul.f32 %v8291, %v198
        %v8293 = vmul.f32 %v8291, %v199
        %v8294 = vmul.f32 %v8291, %v200
        %v8295 = vmul.f32 %v8291, %v201
        %8300 = vrot.lane.b32.xlu0 %v8292, 126
        %v8301 = vpop.permute.xlu0 %8300
        %8302 = vrot.lane.b32.xlu0 %v8293, 126
        %v8303 = vpop.permute.xlu0 %8302
        %8304 = vrot.lane.b32.xlu0 %v8294, 126
        %v8305 = vpop.permute.xlu0 %8304
        %8306 = vrot.lane.b32.xlu0 %v8295, 126
        %v8307 = vpop.permute.xlu0 %8306
        %v8312 = vadd.f32 %v8286, %v8301
        %v8313 = vadd.f32 %v8287, %v8303
        %v8314 = vadd.f32 %v8288, %v8305
        %v8315 = vadd.f32 %v8289, %v8307
        %s8316 = sld [smem:[#allocation2 + $0x703]]
        %v8317 = vstv %s8316
        %v8318 = vmul.f32 %v8317, %v202
        %v8319 = vmul.f32 %v8317, %v203
        %v8320 = vmul.f32 %v8317, %v204
        %v8321 = vmul.f32 %v8317, %v205
        %v8322 = vadd.f32 %v8312, %v8318
        %v8323 = vadd.f32 %v8313, %v8319
        %v8324 = vadd.f32 %v8314, %v8320
        %v8325 = vadd.f32 %v8315, %v8321
        %s8326 = sld [smem:[#allocation2 + $0x704]]
        %v8327 = vstv %s8326
        %v8328 = vmul.f32 %v8327, %v202
        %v8329 = vmul.f32 %v8327, %v203
        %v8330 = vmul.f32 %v8327, %v204
        %v8331 = vmul.f32 %v8327, %v205
        %8336 = vrot.lane.b32.xlu0 %v8328, 127
        %v8337 = vpop.permute.xlu0 %8336
        %8338 = vrot.lane.b32.xlu0 %v8329, 127
        %v8339 = vpop.permute.xlu0 %8338
        %8340 = vrot.lane.b32.xlu0 %v8330, 127
        %v8341 = vpop.permute.xlu0 %8340
        %8342 = vrot.lane.b32.xlu0 %v8331, 127
        %v8343 = vpop.permute.xlu0 %8342
        %v8348 = vadd.f32 %v8322, %v8337
        %v8349 = vadd.f32 %v8323, %v8339
        %v8350 = vadd.f32 %v8324, %v8341
        %v8351 = vadd.f32 %v8325, %v8343
        %s8352 = sld [smem:[#allocation2 + $0x705]]
        %v8353 = vstv %s8352
        %v8354 = vmul.f32 %v8353, %v202
        %v8355 = vmul.f32 %v8353, %v203
        %v8356 = vmul.f32 %v8353, %v204
        %v8357 = vmul.f32 %v8353, %v205
        %8362 = vrot.lane.b32.xlu0 %v8354, 126
        %v8363 = vpop.permute.xlu0 %8362
        %8364 = vrot.lane.b32.xlu0 %v8355, 126
        %v8365 = vpop.permute.xlu0 %8364
        %8366 = vrot.lane.b32.xlu0 %v8356, 126
        %v8367 = vpop.permute.xlu0 %8366
        %8368 = vrot.lane.b32.xlu0 %v8357, 126
        %v8369 = vpop.permute.xlu0 %8368
        %v8374 = vadd.f32 %v8348, %v8363
        %v8375 = vadd.f32 %v8349, %v8365
        %v8376 = vadd.f32 %v8350, %v8367
        %v8377 = vadd.f32 %v8351, %v8369
        %s8378 = sld [smem:[#allocation2 + $0x706]]
        %v8379 = vstv %s8378
        %v8380 = vmul.f32 %v8379, %v206
        %v8381 = vmul.f32 %v8379, %v207
        %v8382 = vmul.f32 %v8379, %v208
        %v8383 = vmul.f32 %v8379, %v209
        %v8384 = vadd.f32 %v8374, %v8380
        %v8385 = vadd.f32 %v8375, %v8381
        %v8386 = vadd.f32 %v8376, %v8382
        %v8387 = vadd.f32 %v8377, %v8383
        %s8388 = sld [smem:[#allocation2 + $0x707]]
        %v8389 = vstv %s8388
        %v8390 = vmul.f32 %v8389, %v206
        %v8391 = vmul.f32 %v8389, %v207
        %v8392 = vmul.f32 %v8389, %v208
        %v8393 = vmul.f32 %v8389, %v209
        %8398 = vrot.lane.b32.xlu0 %v8390, 127
        %v8399 = vpop.permute.xlu0 %8398
        %8400 = vrot.lane.b32.xlu0 %v8391, 127
        %v8401 = vpop.permute.xlu0 %8400
        %8402 = vrot.lane.b32.xlu0 %v8392, 127
        %v8403 = vpop.permute.xlu0 %8402
        %8404 = vrot.lane.b32.xlu0 %v8393, 127
        %v8405 = vpop.permute.xlu0 %8404
        %v8410 = vadd.f32 %v8384, %v8399
        %v8411 = vadd.f32 %v8385, %v8401
        %v8412 = vadd.f32 %v8386, %v8403
        %v8413 = vadd.f32 %v8387, %v8405
        %s8414 = sld [smem:[#allocation2 + $0x708]]
        %v8415 = vstv %s8414
        %v8416 = vmul.f32 %v8415, %v206
        %v8417 = vmul.f32 %v8415, %v207
        %v8418 = vmul.f32 %v8415, %v208
        %v8419 = vmul.f32 %v8415, %v209
        %8424 = vrot.lane.b32.xlu0 %v8416, 126
        %v8425 = vpop.permute.xlu0 %8424
        %8426 = vrot.lane.b32.xlu0 %v8417, 126
        %v8427 = vpop.permute.xlu0 %8426
        %8428 = vrot.lane.b32.xlu0 %v8418, 126
        %v8429 = vpop.permute.xlu0 %8428
        %8430 = vrot.lane.b32.xlu0 %v8419, 126
        %v8431 = vpop.permute.xlu0 %8430
        %v8436 = vadd.f32 %v8410, %v8425
        %v8437 = vadd.f32 %v8411, %v8427
        %v8438 = vadd.f32 %v8412, %v8429
        %v8439 = vadd.f32 %v8413, %v8431
        %s8440 = sld [smem:[#allocation2 + $0x709]]
        %v8441 = vstv %s8440
        %v8442 = vmul.f32 %v8441, %v211
        %v8443 = vmul.f32 %v8441, %v212
        %v8444 = vmul.f32 %v8441, %v213
        %v8445 = vmul.f32 %v8441, %v214
        %v8446 = vadd.f32 %v8436, %v8442
        %v8447 = vadd.f32 %v8437, %v8443
        %v8448 = vadd.f32 %v8438, %v8444
        %v8449 = vadd.f32 %v8439, %v8445
        %s8450 = sld [smem:[#allocation2 + $0x70a]]
        %v8451 = vstv %s8450
        %v8452 = vmul.f32 %v8451, %v211
        %v8453 = vmul.f32 %v8451, %v212
        %v8454 = vmul.f32 %v8451, %v213
        %v8455 = vmul.f32 %v8451, %v214
        %8460 = vrot.lane.b32.xlu0 %v8452, 127
        %v8461 = vpop.permute.xlu0 %8460
        %8462 = vrot.lane.b32.xlu0 %v8453, 127
        %v8463 = vpop.permute.xlu0 %8462
        %8464 = vrot.lane.b32.xlu0 %v8454, 127
        %v8465 = vpop.permute.xlu0 %8464
        %8466 = vrot.lane.b32.xlu0 %v8455, 127
        %v8467 = vpop.permute.xlu0 %8466
        %v8472 = vadd.f32 %v8446, %v8461
        %v8473 = vadd.f32 %v8447, %v8463
        %v8474 = vadd.f32 %v8448, %v8465
        %v8475 = vadd.f32 %v8449, %v8467
        %s8476 = sld [smem:[#allocation2 + $0x70b]]
        %v8477 = vstv %s8476
        %v8478 = vmul.f32 %v8477, %v211
        %v8479 = vmul.f32 %v8477, %v212
        %v8480 = vmul.f32 %v8477, %v213
        %v8481 = vmul.f32 %v8477, %v214
        %8486 = vrot.lane.b32.xlu0 %v8478, 126
        %v8487 = vpop.permute.xlu0 %8486
        %8488 = vrot.lane.b32.xlu0 %v8479, 126
        %v8489 = vpop.permute.xlu0 %8488
        %8490 = vrot.lane.b32.xlu0 %v8480, 126
        %v8491 = vpop.permute.xlu0 %8490
        %8492 = vrot.lane.b32.xlu0 %v8481, 126
        %v8493 = vpop.permute.xlu0 %8492
        %v8498 = vadd.f32 %v8472, %v8487
        %v8499 = vadd.f32 %v8473, %v8489
        %v8500 = vadd.f32 %v8474, %v8491
        %v8501 = vadd.f32 %v8475, %v8493
        %s8502 = sld [smem:[#allocation2 + $0x70c]]
        %v8503 = vstv %s8502
        %v8504 = vmul.f32 %v8503, %v215
        %v8505 = vmul.f32 %v8503, %v216
        %v8506 = vmul.f32 %v8503, %v217
        %v8507 = vmul.f32 %v8503, %v218
        %v8508 = vadd.f32 %v8498, %v8504
        %v8509 = vadd.f32 %v8499, %v8505
        %v8510 = vadd.f32 %v8500, %v8506
        %v8511 = vadd.f32 %v8501, %v8507
        %s8512 = sld [smem:[#allocation2 + $0x70d]]
        %v8513 = vstv %s8512
        %v8514 = vmul.f32 %v8513, %v215
        %v8515 = vmul.f32 %v8513, %v216
        %v8516 = vmul.f32 %v8513, %v217
        %v8517 = vmul.f32 %v8513, %v218
        %8522 = vrot.lane.b32.xlu0 %v8514, 127
        %v8523 = vpop.permute.xlu0 %8522
        %8524 = vrot.lane.b32.xlu0 %v8515, 127
        %v8525 = vpop.permute.xlu0 %8524
        %8526 = vrot.lane.b32.xlu0 %v8516, 127
        %v8527 = vpop.permute.xlu0 %8526
        %8528 = vrot.lane.b32.xlu0 %v8517, 127
        %v8529 = vpop.permute.xlu0 %8528
        %v8534 = vadd.f32 %v8508, %v8523
        %v8535 = vadd.f32 %v8509, %v8525
        %v8536 = vadd.f32 %v8510, %v8527
        %v8537 = vadd.f32 %v8511, %v8529
        %s8538 = sld [smem:[#allocation2 + $0x70e]]
        %v8539 = vstv %s8538
        %v8540 = vmul.f32 %v8539, %v215
        %v8541 = vmul.f32 %v8539, %v216
        %v8542 = vmul.f32 %v8539, %v217
        %v8543 = vmul.f32 %v8539, %v218
        %8548 = vrot.lane.b32.xlu0 %v8540, 126
        %v8549 = vpop.permute.xlu0 %8548
        %8550 = vrot.lane.b32.xlu0 %v8541, 126
        %v8551 = vpop.permute.xlu0 %8550
        %8552 = vrot.lane.b32.xlu0 %v8542, 126
        %v8553 = vpop.permute.xlu0 %8552
        %8554 = vrot.lane.b32.xlu0 %v8543, 126
        %v8555 = vpop.permute.xlu0 %8554
        %v8560 = vadd.f32 %v8534, %v8549
        %v8561 = vadd.f32 %v8535, %v8551
        %v8562 = vadd.f32 %v8536, %v8553
        %v8563 = vadd.f32 %v8537, %v8555
        %s8564 = sld [smem:[#allocation2 + $0x70f]]
        %v8565 = vstv %s8564
        %v8566 = vmul.f32 %v8565, %v219
        %v8567 = vmul.f32 %v8565, %v220
        %v8568 = vmul.f32 %v8565, %v221
        %v8569 = vmul.f32 %v8565, %v222
        %v8570 = vadd.f32 %v8560, %v8566
        %v8571 = vadd.f32 %v8561, %v8567
        %v8572 = vadd.f32 %v8562, %v8568
        %v8573 = vadd.f32 %v8563, %v8569
        %s8574 = sld [smem:[#allocation2 + $0x710]]
        %v8575 = vstv %s8574
        %v8576 = vmul.f32 %v8575, %v219
        %v8577 = vmul.f32 %v8575, %v220
        %v8578 = vmul.f32 %v8575, %v221
        %v8579 = vmul.f32 %v8575, %v222
        %8584 = vrot.lane.b32.xlu0 %v8576, 127
        %v8585 = vpop.permute.xlu0 %8584
        %8586 = vrot.lane.b32.xlu0 %v8577, 127
        %v8587 = vpop.permute.xlu0 %8586
        %8588 = vrot.lane.b32.xlu0 %v8578, 127
        %v8589 = vpop.permute.xlu0 %8588
        %8590 = vrot.lane.b32.xlu0 %v8579, 127
        %v8591 = vpop.permute.xlu0 %8590
        %v8596 = vadd.f32 %v8570, %v8585
        %v8597 = vadd.f32 %v8571, %v8587
        %v8598 = vadd.f32 %v8572, %v8589
        %v8599 = vadd.f32 %v8573, %v8591
        %s8600 = sld [smem:[#allocation2 + $0x711]]
        %v8601 = vstv %s8600
        %v8602 = vmul.f32 %v8601, %v219
        %v8603 = vmul.f32 %v8601, %v220
        %v8604 = vmul.f32 %v8601, %v221
        %v8605 = vmul.f32 %v8601, %v222
        %8610 = vrot.lane.b32.xlu0 %v8602, 126
        %v8611 = vpop.permute.xlu0 %8610
        %8612 = vrot.lane.b32.xlu0 %v8603, 126
        %v8613 = vpop.permute.xlu0 %8612
        %8614 = vrot.lane.b32.xlu0 %v8604, 126
        %v8615 = vpop.permute.xlu0 %8614
        %8616 = vrot.lane.b32.xlu0 %v8605, 126
        %v8617 = vpop.permute.xlu0 %8616
        %v8622 = vadd.f32 %v8596, %v8611
        %v8623 = vadd.f32 %v8597, %v8613
        %v8624 = vadd.f32 %v8598, %v8615
        %v8625 = vadd.f32 %v8599, %v8617
        %s8626 = sld [smem:[#allocation2 + $0x712]]
        %v8627 = vstv %s8626
        %v8628 = vmul.f32 %v8627, %v224
        %v8629 = vmul.f32 %v8627, %v225
        %v8630 = vmul.f32 %v8627, %v226
        %v8631 = vmul.f32 %v8627, %v227
        %v8632 = vadd.f32 %v8622, %v8628
        %v8633 = vadd.f32 %v8623, %v8629
        %v8634 = vadd.f32 %v8624, %v8630
        %v8635 = vadd.f32 %v8625, %v8631
        %s8636 = sld [smem:[#allocation2 + $0x713]]
        %v8637 = vstv %s8636
        %v8638 = vmul.f32 %v8637, %v224
        %v8639 = vmul.f32 %v8637, %v225
        %v8640 = vmul.f32 %v8637, %v226
        %v8641 = vmul.f32 %v8637, %v227
        %8646 = vrot.lane.b32.xlu0 %v8638, 127
        %v8647 = vpop.permute.xlu0 %8646
        %8648 = vrot.lane.b32.xlu0 %v8639, 127
        %v8649 = vpop.permute.xlu0 %8648
        %8650 = vrot.lane.b32.xlu0 %v8640, 127
        %v8651 = vpop.permute.xlu0 %8650
        %8652 = vrot.lane.b32.xlu0 %v8641, 127
        %v8653 = vpop.permute.xlu0 %8652
        %v8658 = vadd.f32 %v8632, %v8647
        %v8659 = vadd.f32 %v8633, %v8649
        %v8660 = vadd.f32 %v8634, %v8651
        %v8661 = vadd.f32 %v8635, %v8653
        %s8662 = sld [smem:[#allocation2 + $0x714]]
        %v8663 = vstv %s8662
        %v8664 = vmul.f32 %v8663, %v224
        %v8665 = vmul.f32 %v8663, %v225
        %v8666 = vmul.f32 %v8663, %v226
        %v8667 = vmul.f32 %v8663, %v227
        %8672 = vrot.lane.b32.xlu0 %v8664, 126
        %v8673 = vpop.permute.xlu0 %8672
        %8674 = vrot.lane.b32.xlu0 %v8665, 126
        %v8675 = vpop.permute.xlu0 %8674
        %8676 = vrot.lane.b32.xlu0 %v8666, 126
        %v8677 = vpop.permute.xlu0 %8676
        %8678 = vrot.lane.b32.xlu0 %v8667, 126
        %v8679 = vpop.permute.xlu0 %8678
        %v8684 = vadd.f32 %v8658, %v8673
        %v8685 = vadd.f32 %v8659, %v8675
        %v8686 = vadd.f32 %v8660, %v8677
        %v8687 = vadd.f32 %v8661, %v8679
        %s8688 = sld [smem:[#allocation2 + $0x715]]
        %v8689 = vstv %s8688
        %v8690 = vmul.f32 %v8689, %v228
        %v8691 = vmul.f32 %v8689, %v229
        %v8692 = vmul.f32 %v8689, %v230
        %v8693 = vmul.f32 %v8689, %v231
        %v8694 = vadd.f32 %v8684, %v8690
        %v8695 = vadd.f32 %v8685, %v8691
        %v8696 = vadd.f32 %v8686, %v8692
        %v8697 = vadd.f32 %v8687, %v8693
        %s8698 = sld [smem:[#allocation2 + $0x716]]
        %v8699 = vstv %s8698
        %v8700 = vmul.f32 %v8699, %v228
        %v8701 = vmul.f32 %v8699, %v229
        %v8702 = vmul.f32 %v8699, %v230
        %v8703 = vmul.f32 %v8699, %v231
        %8708 = vrot.lane.b32.xlu0 %v8700, 127
        %v8709 = vpop.permute.xlu0 %8708
        %8710 = vrot.lane.b32.xlu0 %v8701, 127
        %v8711 = vpop.permute.xlu0 %8710
        %8712 = vrot.lane.b32.xlu0 %v8702, 127
        %v8713 = vpop.permute.xlu0 %8712
        %8714 = vrot.lane.b32.xlu0 %v8703, 127
        %v8715 = vpop.permute.xlu0 %8714
        %v8720 = vadd.f32 %v8694, %v8709
        %v8721 = vadd.f32 %v8695, %v8711
        %v8722 = vadd.f32 %v8696, %v8713
        %v8723 = vadd.f32 %v8697, %v8715
        %s8724 = sld [smem:[#allocation2 + $0x717]]
        %v8725 = vstv %s8724
        %v8726 = vmul.f32 %v8725, %v228
        %v8727 = vmul.f32 %v8725, %v229
        %v8728 = vmul.f32 %v8725, %v230
        %v8729 = vmul.f32 %v8725, %v231
        %8734 = vrot.lane.b32.xlu0 %v8726, 126
        %v8735 = vpop.permute.xlu0 %8734
        %8736 = vrot.lane.b32.xlu0 %v8727, 126
        %v8737 = vpop.permute.xlu0 %8736
        %8738 = vrot.lane.b32.xlu0 %v8728, 126
        %v8739 = vpop.permute.xlu0 %8738
        %8740 = vrot.lane.b32.xlu0 %v8729, 126
        %v8741 = vpop.permute.xlu0 %8740
        %v8746 = vadd.f32 %v8720, %v8735
        %v8747 = vadd.f32 %v8721, %v8737
        %v8748 = vadd.f32 %v8722, %v8739
        %v8749 = vadd.f32 %v8723, %v8741
        %s8750 = sld [smem:[#allocation2 + $0x718]]
        %v8751 = vstv %s8750
        %v8752 = vmul.f32 %v8751, %v232
        %v8753 = vmul.f32 %v8751, %v233
        %v8754 = vmul.f32 %v8751, %v234
        %v8755 = vmul.f32 %v8751, %v235
        %v8756 = vadd.f32 %v8746, %v8752
        %v8757 = vadd.f32 %v8747, %v8753
        %v8758 = vadd.f32 %v8748, %v8754
        %v8759 = vadd.f32 %v8749, %v8755
        %s8760 = sld [smem:[#allocation2 + $0x719]]
        %v8761 = vstv %s8760
        %v8762 = vmul.f32 %v8761, %v232
        %v8763 = vmul.f32 %v8761, %v233
        %v8764 = vmul.f32 %v8761, %v234
        %v8765 = vmul.f32 %v8761, %v235
        %8770 = vrot.lane.b32.xlu0 %v8762, 127
        %v8771 = vpop.permute.xlu0 %8770
        %8772 = vrot.lane.b32.xlu0 %v8763, 127
        %v8773 = vpop.permute.xlu0 %8772
        %8774 = vrot.lane.b32.xlu0 %v8764, 127
        %v8775 = vpop.permute.xlu0 %8774
        %8776 = vrot.lane.b32.xlu0 %v8765, 127
        %v8777 = vpop.permute.xlu0 %8776
        %v8782 = vadd.f32 %v8756, %v8771
        %v8783 = vadd.f32 %v8757, %v8773
        %v8784 = vadd.f32 %v8758, %v8775
        %v8785 = vadd.f32 %v8759, %v8777
        %s8786 = sld [smem:[#allocation2 + $0x71a]]
        %v8787 = vstv %s8786
        %v8788 = vmul.f32 %v8787, %v232
        %v8789 = vmul.f32 %v8787, %v233
        %v8790 = vmul.f32 %v8787, %v234
        %v8791 = vmul.f32 %v8787, %v235
        %8796 = vrot.lane.b32.xlu0 %v8788, 126
        %v8797 = vpop.permute.xlu0 %8796
        %8798 = vrot.lane.b32.xlu0 %v8789, 126
        %v8799 = vpop.permute.xlu0 %8798
        %8800 = vrot.lane.b32.xlu0 %v8790, 126
        %v8801 = vpop.permute.xlu0 %8800
        %8802 = vrot.lane.b32.xlu0 %v8791, 126
        %v8803 = vpop.permute.xlu0 %8802
        %v8808 = vadd.f32 %v8782, %v8797
        %v8809 = vadd.f32 %v8783, %v8799
        %v8810 = vadd.f32 %v8784, %v8801
        %v8811 = vadd.f32 %v8785, %v8803
        %s8812 = sld [smem:[#allocation5 + $0xe]]
        %v8813 = vstv %s8812
        %v8814 = vadd.f32 %v8808, %v8813
        %v8815 = vadd.f32 %v8809, %v8813
        %v8816 = vadd.f32 %v8810, %v8813
        %v8817 = vadd.f32 %v8811, %v8813
        %v8818 = vmax.f32 %v8814, 0.0
        %v8819 = vmax.f32 %v8815, 0.0
        %v8820 = vmax.f32 %v8816, 0.0
        %v8821 = vmax.f32 %v8817, 0.0
        %v8822 = vmin.f32 %v8818, 0.5
        %v8823 = vmin.f32 %v8819, 0.5
        %v8824 = vmin.f32 %v8820, 0.5
        %v8825 = vmin.f32 %v8821, 0.5
        %s8826 = scalar_lea.vmem %s192, 448 [#allocation7]
        %8827 = vst.msk [vmem:[%s8826] sm:$0xff] %vm804, %v8822
        %8828 = vst.msk [vmem:[%s8826 + $0x8] sm:$0xff] %vm804, %v8823
        %8829 = vst.msk [vmem:[%s8826 + $0x10] sm:$0xff] %vm804, %v8824
        %8830 = vst.msk [vmem:[%s8826 + $0x18] sm:$0xff] %vm804, %v8825
        %s8831 = sld [smem:[#allocation2 + $0x780]]
        %v8832 = vstv %s8831
        %v8833 = vmul.f32 %v8832, %v198
        %v8834 = vmul.f32 %v8832, %v199
        %v8835 = vmul.f32 %v8832, %v200
        %v8836 = vmul.f32 %v8832, %v201
        %s8837 = sld [smem:[#allocation2 + $0x781]]
        %v8838 = vstv %s8837
        %v8839 = vmul.f32 %v8838, %v198
        %v8840 = vmul.f32 %v8838, %v199
        %v8841 = vmul.f32 %v8838, %v200
        %v8842 = vmul.f32 %v8838, %v201
        %8847 = vrot.lane.b32.xlu0 %v8839, 127
        %v8848 = vpop.permute.xlu0 %8847
        %8849 = vrot.lane.b32.xlu0 %v8840, 127
        %v8850 = vpop.permute.xlu0 %8849
        %8851 = vrot.lane.b32.xlu0 %v8841, 127
        %v8852 = vpop.permute.xlu0 %8851
        %8853 = vrot.lane.b32.xlu0 %v8842, 127
        %v8854 = vpop.permute.xlu0 %8853
        %v8859 = vadd.f32 %v8833, %v8848
        %v8860 = vadd.f32 %v8834, %v8850
        %v8861 = vadd.f32 %v8835, %v8852
        %v8862 = vadd.f32 %v8836, %v8854
        %s8863 = sld [smem:[#allocation2 + $0x782]]
        %v8864 = vstv %s8863
        %v8865 = vmul.f32 %v8864, %v198
        %v8866 = vmul.f32 %v8864, %v199
        %v8867 = vmul.f32 %v8864, %v200
        %v8868 = vmul.f32 %v8864, %v201
        %8873 = vrot.lane.b32.xlu0 %v8865, 126
        %v8874 = vpop.permute.xlu0 %8873
        %8875 = vrot.lane.b32.xlu0 %v8866, 126
        %v8876 = vpop.permute.xlu0 %8875
        %8877 = vrot.lane.b32.xlu0 %v8867, 126
        %v8878 = vpop.permute.xlu0 %8877
        %8879 = vrot.lane.b32.xlu0 %v8868, 126
        %v8880 = vpop.permute.xlu0 %8879
        %v8885 = vadd.f32 %v8859, %v8874
        %v8886 = vadd.f32 %v8860, %v8876
        %v8887 = vadd.f32 %v8861, %v8878
        %v8888 = vadd.f32 %v8862, %v8880
        %s8889 = sld [smem:[#allocation2 + $0x783]]
        %v8890 = vstv %s8889
        %v8891 = vmul.f32 %v8890, %v202
        %v8892 = vmul.f32 %v8890, %v203
        %v8893 = vmul.f32 %v8890, %v204
        %v8894 = vmul.f32 %v8890, %v205
        %v8895 = vadd.f32 %v8885, %v8891
        %v8896 = vadd.f32 %v8886, %v8892
        %v8897 = vadd.f32 %v8887, %v8893
        %v8898 = vadd.f32 %v8888, %v8894
        %s8899 = sld [smem:[#allocation2 + $0x784]]
        %v8900 = vstv %s8899
        %v8901 = vmul.f32 %v8900, %v202
        %v8902 = vmul.f32 %v8900, %v203
        %v8903 = vmul.f32 %v8900, %v204
        %v8904 = vmul.f32 %v8900, %v205
        %8909 = vrot.lane.b32.xlu0 %v8901, 127
        %v8910 = vpop.permute.xlu0 %8909
        %8911 = vrot.lane.b32.xlu0 %v8902, 127
        %v8912 = vpop.permute.xlu0 %8911
        %8913 = vrot.lane.b32.xlu0 %v8903, 127
        %v8914 = vpop.permute.xlu0 %8913
        %8915 = vrot.lane.b32.xlu0 %v8904, 127
        %v8916 = vpop.permute.xlu0 %8915
        %v8921 = vadd.f32 %v8895, %v8910
        %v8922 = vadd.f32 %v8896, %v8912
        %v8923 = vadd.f32 %v8897, %v8914
        %v8924 = vadd.f32 %v8898, %v8916
        %s8925 = sld [smem:[#allocation2 + $0x785]]
        %v8926 = vstv %s8925
        %v8927 = vmul.f32 %v8926, %v202
        %v8928 = vmul.f32 %v8926, %v203
        %v8929 = vmul.f32 %v8926, %v204
        %v8930 = vmul.f32 %v8926, %v205
        %8935 = vrot.lane.b32.xlu0 %v8927, 126
        %v8936 = vpop.permute.xlu0 %8935
        %8937 = vrot.lane.b32.xlu0 %v8928, 126
        %v8938 = vpop.permute.xlu0 %8937
        %8939 = vrot.lane.b32.xlu0 %v8929, 126
        %v8940 = vpop.permute.xlu0 %8939
        %8941 = vrot.lane.b32.xlu0 %v8930, 126
        %v8942 = vpop.permute.xlu0 %8941
        %v8947 = vadd.f32 %v8921, %v8936
        %v8948 = vadd.f32 %v8922, %v8938
        %v8949 = vadd.f32 %v8923, %v8940
        %v8950 = vadd.f32 %v8924, %v8942
        %s8951 = sld [smem:[#allocation2 + $0x786]]
        %v8952 = vstv %s8951
        %v8953 = vmul.f32 %v8952, %v206
        %v8954 = vmul.f32 %v8952, %v207
        %v8955 = vmul.f32 %v8952, %v208
        %v8956 = vmul.f32 %v8952, %v209
        %v8957 = vadd.f32 %v8947, %v8953
        %v8958 = vadd.f32 %v8948, %v8954
        %v8959 = vadd.f32 %v8949, %v8955
        %v8960 = vadd.f32 %v8950, %v8956
        %s8961 = sld [smem:[#allocation2 + $0x787]]
        %v8962 = vstv %s8961
        %v8963 = vmul.f32 %v8962, %v206
        %v8964 = vmul.f32 %v8962, %v207
        %v8965 = vmul.f32 %v8962, %v208
        %v8966 = vmul.f32 %v8962, %v209
        %8971 = vrot.lane.b32.xlu0 %v8963, 127
        %v8972 = vpop.permute.xlu0 %8971
        %8973 = vrot.lane.b32.xlu0 %v8964, 127
        %v8974 = vpop.permute.xlu0 %8973
        %8975 = vrot.lane.b32.xlu0 %v8965, 127
        %v8976 = vpop.permute.xlu0 %8975
        %8977 = vrot.lane.b32.xlu0 %v8966, 127
        %v8978 = vpop.permute.xlu0 %8977
        %v8983 = vadd.f32 %v8957, %v8972
        %v8984 = vadd.f32 %v8958, %v8974
        %v8985 = vadd.f32 %v8959, %v8976
        %v8986 = vadd.f32 %v8960, %v8978
        %s8987 = sld [smem:[#allocation2 + $0x788]]
        %v8988 = vstv %s8987
        %v8989 = vmul.f32 %v8988, %v206
        %v8990 = vmul.f32 %v8988, %v207
        %v8991 = vmul.f32 %v8988, %v208
        %v8992 = vmul.f32 %v8988, %v209
        %8997 = vrot.lane.b32.xlu0 %v8989, 126
        %v8998 = vpop.permute.xlu0 %8997
        %8999 = vrot.lane.b32.xlu0 %v8990, 126
        %v9000 = vpop.permute.xlu0 %8999
        %9001 = vrot.lane.b32.xlu0 %v8991, 126
        %v9002 = vpop.permute.xlu0 %9001
        %9003 = vrot.lane.b32.xlu0 %v8992, 126
        %v9004 = vpop.permute.xlu0 %9003
        %v9009 = vadd.f32 %v8983, %v8998
        %v9010 = vadd.f32 %v8984, %v9000
        %v9011 = vadd.f32 %v8985, %v9002
        %v9012 = vadd.f32 %v8986, %v9004
        %s9013 = sld [smem:[#allocation2 + $0x789]]
        %v9014 = vstv %s9013
        %v9015 = vmul.f32 %v9014, %v211
        %v9016 = vmul.f32 %v9014, %v212
        %v9017 = vmul.f32 %v9014, %v213
        %v9018 = vmul.f32 %v9014, %v214
        %v9019 = vadd.f32 %v9009, %v9015
        %v9020 = vadd.f32 %v9010, %v9016
        %v9021 = vadd.f32 %v9011, %v9017
        %v9022 = vadd.f32 %v9012, %v9018
        %s9023 = sld [smem:[#allocation2 + $0x78a]]
        %v9024 = vstv %s9023
        %v9025 = vmul.f32 %v9024, %v211
        %v9026 = vmul.f32 %v9024, %v212
        %v9027 = vmul.f32 %v9024, %v213
        %v9028 = vmul.f32 %v9024, %v214
        %9033 = vrot.lane.b32.xlu0 %v9025, 127
        %v9034 = vpop.permute.xlu0 %9033
        %9035 = vrot.lane.b32.xlu0 %v9026, 127
        %v9036 = vpop.permute.xlu0 %9035
        %9037 = vrot.lane.b32.xlu0 %v9027, 127
        %v9038 = vpop.permute.xlu0 %9037
        %9039 = vrot.lane.b32.xlu0 %v9028, 127
        %v9040 = vpop.permute.xlu0 %9039
        %v9045 = vadd.f32 %v9019, %v9034
        %v9046 = vadd.f32 %v9020, %v9036
        %v9047 = vadd.f32 %v9021, %v9038
        %v9048 = vadd.f32 %v9022, %v9040
        %s9049 = sld [smem:[#allocation2 + $0x78b]]
        %v9050 = vstv %s9049
        %v9051 = vmul.f32 %v9050, %v211
        %v9052 = vmul.f32 %v9050, %v212
        %v9053 = vmul.f32 %v9050, %v213
        %v9054 = vmul.f32 %v9050, %v214
        %9059 = vrot.lane.b32.xlu0 %v9051, 126
        %v9060 = vpop.permute.xlu0 %9059
        %9061 = vrot.lane.b32.xlu0 %v9052, 126
        %v9062 = vpop.permute.xlu0 %9061
        %9063 = vrot.lane.b32.xlu0 %v9053, 126
        %v9064 = vpop.permute.xlu0 %9063
        %9065 = vrot.lane.b32.xlu0 %v9054, 126
        %v9066 = vpop.permute.xlu0 %9065
        %v9071 = vadd.f32 %v9045, %v9060
        %v9072 = vadd.f32 %v9046, %v9062
        %v9073 = vadd.f32 %v9047, %v9064
        %v9074 = vadd.f32 %v9048, %v9066
        %s9075 = sld [smem:[#allocation2 + $0x78c]]
        %v9076 = vstv %s9075
        %v9077 = vmul.f32 %v9076, %v215
        %v9078 = vmul.f32 %v9076, %v216
        %v9079 = vmul.f32 %v9076, %v217
        %v9080 = vmul.f32 %v9076, %v218
        %v9081 = vadd.f32 %v9071, %v9077
        %v9082 = vadd.f32 %v9072, %v9078
        %v9083 = vadd.f32 %v9073, %v9079
        %v9084 = vadd.f32 %v9074, %v9080
        %s9085 = sld [smem:[#allocation2 + $0x78d]]
        %v9086 = vstv %s9085
        %v9087 = vmul.f32 %v9086, %v215
        %v9088 = vmul.f32 %v9086, %v216
        %v9089 = vmul.f32 %v9086, %v217
        %v9090 = vmul.f32 %v9086, %v218
        %9095 = vrot.lane.b32.xlu0 %v9087, 127
        %v9096 = vpop.permute.xlu0 %9095
        %9097 = vrot.lane.b32.xlu0 %v9088, 127
        %v9098 = vpop.permute.xlu0 %9097
        %9099 = vrot.lane.b32.xlu0 %v9089, 127
        %v9100 = vpop.permute.xlu0 %9099
        %9101 = vrot.lane.b32.xlu0 %v9090, 127
        %v9102 = vpop.permute.xlu0 %9101
        %v9107 = vadd.f32 %v9081, %v9096
        %v9108 = vadd.f32 %v9082, %v9098
        %v9109 = vadd.f32 %v9083, %v9100
        %v9110 = vadd.f32 %v9084, %v9102
        %s9111 = sld [smem:[#allocation2 + $0x78e]]
        %v9112 = vstv %s9111
        %v9113 = vmul.f32 %v9112, %v215
        %v9114 = vmul.f32 %v9112, %v216
        %v9115 = vmul.f32 %v9112, %v217
        %v9116 = vmul.f32 %v9112, %v218
        %9121 = vrot.lane.b32.xlu0 %v9113, 126
        %v9122 = vpop.permute.xlu0 %9121
        %9123 = vrot.lane.b32.xlu0 %v9114, 126
        %v9124 = vpop.permute.xlu0 %9123
        %9125 = vrot.lane.b32.xlu0 %v9115, 126
        %v9126 = vpop.permute.xlu0 %9125
        %9127 = vrot.lane.b32.xlu0 %v9116, 126
        %v9128 = vpop.permute.xlu0 %9127
        %v9133 = vadd.f32 %v9107, %v9122
        %v9134 = vadd.f32 %v9108, %v9124
        %v9135 = vadd.f32 %v9109, %v9126
        %v9136 = vadd.f32 %v9110, %v9128
        %s9137 = sld [smem:[#allocation2 + $0x78f]]
        %v9138 = vstv %s9137
        %v9139 = vmul.f32 %v9138, %v219
        %v9140 = vmul.f32 %v9138, %v220
        %v9141 = vmul.f32 %v9138, %v221
        %v9142 = vmul.f32 %v9138, %v222
        %v9143 = vadd.f32 %v9133, %v9139
        %v9144 = vadd.f32 %v9134, %v9140
        %v9145 = vadd.f32 %v9135, %v9141
        %v9146 = vadd.f32 %v9136, %v9142
        %s9147 = sld [smem:[#allocation2 + $0x790]]
        %v9148 = vstv %s9147
        %v9149 = vmul.f32 %v9148, %v219
        %v9150 = vmul.f32 %v9148, %v220
        %v9151 = vmul.f32 %v9148, %v221
        %v9152 = vmul.f32 %v9148, %v222
        %9157 = vrot.lane.b32.xlu0 %v9149, 127
        %v9158 = vpop.permute.xlu0 %9157
        %9159 = vrot.lane.b32.xlu0 %v9150, 127
        %v9160 = vpop.permute.xlu0 %9159
        %9161 = vrot.lane.b32.xlu0 %v9151, 127
        %v9162 = vpop.permute.xlu0 %9161
        %9163 = vrot.lane.b32.xlu0 %v9152, 127
        %v9164 = vpop.permute.xlu0 %9163
        %v9169 = vadd.f32 %v9143, %v9158
        %v9170 = vadd.f32 %v9144, %v9160
        %v9171 = vadd.f32 %v9145, %v9162
        %v9172 = vadd.f32 %v9146, %v9164
        %s9173 = sld [smem:[#allocation2 + $0x791]]
        %v9174 = vstv %s9173
        %v9175 = vmul.f32 %v9174, %v219
        %v9176 = vmul.f32 %v9174, %v220
        %v9177 = vmul.f32 %v9174, %v221
        %v9178 = vmul.f32 %v9174, %v222
        %9183 = vrot.lane.b32.xlu0 %v9175, 126
        %v9184 = vpop.permute.xlu0 %9183
        %9185 = vrot.lane.b32.xlu0 %v9176, 126
        %v9186 = vpop.permute.xlu0 %9185
        %9187 = vrot.lane.b32.xlu0 %v9177, 126
        %v9188 = vpop.permute.xlu0 %9187
        %9189 = vrot.lane.b32.xlu0 %v9178, 126
        %v9190 = vpop.permute.xlu0 %9189
        %v9195 = vadd.f32 %v9169, %v9184
        %v9196 = vadd.f32 %v9170, %v9186
        %v9197 = vadd.f32 %v9171, %v9188
        %v9198 = vadd.f32 %v9172, %v9190
        %s9199 = sld [smem:[#allocation2 + $0x792]]
        %v9200 = vstv %s9199
        %v9201 = vmul.f32 %v9200, %v224
        %v9202 = vmul.f32 %v9200, %v225
        %v9203 = vmul.f32 %v9200, %v226
        %v9204 = vmul.f32 %v9200, %v227
        %v9205 = vadd.f32 %v9195, %v9201
        %v9206 = vadd.f32 %v9196, %v9202
        %v9207 = vadd.f32 %v9197, %v9203
        %v9208 = vadd.f32 %v9198, %v9204
        %s9209 = sld [smem:[#allocation2 + $0x793]]
        %v9210 = vstv %s9209
        %v9211 = vmul.f32 %v9210, %v224
        %v9212 = vmul.f32 %v9210, %v225
        %v9213 = vmul.f32 %v9210, %v226
        %v9214 = vmul.f32 %v9210, %v227
        %9219 = vrot.lane.b32.xlu0 %v9211, 127
        %v9220 = vpop.permute.xlu0 %9219
        %9221 = vrot.lane.b32.xlu0 %v9212, 127
        %v9222 = vpop.permute.xlu0 %9221
        %9223 = vrot.lane.b32.xlu0 %v9213, 127
        %v9224 = vpop.permute.xlu0 %9223
        %9225 = vrot.lane.b32.xlu0 %v9214, 127
        %v9226 = vpop.permute.xlu0 %9225
        %v9231 = vadd.f32 %v9205, %v9220
        %v9232 = vadd.f32 %v9206, %v9222
        %v9233 = vadd.f32 %v9207, %v9224
        %v9234 = vadd.f32 %v9208, %v9226
        %s9235 = sld [smem:[#allocation2 + $0x794]]
        %v9236 = vstv %s9235
        %v9237 = vmul.f32 %v9236, %v224
        %v9238 = vmul.f32 %v9236, %v225
        %v9239 = vmul.f32 %v9236, %v226
        %v9240 = vmul.f32 %v9236, %v227
        %9245 = vrot.lane.b32.xlu0 %v9237, 126
        %v9246 = vpop.permute.xlu0 %9245
        %9247 = vrot.lane.b32.xlu0 %v9238, 126
        %v9248 = vpop.permute.xlu0 %9247
        %9249 = vrot.lane.b32.xlu0 %v9239, 126
        %v9250 = vpop.permute.xlu0 %9249
        %9251 = vrot.lane.b32.xlu0 %v9240, 126
        %v9252 = vpop.permute.xlu0 %9251
        %v9257 = vadd.f32 %v9231, %v9246
        %v9258 = vadd.f32 %v9232, %v9248
        %v9259 = vadd.f32 %v9233, %v9250
        %v9260 = vadd.f32 %v9234, %v9252
        %s9261 = sld [smem:[#allocation2 + $0x795]]
        %v9262 = vstv %s9261
        %v9263 = vmul.f32 %v9262, %v228
        %v9264 = vmul.f32 %v9262, %v229
        %v9265 = vmul.f32 %v9262, %v230
        %v9266 = vmul.f32 %v9262, %v231
        %v9267 = vadd.f32 %v9257, %v9263
        %v9268 = vadd.f32 %v9258, %v9264
        %v9269 = vadd.f32 %v9259, %v9265
        %v9270 = vadd.f32 %v9260, %v9266
        %s9271 = sld [smem:[#allocation2 + $0x796]]
        %v9272 = vstv %s9271
        %v9273 = vmul.f32 %v9272, %v228
        %v9274 = vmul.f32 %v9272, %v229
        %v9275 = vmul.f32 %v9272, %v230
        %v9276 = vmul.f32 %v9272, %v231
        %9281 = vrot.lane.b32.xlu0 %v9273, 127
        %v9282 = vpop.permute.xlu0 %9281
        %9283 = vrot.lane.b32.xlu0 %v9274, 127
        %v9284 = vpop.permute.xlu0 %9283
        %9285 = vrot.lane.b32.xlu0 %v9275, 127
        %v9286 = vpop.permute.xlu0 %9285
        %9287 = vrot.lane.b32.xlu0 %v9276, 127
        %v9288 = vpop.permute.xlu0 %9287
        %v9293 = vadd.f32 %v9267, %v9282
        %v9294 = vadd.f32 %v9268, %v9284
        %v9295 = vadd.f32 %v9269, %v9286
        %v9296 = vadd.f32 %v9270, %v9288
        %s9297 = sld [smem:[#allocation2 + $0x797]]
        %v9298 = vstv %s9297
        %v9299 = vmul.f32 %v9298, %v228
        %v9300 = vmul.f32 %v9298, %v229
        %v9301 = vmul.f32 %v9298, %v230
        %v9302 = vmul.f32 %v9298, %v231
        %9307 = vrot.lane.b32.xlu0 %v9299, 126
        %v9308 = vpop.permute.xlu0 %9307
        %9309 = vrot.lane.b32.xlu0 %v9300, 126
        %v9310 = vpop.permute.xlu0 %9309
        %9311 = vrot.lane.b32.xlu0 %v9301, 126
        %v9312 = vpop.permute.xlu0 %9311
        %9313 = vrot.lane.b32.xlu0 %v9302, 126
        %v9314 = vpop.permute.xlu0 %9313
        %v9319 = vadd.f32 %v9293, %v9308
        %v9320 = vadd.f32 %v9294, %v9310
        %v9321 = vadd.f32 %v9295, %v9312
        %v9322 = vadd.f32 %v9296, %v9314
        %s9323 = sld [smem:[#allocation2 + $0x798]]
        %v9324 = vstv %s9323
        %v9325 = vmul.f32 %v9324, %v232
        %v9326 = vmul.f32 %v9324, %v233
        %v9327 = vmul.f32 %v9324, %v234
        %v9328 = vmul.f32 %v9324, %v235
        %v9329 = vadd.f32 %v9319, %v9325
        %v9330 = vadd.f32 %v9320, %v9326
        %v9331 = vadd.f32 %v9321, %v9327
        %v9332 = vadd.f32 %v9322, %v9328
        %s9333 = sld [smem:[#allocation2 + $0x799]]
        %v9334 = vstv %s9333
        %v9335 = vmul.f32 %v9334, %v232
        %v9336 = vmul.f32 %v9334, %v233
        %v9337 = vmul.f32 %v9334, %v234
        %v9338 = vmul.f32 %v9334, %v235
        %9343 = vrot.lane.b32.xlu0 %v9335, 127
        %v9344 = vpop.permute.xlu0 %9343
        %9345 = vrot.lane.b32.xlu0 %v9336, 127
        %v9346 = vpop.permute.xlu0 %9345
        %9347 = vrot.lane.b32.xlu0 %v9337, 127
        %v9348 = vpop.permute.xlu0 %9347
        %9349 = vrot.lane.b32.xlu0 %v9338, 127
        %v9350 = vpop.permute.xlu0 %9349
        %v9355 = vadd.f32 %v9329, %v9344
        %v9356 = vadd.f32 %v9330, %v9346
        %v9357 = vadd.f32 %v9331, %v9348
        %v9358 = vadd.f32 %v9332, %v9350
        %s9359 = sld [smem:[#allocation2 + $0x79a]]
        %v9360 = vstv %s9359
        %v9361 = vmul.f32 %v9360, %v232
        %v9362 = vmul.f32 %v9360, %v233
        %v9363 = vmul.f32 %v9360, %v234
        %v9364 = vmul.f32 %v9360, %v235
        %9369 = vrot.lane.b32.xlu0 %v9361, 126
        %v9370 = vpop.permute.xlu0 %9369
        %9371 = vrot.lane.b32.xlu0 %v9362, 126
        %v9372 = vpop.permute.xlu0 %9371
        %9373 = vrot.lane.b32.xlu0 %v9363, 126
        %v9374 = vpop.permute.xlu0 %9373
        %9375 = vrot.lane.b32.xlu0 %v9364, 126
        %v9376 = vpop.permute.xlu0 %9375
        %v9381 = vadd.f32 %v9355, %v9370
        %v9382 = vadd.f32 %v9356, %v9372
        %v9383 = vadd.f32 %v9357, %v9374
        %v9384 = vadd.f32 %v9358, %v9376
        %s9385 = sld [smem:[#allocation5 + $0xf]]
        %v9386 = vstv %s9385
        %v9387 = vadd.f32 %v9381, %v9386
        %v9388 = vadd.f32 %v9382, %v9386
        %v9389 = vadd.f32 %v9383, %v9386
        %v9390 = vadd.f32 %v9384, %v9386
        %v9391 = vmax.f32 %v9387, 0.0
        %v9392 = vmax.f32 %v9388, 0.0
        %v9393 = vmax.f32 %v9389, 0.0
        %v9394 = vmax.f32 %v9390, 0.0
        %v9395 = vmin.f32 %v9391, 0.5
        %v9396 = vmin.f32 %v9392, 0.5
        %v9397 = vmin.f32 %v9393, 0.5
        %v9398 = vmin.f32 %v9394, 0.5
        %s9399 = scalar_lea.vmem %s192, 480 [#allocation7]
        %9400 = vst.msk [vmem:[%s9399] sm:$0xff] %vm804, %v9395
        %9401 = vst.msk [vmem:[%s9399 + $0x8] sm:$0xff] %vm804, %v9396
        %9402 = vst.msk [vmem:[%s9399 + $0x10] sm:$0xff] %vm804, %v9397
        %9403 = vst.msk [vmem:[%s9399 + $0x18] sm:$0xff] %vm804, %v9398
        %s9404 = sand.u32 %s95, 1
        %s9405 = scalar_lea.sflag [#allocation3], %s9404
        %s9406 = sand.u32 %s95, 1
        %s9407 = smul.addr %s9406, 512
        %s9408 = scalar_lea.vmem [#allocation7], %s9407
        // Predicated region
        $region41: #{model_forward.1} parent=31 // pred_check
          %p9409 = pneg %p105
        $region42: #{model_forward.1} parent=31 // pred_check_branch
          %9411 = sbr.rel (%p9409) target = $region44
        $region43: #{model_forward.1} parent=31 // pred_region
          %s9413 = ssub.s32 8192, 8192
          %9414 = vsyncadd %s9405, %s9413
          %s9415 = smul.addr %s19, 64
          %s9416 = smul.addr %s9415, 128
          %s9417 = scalar_lea.hbm %s3, %s9416
          %s9418 = sshll.u32 %s9408, 4
          %s9419 = int_to_ptr.vmem [resolvable:$true] %s9418
          %9424 = dma.vmem_to_hbm [thread:$0]  %s9419, 8192, %s9417, %s9405, 128, 128, 8
        $region44: #{model_forward.1} parent=31 // pred_fallthru
          _
      $region32: #{model_forward.1} parent=5 // pred_fallthru
        _
      %p9425 = scmp.le.s32.totalorder 2, %s14
      // Predicated region
      $region45: #{model_forward.1} parent=5 // pred_check
        %p9426 = pneg %p9425
      $region46: #{model_forward.1} parent=5 // pred_check_branch
        %9428 = sbr.rel (%p9426) target = $region48
      $region47: #{model_forward.1} parent=5 // pred_region
        %s9429 = ssub.s32 %s14, 2
        // Predicated region
        $region49: #{model_forward.1} parent=47 // pred_check
          %p9430 = pneg %p111
        $region50: #{model_forward.1} parent=47 // pred_check_branch
          %9432 = sbr.rel (%p9430) target = $region52
        $region51: #{model_forward.1} parent=47 // pred_region
          %s9433 = sand.u32 %s96, 1
          %s9434 = scalar_lea.sflag [#allocation3], %s9433
          %s9435 = sand.u32 %s96, 1
          %s9436 = smul.addr %s9435, 512
          %s9437 = scalar_lea.vmem [#allocation7], %s9436
          %9438 = dma.done %s9434, 8192
        $region52: #{model_forward.1} parent=47 // pred_fallthru
          _
      $region48: #{model_forward.1} parent=5 // pred_fallthru
        _
    $region6: #{model_forward.1} parent=1 // loop_footer
      %s18 = sadd.s32 1, %s14
    $region7: #{model_forward.1} parent=1 // loop_footer_branch
      %13 = sbr.rel target = $region3
    $region8: #{model_forward.1} parent=1 // loop_exit
      _
    %9439 = vsyncpa [#allocation3], 1
    %s9440 = scalar_lea.sflag [#allocation3], 1
    %9441 = vsyncpa %s9440, 1
    %9442 = vsyncpa [#allocation4], 1
    %s9443 = scalar_lea.sflag [#allocation4], 1
    %9444 = vsyncpa %s9443, 1
    %9445 = vsyncpa [#allocation6], 1

</llo_original>
